<compile_context>
chip_gen: v7x
topology: tpu7x:2x2x1
jax: 0.10.0
libtpu: 0.0.40
codegen_flags: <defaults>
</compile_context>

<pallas_src>
import jax
import jax.numpy as jnp
from jax.experimental import pallas as pl
from jax.experimental.pallas import tpu as pltpu

THRESH = 1.0   # spiking threshold
DECAY = 1.0    # membrane decay

CFG_CNN = [(1, 32, 1, 1, 3), (32, 32, 1, 1, 3)]   # (in, out, stride, pad, k)
CFG_FC = [128, 10]
CFG_KERNEL = [28, 14, 7]
NPAD_FC2 = 128                                     # lane-dense padding for fc2


# ----------------------------------------------------------------------------
# Pallas kernel 1: fused spiking conv layer (drive + recurrent in ONE matmul)
#   xs = [im2col(x) | im2col(spike)]  (bf16),  w = [W_drive ; 0.1*W_recur] (bf16)
#   mem'   = mem * decay * (1 - spike) + xs @ w + b          (f32 accumulate)
#   spike' = (mem' >= thresh).float()
# ----------------------------------------------------------------------------
def spiking_conv_kernel(xs_ref, w_ref, b_ref, mem_ref, spk_ref,
                        new_mem_ref, new_spk_ref):
    drive = jnp.dot(xs_ref[...], w_ref[...],
                    preferred_element_type=jnp.float32)
    mem = mem_ref[...] * DECAY * (1.0 - spk_ref[...]) + drive + b_ref[...]
    new_mem_ref[...] = mem
    new_spk_ref[...] = (mem >= THRESH).astype(jnp.float32)


def _pick_tm(m, target=1024):
    """Largest M-tile <= target that divides M and is a multiple of 8."""
    if m <= target:
        return m
    for tm in range(target, 7, -1):
        if m % tm == 0 and tm % 8 == 0:
            return tm
    return m


def spiking_conv_update(xs, w, b, mem, spk, tm_target=1024):
    """xs:(M,Kf) bf16, w:(Kf,N) bf16, b:(1,N) f32, mem/spk:(M,N) f32."""
    M, Kf = xs.shape
    N = mem.shape[1]
    TM = _pick_tm(M, tm_target)
    grid = (M // TM,)
    new_mem, new_spk = pl.pallas_call(
        spiking_conv_kernel,
        out_shape=(jax.ShapeDtypeStruct((M, N), jnp.float32),
                   jax.ShapeDtypeStruct((M, N), jnp.float32)),
        grid=grid,
        in_specs=[
            pl.BlockSpec((TM, Kf), lambda i: (i, 0)),     # patch rows (tiled)
            pl.BlockSpec((Kf, N), lambda i: (0, 0)),      # weights (resident)
            pl.BlockSpec((1, N), lambda i: (0, 0)),       # bias (resident)
            pl.BlockSpec((TM, N), lambda i: (i, 0)),      # mem
            pl.BlockSpec((TM, N), lambda i: (i, 0)),      # spike
        ],
        out_specs=(pl.BlockSpec((TM, N), lambda i: (i, 0)),
                   pl.BlockSpec((TM, N), lambda i: (i, 0))),
        input_output_aliases={3: 0, 4: 1},                # in-place mem/spike
        compiler_params=pltpu.CompilerParams(
            dimension_semantics=("parallel",)),
    )(xs, w, b, mem, spk)
    return new_mem, new_spk


# ----------------------------------------------------------------------------
# Pallas kernel 2: fused fc1 + fc2 spiking tail (M = batch, everything in VMEM)
#   recurrent weights are pre-scaled by 0.1 and biases pre-merged; fc2 is
#   padded to 128 output lanes (padded lanes are identically zero / silent).
# ----------------------------------------------------------------------------
def spiking_fc_tail_kernel(xf_ref, h1m_ref, h1s_ref, h2m_ref, h2s_ref,
                           w1_ref, w1r_ref, b1_ref, w2_ref, w2r_ref, b2_ref,
                           nm1_ref, ns1_ref, nm2_ref, ns2_ref):
    h1s = h1s_ref[...]
    d1 = jnp.dot(xf_ref[...], w1_ref[...], preferred_element_type=jnp.float32)
    r1 = jnp.dot(h1s.astype(jnp.bfloat16), w1r_ref[...],
                 preferred_element_type=jnp.float32)
    mem1 = h1m_ref[...] * DECAY * (1.0 - h1s) + d1 + r1 + b1_ref[...]
    spk1 = (mem1 >= THRESH).astype(jnp.float32)
    nm1_ref[...] = mem1
    ns1_ref[...] = spk1

    h2s = h2s_ref[...]
    d2 = jnp.dot(spk1.astype(jnp.bfloat16), w2_ref[...],
                 preferred_element_type=jnp.float32)
    r2 = jnp.dot(h2s.astype(jnp.bfloat16), w2r_ref[...],
                 preferred_element_type=jnp.float32)
    mem2 = h2m_ref[...] * DECAY * (1.0 - h2s) + d2 + r2 + b2_ref[...]
    nm2_ref[...] = mem2
    ns2_ref[...] = (mem2 >= THRESH).astype(jnp.float32)


def spiking_fc_tail(xf, h1m, h1s, h2m, h2s, w1, w1r, b1, w2, w2r, b2):
    B = xf.shape[0]
    N1 = h1m.shape[1]
    N2 = h2m.shape[1]
    vmem = pl.BlockSpec(memory_space=pltpu.MemorySpace.VMEM)
    return pl.pallas_call(
        spiking_fc_tail_kernel,
        out_shape=(jax.ShapeDtypeStruct((B, N1), jnp.float32),
                   jax.ShapeDtypeStruct((B, N1), jnp.float32),
                   jax.ShapeDtypeStruct((B, N2), jnp.float32),
                   jax.ShapeDtypeStruct((B, N2), jnp.float32)),
        in_specs=[vmem] * 11,
        out_specs=(vmem, vmem, vmem, vmem),
        input_output_aliases={1: 0, 2: 1, 3: 2, 4: 3},
    )(xf, h1m, h1s, h2m, h2s, w1, w1r, b1, w2, w2r, b2)


# ----------------------------------------------------------------------------
# Plain-JAX glue: patch extraction (im2col), 2x2 avg-pool
# ----------------------------------------------------------------------------
def im2col_3x3(x_nhwc):
    """3x3 / stride 1 / pad 1 patches -> (B*H*W, 9*C), feature order (ky,kx,c)."""
    B, H, W, C = x_nhwc.shape
    xp = jnp.pad(x_nhwc, ((0, 0), (1, 1), (1, 1), (0, 0)))
    cols = [xp[:, dy:dy + H, dx:dx + W, :] for dy in range(3) for dx in range(3)]
    return jnp.concatenate(cols, axis=-1).reshape(B * H * W, 9 * C)


def avg_pool2(x_nhwc):
    B, H, W, C = x_nhwc.shape
    return x_nhwc.reshape(B, H // 2, 2, W // 2, 2, C).mean(axis=(2, 4))


# ----------------------------------------------------------------------------
# Parameters (deterministic, PyTorch-style uniform(-1/sqrt(fan_in), 1/sqrt(fan_in)))
# ----------------------------------------------------------------------------
def _uinit(key, shape, fan_in):
    bound = float(fan_in) ** -0.5
    return jax.random.uniform(key, shape, jnp.float32, -bound, bound)


def init_params(key):
    ks = jax.random.split(key, 16)
    (cin1, cout1, _, _, K) = CFG_CNN[0]
    (cin2, cout2, _, _, _) = CFG_CNN[1]
    fc_in = CFG_KERNEL[-1] * CFG_KERNEL[-1] * CFG_CNN[-1][1]
    p = {}
    p['w_conv1'] = _uinit(ks[0], (K * K * cin1, cout1), K * K * cin1)
    p['b_conv1'] = _uinit(ks[1], (1, cout1), K * K * cin1)
    p['w_rconv1'] = _uinit(ks[2], (K * K * cout1, cout1), K * K * cout1)
    p['b_rconv1'] = _uinit(ks[3], (1, cout1), K * K * cout1)
    p['w_conv2'] = _uinit(ks[4], (K * K * cin2, cout2), K * K * cin2)
    p['b_conv2'] = _uinit(ks[5], (1, cout2), K * K * cin2)
    p['w_rconv2'] = _uinit(ks[6], (K * K * cout2, cout2), K * K * cout2)
    p['b_rconv2'] = _uinit(ks[7], (1, cout2), K * K * cout2)
    p['w_fc1'] = _uinit(ks[8], (fc_in, CFG_FC[0]), fc_in)
    p['b_fc1'] = _uinit(ks[9], (1, CFG_FC[0]), fc_in)
    p['w_rfc1'] = _uinit(ks[10], (CFG_FC[0], CFG_FC[0]), CFG_FC[0])
    p['b_rfc1'] = _uinit(ks[11], (1, CFG_FC[0]), CFG_FC[0])
    p['w_fc2'] = _uinit(ks[12], (CFG_FC[0], CFG_FC[1]), CFG_FC[0])
    p['b_fc2'] = _uinit(ks[13], (1, CFG_FC[1]), CFG_FC[0])
    p['w_rfc2'] = _uinit(ks[14], (CFG_FC[1], CFG_FC[1]), CFG_FC[1])
    p['b_rfc2'] = _uinit(ks[15], (1, CFG_FC[1]), CFG_FC[1])
    return p


def prepare_params(p):
    """Fold the /10 recurrent scaling + biases, fuse drive/recurrent weights
    along K, cast matmul operands to bf16, pad fc2 to 128 output lanes.
    Done ONCE per forward call, outside the time loop."""
    n2 = CFG_FC[1]
    w2 = jnp.zeros((CFG_FC[0], NPAD_FC2), jnp.float32).at[:, :n2].set(p['w_fc2'])
    w2r = jnp.zeros((NPAD_FC2, NPAD_FC2), jnp.float32).at[:n2, :n2].set(0.1 * p['w_rfc2'])
    b2 = jnp.zeros((1, NPAD_FC2), jnp.float32).at[:, :n2].set(p['b_fc2'] + 0.1 * p['b_rfc2'])
    return {
        'w_c1': jnp.concatenate([p['w_conv1'], 0.1 * p['w_rconv1']],
                                axis=0).astype(jnp.bfloat16),
        'b_c1': p['b_conv1'] + 0.1 * p['b_rconv1'],
        'w_c2': jnp.concatenate([p['w_conv2'], 0.1 * p['w_rconv2']],
                                axis=0).astype(jnp.bfloat16),
        'b_c2': p['b_conv2'] + 0.1 * p['b_rconv2'],
        'w_fc1': p['w_fc1'].astype(jnp.bfloat16),
        'wr_fc1': (0.1 * p['w_rfc1']).astype(jnp.bfloat16),
        'b_fc1': p['b_fc1'] + 0.1 * p['b_rfc1'],
        'w_fc2': w2.astype(jnp.bfloat16),
        'wr_fc2': w2r.astype(jnp.bfloat16),
        'b_fc2': b2,
    }


# ----------------------------------------------------------------------------
# SCNN forward (time loop over the fused Pallas spiking layers)
# ----------------------------------------------------------------------------
def scnn_forward(params, inp_nchw, key, time_window=20):
    B = inp_nchw.shape[0]
    H1, H2, H3 = CFG_KERNEL
    C1, C2 = CFG_CNN[0][1], CFG_CNN[1][1]
    q = prepare_params(params)
    inp = jnp.transpose(inp_nchw, (0, 2, 3, 1))          # (B, 28, 28, 1) NHWC

    c1_mem = jnp.zeros((B * H1 * H1, C1), jnp.float32)
    c1_spk = jnp.zeros((B, H1, H1, C1), jnp.float32)
    c2_mem = jnp.zeros((B * H2 * H2, C2), jnp.float32)
    c2_spk = jnp.zeros((B, H2, H2, C2), jnp.float32)
    h1_mem = jnp.zeros((B, CFG_FC[0]), jnp.float32)
    h1_spk = jnp.zeros((B, CFG_FC[0]), jnp.float32)
    h2_mem = jnp.zeros((B, NPAD_FC2), jnp.float32)
    h2_spk = jnp.zeros((B, NPAD_FC2), jnp.float32)
    h2_sum = jnp.zeros((B, NPAD_FC2), jnp.float32)

    keys = jax.random.split(key, time_window)
    for step in range(time_window):
        # Bernoulli rate-coding of the input: x = input > U[0,1)  (0/1, bf16-exact)
        x = (inp > jax.random.uniform(keys[step], inp.shape)).astype(jnp.bfloat16)

        # --- spiking conv layer 1 (28x28, 1 -> 32), fused drive+recurrent ---
        xs1 = jnp.concatenate(
            [im2col_3x3(x), im2col_3x3(c1_spk.astype(jnp.bfloat16))], axis=-1)
        c1_mem, spk_flat = spiking_conv_update(
            xs1, q['w_c1'], q['b_c1'], c1_mem, c1_spk.reshape(B * H1 * H1, C1))
        c1_spk = spk_flat.reshape(B, H1, H1, C1)
        xp1 = avg_pool2(c1_spk.astype(jnp.bfloat16))      # (B, 14, 14, 32)

        # --- spiking conv layer 2 (14x14, 32 -> 32), fused drive+recurrent ---
        xs2 = jnp.concatenate(
            [im2col_3x3(xp1), im2col_3x3(c2_spk.astype(jnp.bfloat16))], axis=-1)
        c2_mem, spk_flat = spiking_conv_update(
            xs2, q['w_c2'], q['b_c2'], c2_mem, c2_spk.reshape(B * H2 * H2, C2))
        c2_spk = spk_flat.reshape(B, H2, H2, C2)
        xp2 = avg_pool2(c2_spk.astype(jnp.bfloat16))      # (B, 7, 7, 32)

        # flatten exactly like PyTorch's .view on NCHW (channel-major)
        xf = jnp.transpose(xp2, (0, 3, 1, 2)).reshape(B, C2 * H3 * H3)

        # --- fused spiking fc1 (1568 -> 128) + fc2 (128 -> 10, padded to 128) ---
        h1_mem, h1_spk, h2_mem, h2_spk = spiking_fc_tail(
            xf, h1_mem, h1_spk, h2_mem, h2_spk,
            q['w_fc1'], q['wr_fc1'], q['b_fc1'],
            q['w_fc2'], q['wr_fc2'], q['b_fc2'])
        h2_sum = h2_sum + h2_spk

    return h2_sum[:, :CFG_FC[1]] / time_window


if __name__ == "__main__":
    key = jax.random.PRNGKey(0)
    pkey, ikey, skey = jax.random.split(key, 3)

    params = init_params(pkey)
    # small batch, MNIST-like input shape implied by the module (B, 1, 28, 28)
    x = jax.random.uniform(ikey, (2, 1, 28, 28), jnp.float32)

    fwd = jax.jit(scnn_forward, static_argnames=("time_window",))
    out = fwd(params, x, skey, time_window=4)
    out = jax.block_until_ready(out)
    assert out.shape == (2, CFG_FC[1]) and out.dtype == jnp.float32
    print("KERNEL_OK")
</pallas_src>

<mosaic_0001>
module attributes {stable_mosaic.version = 11 : i64} {
  func.func @spiking_conv_kernel(%arg0: i32, %arg1: memref<784x297xbf16, #tpu.memory_space<vmem>>, %arg2: memref<297x32xbf16, #tpu.memory_space<vmem>>, %arg3: memref<1x32xf32, #tpu.memory_space<vmem>>, %arg4: memref<784x32xf32, #tpu.memory_space<vmem>>, %arg5: memref<784x32xf32, #tpu.memory_space<vmem>>, %arg6: memref<784x32xf32, #tpu.memory_space<vmem>>, %arg7: memref<784x32xf32, #tpu.memory_space<vmem>>) attributes {dimension_semantics = [#tpu.dimension_semantics<parallel>], iteration_bounds = array<i64: 2>, scalar_prefetch = 0 : i64, scratch_operands = 0 : i64, tpu.core_type = #tpu.core_type<tc>, window_params = [{transform_indices = @transform_0, window_bounds = array<i64: 784, 297>}, {pipeline_mode = #tpu.pipeline_mode<synchronous>, transform_indices = @transform_1, window_bounds = array<i64: 297, 32>}, {pipeline_mode = #tpu.pipeline_mode<synchronous>, transform_indices = @transform_2, window_bounds = array<i64: 1, 32>}, {transform_indices = @transform_3, window_bounds = array<i64: 784, 32>}, {transform_indices = @transform_4, window_bounds = array<i64: 784, 32>}, {transform_indices = @transform_5, window_bounds = array<i64: 784, 32>}, {transform_indices = @transform_6, window_bounds = array<i64: 784, 32>}]} {
    %c0 = arith.constant 0 : index
    %c0_0 = arith.constant 0 : index
    %0 = vector.load %arg1[%c0, %c0_0] : memref<784x297xbf16, #tpu.memory_space<vmem>>, vector<784x297xbf16>
    %c0_1 = arith.constant 0 : index
    %c0_2 = arith.constant 0 : index
    %1 = vector.load %arg2[%c0_1, %c0_2] : memref<297x32xbf16, #tpu.memory_space<vmem>>, vector<297x32xbf16>
    %cst = arith.constant dense<0.000000e+00> : vector<784x32xf32>
    %2 = tpu.matmul %0, %1, %cst {dimension_numbers = #tpu.dot_dimension_numbers<[1], [0], [0], [1], [0, 0, 1, 1], [], []>} : vector<784x297xbf16>, vector<297x32xbf16>, vector<784x32xf32> -> vector<784x32xf32>
    %c0_3 = arith.constant 0 : index
    %c0_4 = arith.constant 0 : index
    %3 = vector.load %arg4[%c0_3, %c0_4] : memref<784x32xf32, #tpu.memory_space<vmem>>, vector<784x32xf32>
    %cst_5 = arith.constant 1.000000e+00 : f32
    %4 = vector.broadcast %cst_5 : f32 to vector<784x32xf32>
    %5 = arith.mulf %3, %4 : vector<784x32xf32>
    %c0_6 = arith.constant 0 : index
    %c0_7 = arith.constant 0 : index
    %6 = vector.load %arg5[%c0_6, %c0_7] : memref<784x32xf32, #tpu.memory_space<vmem>>, vector<784x32xf32>
    %cst_8 = arith.constant 1.000000e+00 : f32
    %7 = vector.broadcast %cst_8 : f32 to vector<784x32xf32>
    %8 = arith.subf %7, %6 : vector<784x32xf32>
    %9 = arith.mulf %5, %8 : vector<784x32xf32>
    %10 = arith.addf %9, %2 : vector<784x32xf32>
    %c0_9 = arith.constant 0 : index
    %c0_10 = arith.constant 0 : index
    %11 = vector.load %arg3[%c0_9, %c0_10] : memref<1x32xf32, #tpu.memory_space<vmem>>, vector<1x32xf32>
    %12 = vector.broadcast %11 : vector<1x32xf32> to vector<784x32xf32>
    %13 = arith.addf %10, %12 : vector<784x32xf32>
    %c0_11 = arith.constant 0 : index
    %c0_12 = arith.constant 0 : index
    %14 = vector.load %arg6[%c0_11, %c0_12] : memref<784x32xf32, #tpu.memory_space<vmem>>, vector<784x32xf32>
    tpu.vector_store %arg6[%c0_11, %c0_12], %13 {strides = array<i32>} : memref<784x32xf32, #tpu.memory_space<vmem>>, vector<784x32xf32>,
    %cst_13 = arith.constant 1.000000e+00 : f32
    %15 = vector.broadcast %cst_13 : f32 to vector<784x32xf32>
    %16 = arith.cmpf oge, %13, %15 : vector<784x32xf32>
    %17 = arith.extui %16 : vector<784x32xi1> to vector<784x32xi32>
    %18 = arith.sitofp %17 : vector<784x32xi32> to vector<784x32xf32>
    %c0_14 = arith.constant 0 : index
    %c0_15 = arith.constant 0 : index
    %19 = vector.load %arg7[%c0_14, %c0_15] : memref<784x32xf32, #tpu.memory_space<vmem>>, vector<784x32xf32>
    tpu.vector_store %arg7[%c0_14, %c0_15], %18 {strides = array<i32>} : memref<784x32xf32, #tpu.memory_space<vmem>>, vector<784x32xf32>,
    return
  }
  func.func @transform_0(%arg0: i32) -> (i32, i32) {
    %c0_i32 = arith.constant 0 : i32
    %c0_i32_0 = arith.constant 0 : i32
    return %arg0, %c0_i32 : i32, i32
  }
  func.func @transform_1(%arg0: i32) -> (i32, i32) {
    %c0_i32 = arith.constant 0 : i32
    %c0_i32_0 = arith.constant 0 : i32
    %c0_i32_1 = arith.constant 0 : i32
    return %c0_i32, %c0_i32_0 : i32, i32
  }
  func.func @transform_2(%arg0: i32) -> (i32, i32) {
    %c0_i32 = arith.constant 0 : i32
    %c0_i32_0 = arith.constant 0 : i32
    %c0_i32_1 = arith.constant 0 : i32
    return %c0_i32, %c0_i32_0 : i32, i32
  }
  func.func @transform_3(%arg0: i32) -> (i32, i32) {
    %c0_i32 = arith.constant 0 : i32
    %c0_i32_0 = arith.constant 0 : i32
    return %arg0, %c0_i32 : i32, i32
  }
  func.func @transform_4(%arg0: i32) -> (i32, i32) {
    %c0_i32 = arith.constant 0 : i32
    %c0_i32_0 = arith.constant 0 : i32
    return %arg0, %c0_i32 : i32, i32
  }
  func.func @transform_5(%arg0: i32) -> (i32, i32) {
    %c0_i32 = arith.constant 0 : i32
    %c0_i32_0 = arith.constant 0 : i32
    return %arg0, %c0_i32 : i32, i32
  }
  func.func @transform_6(%arg0: i32) -> (i32, i32) {
    %c0_i32 = arith.constant 0 : i32
    %c0_i32_0 = arith.constant 0 : i32
    return %arg0, %c0_i32 : i32, i32
  }
}

module attributes {stable_mosaic.version = 11 : i64} {
  func.func @spiking_conv_kernel(%arg0: i32, %arg1: memref<392x576xbf16, #tpu.memory_space<vmem>>, %arg2: memref<576x32xbf16, #tpu.memory_space<vmem>>, %arg3: memref<1x32xf32, #tpu.memory_space<vmem>>, %arg4: memref<392x32xf32, #tpu.memory_space<vmem>>, %arg5: memref<392x32xf32, #tpu.memory_space<vmem>>, %arg6: memref<392x32xf32, #tpu.memory_space<vmem>>, %arg7: memref<392x32xf32, #tpu.memory_space<vmem>>) attributes {dimension_semantics = [#tpu.dimension_semantics<parallel>], iteration_bounds = array<i64: 1>, scalar_prefetch = 0 : i64, scratch_operands = 0 : i64, tpu.core_type = #tpu.core_type<tc>, window_params = [{transform_indices = @transform_0, window_bounds = array<i64: 392, 576>}, {pipeline_mode = #tpu.pipeline_mode<synchronous>, transform_indices = @transform_1, window_bounds = array<i64: 576, 32>}, {pipeline_mode = #tpu.pipeline_mode<synchronous>, transform_indices = @transform_2, window_bounds = array<i64: 1, 32>}, {transform_indices = @transform_3, window_bounds = array<i64: 392, 32>}, {transform_indices = @transform_4, window_bounds = array<i64: 392, 32>}, {transform_indices = @transform_5, window_bounds = array<i64: 392, 32>}, {transform_indices = @transform_6, window_bounds = array<i64: 392, 32>}]} {
    %c0 = arith.constant 0 : index
    %c0_0 = arith.constant 0 : index
    %0 = vector.load %arg1[%c0, %c0_0] : memref<392x576xbf16, #tpu.memory_space<vmem>>, vector<392x576xbf16>
    %c0_1 = arith.constant 0 : index
    %c0_2 = arith.constant 0 : index
    %1 = vector.load %arg2[%c0_1, %c0_2] : memref<576x32xbf16, #tpu.memory_space<vmem>>, vector<576x32xbf16>
    %cst = arith.constant dense<0.000000e+00> : vector<392x32xf32>
    %2 = tpu.matmul %0, %1, %cst {dimension_numbers = #tpu.dot_dimension_numbers<[1], [0], [0], [1], [0, 0, 1, 1], [], []>} : vector<392x576xbf16>, vector<576x32xbf16>, vector<392x32xf32> -> vector<392x32xf32>
    %c0_3 = arith.constant 0 : index
    %c0_4 = arith.constant 0 : index
    %3 = vector.load %arg4[%c0_3, %c0_4] : memref<392x32xf32, #tpu.memory_space<vmem>>, vector<392x32xf32>
    %cst_5 = arith.constant 1.000000e+00 : f32
    %4 = vector.broadcast %cst_5 : f32 to vector<392x32xf32>
    %5 = arith.mulf %3, %4 : vector<392x32xf32>
    %c0_6 = arith.constant 0 : index
    %c0_7 = arith.constant 0 : index
    %6 = vector.load %arg5[%c0_6, %c0_7] : memref<392x32xf32, #tpu.memory_space<vmem>>, vector<392x32xf32>
    %cst_8 = arith.constant 1.000000e+00 : f32
    %7 = vector.broadcast %cst_8 : f32 to vector<392x32xf32>
    %8 = arith.subf %7, %6 : vector<392x32xf32>
    %9 = arith.mulf %5, %8 : vector<392x32xf32>
    %10 = arith.addf %9, %2 : vector<392x32xf32>
    %c0_9 = arith.constant 0 : index
    %c0_10 = arith.constant 0 : index
    %11 = vector.load %arg3[%c0_9, %c0_10] : memref<1x32xf32, #tpu.memory_space<vmem>>, vector<1x32xf32>
    %12 = vector.broadcast %11 : vector<1x32xf32> to vector<392x32xf32>
    %13 = arith.addf %10, %12 : vector<392x32xf32>
    %c0_11 = arith.constant 0 : index
    %c0_12 = arith.constant 0 : index
    %14 = vector.load %arg6[%c0_11, %c0_12] : memref<392x32xf32, #tpu.memory_space<vmem>>, vector<392x32xf32>
    tpu.vector_store %arg6[%c0_11, %c0_12], %13 {strides = array<i32>} : memref<392x32xf32, #tpu.memory_space<vmem>>, vector<392x32xf32>,
    %cst_13 = arith.constant 1.000000e+00 : f32
    %15 = vector.broadcast %cst_13 : f32 to vector<392x32xf32>
    %16 = arith.cmpf oge, %13, %15 : vector<392x32xf32>
    %17 = arith.extui %16 : vector<392x32xi1> to vector<392x32xi32>
    %18 = arith.sitofp %17 : vector<392x32xi32> to vector<392x32xf32>
    %c0_14 = arith.constant 0 : index
    %c0_15 = arith.constant 0 : index
    %19 = vector.load %arg7[%c0_14, %c0_15] : memref<392x32xf32, #tpu.memory_space<vmem>>, vector<392x32xf32>
    tpu.vector_store %arg7[%c0_14, %c0_15], %18 {strides = array<i32>} : memref<392x32xf32, #tpu.memory_space<vmem>>, vector<392x32xf32>,
    return
  }
  func.func @transform_0(%arg0: i32) -> (i32, i32) {
    %c0_i32 = arith.constant 0 : i32
    %c0_i32_0 = arith.constant 0 : i32
    return %arg0, %c0_i32 : i32, i32
  }
  func.func @transform_1(%arg0: i32) -> (i32, i32) {
    %c0_i32 = arith.constant 0 : i32
    %c0_i32_0 = arith.constant 0 : i32
    %c0_i32_1 = arith.constant 0 : i32
    return %c0_i32, %c0_i32_0 : i32, i32
  }
  func.func @transform_2(%arg0: i32) -> (i32, i32) {
    %c0_i32 = arith.constant 0 : i32
    %c0_i32_0 = arith.constant 0 : i32
    %c0_i32_1 = arith.constant 0 : i32
    return %c0_i32, %c0_i32_0 : i32, i32
  }
  func.func @transform_3(%arg0: i32) -> (i32, i32) {
    %c0_i32 = arith.constant 0 : i32
    %c0_i32_0 = arith.constant 0 : i32
    return %arg0, %c0_i32 : i32, i32
  }
  func.func @transform_4(%arg0: i32) -> (i32, i32) {
    %c0_i32 = arith.constant 0 : i32
    %c0_i32_0 = arith.constant 0 : i32
    return %arg0, %c0_i32 : i32, i32
  }
  func.func @transform_5(%arg0: i32) -> (i32, i32) {
    %c0_i32 = arith.constant 0 : i32
    %c0_i32_0 = arith.constant 0 : i32
    return %arg0, %c0_i32 : i32, i32
  }
  func.func @transform_6(%arg0: i32) -> (i32, i32) {
    %c0_i32 = arith.constant 0 : i32
    %c0_i32_0 = arith.constant 0 : i32
    return %arg0, %c0_i32 : i32, i32
  }
}

module attributes {stable_mosaic.version = 11 : i64} {
  func.func @spiking_fc_tail_kernel(%arg0: memref<2x1568xbf16, #tpu.memory_space<vmem>>, %arg1: memref<2x128xf32, #tpu.memory_space<vmem>>, %arg2: memref<2x128xf32, #tpu.memory_space<vmem>>, %arg3: memref<2x128xf32, #tpu.memory_space<vmem>>, %arg4: memref<2x128xf32, #tpu.memory_space<vmem>>, %arg5: memref<1568x128xbf16, #tpu.memory_space<vmem>>, %arg6: memref<128x128xbf16, #tpu.memory_space<vmem>>, %arg7: memref<1x128xf32, #tpu.memory_space<vmem>>, %arg8: memref<128x128xbf16, #tpu.memory_space<vmem>>, %arg9: memref<128x128xbf16, #tpu.memory_space<vmem>>, %arg10: memref<1x128xf32, #tpu.memory_space<vmem>>, %arg11: memref<2x128xf32, #tpu.memory_space<vmem>>, %arg12: memref<2x128xf32, #tpu.memory_space<vmem>>, %arg13: memref<2x128xf32, #tpu.memory_space<vmem>>, %arg14: memref<2x128xf32, #tpu.memory_space<vmem>>) attributes {dimension_semantics = [], scalar_prefetch = 0 : i64, scratch_operands = 0 : i64, tpu.core_type = #tpu.core_type<tc>} {
    %c0 = arith.constant 0 : index
    %c0_0 = arith.constant 0 : index
    %0 = vector.load %arg2[%c0, %c0_0] : memref<2x128xf32, #tpu.memory_space<vmem>>, vector<2x128xf32>
    %c0_1 = arith.constant 0 : index
    %c0_2 = arith.constant 0 : index
    %1 = vector.load %arg0[%c0_1, %c0_2] : memref<2x1568xbf16, #tpu.memory_space<vmem>>, vector<2x1568xbf16>
    %c0_3 = arith.constant 0 : index
    %c0_4 = arith.constant 0 : index
    %2 = vector.load %arg5[%c0_3, %c0_4] : memref<1568x128xbf16, #tpu.memory_space<vmem>>, vector<1568x128xbf16>
    %cst = arith.constant dense<0.000000e+00> : vector<2x128xf32>
    %3 = tpu.matmul %1, %2, %cst {dimension_numbers = #tpu.dot_dimension_numbers<[1], [0], [0], [1], [0, 0, 1, 1], [], []>} : vector<2x1568xbf16>, vector<1568x128xbf16>, vector<2x128xf32> -> vector<2x128xf32>
    %4 = arith.truncf %0 : vector<2x128xf32> to vector<2x128xbf16>
    %c0_5 = arith.constant 0 : index
    %c0_6 = arith.constant 0 : index
    %5 = vector.load %arg6[%c0_5, %c0_6] : memref<128x128xbf16, #tpu.memory_space<vmem>>, vector<128x128xbf16>
    %cst_7 = arith.constant dense<0.000000e+00> : vector<2x128xf32>
    %6 = tpu.matmul %4, %5, %cst_7 {dimension_numbers = #tpu.dot_dimension_numbers<[1], [0], [0], [1], [0, 0, 1, 1], [], []>} : vector<2x128xbf16>, vector<128x128xbf16>, vector<2x128xf32> -> vector<2x128xf32>
    %c0_8 = arith.constant 0 : index
    %c0_9 = arith.constant 0 : index
    %7 = vector.load %arg1[%c0_8, %c0_9] : memref<2x128xf32, #tpu.memory_space<vmem>>, vector<2x128xf32>
    %cst_10 = arith.constant 1.000000e+00 : f32
    %8 = vector.broadcast %cst_10 : f32 to vector<2x128xf32>
    %9 = arith.mulf %7, %8 : vector<2x128xf32>
    %cst_11 = arith.constant 1.000000e+00 : f32
    %10 = vector.broadcast %cst_11 : f32 to vector<2x128xf32>
    %11 = arith.subf %10, %0 : vector<2x128xf32>
    %12 = arith.mulf %9, %11 : vector<2x128xf32>
    %13 = arith.addf %12, %3 : vector<2x128xf32>
    %14 = arith.addf %13, %6 : vector<2x128xf32>
    %c0_12 = arith.constant 0 : index
    %c0_13 = arith.constant 0 : index
    %15 = vector.load %arg7[%c0_12, %c0_13] : memref<1x128xf32, #tpu.memory_space<vmem>>, vector<1x128xf32>
    %16 = vector.broadcast %15 : vector<1x128xf32> to vector<2x128xf32>
    %17 = arith.addf %14, %16 : vector<2x128xf32>
    %cst_14 = arith.constant 1.000000e+00 : f32
    %18 = vector.broadcast %cst_14 : f32 to vector<2x128xf32>
    %19 = arith.cmpf oge, %17, %18 : vector<2x128xf32>
    %20 = arith.extui %19 : vector<2x128xi1> to vector<2x128xi32>
    %21 = arith.sitofp %20 : vector<2x128xi32> to vector<2x128xf32>
    %c0_15 = arith.constant 0 : index
    %c0_16 = arith.constant 0 : index
    %22 = vector.load %arg11[%c0_15, %c0_16] : memref<2x128xf32, #tpu.memory_space<vmem>>, vector<2x128xf32>
    tpu.vector_store %arg11[%c0_15, %c0_16], %17 {strides = array<i32>} : memref<2x128xf32, #tpu.memory_space<vmem>>, vector<2x128xf32>,
    %c0_17 = arith.constant 0 : index
    %c0_18 = arith.constant 0 : index
    %23 = vector.load %arg12[%c0_17, %c0_18] : memref<2x128xf32, #tpu.memory_space<vmem>>, vector<2x128xf32>
    tpu.vector_store %arg12[%c0_17, %c0_18], %21 {strides = array<i32>} : memref<2x128xf32, #tpu.memory_space<vmem>>, vector<2x128xf32>,
    %c0_19 = arith.constant 0 : index
    %c0_20 = arith.constant 0 : index
    %24 = vector.load %arg4[%c0_19, %c0_20] : memref<2x128xf32, #tpu.memory_space<vmem>>, vector<2x128xf32>
    %25 = arith.truncf %21 : vector<2x128xf32> to vector<2x128xbf16>
    %c0_21 = arith.constant 0 : index
    %c0_22 = arith.constant 0 : index
    %26 = vector.load %arg8[%c0_21, %c0_22] : memref<128x128xbf16, #tpu.memory_space<vmem>>, vector<128x128xbf16>
    %cst_23 = arith.constant dense<0.000000e+00> : vector<2x128xf32>
    %27 = tpu.matmul %25, %26, %cst_23 {dimension_numbers = #tpu.dot_dimension_numbers<[1], [0], [0], [1], [0, 0, 1, 1], [], []>} : vector<2x128xbf16>, vector<128x128xbf16>, vector<2x128xf32> -> vector<2x128xf32>
    %28 = arith.truncf %24 : vector<2x128xf32> to vector<2x128xbf16>
    %c0_24 = arith.constant 0 : index
    %c0_25 = arith.constant 0 : index
    %29 = vector.load %arg9[%c0_24, %c0_25] : memref<128x128xbf16, #tpu.memory_space<vmem>>, vector<128x128xbf16>
    %cst_26 = arith.constant dense<0.000000e+00> : vector<2x128xf32>
    %30 = tpu.matmul %28, %29, %cst_26 {dimension_numbers = #tpu.dot_dimension_numbers<[1], [0], [0], [1], [0, 0, 1, 1], [], []>} : vector<2x128xbf16>, vector<128x128xbf16>, vector<2x128xf32> -> vector<2x128xf32>
    %c0_27 = arith.constant 0 : index
    %c0_28 = arith.constant 0 : index
    %31 = vector.load %arg3[%c0_27, %c0_28] : memref<2x128xf32, #tpu.memory_space<vmem>>, vector<2x128xf32>
    %cst_29 = arith.constant 1.000000e+00 : f32
    %32 = vector.broadcast %cst_29 : f32 to vector<2x128xf32>
    %33 = arith.mulf %31, %32 : vector<2x128xf32>
    %cst_30 = arith.constant 1.000000e+00 : f32
    %34 = vector.broadcast %cst_30 : f32 to vector<2x128xf32>
    %35 = arith.subf %34, %24 : vector<2x128xf32>
    %36 = arith.mulf %33, %35 : vector<2x128xf32>
    %37 = arith.addf %36, %27 : vector<2x128xf32>
    %38 = arith.addf %37, %30 : vector<2x128xf32>
    %c0_31 = arith.constant 0 : index
    %c0_32 = arith.constant 0 : index
    %39 = vector.load %arg10[%c0_31, %c0_32] : memref<1x128xf32, #tpu.memory_space<vmem>>, vector<1x128xf32>
    %40 = vector.broadcast %39 : vector<1x128xf32> to vector<2x128xf32>
    %41 = arith.addf %38, %40 : vector<2x128xf32>
    %c0_33 = arith.constant 0 : index
    %c0_34 = arith.constant 0 : index
    %42 = vector.load %arg13[%c0_33, %c0_34] : memref<2x128xf32, #tpu.memory_space<vmem>>, vector<2x128xf32>
    tpu.vector_store %arg13[%c0_33, %c0_34], %41 {strides = array<i32>} : memref<2x128xf32, #tpu.memory_space<vmem>>, vector<2x128xf32>,
    %cst_35 = arith.constant 1.000000e+00 : f32
    %43 = vector.broadcast %cst_35 : f32 to vector<2x128xf32>
    %44 = arith.cmpf oge, %41, %43 : vector<2x128xf32>
    %45 = arith.extui %44 : vector<2x128xi1> to vector<2x128xi32>
    %46 = arith.sitofp %45 : vector<2x128xi32> to vector<2x128xf32>
    %c0_36 = arith.constant 0 : index
    %c0_37 = arith.constant 0 : index
    %47 = vector.load %arg14[%c0_36, %c0_37] : memref<2x128xf32, #tpu.memory_space<vmem>>, vector<2x128xf32>
    tpu.vector_store %arg14[%c0_36, %c0_37], %46 {strides = array<i32>} : memref<2x128xf32, #tpu.memory_space<vmem>>, vector<2x128xf32>,
    return
  }
}

</mosaic_0001>

<llo_original>
// kernel: scnn_forward.14
$region0: #{scnn_forward.14}
  #allocation0 [shape = 'u32[]', space=smem, size = 0x4, offset = 0x4, fixed_abs, tag = 'smem constant byte address 0x4 - core index']
  #allocation1 [shape = 'u32[144,128]{1,0:T(1,128)}', space=vmem, size = 0x12000, scoped, tag = 'internal scratch']
  %s0 = inlined_call_operand.vmem [shape: bf16[1568,297], index: 0, kind: input, shape index: {}]
  %s1 = inlined_call_operand.vmem [shape: bf16[297,32], index: 1, kind: input, shape index: {}]
  %s2 = inlined_call_operand.vmem [shape: f32[1,32], index: 2, kind: input, shape index: {}]
  %s3 = inlined_call_operand.vmem [shape: f32[1568,32], index: 3, kind: input, shape index: {}, may-alias: {3,5}]
  %s4 = inlined_call_operand.vmem [shape: f32[1568,32], index: 4, kind: input, shape index: {}, may-alias: {4,6}]
  %s5 = inlined_call_operand.vmem [shape: f32[1568,32], index: 5, kind: output, shape index: {0}, may-alias: {3,5}]
  %s6 = inlined_call_operand.vmem [shape: f32[1568,32], index: 6, kind: output, shape index: {1}, may-alias: {4,6}]
  %7 = xla_tuple %s5, %s6
  %s8 = sld [smem:[#allocation0]]
  $region61: #{scnn_forward.14} parent=0
    _
  %s10 = ssub.s32 1, %s8
  %s11 = scalar_select 0, %s10, %s8
  loop: start=0, step=1, limit=4
  $region2: #{scnn_forward.14} parent=0 // loop_pre_header
    _
  $region3: #{scnn_forward.14} parent=0 // loop_header
    %s13 = sphi 0, %s17
    %p14 = scmp.ge.s32.totalorder %s13, 4
    %s23 = sphi 0, %s25
    %s26 = sphi 0, %s23
    %s27 = sphi 0, %s26
    %s43 = sphi 0, %s27
    %s47 = sphi 0, %s47
    %s49 = sphi 0, %s47
    %s50 = sphi 0, %s49
    %s64 = sphi 0, %s50
    %s68 = sphi 0, %s68
    %s70 = sphi 0, %s68
    %s71 = sphi 0, %s70
    %s85 = sphi 0, %s71
    %s91 = sphi 0, %s93
    %s94 = sphi 0, %s91
    %s95 = sphi 0, %s94
    %s111 = sphi 0, %s95
    %s117 = sphi 0, %s119
    %s120 = sphi 0, %s117
    %s121 = sphi 0, %s120
    %s137 = sphi 0, %s121
    %s143 = sphi 0, %s145
    %s146 = sphi 0, %s143
    %s147 = sphi 0, %s146
    %s163 = sphi 0, %s147
    %s169 = sphi 0, %s171
    %s172 = sphi 0, %s169
    %s173 = sphi 0, %s172
    %s189 = sphi 0, %s173
  $region4: #{scnn_forward.14} parent=0 // loop_header_branch
    %16 = sbr.rel (%p14) target = $region8
  $region5: #{scnn_forward.14} parent=0 // loop_body
    %s18 = ssub.s32 %s13, 1
    %s19 = ssub.s32 %s13, 2
    %s20 = sadd.s32 %s13, 1
    %s21 = ssub.s32 %s13, %s20
    %p22 = scmp.eq.s32.totalorder %s21, 0
    %s24 = sadd.s32 %s23, 1
    %s25 = scalar_select %p22, %s23, %s24
    %p28 = pneg %p22
    %p29 = scmp.eq.s32.totalorder %s13, 1
    %p30 = por %p28, %p29
    %p31 = scmp.ne.s32.totalorder %s23, %s26
    %p32 = scmp.eq.s32.totalorder %s13, 0
    %p33 = por %p31, %p32
    %p34 = scmp.ne.s32.totalorder %s23, %s26
    %p35 = scmp.eq.s32.totalorder %s18, 1
    %p36 = por %p34, %p35
    %p37 = scmp.ne.s32.totalorder %s26, %s27
    %p38 = scmp.eq.s32.totalorder %s18, 0
    %p39 = por %p37, %p38
    %p40 = scmp.ne.s32.totalorder %s26, %s27
    %p41 = scmp.eq.s32.totalorder %s19, 1
    %p42 = por %p40, %p41
    %p44 = scmp.ne.s32.totalorder %s27, %s43
    %p45 = scmp.eq.s32.totalorder %s19, 0
    %p46 = por %p44, %p45
    %s48 = sadd.s32 %s47, 1
    %p51 = scmp.eq.s32.totalorder %s13, 1
    %p52 = scmp.ne.s32.totalorder %s47, %s49
    %p53 = scmp.eq.s32.totalorder %s13, 0
    %p54 = por %p52, %p53
    %p55 = scmp.ne.s32.totalorder %s47, %s49
    %p56 = scmp.eq.s32.totalorder %s18, 1
    %p57 = por %p55, %p56
    %p58 = scmp.ne.s32.totalorder %s49, %s50
    %p59 = scmp.eq.s32.totalorder %s18, 0
    %p60 = por %p58, %p59
    %p61 = scmp.ne.s32.totalorder %s49, %s50
    %p62 = scmp.eq.s32.totalorder %s19, 1
    %p63 = por %p61, %p62
    %p65 = scmp.ne.s32.totalorder %s50, %s64
    %p66 = scmp.eq.s32.totalorder %s19, 0
    %p67 = por %p65, %p66
    %s69 = sadd.s32 %s68, 1
    %p72 = scmp.eq.s32.totalorder %s13, 1
    %p73 = scmp.ne.s32.totalorder %s68, %s70
    %p74 = scmp.eq.s32.totalorder %s13, 0
    %p75 = por %p73, %p74
    %p76 = scmp.ne.s32.totalorder %s68, %s70
    %p77 = scmp.eq.s32.totalorder %s18, 1
    %p78 = por %p76, %p77
    %p79 = scmp.ne.s32.totalorder %s70, %s71
    %p80 = scmp.eq.s32.totalorder %s18, 0
    %p81 = por %p79, %p80
    %p82 = scmp.ne.s32.totalorder %s70, %s71
    %p83 = scmp.eq.s32.totalorder %s19, 1
    %p84 = por %p82, %p83
    %p86 = scmp.ne.s32.totalorder %s71, %s85
    %p87 = scmp.eq.s32.totalorder %s19, 0
    %p88 = por %p86, %p87
    %s89 = ssub.s32 %s13, %s20
    %p90 = scmp.eq.s32.totalorder %s89, 0
    %s92 = sadd.s32 %s91, 1
    %s93 = scalar_select %p90, %s91, %s92
    %p96 = pneg %p90
    %p97 = scmp.eq.s32.totalorder %s13, 1
    %p98 = por %p96, %p97
    %p99 = scmp.ne.s32.totalorder %s91, %s94
    %p100 = scmp.eq.s32.totalorder %s13, 0
    %p101 = por %p99, %p100
    %p102 = scmp.ne.s32.totalorder %s91, %s94
    %p103 = scmp.eq.s32.totalorder %s18, 1
    %p104 = por %p102, %p103
    %p105 = scmp.ne.s32.totalorder %s94, %s95
    %p106 = scmp.eq.s32.totalorder %s18, 0
    %p107 = por %p105, %p106
    %p108 = scmp.ne.s32.totalorder %s94, %s95
    %p109 = scmp.eq.s32.totalorder %s19, 1
    %p110 = por %p108, %p109
    %p112 = scmp.ne.s32.totalorder %s95, %s111
    %p113 = scmp.eq.s32.totalorder %s19, 0
    %p114 = por %p112, %p113
    %s115 = ssub.s32 %s13, %s20
    %p116 = scmp.eq.s32.totalorder %s115, 0
    %s118 = sadd.s32 %s117, 1
    %s119 = scalar_select %p116, %s117, %s118
    %p122 = pneg %p116
    %p123 = scmp.eq.s32.totalorder %s13, 1
    %p124 = por %p122, %p123
    %p125 = scmp.ne.s32.totalorder %s117, %s120
    %p126 = scmp.eq.s32.totalorder %s13, 0
    %p127 = por %p125, %p126
    %p128 = scmp.ne.s32.totalorder %s117, %s120
    %p129 = scmp.eq.s32.totalorder %s18, 1
    %p130 = por %p128, %p129
    %p131 = scmp.ne.s32.totalorder %s120, %s121
    %p132 = scmp.eq.s32.totalorder %s18, 0
    %p133 = por %p131, %p132
    %p134 = scmp.ne.s32.totalorder %s120, %s121
    %p135 = scmp.eq.s32.totalorder %s19, 1
    %p136 = por %p134, %p135
    %p138 = scmp.ne.s32.totalorder %s121, %s137
    %p139 = scmp.eq.s32.totalorder %s19, 0
    %p140 = por %p138, %p139
    %s141 = ssub.s32 %s13, %s20
    %p142 = scmp.eq.s32.totalorder %s141, 0
    %s144 = sadd.s32 %s143, 1
    %s145 = scalar_select %p142, %s143, %s144
    %p148 = pneg %p142
    %p149 = scmp.eq.s32.totalorder %s13, 1
    %p150 = por %p148, %p149
    %p151 = scmp.ne.s32.totalorder %s143, %s146
    %p152 = scmp.eq.s32.totalorder %s13, 0
    %p153 = por %p151, %p152
    %p154 = scmp.ne.s32.totalorder %s143, %s146
    %p155 = scmp.eq.s32.totalorder %s18, 1
    %p156 = por %p154, %p155
    %p157 = scmp.ne.s32.totalorder %s146, %s147
    %p158 = scmp.eq.s32.totalorder %s18, 0
    %p159 = por %p157, %p158
    %p160 = scmp.ne.s32.totalorder %s146, %s147
    %p161 = scmp.eq.s32.totalorder %s19, 1
    %p162 = por %p160, %p161
    %p164 = scmp.ne.s32.totalorder %s147, %s163
    %p165 = scmp.eq.s32.totalorder %s19, 0
    %p166 = por %p164, %p165
    %s167 = ssub.s32 %s13, %s20
    %p168 = scmp.eq.s32.totalorder %s167, 0
    %s170 = sadd.s32 %s169, 1
    %s171 = scalar_select %p168, %s169, %s170
    %p174 = pneg %p168
    %p175 = scmp.eq.s32.totalorder %s13, 1
    %p176 = por %p174, %p175
    %p177 = scmp.ne.s32.totalorder %s169, %s172
    %p178 = scmp.eq.s32.totalorder %s13, 0
    %p179 = por %p177, %p178
    %p180 = scmp.ne.s32.totalorder %s169, %s172
    %p181 = scmp.eq.s32.totalorder %s18, 1
    %p182 = por %p180, %p181
    %p183 = scmp.ne.s32.totalorder %s172, %s173
    %p184 = scmp.eq.s32.totalorder %s18, 0
    %p185 = por %p183, %p184
    %p186 = scmp.ne.s32.totalorder %s172, %s173
    %p187 = scmp.eq.s32.totalorder %s19, 1
    %p188 = por %p186, %p187
    %p190 = scmp.ne.s32.totalorder %s173, %s189
    %p191 = scmp.eq.s32.totalorder %s19, 0
    %p192 = por %p190, %p191
    %p193 = scmp.le.s32.totalorder 1, %s13
    %p194 = scmp.lt.s32.totalorder %s13, 3
    %p195 = pnand %p193, %p194
    %p196 = pneg %p195
    // Predicated region
    $region9: #{scnn_forward.14} parent=5 // pred_check
      _
    $region10: #{scnn_forward.14} parent=5 // pred_check_branch
      %198 = sbr.rel (%p195) target = $region12
    $region11: #{scnn_forward.14} parent=5 // pred_region
      %s199 = ssub.s32 %s13, 1
      // Predicated region
      $region13: #{scnn_forward.14} parent=11 // pred_check
        %p200 = pneg %p60
      $region14: #{scnn_forward.14} parent=11 // pred_check_branch
        %202 = sbr.rel (%p200) target = $region16
      $region15: #{scnn_forward.14} parent=11 // pred_region
        _
      $region16: #{scnn_forward.14} parent=11 // pred_fallthru
        _
      // Predicated region
      $region17: #{scnn_forward.14} parent=11 // pred_check
        %p203 = pneg %p81
      $region18: #{scnn_forward.14} parent=11 // pred_check_branch
        %205 = sbr.rel (%p203) target = $region20
      $region19: #{scnn_forward.14} parent=11 // pred_region
        _
      $region20: #{scnn_forward.14} parent=11 // pred_fallthru
        _
    $region12: #{scnn_forward.14} parent=5 // pred_fallthru
      _
    %p206 = scmp.lt.s32.totalorder %s13, 2
    // Predicated region
    $region21: #{scnn_forward.14} parent=5 // pred_check
      %p207 = pneg %p206
    $region22: #{scnn_forward.14} parent=5 // pred_check_branch
      %209 = sbr.rel (%p207) target = $region24
    $region23: #{scnn_forward.14} parent=5 // pred_region
      // Predicated region
      $region25: #{scnn_forward.14} parent=23 // pred_check
        %p210 = pneg %p33
      $region26: #{scnn_forward.14} parent=23 // pred_check_branch
        %212 = sbr.rel (%p210) target = $region28
      $region27: #{scnn_forward.14} parent=23 // pred_region
        %s213 = smul.u32 98, %s13
        %p214 = scmp.lt.s32.totalorder %s213, 195
        %s215 = scalar_select %p214, %s213, 195
        %s216 = smul.addr %s215, 3
        %s217 = smul.addr %s216, 4
        %s218 = scalar_lea.vmem %s0, %s217
        %s219 = smul.u32 98, %s13
      $region28: #{scnn_forward.14} parent=23 // pred_fallthru
        _
      // Predicated region
      $region29: #{scnn_forward.14} parent=23 // pred_check
        %p220 = pneg %p101
      $region30: #{scnn_forward.14} parent=23 // pred_check_branch
        %222 = sbr.rel (%p220) target = $region32
      $region31: #{scnn_forward.14} parent=23 // pred_region
        %s223 = smul.u32 98, %s13
        %p224 = scmp.lt.s32.totalorder %s223, 195
        %s225 = scalar_select %p224, %s223, 195
        %s226 = smul.addr %s225, 8
        %s227 = scalar_lea.vmem %s3, %s226
        %s228 = smul.u32 98, %s13
      $region32: #{scnn_forward.14} parent=23 // pred_fallthru
        _
      // Predicated region
      $region33: #{scnn_forward.14} parent=23 // pred_check
        %p229 = pneg %p127
      $region34: #{scnn_forward.14} parent=23 // pred_check_branch
        %231 = sbr.rel (%p229) target = $region36
      $region35: #{scnn_forward.14} parent=23 // pred_region
        %s232 = smul.u32 98, %s13
        %p233 = scmp.lt.s32.totalorder %s232, 195
        %s234 = scalar_select %p233, %s232, 195
        %s235 = smul.addr %s234, 8
        %s236 = scalar_lea.vmem %s4, %s235
        %s237 = smul.u32 98, %s13
      $region36: #{scnn_forward.14} parent=23 // pred_fallthru
        _
    $region24: #{scnn_forward.14} parent=5 // pred_fallthru
      _
    %p238 = scmp.le.s32.totalorder 1, %s13
    %p239 = scmp.lt.s32.totalorder %s13, 3
    %p240 = pnand %p238, %p239
    %p241 = pneg %p240
    // Predicated region
    $region37: #{scnn_forward.14} parent=5 // pred_check
      _
    $region38: #{scnn_forward.14} parent=5 // pred_check_branch
      %243 = sbr.rel (%p240) target = $region40
    $region39: #{scnn_forward.14} parent=5 // pred_region
      %s244 = ssub.s32 %s13, 1
      %s245 = smul.u32 98, %s18
      %p246 = scmp.lt.s32.totalorder %s245, 195
      %s247 = scalar_select %p246, %s245, 195
      %s248 = smul.addr %s247, 3
      %s249 = smul.addr %s248, 4
      %s250 = scalar_lea.vmem %s0, %s249
      %p251 = pneg %p39
      %p252 = pneg %p36
      %p253 = pneg %p60
      %p254 = pneg %p57
      %p255 = pneg %p81
      %p256 = pneg %p78
      %s257 = smul.u32 98, %s18
      %p258 = scmp.lt.s32.totalorder %s257, 195
      %s259 = scalar_select %p258, %s257, 195
      %s260 = smul.addr %s259, 8
      %s261 = scalar_lea.vmem %s3, %s260
      %p262 = pneg %p107
      %p263 = pneg %p104
      %s264 = smul.u32 98, %s18
      %p265 = scmp.lt.s32.totalorder %s264, 195
      %s266 = scalar_select %p265, %s264, 195
      %s267 = smul.addr %s266, 8
      %s268 = scalar_lea.vmem %s4, %s267
      %p269 = pneg %p133
      %p270 = pneg %p130
      %p271 = pneg %p159
      %p272 = pneg %p156
      %s273 = smul.u32 98, %s18
      %p274 = scmp.lt.s32.totalorder %s273, 195
      %s275 = scalar_select %p274, %s273, 195
      %s276 = smul.addr %s275, 8
      %s277 = scalar_lea.vmem %s5, %s276
      %p278 = pneg %p185
      %p279 = pneg %p182
      %s280 = smul.u32 98, %s18
      %p281 = scmp.lt.s32.totalorder %s280, 195
      %s282 = scalar_select %p281, %s280, 195
      %s283 = smul.addr %s282, 8
      %s284 = scalar_lea.vmem %s6, %s283
      %s285 = smul.u32 98, %s18
      %p286 = scmp.lt.s32.totalorder %s285, 195
      %s287 = scalar_select %p286, %s285, 195
      %s288 = smul.addr %s287, 3
      %s289 = smul.addr %s288, 4
      %s290 = scalar_lea.vmem %s0, %s289
      %s291 = smul.u32 98, %s18
      %s292 = smul.u32 98, %s18
      %p293 = scmp.lt.s32.totalorder %s292, 195
      %s294 = scalar_select %p293, %s292, 195
      %s295 = smul.addr %s294, 8
      %s296 = scalar_lea.vmem %s3, %s295
      %s297 = smul.u32 98, %s18
      %s298 = smul.u32 98, %s18
      %p299 = scmp.lt.s32.totalorder %s298, 195
      %s300 = scalar_select %p299, %s298, 195
      %s301 = smul.addr %s300, 8
      %s302 = scalar_lea.vmem %s4, %s301
      %s303 = smul.u32 98, %s18
      %s304 = smul.u32 98, %s18
      %p305 = scmp.lt.s32.totalorder %s304, 195
      %s306 = scalar_select %p305, %s304, 195
      %s307 = smul.addr %s306, 8
      %s308 = scalar_lea.vmem %s5, %s307
      %s309 = smul.u32 98, %s18
      %s310 = smul.u32 98, %s18
      %p311 = scmp.lt.s32.totalorder %s310, 195
      %s312 = scalar_select %p311, %s310, 195
      %s313 = smul.addr %s312, 8
      %s314 = scalar_lea.vmem %s6, %s313
      %s315 = smul.u32 98, %s18
      %v317 = vld [vmem:[%s290] sm:$0xff]
      %v318 = vld [vmem:[%s290 + $0x8] sm:$0xf]
      %v319 = vld [vmem:[%s290 + $0xc] sm:$0xff]
      %v320 = vld [vmem:[%s290 + $0x14] sm:$0xf]
      %v321 = vld [vmem:[%s290 + $0x18] sm:$0xff]
      %v322 = vld [vmem:[%s290 + $0x20] sm:$0xf]
      %v323 = vld [vmem:[%s290 + $0x24] sm:$0xff]
      %v324 = vld [vmem:[%s290 + $0x2c] sm:$0xf]
      %v325 = vld [vmem:[%s290 + $0x30] sm:$0xff]
      %v326 = vld [vmem:[%s290 + $0x38] sm:$0xf]
      %v327 = vld [vmem:[%s290 + $0x3c] sm:$0xff]
      %v328 = vld [vmem:[%s290 + $0x44] sm:$0xf]
      %v329 = vld [vmem:[%s290 + $0x48] sm:$0xff]
      %v330 = vld [vmem:[%s290 + $0x50] sm:$0xf]
      %v331 = vld [vmem:[%s290 + $0x54] sm:$0xff]
      %v332 = vld [vmem:[%s290 + $0x5c] sm:$0xf]
      %v333 = vld [vmem:[%s290 + $0x60] sm:$0xff]
      %v334 = vld [vmem:[%s290 + $0x68] sm:$0xf]
      %v335 = vld [vmem:[%s290 + $0x6c] sm:$0xff]
      %v336 = vld [vmem:[%s290 + $0x74] sm:$0xf]
      %v337 = vld [vmem:[%s290 + $0x78] sm:$0xff]
      %v338 = vld [vmem:[%s290 + $0x80] sm:$0xf]
      %v339 = vld [vmem:[%s290 + $0x84] sm:$0xff]
      %v340 = vld [vmem:[%s290 + $0x8c] sm:$0xf]
      %v341 = vld [vmem:[%s290 + $0x90] sm:$0xff]
      %v342 = vld [vmem:[%s290 + $0x98] sm:$0xf]
      %v343 = vld [vmem:[%s290 + $0x9c] sm:$0xff]
      %v344 = vld [vmem:[%s290 + $0xa4] sm:$0xf]
      %v345 = vld [vmem:[%s290 + $0xa8] sm:$0xff]
      %v346 = vld [vmem:[%s290 + $0xb0] sm:$0xf]
      %v347 = vld [vmem:[%s290 + $0xb4] sm:$0xff]
      %v348 = vld [vmem:[%s290 + $0xbc] sm:$0xf]
      %v349 = vld [vmem:[%s290 + $0xc0] sm:$0xff]
      %v350 = vld [vmem:[%s290 + $0xc8] sm:$0xf]
      %v351 = vld [vmem:[%s290 + $0xcc] sm:$0xff]
      %v352 = vld [vmem:[%s290 + $0xd4] sm:$0xf]
      %v353 = vld [vmem:[%s290 + $0xd8] sm:$0xff]
      %v354 = vld [vmem:[%s290 + $0xe0] sm:$0xf]
      %v355 = vld [vmem:[%s290 + $0xe4] sm:$0xff]
      %v356 = vld [vmem:[%s290 + $0xec] sm:$0xf]
      %v357 = vld [vmem:[%s290 + $0xf0] sm:$0xff]
      %v358 = vld [vmem:[%s290 + $0xf8] sm:$0xf]
      %v359 = vld [vmem:[%s290 + $0xfc] sm:$0xff]
      %v360 = vld [vmem:[%s290 + $0x104] sm:$0xf]
      %v361 = vld [vmem:[%s290 + $0x108] sm:$0xff]
      %v362 = vld [vmem:[%s290 + $0x110] sm:$0xf]
      %v363 = vld [vmem:[%s290 + $0x114] sm:$0xff]
      %v364 = vld [vmem:[%s290 + $0x11c] sm:$0xf]
      %v365 = vld [vmem:[%s290 + $0x120] sm:$0xff]
      %v366 = vld [vmem:[%s290 + $0x128] sm:$0xf]
      %v367 = vld [vmem:[%s290 + $0x12c] sm:$0xff]
      %v368 = vld [vmem:[%s290 + $0x134] sm:$0xf]
      %v369 = vld [vmem:[%s290 + $0x138] sm:$0xff]
      %v370 = vld [vmem:[%s290 + $0x140] sm:$0xf]
      %v371 = vld [vmem:[%s290 + $0x144] sm:$0xff]
      %v372 = vld [vmem:[%s290 + $0x14c] sm:$0xf]
      %v373 = vld [vmem:[%s290 + $0x150] sm:$0xff]
      %v374 = vld [vmem:[%s290 + $0x158] sm:$0xf]
      %v375 = vld [vmem:[%s290 + $0x15c] sm:$0xff]
      %v376 = vld [vmem:[%s290 + $0x164] sm:$0xf]
      %v377 = vld [vmem:[%s290 + $0x168] sm:$0xff]
      %v378 = vld [vmem:[%s290 + $0x170] sm:$0xf]
      %v379 = vld [vmem:[%s290 + $0x174] sm:$0xff]
      %v380 = vld [vmem:[%s290 + $0x17c] sm:$0xf]
      %v381 = vld [vmem:[%s290 + $0x180] sm:$0xff]
      %v382 = vld [vmem:[%s290 + $0x188] sm:$0xf]
      %v383 = vld [vmem:[%s290 + $0x18c] sm:$0xff]
      %v384 = vld [vmem:[%s290 + $0x194] sm:$0xf]
      %v385 = vld [vmem:[%s290 + $0x198] sm:$0xff]
      %v386 = vld [vmem:[%s290 + $0x1a0] sm:$0xf]
      %v387 = vld [vmem:[%s290 + $0x1a4] sm:$0xff]
      %v388 = vld [vmem:[%s290 + $0x1ac] sm:$0xf]
      %v389 = vld [vmem:[%s290 + $0x1b0] sm:$0xff]
      %v390 = vld [vmem:[%s290 + $0x1b8] sm:$0xf]
      %v391 = vld [vmem:[%s290 + $0x1bc] sm:$0xff]
      %v392 = vld [vmem:[%s290 + $0x1c4] sm:$0xf]
      %v393 = vld [vmem:[%s290 + $0x1c8] sm:$0xff]
      %v394 = vld [vmem:[%s290 + $0x1d0] sm:$0xf]
      %v395 = vld [vmem:[%s290 + $0x1d4] sm:$0xff]
      %v396 = vld [vmem:[%s290 + $0x1dc] sm:$0xf]
      %v397 = vld [vmem:[%s290 + $0x1e0] sm:$0xff]
      %v398 = vld [vmem:[%s290 + $0x1e8] sm:$0xf]
      %v399 = vld [vmem:[%s290 + $0x1ec] sm:$0xff]
      %v400 = vld [vmem:[%s290 + $0x1f4] sm:$0xf]
      %v401 = vld [vmem:[%s290 + $0x1f8] sm:$0xff]
      %v402 = vld [vmem:[%s290 + $0x200] sm:$0xf]
      %v403 = vld [vmem:[%s290 + $0x204] sm:$0xff]
      %v404 = vld [vmem:[%s290 + $0x20c] sm:$0xf]
      %v405 = vld [vmem:[%s290 + $0x210] sm:$0xff]
      %v406 = vld [vmem:[%s290 + $0x218] sm:$0xf]
      %v407 = vld [vmem:[%s290 + $0x21c] sm:$0xff]
      %v408 = vld [vmem:[%s290 + $0x224] sm:$0xf]
      %v409 = vld [vmem:[%s290 + $0x228] sm:$0xff]
      %v410 = vld [vmem:[%s290 + $0x230] sm:$0xf]
      %v411 = vld [vmem:[%s290 + $0x234] sm:$0xff]
      %v412 = vld [vmem:[%s290 + $0x23c] sm:$0xf]
      %v413 = vld [vmem:[%s290 + $0x240] sm:$0xff]
      %v414 = vld [vmem:[%s290 + $0x248] sm:$0xf]
      %v415 = vld [vmem:[%s290 + $0x24c] sm:$0xff]
      %v416 = vld [vmem:[%s290 + $0x254] sm:$0xf]
      %v417 = vld [vmem:[%s290 + $0x258] sm:$0xff]
      %v418 = vld [vmem:[%s290 + $0x260] sm:$0xf]
      %v419 = vld [vmem:[%s290 + $0x264] sm:$0xff]
      %v420 = vld [vmem:[%s290 + $0x26c] sm:$0xf]
      %v421 = vld [vmem:[%s290 + $0x270] sm:$0xff]
      %v422 = vld [vmem:[%s290 + $0x278] sm:$0xf]
      %v423 = vld [vmem:[%s290 + $0x27c] sm:$0xff]
      %v424 = vld [vmem:[%s290 + $0x284] sm:$0xf]
      %v425 = vld [vmem:[%s290 + $0x288] sm:$0xff]
      %v426 = vld [vmem:[%s290 + $0x290] sm:$0xf]
      %v427 = vld [vmem:[%s290 + $0x294] sm:$0xff]
      %v428 = vld [vmem:[%s290 + $0x29c] sm:$0xf]
      %v429 = vld [vmem:[%s290 + $0x2a0] sm:$0xff]
      %v430 = vld [vmem:[%s290 + $0x2a8] sm:$0xf]
      %v431 = vld [vmem:[%s290 + $0x2ac] sm:$0xff]
      %v432 = vld [vmem:[%s290 + $0x2b4] sm:$0xf]
      %v433 = vld [vmem:[%s290 + $0x2b8] sm:$0xff]
      %v434 = vld [vmem:[%s290 + $0x2c0] sm:$0xf]
      %v435 = vld [vmem:[%s290 + $0x2c4] sm:$0xff]
      %v436 = vld [vmem:[%s290 + $0x2cc] sm:$0xf]
      %v437 = vld [vmem:[%s290 + $0x2d0] sm:$0xff]
      %v438 = vld [vmem:[%s290 + $0x2d8] sm:$0xf]
      %v439 = vld [vmem:[%s290 + $0x2dc] sm:$0xff]
      %v440 = vld [vmem:[%s290 + $0x2e4] sm:$0xf]
      %v441 = vld [vmem:[%s290 + $0x2e8] sm:$0xff]
      %v442 = vld [vmem:[%s290 + $0x2f0] sm:$0xf]
      %v443 = vld [vmem:[%s290 + $0x2f4] sm:$0xff]
      %v444 = vld [vmem:[%s290 + $0x2fc] sm:$0xf]
      %v445 = vld [vmem:[%s290 + $0x300] sm:$0xff]
      %v446 = vld [vmem:[%s290 + $0x308] sm:$0xf]
      %v447 = vld [vmem:[%s290 + $0x30c] sm:$0xff]
      %v448 = vld [vmem:[%s290 + $0x314] sm:$0xf]
      %v449 = vld [vmem:[%s290 + $0x318] sm:$0xff]
      %v450 = vld [vmem:[%s290 + $0x320] sm:$0xf]
      %v451 = vld [vmem:[%s290 + $0x324] sm:$0xff]
      %v452 = vld [vmem:[%s290 + $0x32c] sm:$0xf]
      %v453 = vld [vmem:[%s290 + $0x330] sm:$0xff]
      %v454 = vld [vmem:[%s290 + $0x338] sm:$0xf]
      %v455 = vld [vmem:[%s290 + $0x33c] sm:$0xff]
      %v456 = vld [vmem:[%s290 + $0x344] sm:$0xf]
      %v457 = vld [vmem:[%s290 + $0x348] sm:$0xff]
      %v458 = vld [vmem:[%s290 + $0x350] sm:$0xf]
      %v459 = vld [vmem:[%s290 + $0x354] sm:$0xff]
      %v460 = vld [vmem:[%s290 + $0x35c] sm:$0xf]
      %v461 = vld [vmem:[%s290 + $0x360] sm:$0xff]
      %v462 = vld [vmem:[%s290 + $0x368] sm:$0xf]
      %v463 = vld [vmem:[%s290 + $0x36c] sm:$0xff]
      %v464 = vld [vmem:[%s290 + $0x374] sm:$0xf]
      %v465 = vld [vmem:[%s290 + $0x378] sm:$0xff]
      %v466 = vld [vmem:[%s290 + $0x380] sm:$0xf]
      %v467 = vld [vmem:[%s290 + $0x384] sm:$0xff]
      %v468 = vld [vmem:[%s290 + $0x38c] sm:$0xf]
      %v469 = vld [vmem:[%s290 + $0x390] sm:$0xff]
      %v470 = vld [vmem:[%s290 + $0x398] sm:$0xf]
      %v471 = vld [vmem:[%s290 + $0x39c] sm:$0xff]
      %v472 = vld [vmem:[%s290 + $0x3a4] sm:$0xf]
      %v473 = vld [vmem:[%s290 + $0x3a8] sm:$0xff]
      %v474 = vld [vmem:[%s290 + $0x3b0] sm:$0xf]
      %v475 = vld [vmem:[%s290 + $0x3b4] sm:$0xff]
      %v476 = vld [vmem:[%s290 + $0x3bc] sm:$0xf]
      %v477 = vld [vmem:[%s290 + $0x3c0] sm:$0xff]
      %v478 = vld [vmem:[%s290 + $0x3c8] sm:$0xf]
      %v479 = vld [vmem:[%s290 + $0x3cc] sm:$0xff]
      %v480 = vld [vmem:[%s290 + $0x3d4] sm:$0xf]
      %v481 = vld [vmem:[%s290 + $0x3d8] sm:$0xff]
      %v482 = vld [vmem:[%s290 + $0x3e0] sm:$0xf]
      %v483 = vld [vmem:[%s290 + $0x3e4] sm:$0xff]
      %v484 = vld [vmem:[%s290 + $0x3ec] sm:$0xf]
      %v485 = vld [vmem:[%s290 + $0x3f0] sm:$0xff]
      %v486 = vld [vmem:[%s290 + $0x3f8] sm:$0xf]
      %v487 = vld [vmem:[%s290 + $0x3fc] sm:$0xff]
      %v488 = vld [vmem:[%s290 + $0x404] sm:$0xf]
      %v489 = vld [vmem:[%s290 + $0x408] sm:$0xff]
      %v490 = vld [vmem:[%s290 + $0x410] sm:$0xf]
      %v491 = vld [vmem:[%s290 + $0x414] sm:$0xff]
      %v492 = vld [vmem:[%s290 + $0x41c] sm:$0xf]
      %v493 = vld [vmem:[%s290 + $0x420] sm:$0xff]
      %v494 = vld [vmem:[%s290 + $0x428] sm:$0xf]
      %v495 = vld [vmem:[%s290 + $0x42c] sm:$0xff]
      %v496 = vld [vmem:[%s290 + $0x434] sm:$0xf]
      %v497 = vld [vmem:[%s290 + $0x438] sm:$0xff]
      %v498 = vld [vmem:[%s290 + $0x440] sm:$0xf]
      %v499 = vld [vmem:[%s290 + $0x444] sm:$0xff]
      %v500 = vld [vmem:[%s290 + $0x44c] sm:$0xf]
      %v501 = vld [vmem:[%s290 + $0x450] sm:$0xff]
      %v502 = vld [vmem:[%s290 + $0x458] sm:$0xf]
      %v503 = vld [vmem:[%s290 + $0x45c] sm:$0xff]
      %v504 = vld [vmem:[%s290 + $0x464] sm:$0xf]
      %v505 = vld [vmem:[%s290 + $0x468] sm:$0xff]
      %v506 = vld [vmem:[%s290 + $0x470] sm:$0xf]
      %v507 = vld [vmem:[%s290 + $0x474] sm:$0xff]
      %v508 = vld [vmem:[%s290 + $0x47c] sm:$0xf]
      %v509 = vld [vmem:[%s290 + $0x480] sm:$0xff]
      %v510 = vld [vmem:[%s290 + $0x488] sm:$0xf]
      %v511 = vld [vmem:[%s290 + $0x48c] sm:$0xff]
      %v512 = vld [vmem:[%s290 + $0x494] sm:$0xf]
      %v513 = vld [vmem:[%s1] sm:$0xf]
      %v514 = vld [vmem:[%s1 + $0x4] sm:$0xf]
      %v515 = vld [vmem:[%s1 + $0x8] sm:$0xf]
      %v516 = vld [vmem:[%s1 + $0xc] sm:$0xf]
      %v517 = vld [vmem:[%s1 + $0x10] sm:$0xf]
      %v518 = vld [vmem:[%s1 + $0x14] sm:$0xf]
      %v519 = vld [vmem:[%s1 + $0x18] sm:$0xf]
      %v520 = vld [vmem:[%s1 + $0x1c] sm:$0xf]
      %v521 = vld [vmem:[%s1 + $0x20] sm:$0xf]
      %v522 = vld [vmem:[%s1 + $0x24] sm:$0xf]
      %v523 = vld [vmem:[%s1 + $0x28] sm:$0xf]
      %v524 = vld [vmem:[%s1 + $0x2c] sm:$0xf]
      %v525 = vld [vmem:[%s1 + $0x30] sm:$0xf]
      %v526 = vld [vmem:[%s1 + $0x34] sm:$0xf]
      %v527 = vld [vmem:[%s1 + $0x38] sm:$0xf]
      %v528 = vld [vmem:[%s1 + $0x3c] sm:$0xf]
      %v529 = vld [vmem:[%s1 + $0x40] sm:$0xf]
      %v530 = vld [vmem:[%s1 + $0x44] sm:$0xf]
      %v531 = vld [vmem:[%s1 + $0x48] sm:$0xf]
      %v532 = vld [vmem:[%s1 + $0x4c] sm:$0xf]
      %v533 = vld [vmem:[%s1 + $0x50] sm:$0xf]
      %v534 = vld [vmem:[%s1 + $0x54] sm:$0xf]
      %v535 = vld [vmem:[%s1 + $0x58] sm:$0xf]
      %v536 = vld [vmem:[%s1 + $0x5c] sm:$0xf]
      %v537 = vld [vmem:[%s1 + $0x60] sm:$0xf]
      %v538 = vld [vmem:[%s1 + $0x64] sm:$0xf]
      %v539 = vld [vmem:[%s1 + $0x68] sm:$0xf]
      %v540 = vld [vmem:[%s1 + $0x6c] sm:$0xf]
      %v541 = vld [vmem:[%s1 + $0x70] sm:$0xf]
      %v542 = vld [vmem:[%s1 + $0x74] sm:$0xf]
      %v543 = vld [vmem:[%s1 + $0x78] sm:$0xf]
      %v544 = vld [vmem:[%s1 + $0x7c] sm:$0xf]
      %v545 = vld [vmem:[%s1 + $0x80] sm:$0xf]
      %v546 = vld [vmem:[%s1 + $0x84] sm:$0xf]
      %v547 = vld [vmem:[%s1 + $0x88] sm:$0xf]
      %v548 = vld [vmem:[%s1 + $0x8c] sm:$0xf]
      %v549 = vld [vmem:[%s1 + $0x90] sm:$0xf]
      %v550 = vld [vmem:[%s1 + $0x94] sm:$0x1]
      %v747 = vunpack.c.l.b16 %v317
      %v748 = vunpack.c.h.b16 %v317
      %v749 = vunpack.c.l.b16 %v318
      %v750 = vunpack.c.l.b16 %v319
      %v751 = vunpack.c.h.b16 %v319
      %v752 = vunpack.c.l.b16 %v320
      %v753 = vunpack.c.l.b16 %v321
      %v754 = vunpack.c.h.b16 %v321
      %v755 = vunpack.c.l.b16 %v322
      %v756 = vunpack.c.l.b16 %v323
      %v757 = vunpack.c.h.b16 %v323
      %v758 = vunpack.c.l.b16 %v324
      %v759 = vunpack.c.l.b16 %v325
      %v760 = vunpack.c.h.b16 %v325
      %v761 = vunpack.c.l.b16 %v326
      %v762 = vunpack.c.l.b16 %v327
      %v763 = vunpack.c.h.b16 %v327
      %v764 = vunpack.c.l.b16 %v328
      %v765 = vunpack.c.l.b16 %v329
      %v766 = vunpack.c.h.b16 %v329
      %v767 = vunpack.c.l.b16 %v330
      %v768 = vunpack.c.l.b16 %v331
      %v769 = vunpack.c.h.b16 %v331
      %v770 = vunpack.c.l.b16 %v332
      %v771 = vunpack.c.l.b16 %v333
      %v772 = vunpack.c.h.b16 %v333
      %v773 = vunpack.c.l.b16 %v334
      %v774 = vunpack.c.l.b16 %v335
      %v775 = vunpack.c.h.b16 %v335
      %v776 = vunpack.c.l.b16 %v336
      %v777 = vunpack.c.l.b16 %v337
      %v778 = vunpack.c.h.b16 %v337
      %v779 = vunpack.c.l.b16 %v338
      %v780 = vunpack.c.l.b16 %v339
      %v781 = vunpack.c.h.b16 %v339
      %v782 = vunpack.c.l.b16 %v340
      %v783 = vunpack.c.l.b16 %v341
      %v784 = vunpack.c.h.b16 %v341
      %v785 = vunpack.c.l.b16 %v342
      %v786 = vunpack.c.l.b16 %v343
      %v787 = vunpack.c.h.b16 %v343
      %v788 = vunpack.c.l.b16 %v344
      %v789 = vunpack.c.l.b16 %v345
      %v790 = vunpack.c.h.b16 %v345
      %v791 = vunpack.c.l.b16 %v346
      %v792 = vunpack.c.l.b16 %v347
      %v793 = vunpack.c.h.b16 %v347
      %v794 = vunpack.c.l.b16 %v348
      %v795 = vunpack.c.l.b16 %v349
      %v796 = vunpack.c.h.b16 %v349
      %v797 = vunpack.c.l.b16 %v350
      %v798 = vunpack.c.l.b16 %v351
      %v799 = vunpack.c.h.b16 %v351
      %v800 = vunpack.c.l.b16 %v352
      %v801 = vunpack.c.l.b16 %v353
      %v802 = vunpack.c.h.b16 %v353
      %v803 = vunpack.c.l.b16 %v354
      %v804 = vunpack.c.l.b16 %v355
      %v805 = vunpack.c.h.b16 %v355
      %v806 = vunpack.c.l.b16 %v356
      %v807 = vunpack.c.l.b16 %v357
      %v808 = vunpack.c.h.b16 %v357
      %v809 = vunpack.c.l.b16 %v358
      %v810 = vunpack.c.l.b16 %v359
      %v811 = vunpack.c.h.b16 %v359
      %v812 = vunpack.c.l.b16 %v360
      %v813 = vunpack.c.l.b16 %v361
      %v814 = vunpack.c.h.b16 %v361
      %v815 = vunpack.c.l.b16 %v362
      %v816 = vunpack.c.l.b16 %v363
      %v817 = vunpack.c.h.b16 %v363
      %v818 = vunpack.c.l.b16 %v364
      %v819 = vunpack.c.l.b16 %v365
      %v820 = vunpack.c.h.b16 %v365
      %v821 = vunpack.c.l.b16 %v366
      %v822 = vunpack.c.l.b16 %v367
      %v823 = vunpack.c.h.b16 %v367
      %v824 = vunpack.c.l.b16 %v368
      %v825 = vunpack.c.l.b16 %v369
      %v826 = vunpack.c.h.b16 %v369
      %v827 = vunpack.c.l.b16 %v370
      %v828 = vunpack.c.l.b16 %v371
      %v829 = vunpack.c.h.b16 %v371
      %v830 = vunpack.c.l.b16 %v372
      %v831 = vunpack.c.l.b16 %v373
      %v832 = vunpack.c.h.b16 %v373
      %v833 = vunpack.c.l.b16 %v374
      %v834 = vunpack.c.l.b16 %v375
      %v835 = vunpack.c.h.b16 %v375
      %v836 = vunpack.c.l.b16 %v376
      %v837 = vunpack.c.l.b16 %v377
      %v838 = vunpack.c.h.b16 %v377
      %v839 = vunpack.c.l.b16 %v378
      %v840 = vunpack.c.l.b16 %v379
      %v841 = vunpack.c.h.b16 %v379
      %v842 = vunpack.c.l.b16 %v380
      %v843 = vunpack.c.l.b16 %v381
      %v844 = vunpack.c.h.b16 %v381
      %v845 = vunpack.c.l.b16 %v382
      %v846 = vunpack.c.l.b16 %v383
      %v847 = vunpack.c.h.b16 %v383
      %v848 = vunpack.c.l.b16 %v384
      %v849 = vunpack.c.l.b16 %v385
      %v850 = vunpack.c.h.b16 %v385
      %v851 = vunpack.c.l.b16 %v386
      %v852 = vunpack.c.l.b16 %v387
      %v853 = vunpack.c.h.b16 %v387
      %v854 = vunpack.c.l.b16 %v388
      %v855 = vunpack.c.l.b16 %v389
      %v856 = vunpack.c.h.b16 %v389
      %v857 = vunpack.c.l.b16 %v390
      %v858 = vunpack.c.l.b16 %v391
      %v859 = vunpack.c.h.b16 %v391
      %v860 = vunpack.c.l.b16 %v392
      %v861 = vunpack.c.l.b16 %v393
      %v862 = vunpack.c.h.b16 %v393
      %v863 = vunpack.c.l.b16 %v394
      %v864 = vunpack.c.l.b16 %v395
      %v865 = vunpack.c.h.b16 %v395
      %v866 = vunpack.c.l.b16 %v396
      %v867 = vunpack.c.l.b16 %v397
      %v868 = vunpack.c.h.b16 %v397
      %v869 = vunpack.c.l.b16 %v398
      %v870 = vunpack.c.l.b16 %v399
      %v871 = vunpack.c.h.b16 %v399
      %v872 = vunpack.c.l.b16 %v400
      %v873 = vunpack.c.l.b16 %v401
      %v874 = vunpack.c.h.b16 %v401
      %v875 = vunpack.c.l.b16 %v402
      %v876 = vunpack.c.l.b16 %v403
      %v877 = vunpack.c.h.b16 %v403
      %v878 = vunpack.c.l.b16 %v404
      %v879 = vunpack.c.l.b16 %v405
      %v880 = vunpack.c.h.b16 %v405
      %v881 = vunpack.c.l.b16 %v406
      %v882 = vunpack.c.l.b16 %v407
      %v883 = vunpack.c.h.b16 %v407
      %v884 = vunpack.c.l.b16 %v408
      %v885 = vunpack.c.l.b16 %v409
      %v886 = vunpack.c.h.b16 %v409
      %v887 = vunpack.c.l.b16 %v410
      %v888 = vunpack.c.l.b16 %v411
      %v889 = vunpack.c.h.b16 %v411
      %v890 = vunpack.c.l.b16 %v412
      %v891 = vunpack.c.l.b16 %v413
      %v892 = vunpack.c.h.b16 %v413
      %v893 = vunpack.c.l.b16 %v414
      %v894 = vunpack.c.l.b16 %v415
      %v895 = vunpack.c.h.b16 %v415
      %v896 = vunpack.c.l.b16 %v416
      %v897 = vunpack.c.l.b16 %v417
      %v898 = vunpack.c.h.b16 %v417
      %v899 = vunpack.c.l.b16 %v418
      %v900 = vunpack.c.l.b16 %v419
      %v901 = vunpack.c.h.b16 %v419
      %v902 = vunpack.c.l.b16 %v420
      %v903 = vunpack.c.l.b16 %v421
      %v904 = vunpack.c.h.b16 %v421
      %v905 = vunpack.c.l.b16 %v422
      %v906 = vunpack.c.l.b16 %v423
      %v907 = vunpack.c.h.b16 %v423
      %v908 = vunpack.c.l.b16 %v424
      %v909 = vunpack.c.l.b16 %v425
      %v910 = vunpack.c.h.b16 %v425
      %v911 = vunpack.c.l.b16 %v426
      %v912 = vunpack.c.l.b16 %v427
      %v913 = vunpack.c.h.b16 %v427
      %v914 = vunpack.c.l.b16 %v428
      %v915 = vunpack.c.l.b16 %v429
      %v916 = vunpack.c.h.b16 %v429
      %v917 = vunpack.c.l.b16 %v430
      %v918 = vunpack.c.l.b16 %v431
      %v919 = vunpack.c.h.b16 %v431
      %v920 = vunpack.c.l.b16 %v432
      %v921 = vunpack.c.l.b16 %v433
      %v922 = vunpack.c.h.b16 %v433
      %v923 = vunpack.c.l.b16 %v434
      %v924 = vunpack.c.l.b16 %v435
      %v925 = vunpack.c.h.b16 %v435
      %v926 = vunpack.c.l.b16 %v436
      %v927 = vunpack.c.l.b16 %v437
      %v928 = vunpack.c.h.b16 %v437
      %v929 = vunpack.c.l.b16 %v438
      %v930 = vunpack.c.l.b16 %v439
      %v931 = vunpack.c.h.b16 %v439
      %v932 = vunpack.c.l.b16 %v440
      %v933 = vunpack.c.l.b16 %v441
      %v934 = vunpack.c.h.b16 %v441
      %v935 = vunpack.c.l.b16 %v442
      %v936 = vunpack.c.l.b16 %v443
      %v937 = vunpack.c.h.b16 %v443
      %v938 = vunpack.c.l.b16 %v444
      %v939 = vunpack.c.l.b16 %v445
      %v940 = vunpack.c.h.b16 %v445
      %v941 = vunpack.c.l.b16 %v446
      %v942 = vunpack.c.l.b16 %v447
      %v943 = vunpack.c.h.b16 %v447
      %v944 = vunpack.c.l.b16 %v448
      %v945 = vunpack.c.l.b16 %v449
      %v946 = vunpack.c.h.b16 %v449
      %v947 = vunpack.c.l.b16 %v450
      %v948 = vunpack.c.l.b16 %v451
      %v949 = vunpack.c.h.b16 %v451
      %v950 = vunpack.c.l.b16 %v452
      %v951 = vunpack.c.l.b16 %v453
      %v952 = vunpack.c.h.b16 %v453
      %v953 = vunpack.c.l.b16 %v454
      %v954 = vunpack.c.l.b16 %v455
      %v955 = vunpack.c.h.b16 %v455
      %v956 = vunpack.c.l.b16 %v456
      %v957 = vunpack.c.l.b16 %v457
      %v958 = vunpack.c.h.b16 %v457
      %v959 = vunpack.c.l.b16 %v458
      %v960 = vunpack.c.l.b16 %v459
      %v961 = vunpack.c.h.b16 %v459
      %v962 = vunpack.c.l.b16 %v460
      %v963 = vunpack.c.l.b16 %v461
      %v964 = vunpack.c.h.b16 %v461
      %v965 = vunpack.c.l.b16 %v462
      %v966 = vunpack.c.l.b16 %v463
      %v967 = vunpack.c.h.b16 %v463
      %v968 = vunpack.c.l.b16 %v464
      %v969 = vunpack.c.l.b16 %v465
      %v970 = vunpack.c.h.b16 %v465
      %v971 = vunpack.c.l.b16 %v466
      %v972 = vunpack.c.l.b16 %v467
      %v973 = vunpack.c.h.b16 %v467
      %v974 = vunpack.c.l.b16 %v468
      %v975 = vunpack.c.l.b16 %v469
      %v976 = vunpack.c.h.b16 %v469
      %v977 = vunpack.c.l.b16 %v470
      %v978 = vunpack.c.l.b16 %v471
      %v979 = vunpack.c.h.b16 %v471
      %v980 = vunpack.c.l.b16 %v472
      %v981 = vunpack.c.l.b16 %v473
      %v982 = vunpack.c.h.b16 %v473
      %v983 = vunpack.c.l.b16 %v474
      %v984 = vunpack.c.l.b16 %v475
      %v985 = vunpack.c.h.b16 %v475
      %v986 = vunpack.c.l.b16 %v476
      %v987 = vunpack.c.l.b16 %v477
      %v988 = vunpack.c.h.b16 %v477
      %v989 = vunpack.c.l.b16 %v478
      %v990 = vunpack.c.l.b16 %v479
      %v991 = vunpack.c.h.b16 %v479
      %v992 = vunpack.c.l.b16 %v480
      %v993 = vunpack.c.l.b16 %v481
      %v994 = vunpack.c.h.b16 %v481
      %v995 = vunpack.c.l.b16 %v482
      %v996 = vunpack.c.l.b16 %v483
      %v997 = vunpack.c.h.b16 %v483
      %v998 = vunpack.c.l.b16 %v484
      %v999 = vunpack.c.l.b16 %v485
      %v1000 = vunpack.c.h.b16 %v485
      %v1001 = vunpack.c.l.b16 %v486
      %v1002 = vunpack.c.l.b16 %v487
      %v1003 = vunpack.c.h.b16 %v487
      %v1004 = vunpack.c.l.b16 %v488
      %v1005 = vunpack.c.l.b16 %v489
      %v1006 = vunpack.c.h.b16 %v489
      %v1007 = vunpack.c.l.b16 %v490
      %v1008 = vunpack.c.l.b16 %v491
      %v1009 = vunpack.c.h.b16 %v491
      %v1010 = vunpack.c.l.b16 %v492
      %v1011 = vunpack.c.l.b16 %v493
      %v1012 = vunpack.c.h.b16 %v493
      %v1013 = vunpack.c.l.b16 %v494
      %v1014 = vunpack.c.l.b16 %v495
      %v1015 = vunpack.c.h.b16 %v495
      %v1016 = vunpack.c.l.b16 %v496
      %v1017 = vunpack.c.l.b16 %v497
      %v1018 = vunpack.c.h.b16 %v497
      %v1019 = vunpack.c.l.b16 %v498
      %v1020 = vunpack.c.l.b16 %v499
      %v1021 = vunpack.c.h.b16 %v499
      %v1022 = vunpack.c.l.b16 %v500
      %v1023 = vunpack.c.l.b16 %v501
      %v1024 = vunpack.c.h.b16 %v501
      %v1025 = vunpack.c.l.b16 %v502
      %v1026 = vunpack.c.l.b16 %v503
      %v1027 = vunpack.c.h.b16 %v503
      %v1028 = vunpack.c.l.b16 %v504
      %v1029 = vunpack.c.l.b16 %v505
      %v1030 = vunpack.c.h.b16 %v505
      %v1031 = vunpack.c.l.b16 %v506
      %v1032 = vunpack.c.l.b16 %v507
      %v1033 = vunpack.c.h.b16 %v507
      %v1034 = vunpack.c.l.b16 %v508
      %v1035 = vunpack.c.l.b16 %v509
      %v1036 = vunpack.c.h.b16 %v509
      %v1037 = vunpack.c.l.b16 %v510
      %v1038 = vunpack.c.l.b16 %v511
      %v1039 = vunpack.c.h.b16 %v511
      %v1040 = vunpack.c.l.b16 %v512
      %v1041 = vpack.c.b16 %v750, %v747
      %v1042 = vpack.c.b16 %v751, %v748
      %v1043 = vpack.c.b16 %v752, %v749
      %v1044 = vpack.c.b16 %v756, %v753
      %v1045 = vpack.c.b16 %v757, %v754
      %v1046 = vpack.c.b16 %v758, %v755
      %v1047 = vpack.c.b16 %v762, %v759
      %v1048 = vpack.c.b16 %v763, %v760
      %v1049 = vpack.c.b16 %v764, %v761
      %v1050 = vpack.c.b16 %v768, %v765
      %v1051 = vpack.c.b16 %v769, %v766
      %v1052 = vpack.c.b16 %v770, %v767
      %v1053 = vpack.c.b16 %v774, %v771
      %v1054 = vpack.c.b16 %v775, %v772
      %v1055 = vpack.c.b16 %v776, %v773
      %v1056 = vpack.c.b16 %v780, %v777
      %v1057 = vpack.c.b16 %v781, %v778
      %v1058 = vpack.c.b16 %v782, %v779
      %v1059 = vpack.c.b16 %v786, %v783
      %v1060 = vpack.c.b16 %v787, %v784
      %v1061 = vpack.c.b16 %v788, %v785
      %v1062 = vpack.c.b16 %v792, %v789
      %v1063 = vpack.c.b16 %v793, %v790
      %v1064 = vpack.c.b16 %v794, %v791
      %v1065 = vpack.c.b16 %v798, %v795
      %v1066 = vpack.c.b16 %v799, %v796
      %v1067 = vpack.c.b16 %v800, %v797
      %v1068 = vpack.c.b16 %v804, %v801
      %v1069 = vpack.c.b16 %v805, %v802
      %v1070 = vpack.c.b16 %v806, %v803
      %v1071 = vpack.c.b16 %v810, %v807
      %v1072 = vpack.c.b16 %v811, %v808
      %v1073 = vpack.c.b16 %v812, %v809
      %v1074 = vpack.c.b16 %v816, %v813
      %v1075 = vpack.c.b16 %v817, %v814
      %v1076 = vpack.c.b16 %v818, %v815
      %v1077 = vpack.c.b16 %v822, %v819
      %v1078 = vpack.c.b16 %v823, %v820
      %v1079 = vpack.c.b16 %v824, %v821
      %v1080 = vpack.c.b16 %v828, %v825
      %v1081 = vpack.c.b16 %v829, %v826
      %v1082 = vpack.c.b16 %v830, %v827
      %v1083 = vpack.c.b16 %v834, %v831
      %v1084 = vpack.c.b16 %v835, %v832
      %v1085 = vpack.c.b16 %v836, %v833
      %v1086 = vpack.c.b16 %v840, %v837
      %v1087 = vpack.c.b16 %v841, %v838
      %v1088 = vpack.c.b16 %v842, %v839
      %v1089 = vpack.c.b16 %v846, %v843
      %v1090 = vpack.c.b16 %v847, %v844
      %v1091 = vpack.c.b16 %v848, %v845
      %v1092 = vpack.c.b16 %v852, %v849
      %v1093 = vpack.c.b16 %v853, %v850
      %v1094 = vpack.c.b16 %v854, %v851
      %v1095 = vpack.c.b16 %v858, %v855
      %v1096 = vpack.c.b16 %v859, %v856
      %v1097 = vpack.c.b16 %v860, %v857
      %v1098 = vpack.c.b16 %v864, %v861
      %v1099 = vpack.c.b16 %v865, %v862
      %v1100 = vpack.c.b16 %v866, %v863
      %v1101 = vpack.c.b16 %v870, %v867
      %v1102 = vpack.c.b16 %v871, %v868
      %v1103 = vpack.c.b16 %v872, %v869
      %v1104 = vpack.c.b16 %v876, %v873
      %v1105 = vpack.c.b16 %v877, %v874
      %v1106 = vpack.c.b16 %v878, %v875
      %v1107 = vpack.c.b16 %v882, %v879
      %v1108 = vpack.c.b16 %v883, %v880
      %v1109 = vpack.c.b16 %v884, %v881
      %v1110 = vpack.c.b16 %v888, %v885
      %v1111 = vpack.c.b16 %v889, %v886
      %v1112 = vpack.c.b16 %v890, %v887
      %v1113 = vpack.c.b16 %v894, %v891
      %v1114 = vpack.c.b16 %v895, %v892
      %v1115 = vpack.c.b16 %v896, %v893
      %v1116 = vpack.c.b16 %v900, %v897
      %v1117 = vpack.c.b16 %v901, %v898
      %v1118 = vpack.c.b16 %v902, %v899
      %v1119 = vpack.c.b16 %v906, %v903
      %v1120 = vpack.c.b16 %v907, %v904
      %v1121 = vpack.c.b16 %v908, %v905
      %v1122 = vpack.c.b16 %v912, %v909
      %v1123 = vpack.c.b16 %v913, %v910
      %v1124 = vpack.c.b16 %v914, %v911
      %v1125 = vpack.c.b16 %v918, %v915
      %v1126 = vpack.c.b16 %v919, %v916
      %v1127 = vpack.c.b16 %v920, %v917
      %v1128 = vpack.c.b16 %v924, %v921
      %v1129 = vpack.c.b16 %v925, %v922
      %v1130 = vpack.c.b16 %v926, %v923
      %v1131 = vpack.c.b16 %v930, %v927
      %v1132 = vpack.c.b16 %v931, %v928
      %v1133 = vpack.c.b16 %v932, %v929
      %v1134 = vpack.c.b16 %v936, %v933
      %v1135 = vpack.c.b16 %v937, %v934
      %v1136 = vpack.c.b16 %v938, %v935
      %v1137 = vpack.c.b16 %v942, %v939
      %v1138 = vpack.c.b16 %v943, %v940
      %v1139 = vpack.c.b16 %v944, %v941
      %v1140 = vpack.c.b16 %v948, %v945
      %v1141 = vpack.c.b16 %v949, %v946
      %v1142 = vpack.c.b16 %v950, %v947
      %v1143 = vpack.c.b16 %v954, %v951
      %v1144 = vpack.c.b16 %v955, %v952
      %v1145 = vpack.c.b16 %v956, %v953
      %v1146 = vpack.c.b16 %v960, %v957
      %v1147 = vpack.c.b16 %v961, %v958
      %v1148 = vpack.c.b16 %v962, %v959
      %v1149 = vpack.c.b16 %v966, %v963
      %v1150 = vpack.c.b16 %v967, %v964
      %v1151 = vpack.c.b16 %v968, %v965
      %v1152 = vpack.c.b16 %v972, %v969
      %v1153 = vpack.c.b16 %v973, %v970
      %v1154 = vpack.c.b16 %v974, %v971
      %v1155 = vpack.c.b16 %v978, %v975
      %v1156 = vpack.c.b16 %v979, %v976
      %v1157 = vpack.c.b16 %v980, %v977
      %v1158 = vpack.c.b16 %v984, %v981
      %v1159 = vpack.c.b16 %v985, %v982
      %v1160 = vpack.c.b16 %v986, %v983
      %v1161 = vpack.c.b16 %v990, %v987
      %v1162 = vpack.c.b16 %v991, %v988
      %v1163 = vpack.c.b16 %v992, %v989
      %v1164 = vpack.c.b16 %v996, %v993
      %v1165 = vpack.c.b16 %v997, %v994
      %v1166 = vpack.c.b16 %v998, %v995
      %v1167 = vpack.c.b16 %v1002, %v999
      %v1168 = vpack.c.b16 %v1003, %v1000
      %v1169 = vpack.c.b16 %v1004, %v1001
      %v1170 = vpack.c.b16 %v1008, %v1005
      %v1171 = vpack.c.b16 %v1009, %v1006
      %v1172 = vpack.c.b16 %v1010, %v1007
      %v1173 = vpack.c.b16 %v1014, %v1011
      %v1174 = vpack.c.b16 %v1015, %v1012
      %v1175 = vpack.c.b16 %v1016, %v1013
      %v1176 = vpack.c.b16 %v1020, %v1017
      %v1177 = vpack.c.b16 %v1021, %v1018
      %v1178 = vpack.c.b16 %v1022, %v1019
      %v1179 = vpack.c.b16 %v1026, %v1023
      %v1180 = vpack.c.b16 %v1027, %v1024
      %v1181 = vpack.c.b16 %v1028, %v1025
      %v1182 = vpack.c.b16 %v1032, %v1029
      %v1183 = vpack.c.b16 %v1033, %v1030
      %v1184 = vpack.c.b16 %v1034, %v1031
      %v1185 = vpack.c.b16 %v1038, %v1035
      %v1186 = vpack.c.b16 %v1039, %v1036
      %v1187 = vpack.c.b16 %v1040, %v1037
      %v1324 = vunpack.c.l.b16 %v513
      %v1325 = vunpack.c.l.b16 %v514
      %v1326 = vunpack.c.l.b16 %v515
      %v1327 = vunpack.c.l.b16 %v516
      %v1328 = vunpack.c.l.b16 %v517
      %v1329 = vunpack.c.l.b16 %v518
      %v1330 = vunpack.c.l.b16 %v519
      %v1331 = vunpack.c.l.b16 %v520
      %v1332 = vunpack.c.l.b16 %v521
      %v1333 = vunpack.c.l.b16 %v522
      %v1334 = vunpack.c.l.b16 %v523
      %v1335 = vunpack.c.l.b16 %v524
      %v1336 = vunpack.c.l.b16 %v525
      %v1337 = vunpack.c.l.b16 %v526
      %v1338 = vunpack.c.l.b16 %v527
      %v1339 = vunpack.c.l.b16 %v528
      %v1340 = vunpack.c.l.b16 %v529
      %v1341 = vunpack.c.l.b16 %v530
      %v1342 = vunpack.c.l.b16 %v531
      %v1343 = vunpack.c.l.b16 %v532
      %v1344 = vunpack.c.l.b16 %v533
      %v1345 = vunpack.c.l.b16 %v534
      %v1346 = vunpack.c.l.b16 %v535
      %v1347 = vunpack.c.l.b16 %v536
      %v1348 = vunpack.c.l.b16 %v537
      %v1349 = vunpack.c.l.b16 %v538
      %v1350 = vunpack.c.l.b16 %v539
      %v1351 = vunpack.c.l.b16 %v540
      %v1352 = vunpack.c.l.b16 %v541
      %v1353 = vunpack.c.l.b16 %v542
      %v1354 = vunpack.c.l.b16 %v543
      %v1355 = vunpack.c.l.b16 %v544
      %v1356 = vunpack.c.l.b16 %v545
      %v1357 = vunpack.c.l.b16 %v546
      %v1358 = vunpack.c.l.b16 %v547
      %v1359 = vunpack.c.l.b16 %v548
      %v1360 = vunpack.c.l.b16 %v549
      %v1361 = vunpack.c.l.b16 %v550
      %v1362 = vpack.c.b16 %v1325, %v1324
      %v1363 = vpack.c.b16 %v1327, %v1326
      %v1364 = vpack.c.b16 %v1329, %v1328
      %v1365 = vpack.c.b16 %v1331, %v1330
      %v1366 = vpack.c.b16 %v1333, %v1332
      %v1367 = vpack.c.b16 %v1335, %v1334
      %v1368 = vpack.c.b16 %v1337, %v1336
      %v1369 = vpack.c.b16 %v1339, %v1338
      %v1370 = vpack.c.b16 %v1341, %v1340
      %v1371 = vpack.c.b16 %v1343, %v1342
      %v1372 = vpack.c.b16 %v1345, %v1344
      %v1373 = vpack.c.b16 %v1347, %v1346
      %v1374 = vpack.c.b16 %v1349, %v1348
      %v1375 = vpack.c.b16 %v1351, %v1350
      %v1376 = vpack.c.b16 %v1353, %v1352
      %v1377 = vpack.c.b16 %v1355, %v1354
      %v1378 = vpack.c.b16 %v1357, %v1356
      %v1379 = vpack.c.b16 %v1359, %v1358
      %v1380 = vpack.c.b16 %v1361, %v1360
      %vm1399 = vcmask 334848
      %v1401 = vsel %vm1399, %v1043, 0
      %v1404 = vsel %vm1399, %v1046, 0
      %v1407 = vsel %vm1399, %v1049, 0
      %v1410 = vsel %vm1399, %v1052, 0
      %v1413 = vsel %vm1399, %v1055, 0
      %v1416 = vsel %vm1399, %v1058, 0
      %v1419 = vsel %vm1399, %v1061, 0
      %v1422 = vsel %vm1399, %v1064, 0
      %v1425 = vsel %vm1399, %v1067, 0
      %v1428 = vsel %vm1399, %v1070, 0
      %v1431 = vsel %vm1399, %v1073, 0
      %v1434 = vsel %vm1399, %v1076, 0
      %v1437 = vsel %vm1399, %v1079, 0
      %v1440 = vsel %vm1399, %v1082, 0
      %v1443 = vsel %vm1399, %v1085, 0
      %v1446 = vsel %vm1399, %v1088, 0
      %v1449 = vsel %vm1399, %v1091, 0
      %v1452 = vsel %vm1399, %v1094, 0
      %v1455 = vsel %vm1399, %v1097, 0
      %v1458 = vsel %vm1399, %v1100, 0
      %v1461 = vsel %vm1399, %v1103, 0
      %v1464 = vsel %vm1399, %v1106, 0
      %v1467 = vsel %vm1399, %v1109, 0
      %v1470 = vsel %vm1399, %v1112, 0
      %v1473 = vsel %vm1399, %v1115, 0
      %v1476 = vsel %vm1399, %v1118, 0
      %v1479 = vsel %vm1399, %v1121, 0
      %v1482 = vsel %vm1399, %v1124, 0
      %v1485 = vsel %vm1399, %v1127, 0
      %v1488 = vsel %vm1399, %v1130, 0
      %v1491 = vsel %vm1399, %v1133, 0
      %v1494 = vsel %vm1399, %v1136, 0
      %v1497 = vsel %vm1399, %v1139, 0
      %v1500 = vsel %vm1399, %v1142, 0
      %v1503 = vsel %vm1399, %v1145, 0
      %v1506 = vsel %vm1399, %v1148, 0
      %v1509 = vsel %vm1399, %v1151, 0
      %v1512 = vsel %vm1399, %v1154, 0
      %v1515 = vsel %vm1399, %v1157, 0
      %v1518 = vsel %vm1399, %v1160, 0
      %v1521 = vsel %vm1399, %v1163, 0
      %v1524 = vsel %vm1399, %v1166, 0
      %v1527 = vsel %vm1399, %v1169, 0
      %v1530 = vsel %vm1399, %v1172, 0
      %v1533 = vsel %vm1399, %v1175, 0
      %v1536 = vsel %vm1399, %v1178, 0
      %v1539 = vsel %vm1399, %v1181, 0
      %v1542 = vsel %vm1399, %v1184, 0
      %v1545 = vsel %vm1399, %v1187, 0
      %vm1547 = vcmask 1043456
      %vm1548 = vcmask 1044480
      %v1549 = vsel %vm1547, 4294967295, 65535
      %v1550 = vsel %vm1548, %v1549, 0
      %v1552 = vand.u32 %v1380, %v1550
      %1554 = vmatprep.subr.bf16.mxu0 0
      %1555 = vmatpush1.bf16.msra.mxu0 %v1362
      %1556 = vmatprep.subr.bf16.mxu0 0
      %1557 = vmatpush1.bf16.msra.mxu0 %v1363
      %1558 = vmatprep.subr.bf16.mxu0 0
      %1559 = vmatpush1.bf16.msra.mxu0 %v1364
      %1560 = vmatprep.subr.bf16.mxu0 0
      %1561 = vmatpush1.bf16.msra.mxu0 %v1365
      %1562 = vmatprep.subr.bf16.mxu0 0
      %1563 = vmatpush1.bf16.msra.mxu0 %v1366
      %1564 = vmatprep.subr.bf16.mxu0 0
      %1565 = vmatpush1.bf16.msra.mxu0 %v1367
      %1566 = vmatprep.subr.bf16.mxu0 0
      %1567 = vmatpush1.bf16.msra.mxu0 %v1368
      %1568 = vmatprep.subr.bf16.mxu0 0
      %1569 = vmatpush1.bf16.msra.mxu0 %v1369
      %1570 = vmatprep.subr.bf16.mxu0 0
      %1571 = vmatpush1.bf16.msra.mxu0 %v1370
      %1572 = vmatprep.subr.bf16.mxu0 0
      %1573 = vmatpush1.bf16.msra.mxu0 %v1371
      %1574 = vmatprep.subr.bf16.mxu0 0
      %1575 = vmatpush1.bf16.msra.mxu0 %v1372
      %1576 = vmatprep.subr.bf16.mxu0 0
      %1577 = vmatpush1.bf16.msra.mxu0 %v1373
      %1578 = vmatprep.subr.bf16.mxu0 0
      %1579 = vmatpush1.bf16.msra.mxu0 %v1374
      %1580 = vmatprep.subr.bf16.mxu0 0
      %1581 = vmatpush1.bf16.msra.mxu0 %v1375
      %1582 = vmatprep.subr.bf16.mxu0 0
      %1583 = vmatpush1.bf16.msra.mxu0 %v1376
      %1584 = vmatprep.subr.bf16.mxu0 0
      %1585 = vmatpush1.bf16.msra.mxu0 %v1377
      %1586 = vmatprep.mubr.bf16.mxu0 %v1042
      %1587 = vmatmul.mubr.bf16.gmra.mrb[0].mxu0 %v1041
      %v1588 = vpop.f32.mrb[0].mxu0
      %v1589 = vadd.f32 0.0, %v1588
      %v1590 = vpop.f32.mrb[0].mxu0
      %v1591 = vpop.f32.mrb[0].mxu0
      %v1592 = vadd.f32 0.0, %v1591
      %v1593 = vpop.f32.mrb[0].mxu0
      %1594 = vmatprep.mubr.bf16.mxu0 %v1045
      %1595 = vmatmul.mubr.bf16.gmra.mrb[0].mxu0 %v1044
      %v1596 = vpop.f32.mrb[0].mxu0
      %v1597 = vadd.f32 0.0, %v1596
      %v1598 = vpop.f32.mrb[0].mxu0
      %v1599 = vpop.f32.mrb[0].mxu0
      %v1600 = vadd.f32 0.0, %v1599
      %v1601 = vpop.f32.mrb[0].mxu0
      %1602 = vmatprep.mubr.bf16.mxu0 %v1048
      %1603 = vmatmul.mubr.bf16.gmra.mrb[0].mxu0 %v1047
      %v1604 = vpop.f32.mrb[0].mxu0
      %v1605 = vadd.f32 0.0, %v1604
      %v1606 = vpop.f32.mrb[0].mxu0
      %v1607 = vpop.f32.mrb[0].mxu0
      %v1608 = vadd.f32 0.0, %v1607
      %v1609 = vpop.f32.mrb[0].mxu0
      %1610 = vmatprep.mubr.bf16.mxu0 %v1051
      %1611 = vmatmul.mubr.bf16.gmra.mrb[0].mxu0 %v1050
      %v1612 = vpop.f32.mrb[0].mxu0
      %v1613 = vadd.f32 0.0, %v1612
      %v1614 = vpop.f32.mrb[0].mxu0
      %v1615 = vpop.f32.mrb[0].mxu0
      %v1616 = vadd.f32 0.0, %v1615
      %v1617 = vpop.f32.mrb[0].mxu0
      %1618 = vmatprep.mubr.bf16.mxu0 %v1054
      %1619 = vmatmul.mubr.bf16.gmra.mrb[0].mxu0 %v1053
      %v1620 = vpop.f32.mrb[0].mxu0
      %v1621 = vadd.f32 0.0, %v1620
      %v1622 = vpop.f32.mrb[0].mxu0
      %v1623 = vpop.f32.mrb[0].mxu0
      %v1624 = vadd.f32 0.0, %v1623
      %v1625 = vpop.f32.mrb[0].mxu0
      %1626 = vmatprep.mubr.bf16.mxu0 %v1057
      %1627 = vmatmul.mubr.bf16.gmra.mrb[0].mxu0 %v1056
      %v1628 = vpop.f32.mrb[0].mxu0
      %v1629 = vadd.f32 0.0, %v1628
      %v1630 = vpop.f32.mrb[0].mxu0
      %v1631 = vpop.f32.mrb[0].mxu0
      %v1632 = vadd.f32 0.0, %v1631
      %v1633 = vpop.f32.mrb[0].mxu0
      %1634 = vmatprep.mubr.bf16.mxu0 %v1060
      %1635 = vmatmul.mubr.bf16.gmra.mrb[0].mxu0 %v1059
      %v1636 = vpop.f32.mrb[0].mxu0
      %v1637 = vadd.f32 0.0, %v1636
      %v1638 = vpop.f32.mrb[0].mxu0
      %v1639 = vpop.f32.mrb[0].mxu0
      %v1640 = vadd.f32 0.0, %v1639
      %v1641 = vpop.f32.mrb[0].mxu0
      %1642 = vmatprep.mubr.bf16.mxu0 %v1063
      %1643 = vmatmul.mubr.bf16.gmra.mrb[0].mxu0 %v1062
      %v1644 = vpop.f32.mrb[0].mxu0
      %v1645 = vadd.f32 0.0, %v1644
      %v1646 = vpop.f32.mrb[0].mxu0
      %v1647 = vpop.f32.mrb[0].mxu0
      %v1648 = vadd.f32 0.0, %v1647
      %v1649 = vpop.f32.mrb[0].mxu0
      %1650 = vmatprep.mubr.bf16.mxu0 %v1066
      %1651 = vmatmul.mubr.bf16.gmra.mrb[0].mxu0 %v1065
      %v1652 = vpop.f32.mrb[0].mxu0
      %v1653 = vadd.f32 0.0, %v1652
      %v1654 = vpop.f32.mrb[0].mxu0
      %v1655 = vpop.f32.mrb[0].mxu0
      %v1656 = vadd.f32 0.0, %v1655
      %v1657 = vpop.f32.mrb[0].mxu0
      %1658 = vmatprep.mubr.bf16.mxu0 %v1069
      %1659 = vmatmul.mubr.bf16.gmra.mrb[0].mxu0 %v1068
      %v1660 = vpop.f32.mrb[0].mxu0
      %v1661 = vadd.f32 0.0, %v1660
      %v1662 = vpop.f32.mrb[0].mxu0
      %v1663 = vpop.f32.mrb[0].mxu0
      %v1664 = vadd.f32 0.0, %v1663
      %v1665 = vpop.f32.mrb[0].mxu0
      %1666 = vmatprep.mubr.bf16.mxu0 %v1072
      %1667 = vmatmul.mubr.bf16.gmra.mrb[0].mxu0 %v1071
      %v1668 = vpop.f32.mrb[0].mxu0
      %v1669 = vadd.f32 0.0, %v1668
      %v1670 = vpop.f32.mrb[0].mxu0
      %v1671 = vpop.f32.mrb[0].mxu0
      %v1672 = vadd.f32 0.0, %v1671
      %v1673 = vpop.f32.mrb[0].mxu0
      %1674 = vmatprep.mubr.bf16.mxu0 %v1075
      %1675 = vmatmul.mubr.bf16.gmra.mrb[0].mxu0 %v1074
      %v1676 = vpop.f32.mrb[0].mxu0
      %v1677 = vadd.f32 0.0, %v1676
      %v1678 = vpop.f32.mrb[0].mxu0
      %v1679 = vpop.f32.mrb[0].mxu0
      %v1680 = vadd.f32 0.0, %v1679
      %v1681 = vpop.f32.mrb[0].mxu0
      %1682 = vmatprep.mubr.bf16.mxu0 %v1078
      %1683 = vmatmul.mubr.bf16.gmra.mrb[0].mxu0 %v1077
      %v1684 = vpop.f32.mrb[0].mxu0
      %v1685 = vadd.f32 0.0, %v1684
      %v1686 = vpop.f32.mrb[0].mxu0
      %v1687 = vpop.f32.mrb[0].mxu0
      %v1688 = vadd.f32 0.0, %v1687
      %v1689 = vpop.f32.mrb[0].mxu0
      %1690 = vmatprep.mubr.bf16.mxu0 %v1081
      %1691 = vmatmul.mubr.bf16.gmra.mrb[0].mxu0 %v1080
      %v1692 = vpop.f32.mrb[0].mxu0
      %v1693 = vadd.f32 0.0, %v1692
      %v1694 = vpop.f32.mrb[0].mxu0
      %v1695 = vpop.f32.mrb[0].mxu0
      %v1696 = vadd.f32 0.0, %v1695
      %v1697 = vpop.f32.mrb[0].mxu0
      %1698 = vmatprep.mubr.bf16.mxu0 %v1084
      %1699 = vmatmul.mubr.bf16.gmra.mrb[0].mxu0 %v1083
      %v1700 = vpop.f32.mrb[0].mxu0
      %v1701 = vadd.f32 0.0, %v1700
      %v1702 = vpop.f32.mrb[0].mxu0
      %v1703 = vpop.f32.mrb[0].mxu0
      %v1704 = vadd.f32 0.0, %v1703
      %v1705 = vpop.f32.mrb[0].mxu0
      %1706 = vmatprep.mubr.bf16.mxu0 %v1087
      %1707 = vmatmul.mubr.bf16.gmra.mrb[0].mxu0 %v1086
      %v1708 = vpop.f32.mrb[0].mxu0
      %v1709 = vadd.f32 0.0, %v1708
      %v1710 = vpop.f32.mrb[0].mxu0
      %v1711 = vpop.f32.mrb[0].mxu0
      %v1712 = vadd.f32 0.0, %v1711
      %v1713 = vpop.f32.mrb[0].mxu0
      %1714 = vmatprep.mubr.bf16.mxu0 %v1090
      %1715 = vmatmul.mubr.bf16.gmra.mrb[0].mxu0 %v1089
      %v1716 = vpop.f32.mrb[0].mxu0
      %v1717 = vadd.f32 0.0, %v1716
      %v1718 = vpop.f32.mrb[0].mxu0
      %v1719 = vpop.f32.mrb[0].mxu0
      %v1720 = vadd.f32 0.0, %v1719
      %v1721 = vpop.f32.mrb[0].mxu0
      %1722 = vmatprep.mubr.bf16.mxu0 %v1093
      %1723 = vmatmul.mubr.bf16.gmra.mrb[0].mxu0 %v1092
      %v1724 = vpop.f32.mrb[0].mxu0
      %v1725 = vadd.f32 0.0, %v1724
      %v1726 = vpop.f32.mrb[0].mxu0
      %v1727 = vpop.f32.mrb[0].mxu0
      %v1728 = vadd.f32 0.0, %v1727
      %v1729 = vpop.f32.mrb[0].mxu0
      %1730 = vmatprep.mubr.bf16.mxu0 %v1096
      %1731 = vmatmul.mubr.bf16.gmra.mrb[0].mxu0 %v1095
      %v1732 = vpop.f32.mrb[0].mxu0
      %v1733 = vadd.f32 0.0, %v1732
      %v1734 = vpop.f32.mrb[0].mxu0
      %v1735 = vpop.f32.mrb[0].mxu0
      %v1736 = vadd.f32 0.0, %v1735
      %v1737 = vpop.f32.mrb[0].mxu0
      %1738 = vmatprep.mubr.bf16.mxu0 %v1099
      %1739 = vmatmul.mubr.bf16.gmra.mrb[0].mxu0 %v1098
      %v1740 = vpop.f32.mrb[0].mxu0
      %v1741 = vadd.f32 0.0, %v1740
      %v1742 = vpop.f32.mrb[0].mxu0
      %v1743 = vpop.f32.mrb[0].mxu0
      %v1744 = vadd.f32 0.0, %v1743
      %v1745 = vpop.f32.mrb[0].mxu0
      %1746 = vmatprep.mubr.bf16.mxu0 %v1102
      %1747 = vmatmul.mubr.bf16.gmra.mrb[0].mxu0 %v1101
      %v1748 = vpop.f32.mrb[0].mxu0
      %v1749 = vadd.f32 0.0, %v1748
      %v1750 = vpop.f32.mrb[0].mxu0
      %v1751 = vpop.f32.mrb[0].mxu0
      %v1752 = vadd.f32 0.0, %v1751
      %v1753 = vpop.f32.mrb[0].mxu0
      %1754 = vmatprep.mubr.bf16.mxu0 %v1105
      %1755 = vmatmul.mubr.bf16.gmra.mrb[0].mxu0 %v1104
      %v1756 = vpop.f32.mrb[0].mxu0
      %v1757 = vadd.f32 0.0, %v1756
      %v1758 = vpop.f32.mrb[0].mxu0
      %v1759 = vpop.f32.mrb[0].mxu0
      %v1760 = vadd.f32 0.0, %v1759
      %v1761 = vpop.f32.mrb[0].mxu0
      %1762 = vmatprep.mubr.bf16.mxu0 %v1108
      %1763 = vmatmul.mubr.bf16.gmra.mrb[0].mxu0 %v1107
      %v1764 = vpop.f32.mrb[0].mxu0
      %v1765 = vadd.f32 0.0, %v1764
      %v1766 = vpop.f32.mrb[0].mxu0
      %v1767 = vpop.f32.mrb[0].mxu0
      %v1768 = vadd.f32 0.0, %v1767
      %v1769 = vpop.f32.mrb[0].mxu0
      %1770 = vmatprep.mubr.bf16.mxu0 %v1111
      %1771 = vmatmul.mubr.bf16.gmra.mrb[0].mxu0 %v1110
      %v1772 = vpop.f32.mrb[0].mxu0
      %v1773 = vadd.f32 0.0, %v1772
      %v1774 = vpop.f32.mrb[0].mxu0
      %v1775 = vpop.f32.mrb[0].mxu0
      %v1776 = vadd.f32 0.0, %v1775
      %v1777 = vpop.f32.mrb[0].mxu0
      %1778 = vmatprep.mubr.bf16.mxu0 %v1114
      %1779 = vmatmul.mubr.bf16.gmra.mrb[0].mxu0 %v1113
      %v1780 = vpop.f32.mrb[0].mxu0
      %v1781 = vadd.f32 0.0, %v1780
      %v1782 = vpop.f32.mrb[0].mxu0
      %v1783 = vpop.f32.mrb[0].mxu0
      %v1784 = vadd.f32 0.0, %v1783
      %v1785 = vpop.f32.mrb[0].mxu0
      %1786 = vmatprep.mubr.bf16.mxu0 %v1117
      %1787 = vmatmul.mubr.bf16.gmra.mrb[0].mxu0 %v1116
      %v1788 = vpop.f32.mrb[0].mxu0
      %v1789 = vadd.f32 0.0, %v1788
      %v1790 = vpop.f32.mrb[0].mxu0
      %v1791 = vpop.f32.mrb[0].mxu0
      %v1792 = vadd.f32 0.0, %v1791
      %v1793 = vpop.f32.mrb[0].mxu0
      %1794 = vmatprep.mubr.bf16.mxu0 %v1120
      %1795 = vmatmul.mubr.bf16.gmra.mrb[0].mxu0 %v1119
      %v1796 = vpop.f32.mrb[0].mxu0
      %v1797 = vadd.f32 0.0, %v1796
      %v1798 = vpop.f32.mrb[0].mxu0
      %v1799 = vpop.f32.mrb[0].mxu0
      %v1800 = vadd.f32 0.0, %v1799
      %v1801 = vpop.f32.mrb[0].mxu0
      %1802 = vmatprep.mubr.bf16.mxu0 %v1123
      %1803 = vmatmul.mubr.bf16.gmra.mrb[0].mxu0 %v1122
      %v1804 = vpop.f32.mrb[0].mxu0
      %v1805 = vadd.f32 0.0, %v1804
      %v1806 = vpop.f32.mrb[0].mxu0
      %v1807 = vpop.f32.mrb[0].mxu0
      %v1808 = vadd.f32 0.0, %v1807
      %v1809 = vpop.f32.mrb[0].mxu0
      %1810 = vmatprep.mubr.bf16.mxu0 %v1126
      %1811 = vmatmul.mubr.bf16.gmra.mrb[0].mxu0 %v1125
      %v1812 = vpop.f32.mrb[0].mxu0
      %v1813 = vadd.f32 0.0, %v1812
      %v1814 = vpop.f32.mrb[0].mxu0
      %v1815 = vpop.f32.mrb[0].mxu0
      %v1816 = vadd.f32 0.0, %v1815
      %v1817 = vpop.f32.mrb[0].mxu0
      %1818 = vmatprep.mubr.bf16.mxu0 %v1129
      %1819 = vmatmul.mubr.bf16.gmra.mrb[0].mxu0 %v1128
      %v1820 = vpop.f32.mrb[0].mxu0
      %v1821 = vadd.f32 0.0, %v1820
      %v1822 = vpop.f32.mrb[0].mxu0
      %v1823 = vpop.f32.mrb[0].mxu0
      %v1824 = vadd.f32 0.0, %v1823
      %v1825 = vpop.f32.mrb[0].mxu0
      %1826 = vmatprep.mubr.bf16.mxu0 %v1132
      %1827 = vmatmul.mubr.bf16.gmra.mrb[0].mxu0 %v1131
      %v1828 = vpop.f32.mrb[0].mxu0
      %v1829 = vadd.f32 0.0, %v1828
      %v1830 = vpop.f32.mrb[0].mxu0
      %v1831 = vpop.f32.mrb[0].mxu0
      %v1832 = vadd.f32 0.0, %v1831
      %v1833 = vpop.f32.mrb[0].mxu0
      %1834 = vmatprep.mubr.bf16.mxu0 %v1135
      %1835 = vmatmul.mubr.bf16.gmra.mrb[0].mxu0 %v1134
      %v1836 = vpop.f32.mrb[0].mxu0
      %v1837 = vadd.f32 0.0, %v1836
      %v1838 = vpop.f32.mrb[0].mxu0
      %v1839 = vpop.f32.mrb[0].mxu0
      %v1840 = vadd.f32 0.0, %v1839
      %v1841 = vpop.f32.mrb[0].mxu0
      %1842 = vmatprep.mubr.bf16.mxu0 %v1138
      %1843 = vmatmul.mubr.bf16.gmra.mrb[0].mxu0 %v1137
      %v1844 = vpop.f32.mrb[0].mxu0
      %v1845 = vadd.f32 0.0, %v1844
      %v1846 = vpop.f32.mrb[0].mxu0
      %v1847 = vpop.f32.mrb[0].mxu0
      %v1848 = vadd.f32 0.0, %v1847
      %v1849 = vpop.f32.mrb[0].mxu0
      %1850 = vmatprep.mubr.bf16.mxu0 %v1141
      %1851 = vmatmul.mubr.bf16.gmra.mrb[0].mxu0 %v1140
      %v1852 = vpop.f32.mrb[0].mxu0
      %v1853 = vadd.f32 0.0, %v1852
      %v1854 = vpop.f32.mrb[0].mxu0
      %v1855 = vpop.f32.mrb[0].mxu0
      %v1856 = vadd.f32 0.0, %v1855
      %v1857 = vpop.f32.mrb[0].mxu0
      %1858 = vmatprep.mubr.bf16.mxu0 %v1144
      %1859 = vmatmul.mubr.bf16.gmra.mrb[0].mxu0 %v1143
      %v1860 = vpop.f32.mrb[0].mxu0
      %v1861 = vadd.f32 0.0, %v1860
      %v1862 = vpop.f32.mrb[0].mxu0
      %v1863 = vpop.f32.mrb[0].mxu0
      %v1864 = vadd.f32 0.0, %v1863
      %v1865 = vpop.f32.mrb[0].mxu0
      %1866 = vmatprep.mubr.bf16.mxu0 %v1147
      %1867 = vmatmul.mubr.bf16.gmra.mrb[0].mxu0 %v1146
      %v1868 = vpop.f32.mrb[0].mxu0
      %v1869 = vadd.f32 0.0, %v1868
      %v1870 = vpop.f32.mrb[0].mxu0
      %v1871 = vpop.f32.mrb[0].mxu0
      %v1872 = vadd.f32 0.0, %v1871
      %v1873 = vpop.f32.mrb[0].mxu0
      %1874 = vmatprep.mubr.bf16.mxu0 %v1150
      %1875 = vmatmul.mubr.bf16.gmra.mrb[0].mxu0 %v1149
      %v1876 = vpop.f32.mrb[0].mxu0
      %v1877 = vadd.f32 0.0, %v1876
      %v1878 = vpop.f32.mrb[0].mxu0
      %v1879 = vpop.f32.mrb[0].mxu0
      %v1880 = vadd.f32 0.0, %v1879
      %v1881 = vpop.f32.mrb[0].mxu0
      %1882 = vmatprep.mubr.bf16.mxu0 %v1153
      %1883 = vmatmul.mubr.bf16.gmra.mrb[0].mxu0 %v1152
      %v1884 = vpop.f32.mrb[0].mxu0
      %v1885 = vadd.f32 0.0, %v1884
      %v1886 = vpop.f32.mrb[0].mxu0
      %v1887 = vpop.f32.mrb[0].mxu0
      %v1888 = vadd.f32 0.0, %v1887
      %v1889 = vpop.f32.mrb[0].mxu0
      %1890 = vmatprep.mubr.bf16.mxu0 %v1156
      %1891 = vmatmul.mubr.bf16.gmra.mrb[0].mxu0 %v1155
      %v1892 = vpop.f32.mrb[0].mxu0
      %v1893 = vadd.f32 0.0, %v1892
      %v1894 = vpop.f32.mrb[0].mxu0
      %v1895 = vpop.f32.mrb[0].mxu0
      %v1896 = vadd.f32 0.0, %v1895
      %v1897 = vpop.f32.mrb[0].mxu0
      %1898 = vmatprep.mubr.bf16.mxu0 %v1159
      %1899 = vmatmul.mubr.bf16.gmra.mrb[0].mxu0 %v1158
      %v1900 = vpop.f32.mrb[0].mxu0
      %v1901 = vadd.f32 0.0, %v1900
      %v1902 = vpop.f32.mrb[0].mxu0
      %v1903 = vpop.f32.mrb[0].mxu0
      %v1904 = vadd.f32 0.0, %v1903
      %v1905 = vpop.f32.mrb[0].mxu0
      %1906 = vmatprep.mubr.bf16.mxu0 %v1162
      %1907 = vmatmul.mubr.bf16.gmra.mrb[0].mxu0 %v1161
      %v1908 = vpop.f32.mrb[0].mxu0
      %v1909 = vadd.f32 0.0, %v1908
      %v1910 = vpop.f32.mrb[0].mxu0
      %v1911 = vpop.f32.mrb[0].mxu0
      %v1912 = vadd.f32 0.0, %v1911
      %v1913 = vpop.f32.mrb[0].mxu0
      %1914 = vmatprep.mubr.bf16.mxu0 %v1165
      %1915 = vmatmul.mubr.bf16.gmra.mrb[0].mxu0 %v1164
      %v1916 = vpop.f32.mrb[0].mxu0
      %v1917 = vadd.f32 0.0, %v1916
      %v1918 = vpop.f32.mrb[0].mxu0
      %v1919 = vpop.f32.mrb[0].mxu0
      %v1920 = vadd.f32 0.0, %v1919
      %v1921 = vpop.f32.mrb[0].mxu0
      %1922 = vmatprep.mubr.bf16.mxu0 %v1168
      %1923 = vmatmul.mubr.bf16.gmra.mrb[0].mxu0 %v1167
      %v1924 = vpop.f32.mrb[0].mxu0
      %v1925 = vadd.f32 0.0, %v1924
      %v1926 = vpop.f32.mrb[0].mxu0
      %v1927 = vpop.f32.mrb[0].mxu0
      %v1928 = vadd.f32 0.0, %v1927
      %v1929 = vpop.f32.mrb[0].mxu0
      %1930 = vmatprep.mubr.bf16.mxu0 %v1171
      %1931 = vmatmul.mubr.bf16.gmra.mrb[0].mxu0 %v1170
      %v1932 = vpop.f32.mrb[0].mxu0
      %v1933 = vadd.f32 0.0, %v1932
      %v1934 = vpop.f32.mrb[0].mxu0
      %v1935 = vpop.f32.mrb[0].mxu0
      %v1936 = vadd.f32 0.0, %v1935
      %v1937 = vpop.f32.mrb[0].mxu0
      %1938 = vmatprep.mubr.bf16.mxu0 %v1174
      %1939 = vmatmul.mubr.bf16.gmra.mrb[0].mxu0 %v1173
      %v1940 = vpop.f32.mrb[0].mxu0
      %v1941 = vadd.f32 0.0, %v1940
      %v1942 = vpop.f32.mrb[0].mxu0
      %v1943 = vpop.f32.mrb[0].mxu0
      %v1944 = vadd.f32 0.0, %v1943
      %v1945 = vpop.f32.mrb[0].mxu0
      %1946 = vmatprep.mubr.bf16.mxu0 %v1177
      %1947 = vmatmul.mubr.bf16.gmra.mrb[0].mxu0 %v1176
      %v1948 = vpop.f32.mrb[0].mxu0
      %v1949 = vadd.f32 0.0, %v1948
      %v1950 = vpop.f32.mrb[0].mxu0
      %v1951 = vpop.f32.mrb[0].mxu0
      %v1952 = vadd.f32 0.0, %v1951
      %v1953 = vpop.f32.mrb[0].mxu0
      %1954 = vmatprep.mubr.bf16.mxu0 %v1180
      %1955 = vmatmul.mubr.bf16.gmra.mrb[0].mxu0 %v1179
      %v1956 = vpop.f32.mrb[0].mxu0
      %v1957 = vadd.f32 0.0, %v1956
      %v1958 = vpop.f32.mrb[0].mxu0
      %v1959 = vpop.f32.mrb[0].mxu0
      %v1960 = vadd.f32 0.0, %v1959
      %v1961 = vpop.f32.mrb[0].mxu0
      %1962 = vmatprep.mubr.bf16.mxu0 %v1183
      %1963 = vmatmul.mubr.bf16.gmra.mrb[0].mxu0 %v1182
      %v1964 = vpop.f32.mrb[0].mxu0
      %v1965 = vadd.f32 0.0, %v1964
      %v1966 = vpop.f32.mrb[0].mxu0
      %v1967 = vpop.f32.mrb[0].mxu0
      %v1968 = vadd.f32 0.0, %v1967
      %v1969 = vpop.f32.mrb[0].mxu0
      %1970 = vmatprep.mubr.bf16.mxu0 %v1186
      %1971 = vmatmul.mubr.bf16.gmra.mrb[0].mxu0 %v1185
      %v1972 = vpop.f32.mrb[0].mxu0
      %v1973 = vadd.f32 0.0, %v1972
      %v1974 = vpop.f32.mrb[0].mxu0
      %v1975 = vpop.f32.mrb[0].mxu0
      %v1976 = vadd.f32 0.0, %v1975
      %v1977 = vpop.f32.mrb[0].mxu0
      %1978 = vdwg.mxu0
      %1979 = vmatprep.subr.bf16.mxu0 0
      %1980 = vmatpush1.bf16.msra.mxu0 %v1378
      %1981 = vmatprep.subr.bf16.mxu0 0
      %1982 = vmatpush1.bf16.msra.mxu0 %v1379
      %1983 = vmatprep.subr.bf16.mxu0 0
      %1984 = vmatpush1.bf16.msra.mxu0 %v1552
      %1985 = vmatprep.subr.bf16.mxu0 0
      %1986 = vmatpush1.bf16.msra.mxu0 0
      %1987 = vmatprep.subr.bf16.mxu0 0
      %1988 = vmatpush1.bf16.msra.mxu0 0
      %1989 = vmatprep.subr.bf16.mxu0 0
      %1990 = vmatpush1.bf16.msra.mxu0 0
      %1991 = vmatprep.subr.bf16.mxu0 0
      %1992 = vmatpush1.bf16.msra.mxu0 0
      %1993 = vmatprep.subr.bf16.mxu0 0
      %1994 = vmatpush1.bf16.msra.mxu0 0
      %1995 = vmatprep.subr.bf16.mxu0 0
      %1996 = vmatpush1.bf16.msra.mxu0 0
      %1997 = vmatprep.subr.bf16.mxu0 0
      %1998 = vmatpush1.bf16.msra.mxu0 0
      %1999 = vmatprep.subr.bf16.mxu0 0
      %2000 = vmatpush1.bf16.msra.mxu0 0
      %2001 = vmatprep.subr.bf16.mxu0 0
      %2002 = vmatpush1.bf16.msra.mxu0 0
      %2003 = vmatprep.subr.bf16.mxu0 0
      %2004 = vmatpush1.bf16.msra.mxu0 0
      %2005 = vmatprep.subr.bf16.mxu0 0
      %2006 = vmatpush1.bf16.msra.mxu0 0
      %2007 = vmatprep.subr.bf16.mxu0 0
      %2008 = vmatpush1.bf16.msra.mxu0 0
      %2009 = vmatprep.subr.bf16.mxu0 0
      %2010 = vmatpush1.bf16.msra.mxu0 0
      %2011 = vmatprep.mubr.bf16.mxu0 0
      %2012 = vmatmul.mubr.bf16.gmra.mrb[0].mxu0 %v1401
      %v2013 = vpop.f32.mrb[0].mxu0
      %v2014 = vadd.f32 %v1589, %v2013
      %v2015 = vpop.f32.mrb[0].mxu0
      %v2016 = vpop.f32.mrb[0].mxu0
      %v2017 = vadd.f32 %v1592, %v2016
      %v2018 = vpop.f32.mrb[0].mxu0
      %2019 = vmatprep.mubr.bf16.mxu0 0
      %2020 = vmatmul.mubr.bf16.gmra.mrb[0].mxu0 %v1404
      %v2021 = vpop.f32.mrb[0].mxu0
      %v2022 = vadd.f32 %v1597, %v2021
      %v2023 = vpop.f32.mrb[0].mxu0
      %v2024 = vpop.f32.mrb[0].mxu0
      %v2025 = vadd.f32 %v1600, %v2024
      %v2026 = vpop.f32.mrb[0].mxu0
      %2027 = vmatprep.mubr.bf16.mxu0 0
      %2028 = vmatmul.mubr.bf16.gmra.mrb[0].mxu0 %v1407
      %v2029 = vpop.f32.mrb[0].mxu0
      %v2030 = vadd.f32 %v1605, %v2029
      %v2031 = vpop.f32.mrb[0].mxu0
      %v2032 = vpop.f32.mrb[0].mxu0
      %v2033 = vadd.f32 %v1608, %v2032
      %v2034 = vpop.f32.mrb[0].mxu0
      %2035 = vmatprep.mubr.bf16.mxu0 0
      %2036 = vmatmul.mubr.bf16.gmra.mrb[0].mxu0 %v1410
      %v2037 = vpop.f32.mrb[0].mxu0
      %v2038 = vadd.f32 %v1613, %v2037
      %v2039 = vpop.f32.mrb[0].mxu0
      %v2040 = vpop.f32.mrb[0].mxu0
      %v2041 = vadd.f32 %v1616, %v2040
      %v2042 = vpop.f32.mrb[0].mxu0
      %2043 = vmatprep.mubr.bf16.mxu0 0
      %2044 = vmatmul.mubr.bf16.gmra.mrb[0].mxu0 %v1413
      %v2045 = vpop.f32.mrb[0].mxu0
      %v2046 = vadd.f32 %v1621, %v2045
      %v2047 = vpop.f32.mrb[0].mxu0
      %v2048 = vpop.f32.mrb[0].mxu0
      %v2049 = vadd.f32 %v1624, %v2048
      %v2050 = vpop.f32.mrb[0].mxu0
      %2051 = vmatprep.mubr.bf16.mxu0 0
      %2052 = vmatmul.mubr.bf16.gmra.mrb[0].mxu0 %v1416
      %v2053 = vpop.f32.mrb[0].mxu0
      %v2054 = vadd.f32 %v1629, %v2053
      %v2055 = vpop.f32.mrb[0].mxu0
      %v2056 = vpop.f32.mrb[0].mxu0
      %v2057 = vadd.f32 %v1632, %v2056
      %v2058 = vpop.f32.mrb[0].mxu0
      %2059 = vmatprep.mubr.bf16.mxu0 0
      %2060 = vmatmul.mubr.bf16.gmra.mrb[0].mxu0 %v1419
      %v2061 = vpop.f32.mrb[0].mxu0
      %v2062 = vadd.f32 %v1637, %v2061
      %v2063 = vpop.f32.mrb[0].mxu0
      %v2064 = vpop.f32.mrb[0].mxu0
      %v2065 = vadd.f32 %v1640, %v2064
      %v2066 = vpop.f32.mrb[0].mxu0
      %2067 = vmatprep.mubr.bf16.mxu0 0
      %2068 = vmatmul.mubr.bf16.gmra.mrb[0].mxu0 %v1422
      %v2069 = vpop.f32.mrb[0].mxu0
      %v2070 = vadd.f32 %v1645, %v2069
      %v2071 = vpop.f32.mrb[0].mxu0
      %v2072 = vpop.f32.mrb[0].mxu0
      %v2073 = vadd.f32 %v1648, %v2072
      %v2074 = vpop.f32.mrb[0].mxu0
      %2075 = vmatprep.mubr.bf16.mxu0 0
      %2076 = vmatmul.mubr.bf16.gmra.mrb[0].mxu0 %v1425
      %v2077 = vpop.f32.mrb[0].mxu0
      %v2078 = vadd.f32 %v1653, %v2077
      %v2079 = vpop.f32.mrb[0].mxu0
      %v2080 = vpop.f32.mrb[0].mxu0
      %v2081 = vadd.f32 %v1656, %v2080
      %v2082 = vpop.f32.mrb[0].mxu0
      %2083 = vmatprep.mubr.bf16.mxu0 0
      %2084 = vmatmul.mubr.bf16.gmra.mrb[0].mxu0 %v1428
      %v2085 = vpop.f32.mrb[0].mxu0
      %v2086 = vadd.f32 %v1661, %v2085
      %v2087 = vpop.f32.mrb[0].mxu0
      %v2088 = vpop.f32.mrb[0].mxu0
      %v2089 = vadd.f32 %v1664, %v2088
      %v2090 = vpop.f32.mrb[0].mxu0
      %2091 = vmatprep.mubr.bf16.mxu0 0
      %2092 = vmatmul.mubr.bf16.gmra.mrb[0].mxu0 %v1431
      %v2093 = vpop.f32.mrb[0].mxu0
      %v2094 = vadd.f32 %v1669, %v2093
      %v2095 = vpop.f32.mrb[0].mxu0
      %v2096 = vpop.f32.mrb[0].mxu0
      %v2097 = vadd.f32 %v1672, %v2096
      %v2098 = vpop.f32.mrb[0].mxu0
      %2099 = vmatprep.mubr.bf16.mxu0 0
      %2100 = vmatmul.mubr.bf16.gmra.mrb[0].mxu0 %v1434
      %v2101 = vpop.f32.mrb[0].mxu0
      %v2102 = vadd.f32 %v1677, %v2101
      %v2103 = vpop.f32.mrb[0].mxu0
      %v2104 = vpop.f32.mrb[0].mxu0
      %v2105 = vadd.f32 %v1680, %v2104
      %v2106 = vpop.f32.mrb[0].mxu0
      %2107 = vmatprep.mubr.bf16.mxu0 0
      %2108 = vmatmul.mubr.bf16.gmra.mrb[0].mxu0 %v1437
      %v2109 = vpop.f32.mrb[0].mxu0
      %v2110 = vadd.f32 %v1685, %v2109
      %v2111 = vpop.f32.mrb[0].mxu0
      %v2112 = vpop.f32.mrb[0].mxu0
      %v2113 = vadd.f32 %v1688, %v2112
      %v2114 = vpop.f32.mrb[0].mxu0
      %2115 = vmatprep.mubr.bf16.mxu0 0
      %2116 = vmatmul.mubr.bf16.gmra.mrb[0].mxu0 %v1440
      %v2117 = vpop.f32.mrb[0].mxu0
      %v2118 = vadd.f32 %v1693, %v2117
      %v2119 = vpop.f32.mrb[0].mxu0
      %v2120 = vpop.f32.mrb[0].mxu0
      %v2121 = vadd.f32 %v1696, %v2120
      %v2122 = vpop.f32.mrb[0].mxu0
      %2123 = vmatprep.mubr.bf16.mxu0 0
      %2124 = vmatmul.mubr.bf16.gmra.mrb[0].mxu0 %v1443
      %v2125 = vpop.f32.mrb[0].mxu0
      %v2126 = vadd.f32 %v1701, %v2125
      %v2127 = vpop.f32.mrb[0].mxu0
      %v2128 = vpop.f32.mrb[0].mxu0
      %v2129 = vadd.f32 %v1704, %v2128
      %v2130 = vpop.f32.mrb[0].mxu0
      %2131 = vmatprep.mubr.bf16.mxu0 0
      %2132 = vmatmul.mubr.bf16.gmra.mrb[0].mxu0 %v1446
      %v2133 = vpop.f32.mrb[0].mxu0
      %v2134 = vadd.f32 %v1709, %v2133
      %v2135 = vpop.f32.mrb[0].mxu0
      %v2136 = vpop.f32.mrb[0].mxu0
      %v2137 = vadd.f32 %v1712, %v2136
      %v2138 = vpop.f32.mrb[0].mxu0
      %2139 = vmatprep.mubr.bf16.mxu0 0
      %2140 = vmatmul.mubr.bf16.gmra.mrb[0].mxu0 %v1449
      %v2141 = vpop.f32.mrb[0].mxu0
      %v2142 = vadd.f32 %v1717, %v2141
      %v2143 = vpop.f32.mrb[0].mxu0
      %v2144 = vpop.f32.mrb[0].mxu0
      %v2145 = vadd.f32 %v1720, %v2144
      %v2146 = vpop.f32.mrb[0].mxu0
      %2147 = vmatprep.mubr.bf16.mxu0 0
      %2148 = vmatmul.mubr.bf16.gmra.mrb[0].mxu0 %v1452
      %v2149 = vpop.f32.mrb[0].mxu0
      %v2150 = vadd.f32 %v1725, %v2149
      %v2151 = vpop.f32.mrb[0].mxu0
      %v2152 = vpop.f32.mrb[0].mxu0
      %v2153 = vadd.f32 %v1728, %v2152
      %v2154 = vpop.f32.mrb[0].mxu0
      %2155 = vmatprep.mubr.bf16.mxu0 0
      %2156 = vmatmul.mubr.bf16.gmra.mrb[0].mxu0 %v1455
      %v2157 = vpop.f32.mrb[0].mxu0
      %v2158 = vadd.f32 %v1733, %v2157
      %v2159 = vpop.f32.mrb[0].mxu0
      %v2160 = vpop.f32.mrb[0].mxu0
      %v2161 = vadd.f32 %v1736, %v2160
      %v2162 = vpop.f32.mrb[0].mxu0
      %2163 = vmatprep.mubr.bf16.mxu0 0
      %2164 = vmatmul.mubr.bf16.gmra.mrb[0].mxu0 %v1458
      %v2165 = vpop.f32.mrb[0].mxu0
      %v2166 = vadd.f32 %v1741, %v2165
      %v2167 = vpop.f32.mrb[0].mxu0
      %v2168 = vpop.f32.mrb[0].mxu0
      %v2169 = vadd.f32 %v1744, %v2168
      %v2170 = vpop.f32.mrb[0].mxu0
      %2171 = vmatprep.mubr.bf16.mxu0 0
      %2172 = vmatmul.mubr.bf16.gmra.mrb[0].mxu0 %v1461
      %v2173 = vpop.f32.mrb[0].mxu0
      %v2174 = vadd.f32 %v1749, %v2173
      %v2175 = vpop.f32.mrb[0].mxu0
      %v2176 = vpop.f32.mrb[0].mxu0
      %v2177 = vadd.f32 %v1752, %v2176
      %v2178 = vpop.f32.mrb[0].mxu0
      %2179 = vmatprep.mubr.bf16.mxu0 0
      %2180 = vmatmul.mubr.bf16.gmra.mrb[0].mxu0 %v1464
      %v2181 = vpop.f32.mrb[0].mxu0
      %v2182 = vadd.f32 %v1757, %v2181
      %v2183 = vpop.f32.mrb[0].mxu0
      %v2184 = vpop.f32.mrb[0].mxu0
      %v2185 = vadd.f32 %v1760, %v2184
      %v2186 = vpop.f32.mrb[0].mxu0
      %2187 = vmatprep.mubr.bf16.mxu0 0
      %2188 = vmatmul.mubr.bf16.gmra.mrb[0].mxu0 %v1467
      %v2189 = vpop.f32.mrb[0].mxu0
      %v2190 = vadd.f32 %v1765, %v2189
      %v2191 = vpop.f32.mrb[0].mxu0
      %v2192 = vpop.f32.mrb[0].mxu0
      %v2193 = vadd.f32 %v1768, %v2192
      %v2194 = vpop.f32.mrb[0].mxu0
      %2195 = vmatprep.mubr.bf16.mxu0 0
      %2196 = vmatmul.mubr.bf16.gmra.mrb[0].mxu0 %v1470
      %v2197 = vpop.f32.mrb[0].mxu0
      %v2198 = vadd.f32 %v1773, %v2197
      %v2199 = vpop.f32.mrb[0].mxu0
      %v2200 = vpop.f32.mrb[0].mxu0
      %v2201 = vadd.f32 %v1776, %v2200
      %v2202 = vpop.f32.mrb[0].mxu0
      %2203 = vmatprep.mubr.bf16.mxu0 0
      %2204 = vmatmul.mubr.bf16.gmra.mrb[0].mxu0 %v1473
      %v2205 = vpop.f32.mrb[0].mxu0
      %v2206 = vadd.f32 %v1781, %v2205
      %v2207 = vpop.f32.mrb[0].mxu0
      %v2208 = vpop.f32.mrb[0].mxu0
      %v2209 = vadd.f32 %v1784, %v2208
      %v2210 = vpop.f32.mrb[0].mxu0
      %2211 = vmatprep.mubr.bf16.mxu0 0
      %2212 = vmatmul.mubr.bf16.gmra.mrb[0].mxu0 %v1476
      %v2213 = vpop.f32.mrb[0].mxu0
      %v2214 = vadd.f32 %v1789, %v2213
      %v2215 = vpop.f32.mrb[0].mxu0
      %v2216 = vpop.f32.mrb[0].mxu0
      %v2217 = vadd.f32 %v1792, %v2216
      %v2218 = vpop.f32.mrb[0].mxu0
      %2219 = vmatprep.mubr.bf16.mxu0 0
      %2220 = vmatmul.mubr.bf16.gmra.mrb[0].mxu0 %v1479
      %v2221 = vpop.f32.mrb[0].mxu0
      %v2222 = vadd.f32 %v1797, %v2221
      %v2223 = vpop.f32.mrb[0].mxu0
      %v2224 = vpop.f32.mrb[0].mxu0
      %v2225 = vadd.f32 %v1800, %v2224
      %v2226 = vpop.f32.mrb[0].mxu0
      %2227 = vmatprep.mubr.bf16.mxu0 0
      %2228 = vmatmul.mubr.bf16.gmra.mrb[0].mxu0 %v1482
      %v2229 = vpop.f32.mrb[0].mxu0
      %v2230 = vadd.f32 %v1805, %v2229
      %v2231 = vpop.f32.mrb[0].mxu0
      %v2232 = vpop.f32.mrb[0].mxu0
      %v2233 = vadd.f32 %v1808, %v2232
      %v2234 = vpop.f32.mrb[0].mxu0
      %2235 = vmatprep.mubr.bf16.mxu0 0
      %2236 = vmatmul.mubr.bf16.gmra.mrb[0].mxu0 %v1485
      %v2237 = vpop.f32.mrb[0].mxu0
      %v2238 = vadd.f32 %v1813, %v2237
      %v2239 = vpop.f32.mrb[0].mxu0
      %v2240 = vpop.f32.mrb[0].mxu0
      %v2241 = vadd.f32 %v1816, %v2240
      %v2242 = vpop.f32.mrb[0].mxu0
      %2243 = vmatprep.mubr.bf16.mxu0 0
      %2244 = vmatmul.mubr.bf16.gmra.mrb[0].mxu0 %v1488
      %v2245 = vpop.f32.mrb[0].mxu0
      %v2246 = vadd.f32 %v1821, %v2245
      %v2247 = vpop.f32.mrb[0].mxu0
      %v2248 = vpop.f32.mrb[0].mxu0
      %v2249 = vadd.f32 %v1824, %v2248
      %v2250 = vpop.f32.mrb[0].mxu0
      %2251 = vmatprep.mubr.bf16.mxu0 0
      %2252 = vmatmul.mubr.bf16.gmra.mrb[0].mxu0 %v1491
      %v2253 = vpop.f32.mrb[0].mxu0
      %v2254 = vadd.f32 %v1829, %v2253
      %v2255 = vpop.f32.mrb[0].mxu0
      %v2256 = vpop.f32.mrb[0].mxu0
      %v2257 = vadd.f32 %v1832, %v2256
      %v2258 = vpop.f32.mrb[0].mxu0
      %2259 = vmatprep.mubr.bf16.mxu0 0
      %2260 = vmatmul.mubr.bf16.gmra.mrb[0].mxu0 %v1494
      %v2261 = vpop.f32.mrb[0].mxu0
      %v2262 = vadd.f32 %v1837, %v2261
      %v2263 = vpop.f32.mrb[0].mxu0
      %v2264 = vpop.f32.mrb[0].mxu0
      %v2265 = vadd.f32 %v1840, %v2264
      %v2266 = vpop.f32.mrb[0].mxu0
      %2267 = vmatprep.mubr.bf16.mxu0 0
      %2268 = vmatmul.mubr.bf16.gmra.mrb[0].mxu0 %v1497
      %v2269 = vpop.f32.mrb[0].mxu0
      %v2270 = vadd.f32 %v1845, %v2269
      %v2271 = vpop.f32.mrb[0].mxu0
      %v2272 = vpop.f32.mrb[0].mxu0
      %v2273 = vadd.f32 %v1848, %v2272
      %v2274 = vpop.f32.mrb[0].mxu0
      %2275 = vmatprep.mubr.bf16.mxu0 0
      %2276 = vmatmul.mubr.bf16.gmra.mrb[0].mxu0 %v1500
      %v2277 = vpop.f32.mrb[0].mxu0
      %v2278 = vadd.f32 %v1853, %v2277
      %v2279 = vpop.f32.mrb[0].mxu0
      %v2280 = vpop.f32.mrb[0].mxu0
      %v2281 = vadd.f32 %v1856, %v2280
      %v2282 = vpop.f32.mrb[0].mxu0
      %2283 = vmatprep.mubr.bf16.mxu0 0
      %2284 = vmatmul.mubr.bf16.gmra.mrb[0].mxu0 %v1503
      %v2285 = vpop.f32.mrb[0].mxu0
      %v2286 = vadd.f32 %v1861, %v2285
      %v2287 = vpop.f32.mrb[0].mxu0
      %v2288 = vpop.f32.mrb[0].mxu0
      %v2289 = vadd.f32 %v1864, %v2288
      %v2290 = vpop.f32.mrb[0].mxu0
      %2291 = vmatprep.mubr.bf16.mxu0 0
      %2292 = vmatmul.mubr.bf16.gmra.mrb[0].mxu0 %v1506
      %v2293 = vpop.f32.mrb[0].mxu0
      %v2294 = vadd.f32 %v1869, %v2293
      %v2295 = vpop.f32.mrb[0].mxu0
      %v2296 = vpop.f32.mrb[0].mxu0
      %v2297 = vadd.f32 %v1872, %v2296
      %v2298 = vpop.f32.mrb[0].mxu0
      %2299 = vmatprep.mubr.bf16.mxu0 0
      %2300 = vmatmul.mubr.bf16.gmra.mrb[0].mxu0 %v1509
      %v2301 = vpop.f32.mrb[0].mxu0
      %v2302 = vadd.f32 %v1877, %v2301
      %v2303 = vpop.f32.mrb[0].mxu0
      %v2304 = vpop.f32.mrb[0].mxu0
      %v2305 = vadd.f32 %v1880, %v2304
      %v2306 = vpop.f32.mrb[0].mxu0
      %2307 = vmatprep.mubr.bf16.mxu0 0
      %2308 = vmatmul.mubr.bf16.gmra.mrb[0].mxu0 %v1512
      %v2309 = vpop.f32.mrb[0].mxu0
      %v2310 = vadd.f32 %v1885, %v2309
      %v2311 = vpop.f32.mrb[0].mxu0
      %v2312 = vpop.f32.mrb[0].mxu0
      %v2313 = vadd.f32 %v1888, %v2312
      %v2314 = vpop.f32.mrb[0].mxu0
      %2315 = vmatprep.mubr.bf16.mxu0 0
      %2316 = vmatmul.mubr.bf16.gmra.mrb[0].mxu0 %v1515
      %v2317 = vpop.f32.mrb[0].mxu0
      %v2318 = vadd.f32 %v1893, %v2317
      %v2319 = vpop.f32.mrb[0].mxu0
      %v2320 = vpop.f32.mrb[0].mxu0
      %v2321 = vadd.f32 %v1896, %v2320
      %v2322 = vpop.f32.mrb[0].mxu0
      %2323 = vmatprep.mubr.bf16.mxu0 0
      %2324 = vmatmul.mubr.bf16.gmra.mrb[0].mxu0 %v1518
      %v2325 = vpop.f32.mrb[0].mxu0
      %v2326 = vadd.f32 %v1901, %v2325
      %v2327 = vpop.f32.mrb[0].mxu0
      %v2328 = vpop.f32.mrb[0].mxu0
      %v2329 = vadd.f32 %v1904, %v2328
      %v2330 = vpop.f32.mrb[0].mxu0
      %2331 = vmatprep.mubr.bf16.mxu0 0
      %2332 = vmatmul.mubr.bf16.gmra.mrb[0].mxu0 %v1521
      %v2333 = vpop.f32.mrb[0].mxu0
      %v2334 = vadd.f32 %v1909, %v2333
      %v2335 = vpop.f32.mrb[0].mxu0
      %v2336 = vpop.f32.mrb[0].mxu0
      %v2337 = vadd.f32 %v1912, %v2336
      %v2338 = vpop.f32.mrb[0].mxu0
      %2339 = vmatprep.mubr.bf16.mxu0 0
      %2340 = vmatmul.mubr.bf16.gmra.mrb[0].mxu0 %v1524
      %v2341 = vpop.f32.mrb[0].mxu0
      %v2342 = vadd.f32 %v1917, %v2341
      %v2343 = vpop.f32.mrb[0].mxu0
      %v2344 = vpop.f32.mrb[0].mxu0
      %v2345 = vadd.f32 %v1920, %v2344
      %v2346 = vpop.f32.mrb[0].mxu0
      %2347 = vmatprep.mubr.bf16.mxu0 0
      %2348 = vmatmul.mubr.bf16.gmra.mrb[0].mxu0 %v1527
      %v2349 = vpop.f32.mrb[0].mxu0
      %v2350 = vadd.f32 %v1925, %v2349
      %v2351 = vpop.f32.mrb[0].mxu0
      %v2352 = vpop.f32.mrb[0].mxu0
      %v2353 = vadd.f32 %v1928, %v2352
      %v2354 = vpop.f32.mrb[0].mxu0
      %2355 = vmatprep.mubr.bf16.mxu0 0
      %2356 = vmatmul.mubr.bf16.gmra.mrb[0].mxu0 %v1530
      %v2357 = vpop.f32.mrb[0].mxu0
      %v2358 = vadd.f32 %v1933, %v2357
      %v2359 = vpop.f32.mrb[0].mxu0
      %v2360 = vpop.f32.mrb[0].mxu0
      %v2361 = vadd.f32 %v1936, %v2360
      %v2362 = vpop.f32.mrb[0].mxu0
      %2363 = vmatprep.mubr.bf16.mxu0 0
      %2364 = vmatmul.mubr.bf16.gmra.mrb[0].mxu0 %v1533
      %v2365 = vpop.f32.mrb[0].mxu0
      %v2366 = vadd.f32 %v1941, %v2365
      %v2367 = vpop.f32.mrb[0].mxu0
      %v2368 = vpop.f32.mrb[0].mxu0
      %v2369 = vadd.f32 %v1944, %v2368
      %v2370 = vpop.f32.mrb[0].mxu0
      %2371 = vmatprep.mubr.bf16.mxu0 0
      %2372 = vmatmul.mubr.bf16.gmra.mrb[0].mxu0 %v1536
      %v2373 = vpop.f32.mrb[0].mxu0
      %v2374 = vadd.f32 %v1949, %v2373
      %v2375 = vpop.f32.mrb[0].mxu0
      %v2376 = vpop.f32.mrb[0].mxu0
      %v2377 = vadd.f32 %v1952, %v2376
      %v2378 = vpop.f32.mrb[0].mxu0
      %2379 = vmatprep.mubr.bf16.mxu0 0
      %2380 = vmatmul.mubr.bf16.gmra.mrb[0].mxu0 %v1539
      %v2381 = vpop.f32.mrb[0].mxu0
      %v2382 = vadd.f32 %v1957, %v2381
      %v2383 = vpop.f32.mrb[0].mxu0
      %v2384 = vpop.f32.mrb[0].mxu0
      %v2385 = vadd.f32 %v1960, %v2384
      %v2386 = vpop.f32.mrb[0].mxu0
      %2387 = vmatprep.mubr.bf16.mxu0 0
      %2388 = vmatmul.mubr.bf16.gmra.mrb[0].mxu0 %v1542
      %v2389 = vpop.f32.mrb[0].mxu0
      %v2390 = vadd.f32 %v1965, %v2389
      %v2391 = vpop.f32.mrb[0].mxu0
      %v2392 = vpop.f32.mrb[0].mxu0
      %v2393 = vadd.f32 %v1968, %v2392
      %v2394 = vpop.f32.mrb[0].mxu0
      %2395 = vmatprep.mubr.bf16.mxu0 0
      %2396 = vmatmul.mubr.bf16.gmra.mrb[0].mxu0 %v1545
      %v2397 = vpop.f32.mrb[0].mxu0
      %v2398 = vadd.f32 %v1973, %v2397
      %v2399 = vpop.f32.mrb[0].mxu0
      %v2400 = vpop.f32.mrb[0].mxu0
      %v2401 = vadd.f32 %v1976, %v2400
      %v2402 = vpop.f32.mrb[0].mxu0
      %2403 = vdwg.mxu0
      %v2404 = vld [vmem:[%s296] sm:$0xff]
      %v2405 = vld [vmem:[%s296 + $0x8] sm:$0xff]
      %v2406 = vld [vmem:[%s296 + $0x10] sm:$0xff]
      %v2407 = vld [vmem:[%s296 + $0x18] sm:$0xff]
      %v2408 = vld [vmem:[%s296 + $0x20] sm:$0xff]
      %v2409 = vld [vmem:[%s296 + $0x28] sm:$0xff]
      %v2410 = vld [vmem:[%s296 + $0x30] sm:$0xff]
      %v2411 = vld [vmem:[%s296 + $0x38] sm:$0xff]
      %v2412 = vld [vmem:[%s296 + $0x40] sm:$0xff]
      %v2413 = vld [vmem:[%s296 + $0x48] sm:$0xff]
      %v2414 = vld [vmem:[%s296 + $0x50] sm:$0xff]
      %v2415 = vld [vmem:[%s296 + $0x58] sm:$0xff]
      %v2416 = vld [vmem:[%s296 + $0x60] sm:$0xff]
      %v2417 = vld [vmem:[%s296 + $0x68] sm:$0xff]
      %v2418 = vld [vmem:[%s296 + $0x70] sm:$0xff]
      %v2419 = vld [vmem:[%s296 + $0x78] sm:$0xff]
      %v2420 = vld [vmem:[%s296 + $0x80] sm:$0xff]
      %v2421 = vld [vmem:[%s296 + $0x88] sm:$0xff]
      %v2422 = vld [vmem:[%s296 + $0x90] sm:$0xff]
      %v2423 = vld [vmem:[%s296 + $0x98] sm:$0xff]
      %v2424 = vld [vmem:[%s296 + $0xa0] sm:$0xff]
      %v2425 = vld [vmem:[%s296 + $0xa8] sm:$0xff]
      %v2426 = vld [vmem:[%s296 + $0xb0] sm:$0xff]
      %v2427 = vld [vmem:[%s296 + $0xb8] sm:$0xff]
      %v2428 = vld [vmem:[%s296 + $0xc0] sm:$0xff]
      %v2429 = vld [vmem:[%s296 + $0xc8] sm:$0xff]
      %v2430 = vld [vmem:[%s296 + $0xd0] sm:$0xff]
      %v2431 = vld [vmem:[%s296 + $0xd8] sm:$0xff]
      %v2432 = vld [vmem:[%s296 + $0xe0] sm:$0xff]
      %v2433 = vld [vmem:[%s296 + $0xe8] sm:$0xff]
      %v2434 = vld [vmem:[%s296 + $0xf0] sm:$0xff]
      %v2435 = vld [vmem:[%s296 + $0xf8] sm:$0xff]
      %v2436 = vld [vmem:[%s296 + $0x100] sm:$0xff]
      %v2437 = vld [vmem:[%s296 + $0x108] sm:$0xff]
      %v2438 = vld [vmem:[%s296 + $0x110] sm:$0xff]
      %v2439 = vld [vmem:[%s296 + $0x118] sm:$0xff]
      %v2440 = vld [vmem:[%s296 + $0x120] sm:$0xff]
      %v2441 = vld [vmem:[%s296 + $0x128] sm:$0xff]
      %v2442 = vld [vmem:[%s296 + $0x130] sm:$0xff]
      %v2443 = vld [vmem:[%s296 + $0x138] sm:$0xff]
      %v2444 = vld [vmem:[%s296 + $0x140] sm:$0xff]
      %v2445 = vld [vmem:[%s296 + $0x148] sm:$0xff]
      %v2446 = vld [vmem:[%s296 + $0x150] sm:$0xff]
      %v2447 = vld [vmem:[%s296 + $0x158] sm:$0xff]
      %v2448 = vld [vmem:[%s296 + $0x160] sm:$0xff]
      %v2449 = vld [vmem:[%s296 + $0x168] sm:$0xff]
      %v2450 = vld [vmem:[%s296 + $0x170] sm:$0xff]
      %v2451 = vld [vmem:[%s296 + $0x178] sm:$0xff]
      %v2452 = vld [vmem:[%s296 + $0x180] sm:$0xff]
      %v2453 = vld [vmem:[%s296 + $0x188] sm:$0xff]
      %v2454 = vld [vmem:[%s296 + $0x190] sm:$0xff]
      %v2455 = vld [vmem:[%s296 + $0x198] sm:$0xff]
      %v2456 = vld [vmem:[%s296 + $0x1a0] sm:$0xff]
      %v2457 = vld [vmem:[%s296 + $0x1a8] sm:$0xff]
      %v2458 = vld [vmem:[%s296 + $0x1b0] sm:$0xff]
      %v2459 = vld [vmem:[%s296 + $0x1b8] sm:$0xff]
      %v2460 = vld [vmem:[%s296 + $0x1c0] sm:$0xff]
      %v2461 = vld [vmem:[%s296 + $0x1c8] sm:$0xff]
      %v2462 = vld [vmem:[%s296 + $0x1d0] sm:$0xff]
      %v2463 = vld [vmem:[%s296 + $0x1d8] sm:$0xff]
      %v2464 = vld [vmem:[%s296 + $0x1e0] sm:$0xff]
      %v2465 = vld [vmem:[%s296 + $0x1e8] sm:$0xff]
      %v2466 = vld [vmem:[%s296 + $0x1f0] sm:$0xff]
      %v2467 = vld [vmem:[%s296 + $0x1f8] sm:$0xff]
      %v2468 = vld [vmem:[%s296 + $0x200] sm:$0xff]
      %v2469 = vld [vmem:[%s296 + $0x208] sm:$0xff]
      %v2470 = vld [vmem:[%s296 + $0x210] sm:$0xff]
      %v2471 = vld [vmem:[%s296 + $0x218] sm:$0xff]
      %v2472 = vld [vmem:[%s296 + $0x220] sm:$0xff]
      %v2473 = vld [vmem:[%s296 + $0x228] sm:$0xff]
      %v2474 = vld [vmem:[%s296 + $0x230] sm:$0xff]
      %v2475 = vld [vmem:[%s296 + $0x238] sm:$0xff]
      %v2476 = vld [vmem:[%s296 + $0x240] sm:$0xff]
      %v2477 = vld [vmem:[%s296 + $0x248] sm:$0xff]
      %v2478 = vld [vmem:[%s296 + $0x250] sm:$0xff]
      %v2479 = vld [vmem:[%s296 + $0x258] sm:$0xff]
      %v2480 = vld [vmem:[%s296 + $0x260] sm:$0xff]
      %v2481 = vld [vmem:[%s296 + $0x268] sm:$0xff]
      %v2482 = vld [vmem:[%s296 + $0x270] sm:$0xff]
      %v2483 = vld [vmem:[%s296 + $0x278] sm:$0xff]
      %v2484 = vld [vmem:[%s296 + $0x280] sm:$0xff]
      %v2485 = vld [vmem:[%s296 + $0x288] sm:$0xff]
      %v2486 = vld [vmem:[%s296 + $0x290] sm:$0xff]
      %v2487 = vld [vmem:[%s296 + $0x298] sm:$0xff]
      %v2488 = vld [vmem:[%s296 + $0x2a0] sm:$0xff]
      %v2489 = vld [vmem:[%s296 + $0x2a8] sm:$0xff]
      %v2490 = vld [vmem:[%s296 + $0x2b0] sm:$0xff]
      %v2491 = vld [vmem:[%s296 + $0x2b8] sm:$0xff]
      %v2492 = vld [vmem:[%s296 + $0x2c0] sm:$0xff]
      %v2493 = vld [vmem:[%s296 + $0x2c8] sm:$0xff]
      %v2494 = vld [vmem:[%s296 + $0x2d0] sm:$0xff]
      %v2495 = vld [vmem:[%s296 + $0x2d8] sm:$0xff]
      %v2496 = vld [vmem:[%s296 + $0x2e0] sm:$0xff]
      %v2497 = vld [vmem:[%s296 + $0x2e8] sm:$0xff]
      %v2498 = vld [vmem:[%s296 + $0x2f0] sm:$0xff]
      %v2499 = vld [vmem:[%s296 + $0x2f8] sm:$0xff]
      %v2500 = vld [vmem:[%s296 + $0x300] sm:$0xff]
      %v2501 = vld [vmem:[%s296 + $0x308] sm:$0xff]
      %v2502 = vld [vmem:[%s302] sm:$0xff]
      %v2503 = vld [vmem:[%s302 + $0x8] sm:$0xff]
      %v2504 = vld [vmem:[%s302 + $0x10] sm:$0xff]
      %v2505 = vld [vmem:[%s302 + $0x18] sm:$0xff]
      %v2506 = vld [vmem:[%s302 + $0x20] sm:$0xff]
      %v2507 = vld [vmem:[%s302 + $0x28] sm:$0xff]
      %v2508 = vld [vmem:[%s302 + $0x30] sm:$0xff]
      %v2509 = vld [vmem:[%s302 + $0x38] sm:$0xff]
      %v2510 = vld [vmem:[%s302 + $0x40] sm:$0xff]
      %v2511 = vld [vmem:[%s302 + $0x48] sm:$0xff]
      %v2512 = vld [vmem:[%s302 + $0x50] sm:$0xff]
      %v2513 = vld [vmem:[%s302 + $0x58] sm:$0xff]
      %v2514 = vld [vmem:[%s302 + $0x60] sm:$0xff]
      %v2515 = vld [vmem:[%s302 + $0x68] sm:$0xff]
      %v2516 = vld [vmem:[%s302 + $0x70] sm:$0xff]
      %v2517 = vld [vmem:[%s302 + $0x78] sm:$0xff]
      %v2518 = vld [vmem:[%s302 + $0x80] sm:$0xff]
      %v2519 = vld [vmem:[%s302 + $0x88] sm:$0xff]
      %v2520 = vld [vmem:[%s302 + $0x90] sm:$0xff]
      %v2521 = vld [vmem:[%s302 + $0x98] sm:$0xff]
      %v2522 = vld [vmem:[%s302 + $0xa0] sm:$0xff]
      %v2523 = vld [vmem:[%s302 + $0xa8] sm:$0xff]
      %v2524 = vld [vmem:[%s302 + $0xb0] sm:$0xff]
      %v2525 = vld [vmem:[%s302 + $0xb8] sm:$0xff]
      %v2526 = vld [vmem:[%s302 + $0xc0] sm:$0xff]
      %v2527 = vld [vmem:[%s302 + $0xc8] sm:$0xff]
      %v2528 = vld [vmem:[%s302 + $0xd0] sm:$0xff]
      %v2529 = vld [vmem:[%s302 + $0xd8] sm:$0xff]
      %v2530 = vld [vmem:[%s302 + $0xe0] sm:$0xff]
      %v2531 = vld [vmem:[%s302 + $0xe8] sm:$0xff]
      %v2532 = vld [vmem:[%s302 + $0xf0] sm:$0xff]
      %v2533 = vld [vmem:[%s302 + $0xf8] sm:$0xff]
      %v2534 = vld [vmem:[%s302 + $0x100] sm:$0xff]
      %v2535 = vld [vmem:[%s302 + $0x108] sm:$0xff]
      %v2536 = vld [vmem:[%s302 + $0x110] sm:$0xff]
      %v2537 = vld [vmem:[%s302 + $0x118] sm:$0xff]
      %v2538 = vld [vmem:[%s302 + $0x120] sm:$0xff]
      %v2539 = vld [vmem:[%s302 + $0x128] sm:$0xff]
      %v2540 = vld [vmem:[%s302 + $0x130] sm:$0xff]
      %v2541 = vld [vmem:[%s302 + $0x138] sm:$0xff]
      %v2542 = vld [vmem:[%s302 + $0x140] sm:$0xff]
      %v2543 = vld [vmem:[%s302 + $0x148] sm:$0xff]
      %v2544 = vld [vmem:[%s302 + $0x150] sm:$0xff]
      %v2545 = vld [vmem:[%s302 + $0x158] sm:$0xff]
      %v2546 = vld [vmem:[%s302 + $0x160] sm:$0xff]
      %v2547 = vld [vmem:[%s302 + $0x168] sm:$0xff]
      %v2548 = vld [vmem:[%s302 + $0x170] sm:$0xff]
      %v2549 = vld [vmem:[%s302 + $0x178] sm:$0xff]
      %v2550 = vld [vmem:[%s302 + $0x180] sm:$0xff]
      %v2551 = vld [vmem:[%s302 + $0x188] sm:$0xff]
      %v2552 = vld [vmem:[%s302 + $0x190] sm:$0xff]
      %v2553 = vld [vmem:[%s302 + $0x198] sm:$0xff]
      %v2554 = vld [vmem:[%s302 + $0x1a0] sm:$0xff]
      %v2555 = vld [vmem:[%s302 + $0x1a8] sm:$0xff]
      %v2556 = vld [vmem:[%s302 + $0x1b0] sm:$0xff]
      %v2557 = vld [vmem:[%s302 + $0x1b8] sm:$0xff]
      %v2558 = vld [vmem:[%s302 + $0x1c0] sm:$0xff]
      %v2559 = vld [vmem:[%s302 + $0x1c8] sm:$0xff]
      %v2560 = vld [vmem:[%s302 + $0x1d0] sm:$0xff]
      %v2561 = vld [vmem:[%s302 + $0x1d8] sm:$0xff]
      %v2562 = vld [vmem:[%s302 + $0x1e0] sm:$0xff]
      %v2563 = vld [vmem:[%s302 + $0x1e8] sm:$0xff]
      %v2564 = vld [vmem:[%s302 + $0x1f0] sm:$0xff]
      %v2565 = vld [vmem:[%s302 + $0x1f8] sm:$0xff]
      %v2566 = vld [vmem:[%s302 + $0x200] sm:$0xff]
      %v2567 = vld [vmem:[%s302 + $0x208] sm:$0xff]
      %v2568 = vld [vmem:[%s302 + $0x210] sm:$0xff]
      %v2569 = vld [vmem:[%s302 + $0x218] sm:$0xff]
      %v2570 = vld [vmem:[%s302 + $0x220] sm:$0xff]
      %v2571 = vld [vmem:[%s302 + $0x228] sm:$0xff]
      %v2572 = vld [vmem:[%s302 + $0x230] sm:$0xff]
      %v2573 = vld [vmem:[%s302 + $0x238] sm:$0xff]
      %v2574 = vld [vmem:[%s302 + $0x240] sm:$0xff]
      %v2575 = vld [vmem:[%s302 + $0x248] sm:$0xff]
      %v2576 = vld [vmem:[%s302 + $0x250] sm:$0xff]
      %v2577 = vld [vmem:[%s302 + $0x258] sm:$0xff]
      %v2578 = vld [vmem:[%s302 + $0x260] sm:$0xff]
      %v2579 = vld [vmem:[%s302 + $0x268] sm:$0xff]
      %v2580 = vld [vmem:[%s302 + $0x270] sm:$0xff]
      %v2581 = vld [vmem:[%s302 + $0x278] sm:$0xff]
      %v2582 = vld [vmem:[%s302 + $0x280] sm:$0xff]
      %v2583 = vld [vmem:[%s302 + $0x288] sm:$0xff]
      %v2584 = vld [vmem:[%s302 + $0x290] sm:$0xff]
      %v2585 = vld [vmem:[%s302 + $0x298] sm:$0xff]
      %v2586 = vld [vmem:[%s302 + $0x2a0] sm:$0xff]
      %v2587 = vld [vmem:[%s302 + $0x2a8] sm:$0xff]
      %v2588 = vld [vmem:[%s302 + $0x2b0] sm:$0xff]
      %v2589 = vld [vmem:[%s302 + $0x2b8] sm:$0xff]
      %v2590 = vld [vmem:[%s302 + $0x2c0] sm:$0xff]
      %v2591 = vld [vmem:[%s302 + $0x2c8] sm:$0xff]
      %v2592 = vld [vmem:[%s302 + $0x2d0] sm:$0xff]
      %v2593 = vld [vmem:[%s302 + $0x2d8] sm:$0xff]
      %v2594 = vld [vmem:[%s302 + $0x2e0] sm:$0xff]
      %v2595 = vld [vmem:[%s302 + $0x2e8] sm:$0xff]
      %v2596 = vld [vmem:[%s302 + $0x2f0] sm:$0xff]
      %v2597 = vld [vmem:[%s302 + $0x2f8] sm:$0xff]
      %v2598 = vld [vmem:[%s302 + $0x300] sm:$0xff]
      %v2599 = vld [vmem:[%s302 + $0x308] sm:$0xff]
      %v2600 = vsub.f32 1.0, %v2502
      %v2601 = vsub.f32 1.0, %v2503
      %v2602 = vsub.f32 1.0, %v2504
      %v2603 = vsub.f32 1.0, %v2505
      %v2604 = vsub.f32 1.0, %v2506
      %v2605 = vsub.f32 1.0, %v2507
      %v2606 = vsub.f32 1.0, %v2508
      %v2607 = vsub.f32 1.0, %v2509
      %v2608 = vsub.f32 1.0, %v2510
      %v2609 = vsub.f32 1.0, %v2511
      %v2610 = vsub.f32 1.0, %v2512
      %v2611 = vsub.f32 1.0, %v2513
      %v2612 = vsub.f32 1.0, %v2514
      %v2613 = vsub.f32 1.0, %v2515
      %v2614 = vsub.f32 1.0, %v2516
      %v2615 = vsub.f32 1.0, %v2517
      %v2616 = vsub.f32 1.0, %v2518
      %v2617 = vsub.f32 1.0, %v2519
      %v2618 = vsub.f32 1.0, %v2520
      %v2619 = vsub.f32 1.0, %v2521
      %v2620 = vsub.f32 1.0, %v2522
      %v2621 = vsub.f32 1.0, %v2523
      %v2622 = vsub.f32 1.0, %v2524
      %v2623 = vsub.f32 1.0, %v2525
      %v2624 = vsub.f32 1.0, %v2526
      %v2625 = vsub.f32 1.0, %v2527
      %v2626 = vsub.f32 1.0, %v2528
      %v2627 = vsub.f32 1.0, %v2529
      %v2628 = vsub.f32 1.0, %v2530
      %v2629 = vsub.f32 1.0, %v2531
      %v2630 = vsub.f32 1.0, %v2532
      %v2631 = vsub.f32 1.0, %v2533
      %v2632 = vsub.f32 1.0, %v2534
      %v2633 = vsub.f32 1.0, %v2535
      %v2634 = vsub.f32 1.0, %v2536
      %v2635 = vsub.f32 1.0, %v2537
      %v2636 = vsub.f32 1.0, %v2538
      %v2637 = vsub.f32 1.0, %v2539
      %v2638 = vsub.f32 1.0, %v2540
      %v2639 = vsub.f32 1.0, %v2541
      %v2640 = vsub.f32 1.0, %v2542
      %v2641 = vsub.f32 1.0, %v2543
      %v2642 = vsub.f32 1.0, %v2544
      %v2643 = vsub.f32 1.0, %v2545
      %v2644 = vsub.f32 1.0, %v2546
      %v2645 = vsub.f32 1.0, %v2547
      %v2646 = vsub.f32 1.0, %v2548
      %v2647 = vsub.f32 1.0, %v2549
      %v2648 = vsub.f32 1.0, %v2550
      %v2649 = vsub.f32 1.0, %v2551
      %v2650 = vsub.f32 1.0, %v2552
      %v2651 = vsub.f32 1.0, %v2553
      %v2652 = vsub.f32 1.0, %v2554
      %v2653 = vsub.f32 1.0, %v2555
      %v2654 = vsub.f32 1.0, %v2556
      %v2655 = vsub.f32 1.0, %v2557
      %v2656 = vsub.f32 1.0, %v2558
      %v2657 = vsub.f32 1.0, %v2559
      %v2658 = vsub.f32 1.0, %v2560
      %v2659 = vsub.f32 1.0, %v2561
      %v2660 = vsub.f32 1.0, %v2562
      %v2661 = vsub.f32 1.0, %v2563
      %v2662 = vsub.f32 1.0, %v2564
      %v2663 = vsub.f32 1.0, %v2565
      %v2664 = vsub.f32 1.0, %v2566
      %v2665 = vsub.f32 1.0, %v2567
      %v2666 = vsub.f32 1.0, %v2568
      %v2667 = vsub.f32 1.0, %v2569
      %v2668 = vsub.f32 1.0, %v2570
      %v2669 = vsub.f32 1.0, %v2571
      %v2670 = vsub.f32 1.0, %v2572
      %v2671 = vsub.f32 1.0, %v2573
      %v2672 = vsub.f32 1.0, %v2574
      %v2673 = vsub.f32 1.0, %v2575
      %v2674 = vsub.f32 1.0, %v2576
      %v2675 = vsub.f32 1.0, %v2577
      %v2676 = vsub.f32 1.0, %v2578
      %v2677 = vsub.f32 1.0, %v2579
      %v2678 = vsub.f32 1.0, %v2580
      %v2679 = vsub.f32 1.0, %v2581
      %v2680 = vsub.f32 1.0, %v2582
      %v2681 = vsub.f32 1.0, %v2583
      %v2682 = vsub.f32 1.0, %v2584
      %v2683 = vsub.f32 1.0, %v2585
      %v2684 = vsub.f32 1.0, %v2586
      %v2685 = vsub.f32 1.0, %v2587
      %v2686 = vsub.f32 1.0, %v2588
      %v2687 = vsub.f32 1.0, %v2589
      %v2688 = vsub.f32 1.0, %v2590
      %v2689 = vsub.f32 1.0, %v2591
      %v2690 = vsub.f32 1.0, %v2592
      %v2691 = vsub.f32 1.0, %v2593
      %v2692 = vsub.f32 1.0, %v2594
      %v2693 = vsub.f32 1.0, %v2595
      %v2694 = vsub.f32 1.0, %v2596
      %v2695 = vsub.f32 1.0, %v2597
      %v2696 = vsub.f32 1.0, %v2598
      %v2697 = vsub.f32 1.0, %v2599
      %v2698 = vmul.f32 %v2404, %v2600
      %v2699 = vmul.f32 %v2405, %v2601
      %v2700 = vmul.f32 %v2406, %v2602
      %v2701 = vmul.f32 %v2407, %v2603
      %v2702 = vmul.f32 %v2408, %v2604
      %v2703 = vmul.f32 %v2409, %v2605
      %v2704 = vmul.f32 %v2410, %v2606
      %v2705 = vmul.f32 %v2411, %v2607
      %v2706 = vmul.f32 %v2412, %v2608
      %v2707 = vmul.f32 %v2413, %v2609
      %v2708 = vmul.f32 %v2414, %v2610
      %v2709 = vmul.f32 %v2415, %v2611
      %v2710 = vmul.f32 %v2416, %v2612
      %v2711 = vmul.f32 %v2417, %v2613
      %v2712 = vmul.f32 %v2418, %v2614
      %v2713 = vmul.f32 %v2419, %v2615
      %v2714 = vmul.f32 %v2420, %v2616
      %v2715 = vmul.f32 %v2421, %v2617
      %v2716 = vmul.f32 %v2422, %v2618
      %v2717 = vmul.f32 %v2423, %v2619
      %v2718 = vmul.f32 %v2424, %v2620
      %v2719 = vmul.f32 %v2425, %v2621
      %v2720 = vmul.f32 %v2426, %v2622
      %v2721 = vmul.f32 %v2427, %v2623
      %v2722 = vmul.f32 %v2428, %v2624
      %v2723 = vmul.f32 %v2429, %v2625
      %v2724 = vmul.f32 %v2430, %v2626
      %v2725 = vmul.f32 %v2431, %v2627
      %v2726 = vmul.f32 %v2432, %v2628
      %v2727 = vmul.f32 %v2433, %v2629
      %v2728 = vmul.f32 %v2434, %v2630
      %v2729 = vmul.f32 %v2435, %v2631
      %v2730 = vmul.f32 %v2436, %v2632
      %v2731 = vmul.f32 %v2437, %v2633
      %v2732 = vmul.f32 %v2438, %v2634
      %v2733 = vmul.f32 %v2439, %v2635
      %v2734 = vmul.f32 %v2440, %v2636
      %v2735 = vmul.f32 %v2441, %v2637
      %v2736 = vmul.f32 %v2442, %v2638
      %v2737 = vmul.f32 %v2443, %v2639
      %v2738 = vmul.f32 %v2444, %v2640
      %v2739 = vmul.f32 %v2445, %v2641
      %v2740 = vmul.f32 %v2446, %v2642
      %v2741 = vmul.f32 %v2447, %v2643
      %v2742 = vmul.f32 %v2448, %v2644
      %v2743 = vmul.f32 %v2449, %v2645
      %v2744 = vmul.f32 %v2450, %v2646
      %v2745 = vmul.f32 %v2451, %v2647
      %v2746 = vmul.f32 %v2452, %v2648
      %v2747 = vmul.f32 %v2453, %v2649
      %v2748 = vmul.f32 %v2454, %v2650
      %v2749 = vmul.f32 %v2455, %v2651
      %v2750 = vmul.f32 %v2456, %v2652
      %v2751 = vmul.f32 %v2457, %v2653
      %v2752 = vmul.f32 %v2458, %v2654
      %v2753 = vmul.f32 %v2459, %v2655
      %v2754 = vmul.f32 %v2460, %v2656
      %v2755 = vmul.f32 %v2461, %v2657
      %v2756 = vmul.f32 %v2462, %v2658
      %v2757 = vmul.f32 %v2463, %v2659
      %v2758 = vmul.f32 %v2464, %v2660
      %v2759 = vmul.f32 %v2465, %v2661
      %v2760 = vmul.f32 %v2466, %v2662
      %v2761 = vmul.f32 %v2467, %v2663
      %v2762 = vmul.f32 %v2468, %v2664
      %v2763 = vmul.f32 %v2469, %v2665
      %v2764 = vmul.f32 %v2470, %v2666
      %v2765 = vmul.f32 %v2471, %v2667
      %v2766 = vmul.f32 %v2472, %v2668
      %v2767 = vmul.f32 %v2473, %v2669
      %v2768 = vmul.f32 %v2474, %v2670
      %v2769 = vmul.f32 %v2475, %v2671
      %v2770 = vmul.f32 %v2476, %v2672
      %v2771 = vmul.f32 %v2477, %v2673
      %v2772 = vmul.f32 %v2478, %v2674
      %v2773 = vmul.f32 %v2479, %v2675
      %v2774 = vmul.f32 %v2480, %v2676
      %v2775 = vmul.f32 %v2481, %v2677
      %v2776 = vmul.f32 %v2482, %v2678
      %v2777 = vmul.f32 %v2483, %v2679
      %v2778 = vmul.f32 %v2484, %v2680
      %v2779 = vmul.f32 %v2485, %v2681
      %v2780 = vmul.f32 %v2486, %v2682
      %v2781 = vmul.f32 %v2487, %v2683
      %v2782 = vmul.f32 %v2488, %v2684
      %v2783 = vmul.f32 %v2489, %v2685
      %v2784 = vmul.f32 %v2490, %v2686
      %v2785 = vmul.f32 %v2491, %v2687
      %v2786 = vmul.f32 %v2492, %v2688
      %v2787 = vmul.f32 %v2493, %v2689
      %v2788 = vmul.f32 %v2494, %v2690
      %v2789 = vmul.f32 %v2495, %v2691
      %v2790 = vmul.f32 %v2496, %v2692
      %v2791 = vmul.f32 %v2497, %v2693
      %v2792 = vmul.f32 %v2498, %v2694
      %v2793 = vmul.f32 %v2499, %v2695
      %v2794 = vmul.f32 %v2500, %v2696
      %v2795 = vmul.f32 %v2501, %v2697
      %v2796 = vadd.f32 %v2698, %v2014
      %v2797 = vadd.f32 %v2699, %v2017
      %v2798 = vadd.f32 %v2700, %v2022
      %v2799 = vadd.f32 %v2701, %v2025
      %v2800 = vadd.f32 %v2702, %v2030
      %v2801 = vadd.f32 %v2703, %v2033
      %v2802 = vadd.f32 %v2704, %v2038
      %v2803 = vadd.f32 %v2705, %v2041
      %v2804 = vadd.f32 %v2706, %v2046
      %v2805 = vadd.f32 %v2707, %v2049
      %v2806 = vadd.f32 %v2708, %v2054
      %v2807 = vadd.f32 %v2709, %v2057
      %v2808 = vadd.f32 %v2710, %v2062
      %v2809 = vadd.f32 %v2711, %v2065
      %v2810 = vadd.f32 %v2712, %v2070
      %v2811 = vadd.f32 %v2713, %v2073
      %v2812 = vadd.f32 %v2714, %v2078
      %v2813 = vadd.f32 %v2715, %v2081
      %v2814 = vadd.f32 %v2716, %v2086
      %v2815 = vadd.f32 %v2717, %v2089
      %v2816 = vadd.f32 %v2718, %v2094
      %v2817 = vadd.f32 %v2719, %v2097
      %v2818 = vadd.f32 %v2720, %v2102
      %v2819 = vadd.f32 %v2721, %v2105
      %v2820 = vadd.f32 %v2722, %v2110
      %v2821 = vadd.f32 %v2723, %v2113
      %v2822 = vadd.f32 %v2724, %v2118
      %v2823 = vadd.f32 %v2725, %v2121
      %v2824 = vadd.f32 %v2726, %v2126
      %v2825 = vadd.f32 %v2727, %v2129
      %v2826 = vadd.f32 %v2728, %v2134
      %v2827 = vadd.f32 %v2729, %v2137
      %v2828 = vadd.f32 %v2730, %v2142
      %v2829 = vadd.f32 %v2731, %v2145
      %v2830 = vadd.f32 %v2732, %v2150
      %v2831 = vadd.f32 %v2733, %v2153
      %v2832 = vadd.f32 %v2734, %v2158
      %v2833 = vadd.f32 %v2735, %v2161
      %v2834 = vadd.f32 %v2736, %v2166
      %v2835 = vadd.f32 %v2737, %v2169
      %v2836 = vadd.f32 %v2738, %v2174
      %v2837 = vadd.f32 %v2739, %v2177
      %v2838 = vadd.f32 %v2740, %v2182
      %v2839 = vadd.f32 %v2741, %v2185
      %v2840 = vadd.f32 %v2742, %v2190
      %v2841 = vadd.f32 %v2743, %v2193
      %v2842 = vadd.f32 %v2744, %v2198
      %v2843 = vadd.f32 %v2745, %v2201
      %v2844 = vadd.f32 %v2746, %v2206
      %v2845 = vadd.f32 %v2747, %v2209
      %v2846 = vadd.f32 %v2748, %v2214
      %v2847 = vadd.f32 %v2749, %v2217
      %v2848 = vadd.f32 %v2750, %v2222
      %v2849 = vadd.f32 %v2751, %v2225
      %v2850 = vadd.f32 %v2752, %v2230
      %v2851 = vadd.f32 %v2753, %v2233
      %v2852 = vadd.f32 %v2754, %v2238
      %v2853 = vadd.f32 %v2755, %v2241
      %v2854 = vadd.f32 %v2756, %v2246
      %v2855 = vadd.f32 %v2757, %v2249
      %v2856 = vadd.f32 %v2758, %v2254
      %v2857 = vadd.f32 %v2759, %v2257
      %v2858 = vadd.f32 %v2760, %v2262
      %v2859 = vadd.f32 %v2761, %v2265
      %v2860 = vadd.f32 %v2762, %v2270
      %v2861 = vadd.f32 %v2763, %v2273
      %v2862 = vadd.f32 %v2764, %v2278
      %v2863 = vadd.f32 %v2765, %v2281
      %v2864 = vadd.f32 %v2766, %v2286
      %v2865 = vadd.f32 %v2767, %v2289
      %v2866 = vadd.f32 %v2768, %v2294
      %v2867 = vadd.f32 %v2769, %v2297
      %v2868 = vadd.f32 %v2770, %v2302
      %v2869 = vadd.f32 %v2771, %v2305
      %v2870 = vadd.f32 %v2772, %v2310
      %v2871 = vadd.f32 %v2773, %v2313
      %v2872 = vadd.f32 %v2774, %v2318
      %v2873 = vadd.f32 %v2775, %v2321
      %v2874 = vadd.f32 %v2776, %v2326
      %v2875 = vadd.f32 %v2777, %v2329
      %v2876 = vadd.f32 %v2778, %v2334
      %v2877 = vadd.f32 %v2779, %v2337
      %v2878 = vadd.f32 %v2780, %v2342
      %v2879 = vadd.f32 %v2781, %v2345
      %v2880 = vadd.f32 %v2782, %v2350
      %v2881 = vadd.f32 %v2783, %v2353
      %v2882 = vadd.f32 %v2784, %v2358
      %v2883 = vadd.f32 %v2785, %v2361
      %v2884 = vadd.f32 %v2786, %v2366
      %v2885 = vadd.f32 %v2787, %v2369
      %v2886 = vadd.f32 %v2788, %v2374
      %v2887 = vadd.f32 %v2789, %v2377
      %v2888 = vadd.f32 %v2790, %v2382
      %v2889 = vadd.f32 %v2791, %v2385
      %v2890 = vadd.f32 %v2792, %v2390
      %v2891 = vadd.f32 %v2793, %v2393
      %v2892 = vadd.f32 %v2794, %v2398
      %v2893 = vadd.f32 %v2795, %v2401
      %v2894 = vld [vmem:[%s2] sm:$0x1]
      %v2896 = vlaneseq
      %v2897 = vshrl.u32 %v2896, 7
      %v2898 = vsub.s32 0, %v2897
      %v2899 = vrot.slane %v2894, %v2898
      %v2901 = vadd.f32 %v2796, %v2899
      %v2902 = vadd.f32 %v2797, %v2899
      %v2903 = vadd.f32 %v2798, %v2899
      %v2904 = vadd.f32 %v2799, %v2899
      %v2905 = vadd.f32 %v2800, %v2899
      %v2906 = vadd.f32 %v2801, %v2899
      %v2907 = vadd.f32 %v2802, %v2899
      %v2908 = vadd.f32 %v2803, %v2899
      %v2909 = vadd.f32 %v2804, %v2899
      %v2910 = vadd.f32 %v2805, %v2899
      %v2911 = vadd.f32 %v2806, %v2899
      %v2912 = vadd.f32 %v2807, %v2899
      %v2913 = vadd.f32 %v2808, %v2899
      %v2914 = vadd.f32 %v2809, %v2899
      %v2915 = vadd.f32 %v2810, %v2899
      %v2916 = vadd.f32 %v2811, %v2899
      %v2917 = vadd.f32 %v2812, %v2899
      %v2918 = vadd.f32 %v2813, %v2899
      %v2919 = vadd.f32 %v2814, %v2899
      %v2920 = vadd.f32 %v2815, %v2899
      %v2921 = vadd.f32 %v2816, %v2899
      %v2922 = vadd.f32 %v2817, %v2899
      %v2923 = vadd.f32 %v2818, %v2899
      %v2924 = vadd.f32 %v2819, %v2899
      %v2925 = vadd.f32 %v2820, %v2899
      %v2926 = vadd.f32 %v2821, %v2899
      %v2927 = vadd.f32 %v2822, %v2899
      %v2928 = vadd.f32 %v2823, %v2899
      %v2929 = vadd.f32 %v2824, %v2899
      %v2930 = vadd.f32 %v2825, %v2899
      %v2931 = vadd.f32 %v2826, %v2899
      %v2932 = vadd.f32 %v2827, %v2899
      %v2933 = vadd.f32 %v2828, %v2899
      %v2934 = vadd.f32 %v2829, %v2899
      %v2935 = vadd.f32 %v2830, %v2899
      %v2936 = vadd.f32 %v2831, %v2899
      %v2937 = vadd.f32 %v2832, %v2899
      %v2938 = vadd.f32 %v2833, %v2899
      %v2939 = vadd.f32 %v2834, %v2899
      %v2940 = vadd.f32 %v2835, %v2899
      %v2941 = vadd.f32 %v2836, %v2899
      %v2942 = vadd.f32 %v2837, %v2899
      %v2943 = vadd.f32 %v2838, %v2899
      %v2944 = vadd.f32 %v2839, %v2899
      %v2945 = vadd.f32 %v2840, %v2899
      %v2946 = vadd.f32 %v2841, %v2899
      %v2947 = vadd.f32 %v2842, %v2899
      %v2948 = vadd.f32 %v2843, %v2899
      %v2949 = vadd.f32 %v2844, %v2899
      %v2950 = vadd.f32 %v2845, %v2899
      %v2951 = vadd.f32 %v2846, %v2899
      %v2952 = vadd.f32 %v2847, %v2899
      %v2953 = vadd.f32 %v2848, %v2899
      %v2954 = vadd.f32 %v2849, %v2899
      %v2955 = vadd.f32 %v2850, %v2899
      %v2956 = vadd.f32 %v2851, %v2899
      %v2957 = vadd.f32 %v2852, %v2899
      %v2958 = vadd.f32 %v2853, %v2899
      %v2959 = vadd.f32 %v2854, %v2899
      %v2960 = vadd.f32 %v2855, %v2899
      %v2961 = vadd.f32 %v2856, %v2899
      %v2962 = vadd.f32 %v2857, %v2899
      %v2963 = vadd.f32 %v2858, %v2899
      %v2964 = vadd.f32 %v2859, %v2899
      %v2965 = vadd.f32 %v2860, %v2899
      %v2966 = vadd.f32 %v2861, %v2899
      %v2967 = vadd.f32 %v2862, %v2899
      %v2968 = vadd.f32 %v2863, %v2899
      %v2969 = vadd.f32 %v2864, %v2899
      %v2970 = vadd.f32 %v2865, %v2899
      %v2971 = vadd.f32 %v2866, %v2899
      %v2972 = vadd.f32 %v2867, %v2899
      %v2973 = vadd.f32 %v2868, %v2899
      %v2974 = vadd.f32 %v2869, %v2899
      %v2975 = vadd.f32 %v2870, %v2899
      %v2976 = vadd.f32 %v2871, %v2899
      %v2977 = vadd.f32 %v2872, %v2899
      %v2978 = vadd.f32 %v2873, %v2899
      %v2979 = vadd.f32 %v2874, %v2899
      %v2980 = vadd.f32 %v2875, %v2899
      %v2981 = vadd.f32 %v2876, %v2899
      %v2982 = vadd.f32 %v2877, %v2899
      %v2983 = vadd.f32 %v2878, %v2899
      %v2984 = vadd.f32 %v2879, %v2899
      %v2985 = vadd.f32 %v2880, %v2899
      %v2986 = vadd.f32 %v2881, %v2899
      %v2987 = vadd.f32 %v2882, %v2899
      %v2988 = vadd.f32 %v2883, %v2899
      %v2989 = vadd.f32 %v2884, %v2899
      %v2990 = vadd.f32 %v2885, %v2899
      %v2991 = vadd.f32 %v2886, %v2899
      %v2992 = vadd.f32 %v2887, %v2899
      %v2993 = vadd.f32 %v2888, %v2899
      %v2994 = vadd.f32 %v2889, %v2899
      %v2995 = vadd.f32 %v2890, %v2899
      %v2996 = vadd.f32 %v2891, %v2899
      %v2997 = vadd.f32 %v2892, %v2899
      %v2998 = vadd.f32 %v2893, %v2899
      %vm2999 = vcmask 261120
      %3000 = vst.msk [vmem:[%s308] sm:$0xff] %vm2999, %v2901
      %3001 = vst.msk [vmem:[%s308 + $0x8] sm:$0xff] %vm2999, %v2902
      %3002 = vst.msk [vmem:[%s308 + $0x10] sm:$0xff] %vm2999, %v2903
      %3003 = vst.msk [vmem:[%s308 + $0x18] sm:$0xff] %vm2999, %v2904
      %3004 = vst.msk [vmem:[%s308 + $0x20] sm:$0xff] %vm2999, %v2905
      %3005 = vst.msk [vmem:[%s308 + $0x28] sm:$0xff] %vm2999, %v2906
      %3006 = vst.msk [vmem:[%s308 + $0x30] sm:$0xff] %vm2999, %v2907
      %3007 = vst.msk [vmem:[%s308 + $0x38] sm:$0xff] %vm2999, %v2908
      %3008 = vst.msk [vmem:[%s308 + $0x40] sm:$0xff] %vm2999, %v2909
      %3009 = vst.msk [vmem:[%s308 + $0x48] sm:$0xff] %vm2999, %v2910
      %3010 = vst.msk [vmem:[%s308 + $0x50] sm:$0xff] %vm2999, %v2911
      %3011 = vst.msk [vmem:[%s308 + $0x58] sm:$0xff] %vm2999, %v2912
      %3012 = vst.msk [vmem:[%s308 + $0x60] sm:$0xff] %vm2999, %v2913
      %3013 = vst.msk [vmem:[%s308 + $0x68] sm:$0xff] %vm2999, %v2914
      %3014 = vst.msk [vmem:[%s308 + $0x70] sm:$0xff] %vm2999, %v2915
      %3015 = vst.msk [vmem:[%s308 + $0x78] sm:$0xff] %vm2999, %v2916
      %3016 = vst.msk [vmem:[%s308 + $0x80] sm:$0xff] %vm2999, %v2917
      %3017 = vst.msk [vmem:[%s308 + $0x88] sm:$0xff] %vm2999, %v2918
      %3018 = vst.msk [vmem:[%s308 + $0x90] sm:$0xff] %vm2999, %v2919
      %3019 = vst.msk [vmem:[%s308 + $0x98] sm:$0xff] %vm2999, %v2920
      %3020 = vst.msk [vmem:[%s308 + $0xa0] sm:$0xff] %vm2999, %v2921
      %3021 = vst.msk [vmem:[%s308 + $0xa8] sm:$0xff] %vm2999, %v2922
      %3022 = vst.msk [vmem:[%s308 + $0xb0] sm:$0xff] %vm2999, %v2923
      %3023 = vst.msk [vmem:[%s308 + $0xb8] sm:$0xff] %vm2999, %v2924
      %3024 = vst.msk [vmem:[%s308 + $0xc0] sm:$0xff] %vm2999, %v2925
      %3025 = vst.msk [vmem:[%s308 + $0xc8] sm:$0xff] %vm2999, %v2926
      %3026 = vst.msk [vmem:[%s308 + $0xd0] sm:$0xff] %vm2999, %v2927
      %3027 = vst.msk [vmem:[%s308 + $0xd8] sm:$0xff] %vm2999, %v2928
      %3028 = vst.msk [vmem:[%s308 + $0xe0] sm:$0xff] %vm2999, %v2929
      %3029 = vst.msk [vmem:[%s308 + $0xe8] sm:$0xff] %vm2999, %v2930
      %3030 = vst.msk [vmem:[%s308 + $0xf0] sm:$0xff] %vm2999, %v2931
      %3031 = vst.msk [vmem:[%s308 + $0xf8] sm:$0xff] %vm2999, %v2932
      %3032 = vst.msk [vmem:[%s308 + $0x100] sm:$0xff] %vm2999, %v2933
      %3033 = vst.msk [vmem:[%s308 + $0x108] sm:$0xff] %vm2999, %v2934
      %3034 = vst.msk [vmem:[%s308 + $0x110] sm:$0xff] %vm2999, %v2935
      %3035 = vst.msk [vmem:[%s308 + $0x118] sm:$0xff] %vm2999, %v2936
      %3036 = vst.msk [vmem:[%s308 + $0x120] sm:$0xff] %vm2999, %v2937
      %3037 = vst.msk [vmem:[%s308 + $0x128] sm:$0xff] %vm2999, %v2938
      %3038 = vst.msk [vmem:[%s308 + $0x130] sm:$0xff] %vm2999, %v2939
      %3039 = vst.msk [vmem:[%s308 + $0x138] sm:$0xff] %vm2999, %v2940
      %3040 = vst.msk [vmem:[%s308 + $0x140] sm:$0xff] %vm2999, %v2941
      %3041 = vst.msk [vmem:[%s308 + $0x148] sm:$0xff] %vm2999, %v2942
      %3042 = vst.msk [vmem:[%s308 + $0x150] sm:$0xff] %vm2999, %v2943
      %3043 = vst.msk [vmem:[%s308 + $0x158] sm:$0xff] %vm2999, %v2944
      %3044 = vst.msk [vmem:[%s308 + $0x160] sm:$0xff] %vm2999, %v2945
      %3045 = vst.msk [vmem:[%s308 + $0x168] sm:$0xff] %vm2999, %v2946
      %3046 = vst.msk [vmem:[%s308 + $0x170] sm:$0xff] %vm2999, %v2947
      %3047 = vst.msk [vmem:[%s308 + $0x178] sm:$0xff] %vm2999, %v2948
      %3048 = vst.msk [vmem:[%s308 + $0x180] sm:$0xff] %vm2999, %v2949
      %3049 = vst.msk [vmem:[%s308 + $0x188] sm:$0xff] %vm2999, %v2950
      %3050 = vst.msk [vmem:[%s308 + $0x190] sm:$0xff] %vm2999, %v2951
      %3051 = vst.msk [vmem:[%s308 + $0x198] sm:$0xff] %vm2999, %v2952
      %3052 = vst.msk [vmem:[%s308 + $0x1a0] sm:$0xff] %vm2999, %v2953
      %3053 = vst.msk [vmem:[%s308 + $0x1a8] sm:$0xff] %vm2999, %v2954
      %3054 = vst.msk [vmem:[%s308 + $0x1b0] sm:$0xff] %vm2999, %v2955
      %3055 = vst.msk [vmem:[%s308 + $0x1b8] sm:$0xff] %vm2999, %v2956
      %3056 = vst.msk [vmem:[%s308 + $0x1c0] sm:$0xff] %vm2999, %v2957
      %3057 = vst.msk [vmem:[%s308 + $0x1c8] sm:$0xff] %vm2999, %v2958
      %3058 = vst.msk [vmem:[%s308 + $0x1d0] sm:$0xff] %vm2999, %v2959
      %3059 = vst.msk [vmem:[%s308 + $0x1d8] sm:$0xff] %vm2999, %v2960
      %3060 = vst.msk [vmem:[%s308 + $0x1e0] sm:$0xff] %vm2999, %v2961
      %3061 = vst.msk [vmem:[%s308 + $0x1e8] sm:$0xff] %vm2999, %v2962
      %3062 = vst.msk [vmem:[%s308 + $0x1f0] sm:$0xff] %vm2999, %v2963
      %3063 = vst.msk [vmem:[%s308 + $0x1f8] sm:$0xff] %vm2999, %v2964
      %3064 = vst.msk [vmem:[%s308 + $0x200] sm:$0xff] %vm2999, %v2965
      %3065 = vst.msk [vmem:[%s308 + $0x208] sm:$0xff] %vm2999, %v2966
      %3066 = vst.msk [vmem:[%s308 + $0x210] sm:$0xff] %vm2999, %v2967
      %3067 = vst.msk [vmem:[%s308 + $0x218] sm:$0xff] %vm2999, %v2968
      %3068 = vst.msk [vmem:[%s308 + $0x220] sm:$0xff] %vm2999, %v2969
      %3069 = vst.msk [vmem:[%s308 + $0x228] sm:$0xff] %vm2999, %v2970
      %3070 = vst.msk [vmem:[%s308 + $0x230] sm:$0xff] %vm2999, %v2971
      %3071 = vst.msk [vmem:[%s308 + $0x238] sm:$0xff] %vm2999, %v2972
      %3072 = vst.msk [vmem:[%s308 + $0x240] sm:$0xff] %vm2999, %v2973
      %3073 = vst.msk [vmem:[%s308 + $0x248] sm:$0xff] %vm2999, %v2974
      %3074 = vst.msk [vmem:[%s308 + $0x250] sm:$0xff] %vm2999, %v2975
      %3075 = vst.msk [vmem:[%s308 + $0x258] sm:$0xff] %vm2999, %v2976
      %3076 = vst.msk [vmem:[%s308 + $0x260] sm:$0xff] %vm2999, %v2977
      %3077 = vst.msk [vmem:[%s308 + $0x268] sm:$0xff] %vm2999, %v2978
      %3078 = vst.msk [vmem:[%s308 + $0x270] sm:$0xff] %vm2999, %v2979
      %3079 = vst.msk [vmem:[%s308 + $0x278] sm:$0xff] %vm2999, %v2980
      %3080 = vst.msk [vmem:[%s308 + $0x280] sm:$0xff] %vm2999, %v2981
      %3081 = vst.msk [vmem:[%s308 + $0x288] sm:$0xff] %vm2999, %v2982
      %3082 = vst.msk [vmem:[%s308 + $0x290] sm:$0xff] %vm2999, %v2983
      %3083 = vst.msk [vmem:[%s308 + $0x298] sm:$0xff] %vm2999, %v2984
      %3084 = vst.msk [vmem:[%s308 + $0x2a0] sm:$0xff] %vm2999, %v2985
      %3085 = vst.msk [vmem:[%s308 + $0x2a8] sm:$0xff] %vm2999, %v2986
      %3086 = vst.msk [vmem:[%s308 + $0x2b0] sm:$0xff] %vm2999, %v2987
      %3087 = vst.msk [vmem:[%s308 + $0x2b8] sm:$0xff] %vm2999, %v2988
      %3088 = vst.msk [vmem:[%s308 + $0x2c0] sm:$0xff] %vm2999, %v2989
      %3089 = vst.msk [vmem:[%s308 + $0x2c8] sm:$0xff] %vm2999, %v2990
      %3090 = vst.msk [vmem:[%s308 + $0x2d0] sm:$0xff] %vm2999, %v2991
      %3091 = vst.msk [vmem:[%s308 + $0x2d8] sm:$0xff] %vm2999, %v2992
      %3092 = vst.msk [vmem:[%s308 + $0x2e0] sm:$0xff] %vm2999, %v2993
      %3093 = vst.msk [vmem:[%s308 + $0x2e8] sm:$0xff] %vm2999, %v2994
      %3094 = vst.msk [vmem:[%s308 + $0x2f0] sm:$0xff] %vm2999, %v2995
      %3095 = vst.msk [vmem:[%s308 + $0x2f8] sm:$0xff] %vm2999, %v2996
      %3096 = vst.msk [vmem:[%s308 + $0x300] sm:$0xff] %vm2999, %v2997
      %3097 = vst.msk [vmem:[%s308 + $0x308] sm:$0xff] %vm2999, %v2998
      %vm3098 = vcmp.ge.f32.partialorder %v2901, 1.0
      %vm3099 = vcmp.ge.f32.partialorder %v2902, 1.0
      %vm3100 = vcmp.ge.f32.partialorder %v2903, 1.0
      %vm3101 = vcmp.ge.f32.partialorder %v2904, 1.0
      %vm3102 = vcmp.ge.f32.partialorder %v2905, 1.0
      %vm3103 = vcmp.ge.f32.partialorder %v2906, 1.0
      %vm3104 = vcmp.ge.f32.partialorder %v2907, 1.0
      %vm3105 = vcmp.ge.f32.partialorder %v2908, 1.0
      %vm3106 = vcmp.ge.f32.partialorder %v2909, 1.0
      %vm3107 = vcmp.ge.f32.partialorder %v2910, 1.0
      %vm3108 = vcmp.ge.f32.partialorder %v2911, 1.0
      %vm3109 = vcmp.ge.f32.partialorder %v2912, 1.0
      %vm3110 = vcmp.ge.f32.partialorder %v2913, 1.0
      %vm3111 = vcmp.ge.f32.partialorder %v2914, 1.0
      %vm3112 = vcmp.ge.f32.partialorder %v2915, 1.0
      %vm3113 = vcmp.ge.f32.partialorder %v2916, 1.0
      %vm3114 = vcmp.ge.f32.partialorder %v2917, 1.0
      %vm3115 = vcmp.ge.f32.partialorder %v2918, 1.0
      %vm3116 = vcmp.ge.f32.partialorder %v2919, 1.0
      %vm3117 = vcmp.ge.f32.partialorder %v2920, 1.0
      %vm3118 = vcmp.ge.f32.partialorder %v2921, 1.0
      %vm3119 = vcmp.ge.f32.partialorder %v2922, 1.0
      %vm3120 = vcmp.ge.f32.partialorder %v2923, 1.0
      %vm3121 = vcmp.ge.f32.partialorder %v2924, 1.0
      %vm3122 = vcmp.ge.f32.partialorder %v2925, 1.0
      %vm3123 = vcmp.ge.f32.partialorder %v2926, 1.0
      %vm3124 = vcmp.ge.f32.partialorder %v2927, 1.0
      %vm3125 = vcmp.ge.f32.partialorder %v2928, 1.0
      %vm3126 = vcmp.ge.f32.partialorder %v2929, 1.0
      %vm3127 = vcmp.ge.f32.partialorder %v2930, 1.0
      %vm3128 = vcmp.ge.f32.partialorder %v2931, 1.0
      %vm3129 = vcmp.ge.f32.partialorder %v2932, 1.0
      %vm3130 = vcmp.ge.f32.partialorder %v2933, 1.0
      %vm3131 = vcmp.ge.f32.partialorder %v2934, 1.0
      %vm3132 = vcmp.ge.f32.partialorder %v2935, 1.0
      %vm3133 = vcmp.ge.f32.partialorder %v2936, 1.0
      %vm3134 = vcmp.ge.f32.partialorder %v2937, 1.0
      %vm3135 = vcmp.ge.f32.partialorder %v2938, 1.0
      %vm3136 = vcmp.ge.f32.partialorder %v2939, 1.0
      %vm3137 = vcmp.ge.f32.partialorder %v2940, 1.0
      %vm3138 = vcmp.ge.f32.partialorder %v2941, 1.0
      %vm3139 = vcmp.ge.f32.partialorder %v2942, 1.0
      %vm3140 = vcmp.ge.f32.partialorder %v2943, 1.0
      %vm3141 = vcmp.ge.f32.partialorder %v2944, 1.0
      %vm3142 = vcmp.ge.f32.partialorder %v2945, 1.0
      %vm3143 = vcmp.ge.f32.partialorder %v2946, 1.0
      %vm3144 = vcmp.ge.f32.partialorder %v2947, 1.0
      %vm3145 = vcmp.ge.f32.partialorder %v2948, 1.0
      %vm3146 = vcmp.ge.f32.partialorder %v2949, 1.0
      %vm3147 = vcmp.ge.f32.partialorder %v2950, 1.0
      %vm3148 = vcmp.ge.f32.partialorder %v2951, 1.0
      %vm3149 = vcmp.ge.f32.partialorder %v2952, 1.0
      %vm3150 = vcmp.ge.f32.partialorder %v2953, 1.0
      %vm3151 = vcmp.ge.f32.partialorder %v2954, 1.0
      %vm3152 = vcmp.ge.f32.partialorder %v2955, 1.0
      %vm3153 = vcmp.ge.f32.partialorder %v2956, 1.0
      %vm3154 = vcmp.ge.f32.partialorder %v2957, 1.0
      %vm3155 = vcmp.ge.f32.partialorder %v2958, 1.0
      %vm3156 = vcmp.ge.f32.partialorder %v2959, 1.0
      %vm3157 = vcmp.ge.f32.partialorder %v2960, 1.0
      %vm3158 = vcmp.ge.f32.partialorder %v2961, 1.0
      %vm3159 = vcmp.ge.f32.partialorder %v2962, 1.0
      %vm3160 = vcmp.ge.f32.partialorder %v2963, 1.0
      %vm3161 = vcmp.ge.f32.partialorder %v2964, 1.0
      %vm3162 = vcmp.ge.f32.partialorder %v2965, 1.0
      %vm3163 = vcmp.ge.f32.partialorder %v2966, 1.0
      %vm3164 = vcmp.ge.f32.partialorder %v2967, 1.0
      %vm3165 = vcmp.ge.f32.partialorder %v2968, 1.0
      %vm3166 = vcmp.ge.f32.partialorder %v2969, 1.0
      %vm3167 = vcmp.ge.f32.partialorder %v2970, 1.0
      %vm3168 = vcmp.ge.f32.partialorder %v2971, 1.0
      %vm3169 = vcmp.ge.f32.partialorder %v2972, 1.0
      %vm3170 = vcmp.ge.f32.partialorder %v2973, 1.0
      %vm3171 = vcmp.ge.f32.partialorder %v2974, 1.0
      %vm3172 = vcmp.ge.f32.partialorder %v2975, 1.0
      %vm3173 = vcmp.ge.f32.partialorder %v2976, 1.0
      %vm3174 = vcmp.ge.f32.partialorder %v2977, 1.0
      %vm3175 = vcmp.ge.f32.partialorder %v2978, 1.0
      %vm3176 = vcmp.ge.f32.partialorder %v2979, 1.0
      %vm3177 = vcmp.ge.f32.partialorder %v2980, 1.0
      %vm3178 = vcmp.ge.f32.partialorder %v2981, 1.0
      %vm3179 = vcmp.ge.f32.partialorder %v2982, 1.0
      %vm3180 = vcmp.ge.f32.partialorder %v2983, 1.0
      %vm3181 = vcmp.ge.f32.partialorder %v2984, 1.0
      %vm3182 = vcmp.ge.f32.partialorder %v2985, 1.0
      %vm3183 = vcmp.ge.f32.partialorder %v2986, 1.0
      %vm3184 = vcmp.ge.f32.partialorder %v2987, 1.0
      %vm3185 = vcmp.ge.f32.partialorder %v2988, 1.0
      %vm3186 = vcmp.ge.f32.partialorder %v2989, 1.0
      %vm3187 = vcmp.ge.f32.partialorder %v2990, 1.0
      %vm3188 = vcmp.ge.f32.partialorder %v2991, 1.0
      %vm3189 = vcmp.ge.f32.partialorder %v2992, 1.0
      %vm3190 = vcmp.ge.f32.partialorder %v2993, 1.0
      %vm3191 = vcmp.ge.f32.partialorder %v2994, 1.0
      %vm3192 = vcmp.ge.f32.partialorder %v2995, 1.0
      %vm3193 = vcmp.ge.f32.partialorder %v2996, 1.0
      %vm3194 = vcmp.ge.f32.partialorder %v2997, 1.0
      %vm3195 = vcmp.ge.f32.partialorder %v2998, 1.0
      %v3196 = vsel %vm3098, 1, 0
      %v3197 = vsel %vm3099, 1, 0
      %v3198 = vsel %vm3100, 1, 0
      %v3199 = vsel %vm3101, 1, 0
      %v3200 = vsel %vm3102, 1, 0
      %v3201 = vsel %vm3103, 1, 0
      %v3202 = vsel %vm3104, 1, 0
      %v3203 = vsel %vm3105, 1, 0
      %v3204 = vsel %vm3106, 1, 0
      %v3205 = vsel %vm3107, 1, 0
      %v3206 = vsel %vm3108, 1, 0
      %v3207 = vsel %vm3109, 1, 0
      %v3208 = vsel %vm3110, 1, 0
      %v3209 = vsel %vm3111, 1, 0
      %v3210 = vsel %vm3112, 1, 0
      %v3211 = vsel %vm3113, 1, 0
      %v3212 = vsel %vm3114, 1, 0
      %v3213 = vsel %vm3115, 1, 0
      %v3214 = vsel %vm3116, 1, 0
      %v3215 = vsel %vm3117, 1, 0
      %v3216 = vsel %vm3118, 1, 0
      %v3217 = vsel %vm3119, 1, 0
      %v3218 = vsel %vm3120, 1, 0
      %v3219 = vsel %vm3121, 1, 0
      %v3220 = vsel %vm3122, 1, 0
      %v3221 = vsel %vm3123, 1, 0
      %v3222 = vsel %vm3124, 1, 0
      %v3223 = vsel %vm3125, 1, 0
      %v3224 = vsel %vm3126, 1, 0
      %v3225 = vsel %vm3127, 1, 0
      %v3226 = vsel %vm3128, 1, 0
      %v3227 = vsel %vm3129, 1, 0
      %v3228 = vsel %vm3130, 1, 0
      %v3229 = vsel %vm3131, 1, 0
      %v3230 = vsel %vm3132, 1, 0
      %v3231 = vsel %vm3133, 1, 0
      %v3232 = vsel %vm3134, 1, 0
      %v3233 = vsel %vm3135, 1, 0
      %v3234 = vsel %vm3136, 1, 0
      %v3235 = vsel %vm3137, 1, 0
      %v3236 = vsel %vm3138, 1, 0
      %v3237 = vsel %vm3139, 1, 0
      %v3238 = vsel %vm3140, 1, 0
      %v3239 = vsel %vm3141, 1, 0
      %v3240 = vsel %vm3142, 1, 0
      %v3241 = vsel %vm3143, 1, 0
      %v3242 = vsel %vm3144, 1, 0
      %v3243 = vsel %vm3145, 1, 0
      %v3244 = vsel %vm3146, 1, 0
      %v3245 = vsel %vm3147, 1, 0
      %v3246 = vsel %vm3148, 1, 0
      %v3247 = vsel %vm3149, 1, 0
      %v3248 = vsel %vm3150, 1, 0
      %v3249 = vsel %vm3151, 1, 0
      %v3250 = vsel %vm3152, 1, 0
      %v3251 = vsel %vm3153, 1, 0
      %v3252 = vsel %vm3154, 1, 0
      %v3253 = vsel %vm3155, 1, 0
      %v3254 = vsel %vm3156, 1, 0
      %v3255 = vsel %vm3157, 1, 0
      %v3256 = vsel %vm3158, 1, 0
      %v3257 = vsel %vm3159, 1, 0
      %v3258 = vsel %vm3160, 1, 0
      %v3259 = vsel %vm3161, 1, 0
      %v3260 = vsel %vm3162, 1, 0
      %v3261 = vsel %vm3163, 1, 0
      %v3262 = vsel %vm3164, 1, 0
      %v3263 = vsel %vm3165, 1, 0
      %v3264 = vsel %vm3166, 1, 0
      %v3265 = vsel %vm3167, 1, 0
      %v3266 = vsel %vm3168, 1, 0
      %v3267 = vsel %vm3169, 1, 0
      %v3268 = vsel %vm3170, 1, 0
      %v3269 = vsel %vm3171, 1, 0
      %v3270 = vsel %vm3172, 1, 0
      %v3271 = vsel %vm3173, 1, 0
      %v3272 = vsel %vm3174, 1, 0
      %v3273 = vsel %vm3175, 1, 0
      %v3274 = vsel %vm3176, 1, 0
      %v3275 = vsel %vm3177, 1, 0
      %v3276 = vsel %vm3178, 1, 0
      %v3277 = vsel %vm3179, 1, 0
      %v3278 = vsel %vm3180, 1, 0
      %v3279 = vsel %vm3181, 1, 0
      %v3280 = vsel %vm3182, 1, 0
      %v3281 = vsel %vm3183, 1, 0
      %v3282 = vsel %vm3184, 1, 0
      %v3283 = vsel %vm3185, 1, 0
      %v3284 = vsel %vm3186, 1, 0
      %v3285 = vsel %vm3187, 1, 0
      %v3286 = vsel %vm3188, 1, 0
      %v3287 = vsel %vm3189, 1, 0
      %v3288 = vsel %vm3190, 1, 0
      %v3289 = vsel %vm3191, 1, 0
      %v3290 = vsel %vm3192, 1, 0
      %v3291 = vsel %vm3193, 1, 0
      %v3292 = vsel %vm3194, 1, 0
      %v3293 = vsel %vm3195, 1, 0
      %v3294 = vcvt.s32.f32 %v3196
      %v3295 = vcvt.s32.f32 %v3197
      %v3296 = vcvt.s32.f32 %v3198
      %v3297 = vcvt.s32.f32 %v3199
      %v3298 = vcvt.s32.f32 %v3200
      %v3299 = vcvt.s32.f32 %v3201
      %v3300 = vcvt.s32.f32 %v3202
      %v3301 = vcvt.s32.f32 %v3203
      %v3302 = vcvt.s32.f32 %v3204
      %v3303 = vcvt.s32.f32 %v3205
      %v3304 = vcvt.s32.f32 %v3206
      %v3305 = vcvt.s32.f32 %v3207
      %v3306 = vcvt.s32.f32 %v3208
      %v3307 = vcvt.s32.f32 %v3209
      %v3308 = vcvt.s32.f32 %v3210
      %v3309 = vcvt.s32.f32 %v3211
      %v3310 = vcvt.s32.f32 %v3212
      %v3311 = vcvt.s32.f32 %v3213
      %v3312 = vcvt.s32.f32 %v3214
      %v3313 = vcvt.s32.f32 %v3215
      %v3314 = vcvt.s32.f32 %v3216
      %v3315 = vcvt.s32.f32 %v3217
      %v3316 = vcvt.s32.f32 %v3218
      %v3317 = vcvt.s32.f32 %v3219
      %v3318 = vcvt.s32.f32 %v3220
      %v3319 = vcvt.s32.f32 %v3221
      %v3320 = vcvt.s32.f32 %v3222
      %v3321 = vcvt.s32.f32 %v3223
      %v3322 = vcvt.s32.f32 %v3224
      %v3323 = vcvt.s32.f32 %v3225
      %v3324 = vcvt.s32.f32 %v3226
      %v3325 = vcvt.s32.f32 %v3227
      %v3326 = vcvt.s32.f32 %v3228
      %v3327 = vcvt.s32.f32 %v3229
      %v3328 = vcvt.s32.f32 %v3230
      %v3329 = vcvt.s32.f32 %v3231
      %v3330 = vcvt.s32.f32 %v3232
      %v3331 = vcvt.s32.f32 %v3233
      %v3332 = vcvt.s32.f32 %v3234
      %v3333 = vcvt.s32.f32 %v3235
      %v3334 = vcvt.s32.f32 %v3236
      %v3335 = vcvt.s32.f32 %v3237
      %v3336 = vcvt.s32.f32 %v3238
      %v3337 = vcvt.s32.f32 %v3239
      %v3338 = vcvt.s32.f32 %v3240
      %v3339 = vcvt.s32.f32 %v3241
      %v3340 = vcvt.s32.f32 %v3242
      %v3341 = vcvt.s32.f32 %v3243
      %v3342 = vcvt.s32.f32 %v3244
      %v3343 = vcvt.s32.f32 %v3245
      %v3344 = vcvt.s32.f32 %v3246
      %v3345 = vcvt.s32.f32 %v3247
      %v3346 = vcvt.s32.f32 %v3248
      %v3347 = vcvt.s32.f32 %v3249
      %v3348 = vcvt.s32.f32 %v3250
      %v3349 = vcvt.s32.f32 %v3251
      %v3350 = vcvt.s32.f32 %v3252
      %v3351 = vcvt.s32.f32 %v3253
      %v3352 = vcvt.s32.f32 %v3254
      %v3353 = vcvt.s32.f32 %v3255
      %v3354 = vcvt.s32.f32 %v3256
      %v3355 = vcvt.s32.f32 %v3257
      %v3356 = vcvt.s32.f32 %v3258
      %v3357 = vcvt.s32.f32 %v3259
      %v3358 = vcvt.s32.f32 %v3260
      %v3359 = vcvt.s32.f32 %v3261
      %v3360 = vcvt.s32.f32 %v3262
      %v3361 = vcvt.s32.f32 %v3263
      %v3362 = vcvt.s32.f32 %v3264
      %v3363 = vcvt.s32.f32 %v3265
      %v3364 = vcvt.s32.f32 %v3266
      %v3365 = vcvt.s32.f32 %v3267
      %v3366 = vcvt.s32.f32 %v3268
      %v3367 = vcvt.s32.f32 %v3269
      %v3368 = vcvt.s32.f32 %v3270
      %v3369 = vcvt.s32.f32 %v3271
      %v3370 = vcvt.s32.f32 %v3272
      %v3371 = vcvt.s32.f32 %v3273
      %v3372 = vcvt.s32.f32 %v3274
      %v3373 = vcvt.s32.f32 %v3275
      %v3374 = vcvt.s32.f32 %v3276
      %v3375 = vcvt.s32.f32 %v3277
      %v3376 = vcvt.s32.f32 %v3278
      %v3377 = vcvt.s32.f32 %v3279
      %v3378 = vcvt.s32.f32 %v3280
      %v3379 = vcvt.s32.f32 %v3281
      %v3380 = vcvt.s32.f32 %v3282
      %v3381 = vcvt.s32.f32 %v3283
      %v3382 = vcvt.s32.f32 %v3284
      %v3383 = vcvt.s32.f32 %v3285
      %v3384 = vcvt.s32.f32 %v3286
      %v3385 = vcvt.s32.f32 %v3287
      %v3386 = vcvt.s32.f32 %v3288
      %v3387 = vcvt.s32.f32 %v3289
      %v3388 = vcvt.s32.f32 %v3290
      %v3389 = vcvt.s32.f32 %v3291
      %v3390 = vcvt.s32.f32 %v3292
      %v3391 = vcvt.s32.f32 %v3293
      %3392 = vst.msk [vmem:[%s314] sm:$0xff] %vm2999, %v3294
      %3393 = vst.msk [vmem:[%s314 + $0x8] sm:$0xff] %vm2999, %v3295
      %3394 = vst.msk [vmem:[%s314 + $0x10] sm:$0xff] %vm2999, %v3296
      %3395 = vst.msk [vmem:[%s314 + $0x18] sm:$0xff] %vm2999, %v3297
      %3396 = vst.msk [vmem:[%s314 + $0x20] sm:$0xff] %vm2999, %v3298
      %3397 = vst.msk [vmem:[%s314 + $0x28] sm:$0xff] %vm2999, %v3299
      %3398 = vst.msk [vmem:[%s314 + $0x30] sm:$0xff] %vm2999, %v3300
      %3399 = vst.msk [vmem:[%s314 + $0x38] sm:$0xff] %vm2999, %v3301
      %3400 = vst.msk [vmem:[%s314 + $0x40] sm:$0xff] %vm2999, %v3302
      %3401 = vst.msk [vmem:[%s314 + $0x48] sm:$0xff] %vm2999, %v3303
      %3402 = vst.msk [vmem:[%s314 + $0x50] sm:$0xff] %vm2999, %v3304
      %3403 = vst.msk [vmem:[%s314 + $0x58] sm:$0xff] %vm2999, %v3305
      %3404 = vst.msk [vmem:[%s314 + $0x60] sm:$0xff] %vm2999, %v3306
      %3405 = vst.msk [vmem:[%s314 + $0x68] sm:$0xff] %vm2999, %v3307
      %3406 = vst.msk [vmem:[%s314 + $0x70] sm:$0xff] %vm2999, %v3308
      %3407 = vst.msk [vmem:[%s314 + $0x78] sm:$0xff] %vm2999, %v3309
      %3408 = vst.msk [vmem:[%s314 + $0x80] sm:$0xff] %vm2999, %v3310
      %3409 = vst.msk [vmem:[%s314 + $0x88] sm:$0xff] %vm2999, %v3311
      %3410 = vst.msk [vmem:[%s314 + $0x90] sm:$0xff] %vm2999, %v3312
      %3411 = vst.msk [vmem:[%s314 + $0x98] sm:$0xff] %vm2999, %v3313
      %3412 = vst.msk [vmem:[%s314 + $0xa0] sm:$0xff] %vm2999, %v3314
      %3413 = vst.msk [vmem:[%s314 + $0xa8] sm:$0xff] %vm2999, %v3315
      %3414 = vst.msk [vmem:[%s314 + $0xb0] sm:$0xff] %vm2999, %v3316
      %3415 = vst.msk [vmem:[%s314 + $0xb8] sm:$0xff] %vm2999, %v3317
      %3416 = vst.msk [vmem:[%s314 + $0xc0] sm:$0xff] %vm2999, %v3318
      %3417 = vst.msk [vmem:[%s314 + $0xc8] sm:$0xff] %vm2999, %v3319
      %3418 = vst.msk [vmem:[%s314 + $0xd0] sm:$0xff] %vm2999, %v3320
      %3419 = vst.msk [vmem:[%s314 + $0xd8] sm:$0xff] %vm2999, %v3321
      %3420 = vst.msk [vmem:[%s314 + $0xe0] sm:$0xff] %vm2999, %v3322
      %3421 = vst.msk [vmem:[%s314 + $0xe8] sm:$0xff] %vm2999, %v3323
      %3422 = vst.msk [vmem:[%s314 + $0xf0] sm:$0xff] %vm2999, %v3324
      %3423 = vst.msk [vmem:[%s314 + $0xf8] sm:$0xff] %vm2999, %v3325
      %3424 = vst.msk [vmem:[%s314 + $0x100] sm:$0xff] %vm2999, %v3326
      %3425 = vst.msk [vmem:[%s314 + $0x108] sm:$0xff] %vm2999, %v3327
      %3426 = vst.msk [vmem:[%s314 + $0x110] sm:$0xff] %vm2999, %v3328
      %3427 = vst.msk [vmem:[%s314 + $0x118] sm:$0xff] %vm2999, %v3329
      %3428 = vst.msk [vmem:[%s314 + $0x120] sm:$0xff] %vm2999, %v3330
      %3429 = vst.msk [vmem:[%s314 + $0x128] sm:$0xff] %vm2999, %v3331
      %3430 = vst.msk [vmem:[%s314 + $0x130] sm:$0xff] %vm2999, %v3332
      %3431 = vst.msk [vmem:[%s314 + $0x138] sm:$0xff] %vm2999, %v3333
      %3432 = vst.msk [vmem:[%s314 + $0x140] sm:$0xff] %vm2999, %v3334
      %3433 = vst.msk [vmem:[%s314 + $0x148] sm:$0xff] %vm2999, %v3335
      %3434 = vst.msk [vmem:[%s314 + $0x150] sm:$0xff] %vm2999, %v3336
      %3435 = vst.msk [vmem:[%s314 + $0x158] sm:$0xff] %vm2999, %v3337
      %3436 = vst.msk [vmem:[%s314 + $0x160] sm:$0xff] %vm2999, %v3338
      %3437 = vst.msk [vmem:[%s314 + $0x168] sm:$0xff] %vm2999, %v3339
      %3438 = vst.msk [vmem:[%s314 + $0x170] sm:$0xff] %vm2999, %v3340
      %3439 = vst.msk [vmem:[%s314 + $0x178] sm:$0xff] %vm2999, %v3341
      %3440 = vst.msk [vmem:[%s314 + $0x180] sm:$0xff] %vm2999, %v3342
      %3441 = vst.msk [vmem:[%s314 + $0x188] sm:$0xff] %vm2999, %v3343
      %3442 = vst.msk [vmem:[%s314 + $0x190] sm:$0xff] %vm2999, %v3344
      %3443 = vst.msk [vmem:[%s314 + $0x198] sm:$0xff] %vm2999, %v3345
      %3444 = vst.msk [vmem:[%s314 + $0x1a0] sm:$0xff] %vm2999, %v3346
      %3445 = vst.msk [vmem:[%s314 + $0x1a8] sm:$0xff] %vm2999, %v3347
      %3446 = vst.msk [vmem:[%s314 + $0x1b0] sm:$0xff] %vm2999, %v3348
      %3447 = vst.msk [vmem:[%s314 + $0x1b8] sm:$0xff] %vm2999, %v3349
      %3448 = vst.msk [vmem:[%s314 + $0x1c0] sm:$0xff] %vm2999, %v3350
      %3449 = vst.msk [vmem:[%s314 + $0x1c8] sm:$0xff] %vm2999, %v3351
      %3450 = vst.msk [vmem:[%s314 + $0x1d0] sm:$0xff] %vm2999, %v3352
      %3451 = vst.msk [vmem:[%s314 + $0x1d8] sm:$0xff] %vm2999, %v3353
      %3452 = vst.msk [vmem:[%s314 + $0x1e0] sm:$0xff] %vm2999, %v3354
      %3453 = vst.msk [vmem:[%s314 + $0x1e8] sm:$0xff] %vm2999, %v3355
      %3454 = vst.msk [vmem:[%s314 + $0x1f0] sm:$0xff] %vm2999, %v3356
      %3455 = vst.msk [vmem:[%s314 + $0x1f8] sm:$0xff] %vm2999, %v3357
      %3456 = vst.msk [vmem:[%s314 + $0x200] sm:$0xff] %vm2999, %v3358
      %3457 = vst.msk [vmem:[%s314 + $0x208] sm:$0xff] %vm2999, %v3359
      %3458 = vst.msk [vmem:[%s314 + $0x210] sm:$0xff] %vm2999, %v3360
      %3459 = vst.msk [vmem:[%s314 + $0x218] sm:$0xff] %vm2999, %v3361
      %3460 = vst.msk [vmem:[%s314 + $0x220] sm:$0xff] %vm2999, %v3362
      %3461 = vst.msk [vmem:[%s314 + $0x228] sm:$0xff] %vm2999, %v3363
      %3462 = vst.msk [vmem:[%s314 + $0x230] sm:$0xff] %vm2999, %v3364
      %3463 = vst.msk [vmem:[%s314 + $0x238] sm:$0xff] %vm2999, %v3365
      %3464 = vst.msk [vmem:[%s314 + $0x240] sm:$0xff] %vm2999, %v3366
      %3465 = vst.msk [vmem:[%s314 + $0x248] sm:$0xff] %vm2999, %v3367
      %3466 = vst.msk [vmem:[%s314 + $0x250] sm:$0xff] %vm2999, %v3368
      %3467 = vst.msk [vmem:[%s314 + $0x258] sm:$0xff] %vm2999, %v3369
      %3468 = vst.msk [vmem:[%s314 + $0x260] sm:$0xff] %vm2999, %v3370
      %3469 = vst.msk [vmem:[%s314 + $0x268] sm:$0xff] %vm2999, %v3371
      %3470 = vst.msk [vmem:[%s314 + $0x270] sm:$0xff] %vm2999, %v3372
      %3471 = vst.msk [vmem:[%s314 + $0x278] sm:$0xff] %vm2999, %v3373
      %3472 = vst.msk [vmem:[%s314 + $0x280] sm:$0xff] %vm2999, %v3374
      %3473 = vst.msk [vmem:[%s314 + $0x288] sm:$0xff] %vm2999, %v3375
      %3474 = vst.msk [vmem:[%s314 + $0x290] sm:$0xff] %vm2999, %v3376
      %3475 = vst.msk [vmem:[%s314 + $0x298] sm:$0xff] %vm2999, %v3377
      %3476 = vst.msk [vmem:[%s314 + $0x2a0] sm:$0xff] %vm2999, %v3378
      %3477 = vst.msk [vmem:[%s314 + $0x2a8] sm:$0xff] %vm2999, %v3379
      %3478 = vst.msk [vmem:[%s314 + $0x2b0] sm:$0xff] %vm2999, %v3380
      %3479 = vst.msk [vmem:[%s314 + $0x2b8] sm:$0xff] %vm2999, %v3381
      %3480 = vst.msk [vmem:[%s314 + $0x2c0] sm:$0xff] %vm2999, %v3382
      %3481 = vst.msk [vmem:[%s314 + $0x2c8] sm:$0xff] %vm2999, %v3383
      %3482 = vst.msk [vmem:[%s314 + $0x2d0] sm:$0xff] %vm2999, %v3384
      %3483 = vst.msk [vmem:[%s314 + $0x2d8] sm:$0xff] %vm2999, %v3385
      %3484 = vst.msk [vmem:[%s314 + $0x2e0] sm:$0xff] %vm2999, %v3386
      %3485 = vst.msk [vmem:[%s314 + $0x2e8] sm:$0xff] %vm2999, %v3387
      %3486 = vst.msk [vmem:[%s314 + $0x2f0] sm:$0xff] %vm2999, %v3388
      %3487 = vst.msk [vmem:[%s314 + $0x2f8] sm:$0xff] %vm2999, %v3389
      %3488 = vst.msk [vmem:[%s314 + $0x300] sm:$0xff] %vm2999, %v3390
      %3489 = vst.msk [vmem:[%s314 + $0x308] sm:$0xff] %vm2999, %v3391
      %s3490 = smul.u32 98, %s18
      %p3491 = scmp.lt.s32.totalorder %s3490, 195
      %s3492 = scalar_select %p3491, %s3490, 195
      %s3493 = smul.addr %s3492, 8
      %s3494 = scalar_lea.vmem %s5, %s3493
      %s3495 = smul.u32 98, %s18
      %p3496 = scmp.lt.s32.totalorder %s3495, 195
      %s3497 = scalar_select %p3496, %s3495, 195
      %s3498 = smul.addr %s3497, 8
      %s3499 = scalar_lea.vmem %s6, %s3498
      // Predicated region
      $region41: #{scnn_forward.14} parent=39 // pred_check
        %p3500 = pneg %p156
      $region42: #{scnn_forward.14} parent=39 // pred_check_branch
        %3502 = sbr.rel (%p3500) target = $region44
      $region43: #{scnn_forward.14} parent=39 // pred_region
        %s3503 = smul.u32 98, %s18
      $region44: #{scnn_forward.14} parent=39 // pred_fallthru
        _
      // Predicated region
      $region45: #{scnn_forward.14} parent=39 // pred_check
        %p3504 = pneg %p182
      $region46: #{scnn_forward.14} parent=39 // pred_check_branch
        %3506 = sbr.rel (%p3504) target = $region48
      $region47: #{scnn_forward.14} parent=39 // pred_region
        %s3507 = smul.u32 98, %s18
      $region48: #{scnn_forward.14} parent=39 // pred_fallthru
        _
    $region40: #{scnn_forward.14} parent=5 // pred_fallthru
      _
    %p3508 = scmp.le.s32.totalorder 2, %s13
    // Predicated region
    $region49: #{scnn_forward.14} parent=5 // pred_check
      %p3509 = pneg %p3508
    $region50: #{scnn_forward.14} parent=5 // pred_check_branch
      %3511 = sbr.rel (%p3509) target = $region52
    $region51: #{scnn_forward.14} parent=5 // pred_region
      %s3512 = ssub.s32 %s13, 2
      // Predicated region
      $region53: #{scnn_forward.14} parent=51 // pred_check
        %p3513 = pneg %p162
      $region54: #{scnn_forward.14} parent=51 // pred_check_branch
        %3515 = sbr.rel (%p3513) target = $region56
      $region55: #{scnn_forward.14} parent=51 // pred_region
        %s3516 = smul.u32 98, %s19
        %p3517 = scmp.lt.s32.totalorder %s3516, 195
        %s3518 = scalar_select %p3517, %s3516, 195
        %s3519 = smul.addr %s3518, 8
        %s3520 = scalar_lea.vmem %s5, %s3519
      $region56: #{scnn_forward.14} parent=51 // pred_fallthru
        _
      // Predicated region
      $region57: #{scnn_forward.14} parent=51 // pred_check
        %p3521 = pneg %p188
      $region58: #{scnn_forward.14} parent=51 // pred_check_branch
        %3523 = sbr.rel (%p3521) target = $region60
      $region59: #{scnn_forward.14} parent=51 // pred_region
        %s3524 = smul.u32 98, %s19
        %p3525 = scmp.lt.s32.totalorder %s3524, 195
        %s3526 = scalar_select %p3525, %s3524, 195
        %s3527 = smul.addr %s3526, 8
        %s3528 = scalar_lea.vmem %s6, %s3527
      $region60: #{scnn_forward.14} parent=51 // pred_fallthru
        _
    $region52: #{scnn_forward.14} parent=5 // pred_fallthru
      _
  $region6: #{scnn_forward.14} parent=0 // loop_footer
    %s17 = sadd.s32 1, %s13
  $region7: #{scnn_forward.14} parent=0 // loop_footer_branch
    %12 = sbr.rel target = $region3
  $region8: #{scnn_forward.14} parent=0 // loop_exit
    _

// kernel: scnn_forward.15
$region0: #{scnn_forward.15}
  #allocation0 [shape = 'u32[]', space=smem, size = 0x4, offset = 0x4, fixed_abs, tag = 'smem constant byte address 0x4 - core index']
  #allocation1 [shape = 'u32[144,128]{1,0:T(1,128)}', space=vmem, size = 0x12000, scoped, tag = 'internal scratch']
  %s0 = inlined_call_operand.vmem [shape: bf16[392,576], index: 0, kind: input, shape index: {}]
  %s1 = inlined_call_operand.vmem [shape: bf16[576,32], index: 1, kind: input, shape index: {}]
  %s2 = inlined_call_operand.vmem [shape: f32[1,32], index: 2, kind: input, shape index: {}]
  %s3 = inlined_call_operand.vmem [shape: f32[392,32], index: 3, kind: input, shape index: {}, may-alias: {3,5}]
  %s4 = inlined_call_operand.vmem [shape: f32[392,32], index: 4, kind: input, shape index: {}, may-alias: {4,6}]
  %s5 = inlined_call_operand.vmem [shape: f32[392,32], index: 5, kind: output, shape index: {0}, may-alias: {3,5}]
  %s6 = inlined_call_operand.vmem [shape: f32[392,32], index: 6, kind: output, shape index: {1}, may-alias: {4,6}]
  %7 = xla_tuple %s5, %s6
  %s8 = sld [smem:[#allocation0]]
  $region38: #{scnn_forward.15} parent=0
    _
  %s10 = ssub.s32 1, %s8
  %s11 = scalar_select 0, %s10, %s8
  // Predicated region
  $region2: #{scnn_forward.15} parent=0 // pred_check
    _
  $region3: #{scnn_forward.15} parent=0 // pred_check_branch
    %13 = sbr.rel (0) target = $region5
  $region4: #{scnn_forward.15} parent=0 // pred_region
    _
  $region5: #{scnn_forward.15} parent=0 // pred_fallthru
    _
  // Predicated region
  $region6: #{scnn_forward.15} parent=0 // pred_check
    _
  $region7: #{scnn_forward.15} parent=0 // pred_check_branch
    %15 = sbr.rel (0) target = $region9
  $region8: #{scnn_forward.15} parent=0 // pred_region
    _
  $region9: #{scnn_forward.15} parent=0 // pred_fallthru
    _
  // Predicated region
  $region10: #{scnn_forward.15} parent=0 // pred_check
    _
  $region11: #{scnn_forward.15} parent=0 // pred_check_branch
    %17 = sbr.rel (0) target = $region13
  $region12: #{scnn_forward.15} parent=0 // pred_region
    _
  $region13: #{scnn_forward.15} parent=0 // pred_fallthru
    _
  // Predicated region
  $region14: #{scnn_forward.15} parent=0 // pred_check
    _
  $region15: #{scnn_forward.15} parent=0 // pred_check_branch
    %19 = sbr.rel (0) target = $region17
  $region16: #{scnn_forward.15} parent=0 // pred_region
    _
  $region17: #{scnn_forward.15} parent=0 // pred_fallthru
    _
  // Predicated region
  $region18: #{scnn_forward.15} parent=0 // pred_check
    _
  $region19: #{scnn_forward.15} parent=0 // pred_check_branch
    %21 = sbr.rel (0) target = $region21
  $region20: #{scnn_forward.15} parent=0 // pred_region
    _
  $region21: #{scnn_forward.15} parent=0 // pred_fallthru
    _
  %v23 = vld [vmem:[%s0] sm:$0xff]
  %v24 = vld [vmem:[%s0 + $0x8] sm:$0xff]
  %v25 = vld [vmem:[%s0 + $0x10] sm:$0xf]
  %v26 = vld [vmem:[%s0 + $0x14] sm:$0xff]
  %v27 = vld [vmem:[%s0 + $0x1c] sm:$0xff]
  %v28 = vld [vmem:[%s0 + $0x24] sm:$0xf]
  %v29 = vld [vmem:[%s0 + $0x28] sm:$0xff]
  %v30 = vld [vmem:[%s0 + $0x30] sm:$0xff]
  %v31 = vld [vmem:[%s0 + $0x38] sm:$0xf]
  %v32 = vld [vmem:[%s0 + $0x3c] sm:$0xff]
  %v33 = vld [vmem:[%s0 + $0x44] sm:$0xff]
  %v34 = vld [vmem:[%s0 + $0x4c] sm:$0xf]
  %v35 = vld [vmem:[%s0 + $0x50] sm:$0xff]
  %v36 = vld [vmem:[%s0 + $0x58] sm:$0xff]
  %v37 = vld [vmem:[%s0 + $0x60] sm:$0xf]
  %v38 = vld [vmem:[%s0 + $0x64] sm:$0xff]
  %v39 = vld [vmem:[%s0 + $0x6c] sm:$0xff]
  %v40 = vld [vmem:[%s0 + $0x74] sm:$0xf]
  %v41 = vld [vmem:[%s0 + $0x78] sm:$0xff]
  %v42 = vld [vmem:[%s0 + $0x80] sm:$0xff]
  %v43 = vld [vmem:[%s0 + $0x88] sm:$0xf]
  %v44 = vld [vmem:[%s0 + $0x8c] sm:$0xff]
  %v45 = vld [vmem:[%s0 + $0x94] sm:$0xff]
  %v46 = vld [vmem:[%s0 + $0x9c] sm:$0xf]
  %v47 = vld [vmem:[%s0 + $0xa0] sm:$0xff]
  %v48 = vld [vmem:[%s0 + $0xa8] sm:$0xff]
  %v49 = vld [vmem:[%s0 + $0xb0] sm:$0xf]
  %v50 = vld [vmem:[%s0 + $0xb4] sm:$0xff]
  %v51 = vld [vmem:[%s0 + $0xbc] sm:$0xff]
  %v52 = vld [vmem:[%s0 + $0xc4] sm:$0xf]
  %v53 = vld [vmem:[%s0 + $0xc8] sm:$0xff]
  %v54 = vld [vmem:[%s0 + $0xd0] sm:$0xff]
  %v55 = vld [vmem:[%s0 + $0xd8] sm:$0xf]
  %v56 = vld [vmem:[%s0 + $0xdc] sm:$0xff]
  %v57 = vld [vmem:[%s0 + $0xe4] sm:$0xff]
  %v58 = vld [vmem:[%s0 + $0xec] sm:$0xf]
  %v59 = vld [vmem:[%s0 + $0xf0] sm:$0xff]
  %v60 = vld [vmem:[%s0 + $0xf8] sm:$0xff]
  %v61 = vld [vmem:[%s0 + $0x100] sm:$0xf]
  %v62 = vld [vmem:[%s0 + $0x104] sm:$0xff]
  %v63 = vld [vmem:[%s0 + $0x10c] sm:$0xff]
  %v64 = vld [vmem:[%s0 + $0x114] sm:$0xf]
  %v65 = vld [vmem:[%s0 + $0x118] sm:$0xff]
  %v66 = vld [vmem:[%s0 + $0x120] sm:$0xff]
  %v67 = vld [vmem:[%s0 + $0x128] sm:$0xf]
  %v68 = vld [vmem:[%s0 + $0x12c] sm:$0xff]
  %v69 = vld [vmem:[%s0 + $0x134] sm:$0xff]
  %v70 = vld [vmem:[%s0 + $0x13c] sm:$0xf]
  %v71 = vld [vmem:[%s0 + $0x140] sm:$0xff]
  %v72 = vld [vmem:[%s0 + $0x148] sm:$0xff]
  %v73 = vld [vmem:[%s0 + $0x150] sm:$0xf]
  %v74 = vld [vmem:[%s0 + $0x154] sm:$0xff]
  %v75 = vld [vmem:[%s0 + $0x15c] sm:$0xff]
  %v76 = vld [vmem:[%s0 + $0x164] sm:$0xf]
  %v77 = vld [vmem:[%s0 + $0x168] sm:$0xff]
  %v78 = vld [vmem:[%s0 + $0x170] sm:$0xff]
  %v79 = vld [vmem:[%s0 + $0x178] sm:$0xf]
  %v80 = vld [vmem:[%s0 + $0x17c] sm:$0xff]
  %v81 = vld [vmem:[%s0 + $0x184] sm:$0xff]
  %v82 = vld [vmem:[%s0 + $0x18c] sm:$0xf]
  %v83 = vld [vmem:[%s0 + $0x190] sm:$0xff]
  %v84 = vld [vmem:[%s0 + $0x198] sm:$0xff]
  %v85 = vld [vmem:[%s0 + $0x1a0] sm:$0xf]
  %v86 = vld [vmem:[%s0 + $0x1a4] sm:$0xff]
  %v87 = vld [vmem:[%s0 + $0x1ac] sm:$0xff]
  %v88 = vld [vmem:[%s0 + $0x1b4] sm:$0xf]
  %v89 = vld [vmem:[%s0 + $0x1b8] sm:$0xff]
  %v90 = vld [vmem:[%s0 + $0x1c0] sm:$0xff]
  %v91 = vld [vmem:[%s0 + $0x1c8] sm:$0xf]
  %v92 = vld [vmem:[%s0 + $0x1cc] sm:$0xff]
  %v93 = vld [vmem:[%s0 + $0x1d4] sm:$0xff]
  %v94 = vld [vmem:[%s0 + $0x1dc] sm:$0xf]
  %v95 = vld [vmem:[%s0 + $0x1e0] sm:$0xff]
  %v96 = vld [vmem:[%s0 + $0x1e8] sm:$0xff]
  %v97 = vld [vmem:[%s0 + $0x1f0] sm:$0xf]
  %v98 = vld [vmem:[%s0 + $0x1f4] sm:$0xff]
  %v99 = vld [vmem:[%s0 + $0x1fc] sm:$0xff]
  %v100 = vld [vmem:[%s0 + $0x204] sm:$0xf]
  %v101 = vld [vmem:[%s0 + $0x208] sm:$0xff]
  %v102 = vld [vmem:[%s0 + $0x210] sm:$0xff]
  %v103 = vld [vmem:[%s0 + $0x218] sm:$0xf]
  %v104 = vld [vmem:[%s0 + $0x21c] sm:$0xff]
  %v105 = vld [vmem:[%s0 + $0x224] sm:$0xff]
  %v106 = vld [vmem:[%s0 + $0x22c] sm:$0xf]
  %v107 = vld [vmem:[%s0 + $0x230] sm:$0xff]
  %v108 = vld [vmem:[%s0 + $0x238] sm:$0xff]
  %v109 = vld [vmem:[%s0 + $0x240] sm:$0xf]
  %v110 = vld [vmem:[%s0 + $0x244] sm:$0xff]
  %v111 = vld [vmem:[%s0 + $0x24c] sm:$0xff]
  %v112 = vld [vmem:[%s0 + $0x254] sm:$0xf]
  %v113 = vld [vmem:[%s0 + $0x258] sm:$0xff]
  %v114 = vld [vmem:[%s0 + $0x260] sm:$0xff]
  %v115 = vld [vmem:[%s0 + $0x268] sm:$0xf]
  %v116 = vld [vmem:[%s0 + $0x26c] sm:$0xff]
  %v117 = vld [vmem:[%s0 + $0x274] sm:$0xff]
  %v118 = vld [vmem:[%s0 + $0x27c] sm:$0xf]
  %v119 = vld [vmem:[%s0 + $0x280] sm:$0xff]
  %v120 = vld [vmem:[%s0 + $0x288] sm:$0xff]
  %v121 = vld [vmem:[%s0 + $0x290] sm:$0xf]
  %v122 = vld [vmem:[%s0 + $0x294] sm:$0xff]
  %v123 = vld [vmem:[%s0 + $0x29c] sm:$0xff]
  %v124 = vld [vmem:[%s0 + $0x2a4] sm:$0xf]
  %v125 = vld [vmem:[%s0 + $0x2a8] sm:$0xff]
  %v126 = vld [vmem:[%s0 + $0x2b0] sm:$0xff]
  %v127 = vld [vmem:[%s0 + $0x2b8] sm:$0xf]
  %v128 = vld [vmem:[%s0 + $0x2bc] sm:$0xff]
  %v129 = vld [vmem:[%s0 + $0x2c4] sm:$0xff]
  %v130 = vld [vmem:[%s0 + $0x2cc] sm:$0xf]
  %v131 = vld [vmem:[%s0 + $0x2d0] sm:$0xff]
  %v132 = vld [vmem:[%s0 + $0x2d8] sm:$0xff]
  %v133 = vld [vmem:[%s0 + $0x2e0] sm:$0xf]
  %v134 = vld [vmem:[%s0 + $0x2e4] sm:$0xff]
  %v135 = vld [vmem:[%s0 + $0x2ec] sm:$0xff]
  %v136 = vld [vmem:[%s0 + $0x2f4] sm:$0xf]
  %v137 = vld [vmem:[%s0 + $0x2f8] sm:$0xff]
  %v138 = vld [vmem:[%s0 + $0x300] sm:$0xff]
  %v139 = vld [vmem:[%s0 + $0x308] sm:$0xf]
  %v140 = vld [vmem:[%s0 + $0x30c] sm:$0xff]
  %v141 = vld [vmem:[%s0 + $0x314] sm:$0xff]
  %v142 = vld [vmem:[%s0 + $0x31c] sm:$0xf]
  %v143 = vld [vmem:[%s0 + $0x320] sm:$0xff]
  %v144 = vld [vmem:[%s0 + $0x328] sm:$0xff]
  %v145 = vld [vmem:[%s0 + $0x330] sm:$0xf]
  %v146 = vld [vmem:[%s0 + $0x334] sm:$0xff]
  %v147 = vld [vmem:[%s0 + $0x33c] sm:$0xff]
  %v148 = vld [vmem:[%s0 + $0x344] sm:$0xf]
  %v149 = vld [vmem:[%s0 + $0x348] sm:$0xff]
  %v150 = vld [vmem:[%s0 + $0x350] sm:$0xff]
  %v151 = vld [vmem:[%s0 + $0x358] sm:$0xf]
  %v152 = vld [vmem:[%s0 + $0x35c] sm:$0xff]
  %v153 = vld [vmem:[%s0 + $0x364] sm:$0xff]
  %v154 = vld [vmem:[%s0 + $0x36c] sm:$0xf]
  %v155 = vld [vmem:[%s0 + $0x370] sm:$0xff]
  %v156 = vld [vmem:[%s0 + $0x378] sm:$0xff]
  %v157 = vld [vmem:[%s0 + $0x380] sm:$0xf]
  %v158 = vld [vmem:[%s0 + $0x384] sm:$0xff]
  %v159 = vld [vmem:[%s0 + $0x38c] sm:$0xff]
  %v160 = vld [vmem:[%s0 + $0x394] sm:$0xf]
  %v161 = vld [vmem:[%s0 + $0x398] sm:$0xff]
  %v162 = vld [vmem:[%s0 + $0x3a0] sm:$0xff]
  %v163 = vld [vmem:[%s0 + $0x3a8] sm:$0xf]
  %v164 = vld [vmem:[%s0 + $0x3ac] sm:$0xff]
  %v165 = vld [vmem:[%s0 + $0x3b4] sm:$0xff]
  %v166 = vld [vmem:[%s0 + $0x3bc] sm:$0xf]
  %v167 = vld [vmem:[%s0 + $0x3c0] sm:$0xff]
  %v168 = vld [vmem:[%s0 + $0x3c8] sm:$0xff]
  %v169 = vld [vmem:[%s0 + $0x3d0] sm:$0xf]
  %v170 = vld [vmem:[%s1] sm:$0xf]
  %v171 = vld [vmem:[%s1 + $0x4] sm:$0xf]
  %v172 = vld [vmem:[%s1 + $0x8] sm:$0xf]
  %v173 = vld [vmem:[%s1 + $0xc] sm:$0xf]
  %v174 = vld [vmem:[%s1 + $0x10] sm:$0xf]
  %v175 = vld [vmem:[%s1 + $0x14] sm:$0xf]
  %v176 = vld [vmem:[%s1 + $0x18] sm:$0xf]
  %v177 = vld [vmem:[%s1 + $0x1c] sm:$0xf]
  %v178 = vld [vmem:[%s1 + $0x20] sm:$0xf]
  %v179 = vld [vmem:[%s1 + $0x24] sm:$0xf]
  %v180 = vld [vmem:[%s1 + $0x28] sm:$0xf]
  %v181 = vld [vmem:[%s1 + $0x2c] sm:$0xf]
  %v182 = vld [vmem:[%s1 + $0x30] sm:$0xf]
  %v183 = vld [vmem:[%s1 + $0x34] sm:$0xf]
  %v184 = vld [vmem:[%s1 + $0x38] sm:$0xf]
  %v185 = vld [vmem:[%s1 + $0x3c] sm:$0xf]
  %v186 = vld [vmem:[%s1 + $0x40] sm:$0xf]
  %v187 = vld [vmem:[%s1 + $0x44] sm:$0xf]
  %v188 = vld [vmem:[%s1 + $0x48] sm:$0xf]
  %v189 = vld [vmem:[%s1 + $0x4c] sm:$0xf]
  %v190 = vld [vmem:[%s1 + $0x50] sm:$0xf]
  %v191 = vld [vmem:[%s1 + $0x54] sm:$0xf]
  %v192 = vld [vmem:[%s1 + $0x58] sm:$0xf]
  %v193 = vld [vmem:[%s1 + $0x5c] sm:$0xf]
  %v194 = vld [vmem:[%s1 + $0x60] sm:$0xf]
  %v195 = vld [vmem:[%s1 + $0x64] sm:$0xf]
  %v196 = vld [vmem:[%s1 + $0x68] sm:$0xf]
  %v197 = vld [vmem:[%s1 + $0x6c] sm:$0xf]
  %v198 = vld [vmem:[%s1 + $0x70] sm:$0xf]
  %v199 = vld [vmem:[%s1 + $0x74] sm:$0xf]
  %v200 = vld [vmem:[%s1 + $0x78] sm:$0xf]
  %v201 = vld [vmem:[%s1 + $0x7c] sm:$0xf]
  %v202 = vld [vmem:[%s1 + $0x80] sm:$0xf]
  %v203 = vld [vmem:[%s1 + $0x84] sm:$0xf]
  %v204 = vld [vmem:[%s1 + $0x88] sm:$0xf]
  %v205 = vld [vmem:[%s1 + $0x8c] sm:$0xf]
  %v206 = vld [vmem:[%s1 + $0x90] sm:$0xf]
  %v207 = vld [vmem:[%s1 + $0x94] sm:$0xf]
  %v208 = vld [vmem:[%s1 + $0x98] sm:$0xf]
  %v209 = vld [vmem:[%s1 + $0x9c] sm:$0xf]
  %v210 = vld [vmem:[%s1 + $0xa0] sm:$0xf]
  %v211 = vld [vmem:[%s1 + $0xa4] sm:$0xf]
  %v212 = vld [vmem:[%s1 + $0xa8] sm:$0xf]
  %v213 = vld [vmem:[%s1 + $0xac] sm:$0xf]
  %v214 = vld [vmem:[%s1 + $0xb0] sm:$0xf]
  %v215 = vld [vmem:[%s1 + $0xb4] sm:$0xf]
  %v216 = vld [vmem:[%s1 + $0xb8] sm:$0xf]
  %v217 = vld [vmem:[%s1 + $0xbc] sm:$0xf]
  %v218 = vld [vmem:[%s1 + $0xc0] sm:$0xf]
  %v219 = vld [vmem:[%s1 + $0xc4] sm:$0xf]
  %v220 = vld [vmem:[%s1 + $0xc8] sm:$0xf]
  %v221 = vld [vmem:[%s1 + $0xcc] sm:$0xf]
  %v222 = vld [vmem:[%s1 + $0xd0] sm:$0xf]
  %v223 = vld [vmem:[%s1 + $0xd4] sm:$0xf]
  %v224 = vld [vmem:[%s1 + $0xd8] sm:$0xf]
  %v225 = vld [vmem:[%s1 + $0xdc] sm:$0xf]
  %v226 = vld [vmem:[%s1 + $0xe0] sm:$0xf]
  %v227 = vld [vmem:[%s1 + $0xe4] sm:$0xf]
  %v228 = vld [vmem:[%s1 + $0xe8] sm:$0xf]
  %v229 = vld [vmem:[%s1 + $0xec] sm:$0xf]
  %v230 = vld [vmem:[%s1 + $0xf0] sm:$0xf]
  %v231 = vld [vmem:[%s1 + $0xf4] sm:$0xf]
  %v232 = vld [vmem:[%s1 + $0xf8] sm:$0xf]
  %v233 = vld [vmem:[%s1 + $0xfc] sm:$0xf]
  %v234 = vld [vmem:[%s1 + $0x100] sm:$0xf]
  %v235 = vld [vmem:[%s1 + $0x104] sm:$0xf]
  %v236 = vld [vmem:[%s1 + $0x108] sm:$0xf]
  %v237 = vld [vmem:[%s1 + $0x10c] sm:$0xf]
  %v238 = vld [vmem:[%s1 + $0x110] sm:$0xf]
  %v239 = vld [vmem:[%s1 + $0x114] sm:$0xf]
  %v240 = vld [vmem:[%s1 + $0x118] sm:$0xf]
  %v241 = vld [vmem:[%s1 + $0x11c] sm:$0xf]
  %v389 = vunpack.c.l.b16 %v23
  %v390 = vunpack.c.h.b16 %v23
  %v391 = vunpack.c.l.b16 %v24
  %v392 = vunpack.c.h.b16 %v24
  %v393 = vunpack.c.l.b16 %v25
  %v394 = vunpack.c.l.b16 %v26
  %v395 = vunpack.c.h.b16 %v26
  %v396 = vunpack.c.l.b16 %v27
  %v397 = vunpack.c.h.b16 %v27
  %v398 = vunpack.c.l.b16 %v28
  %v399 = vunpack.c.l.b16 %v29
  %v400 = vunpack.c.h.b16 %v29
  %v401 = vunpack.c.l.b16 %v30
  %v402 = vunpack.c.h.b16 %v30
  %v403 = vunpack.c.l.b16 %v31
  %v404 = vunpack.c.l.b16 %v32
  %v405 = vunpack.c.h.b16 %v32
  %v406 = vunpack.c.l.b16 %v33
  %v407 = vunpack.c.h.b16 %v33
  %v408 = vunpack.c.l.b16 %v34
  %v409 = vunpack.c.l.b16 %v35
  %v410 = vunpack.c.h.b16 %v35
  %v411 = vunpack.c.l.b16 %v36
  %v412 = vunpack.c.h.b16 %v36
  %v413 = vunpack.c.l.b16 %v37
  %v414 = vunpack.c.l.b16 %v38
  %v415 = vunpack.c.h.b16 %v38
  %v416 = vunpack.c.l.b16 %v39
  %v417 = vunpack.c.h.b16 %v39
  %v418 = vunpack.c.l.b16 %v40
  %v419 = vunpack.c.l.b16 %v41
  %v420 = vunpack.c.h.b16 %v41
  %v421 = vunpack.c.l.b16 %v42
  %v422 = vunpack.c.h.b16 %v42
  %v423 = vunpack.c.l.b16 %v43
  %v424 = vunpack.c.l.b16 %v44
  %v425 = vunpack.c.h.b16 %v44
  %v426 = vunpack.c.l.b16 %v45
  %v427 = vunpack.c.h.b16 %v45
  %v428 = vunpack.c.l.b16 %v46
  %v429 = vunpack.c.l.b16 %v47
  %v430 = vunpack.c.h.b16 %v47
  %v431 = vunpack.c.l.b16 %v48
  %v432 = vunpack.c.h.b16 %v48
  %v433 = vunpack.c.l.b16 %v49
  %v434 = vunpack.c.l.b16 %v50
  %v435 = vunpack.c.h.b16 %v50
  %v436 = vunpack.c.l.b16 %v51
  %v437 = vunpack.c.h.b16 %v51
  %v438 = vunpack.c.l.b16 %v52
  %v439 = vunpack.c.l.b16 %v53
  %v440 = vunpack.c.h.b16 %v53
  %v441 = vunpack.c.l.b16 %v54
  %v442 = vunpack.c.h.b16 %v54
  %v443 = vunpack.c.l.b16 %v55
  %v444 = vunpack.c.l.b16 %v56
  %v445 = vunpack.c.h.b16 %v56
  %v446 = vunpack.c.l.b16 %v57
  %v447 = vunpack.c.h.b16 %v57
  %v448 = vunpack.c.l.b16 %v58
  %v449 = vunpack.c.l.b16 %v59
  %v450 = vunpack.c.h.b16 %v59
  %v451 = vunpack.c.l.b16 %v60
  %v452 = vunpack.c.h.b16 %v60
  %v453 = vunpack.c.l.b16 %v61
  %v454 = vunpack.c.l.b16 %v62
  %v455 = vunpack.c.h.b16 %v62
  %v456 = vunpack.c.l.b16 %v63
  %v457 = vunpack.c.h.b16 %v63
  %v458 = vunpack.c.l.b16 %v64
  %v459 = vunpack.c.l.b16 %v65
  %v460 = vunpack.c.h.b16 %v65
  %v461 = vunpack.c.l.b16 %v66
  %v462 = vunpack.c.h.b16 %v66
  %v463 = vunpack.c.l.b16 %v67
  %v464 = vunpack.c.l.b16 %v68
  %v465 = vunpack.c.h.b16 %v68
  %v466 = vunpack.c.l.b16 %v69
  %v467 = vunpack.c.h.b16 %v69
  %v468 = vunpack.c.l.b16 %v70
  %v469 = vunpack.c.l.b16 %v71
  %v470 = vunpack.c.h.b16 %v71
  %v471 = vunpack.c.l.b16 %v72
  %v472 = vunpack.c.h.b16 %v72
  %v473 = vunpack.c.l.b16 %v73
  %v474 = vunpack.c.l.b16 %v74
  %v475 = vunpack.c.h.b16 %v74
  %v476 = vunpack.c.l.b16 %v75
  %v477 = vunpack.c.h.b16 %v75
  %v478 = vunpack.c.l.b16 %v76
  %v479 = vunpack.c.l.b16 %v77
  %v480 = vunpack.c.h.b16 %v77
  %v481 = vunpack.c.l.b16 %v78
  %v482 = vunpack.c.h.b16 %v78
  %v483 = vunpack.c.l.b16 %v79
  %v484 = vunpack.c.l.b16 %v80
  %v485 = vunpack.c.h.b16 %v80
  %v486 = vunpack.c.l.b16 %v81
  %v487 = vunpack.c.h.b16 %v81
  %v488 = vunpack.c.l.b16 %v82
  %v489 = vunpack.c.l.b16 %v83
  %v490 = vunpack.c.h.b16 %v83
  %v491 = vunpack.c.l.b16 %v84
  %v492 = vunpack.c.h.b16 %v84
  %v493 = vunpack.c.l.b16 %v85
  %v494 = vunpack.c.l.b16 %v86
  %v495 = vunpack.c.h.b16 %v86
  %v496 = vunpack.c.l.b16 %v87
  %v497 = vunpack.c.h.b16 %v87
  %v498 = vunpack.c.l.b16 %v88
  %v499 = vunpack.c.l.b16 %v89
  %v500 = vunpack.c.h.b16 %v89
  %v501 = vunpack.c.l.b16 %v90
  %v502 = vunpack.c.h.b16 %v90
  %v503 = vunpack.c.l.b16 %v91
  %v504 = vunpack.c.l.b16 %v92
  %v505 = vunpack.c.h.b16 %v92
  %v506 = vunpack.c.l.b16 %v93
  %v507 = vunpack.c.h.b16 %v93
  %v508 = vunpack.c.l.b16 %v94
  %v509 = vunpack.c.l.b16 %v95
  %v510 = vunpack.c.h.b16 %v95
  %v511 = vunpack.c.l.b16 %v96
  %v512 = vunpack.c.h.b16 %v96
  %v513 = vunpack.c.l.b16 %v97
  %v514 = vunpack.c.l.b16 %v98
  %v515 = vunpack.c.h.b16 %v98
  %v516 = vunpack.c.l.b16 %v99
  %v517 = vunpack.c.h.b16 %v99
  %v518 = vunpack.c.l.b16 %v100
  %v519 = vunpack.c.l.b16 %v101
  %v520 = vunpack.c.h.b16 %v101
  %v521 = vunpack.c.l.b16 %v102
  %v522 = vunpack.c.h.b16 %v102
  %v523 = vunpack.c.l.b16 %v103
  %v524 = vunpack.c.l.b16 %v104
  %v525 = vunpack.c.h.b16 %v104
  %v526 = vunpack.c.l.b16 %v105
  %v527 = vunpack.c.h.b16 %v105
  %v528 = vunpack.c.l.b16 %v106
  %v529 = vunpack.c.l.b16 %v107
  %v530 = vunpack.c.h.b16 %v107
  %v531 = vunpack.c.l.b16 %v108
  %v532 = vunpack.c.h.b16 %v108
  %v533 = vunpack.c.l.b16 %v109
  %v534 = vunpack.c.l.b16 %v110
  %v535 = vunpack.c.h.b16 %v110
  %v536 = vunpack.c.l.b16 %v111
  %v537 = vunpack.c.h.b16 %v111
  %v538 = vunpack.c.l.b16 %v112
  %v539 = vunpack.c.l.b16 %v113
  %v540 = vunpack.c.h.b16 %v113
  %v541 = vunpack.c.l.b16 %v114
  %v542 = vunpack.c.h.b16 %v114
  %v543 = vunpack.c.l.b16 %v115
  %v544 = vunpack.c.l.b16 %v116
  %v545 = vunpack.c.h.b16 %v116
  %v546 = vunpack.c.l.b16 %v117
  %v547 = vunpack.c.h.b16 %v117
  %v548 = vunpack.c.l.b16 %v118
  %v549 = vunpack.c.l.b16 %v119
  %v550 = vunpack.c.h.b16 %v119
  %v551 = vunpack.c.l.b16 %v120
  %v552 = vunpack.c.h.b16 %v120
  %v553 = vunpack.c.l.b16 %v121
  %v554 = vunpack.c.l.b16 %v122
  %v555 = vunpack.c.h.b16 %v122
  %v556 = vunpack.c.l.b16 %v123
  %v557 = vunpack.c.h.b16 %v123
  %v558 = vunpack.c.l.b16 %v124
  %v559 = vunpack.c.l.b16 %v125
  %v560 = vunpack.c.h.b16 %v125
  %v561 = vunpack.c.l.b16 %v126
  %v562 = vunpack.c.h.b16 %v126
  %v563 = vunpack.c.l.b16 %v127
  %v564 = vunpack.c.l.b16 %v128
  %v565 = vunpack.c.h.b16 %v128
  %v566 = vunpack.c.l.b16 %v129
  %v567 = vunpack.c.h.b16 %v129
  %v568 = vunpack.c.l.b16 %v130
  %v569 = vunpack.c.l.b16 %v131
  %v570 = vunpack.c.h.b16 %v131
  %v571 = vunpack.c.l.b16 %v132
  %v572 = vunpack.c.h.b16 %v132
  %v573 = vunpack.c.l.b16 %v133
  %v574 = vunpack.c.l.b16 %v134
  %v575 = vunpack.c.h.b16 %v134
  %v576 = vunpack.c.l.b16 %v135
  %v577 = vunpack.c.h.b16 %v135
  %v578 = vunpack.c.l.b16 %v136
  %v579 = vunpack.c.l.b16 %v137
  %v580 = vunpack.c.h.b16 %v137
  %v581 = vunpack.c.l.b16 %v138
  %v582 = vunpack.c.h.b16 %v138
  %v583 = vunpack.c.l.b16 %v139
  %v584 = vunpack.c.l.b16 %v140
  %v585 = vunpack.c.h.b16 %v140
  %v586 = vunpack.c.l.b16 %v141
  %v587 = vunpack.c.h.b16 %v141
  %v588 = vunpack.c.l.b16 %v142
  %v589 = vunpack.c.l.b16 %v143
  %v590 = vunpack.c.h.b16 %v143
  %v591 = vunpack.c.l.b16 %v144
  %v592 = vunpack.c.h.b16 %v144
  %v593 = vunpack.c.l.b16 %v145
  %v594 = vunpack.c.l.b16 %v146
  %v595 = vunpack.c.h.b16 %v146
  %v596 = vunpack.c.l.b16 %v147
  %v597 = vunpack.c.h.b16 %v147
  %v598 = vunpack.c.l.b16 %v148
  %v599 = vunpack.c.l.b16 %v149
  %v600 = vunpack.c.h.b16 %v149
  %v601 = vunpack.c.l.b16 %v150
  %v602 = vunpack.c.h.b16 %v150
  %v603 = vunpack.c.l.b16 %v151
  %v604 = vunpack.c.l.b16 %v152
  %v605 = vunpack.c.h.b16 %v152
  %v606 = vunpack.c.l.b16 %v153
  %v607 = vunpack.c.h.b16 %v153
  %v608 = vunpack.c.l.b16 %v154
  %v609 = vunpack.c.l.b16 %v155
  %v610 = vunpack.c.h.b16 %v155
  %v611 = vunpack.c.l.b16 %v156
  %v612 = vunpack.c.h.b16 %v156
  %v613 = vunpack.c.l.b16 %v157
  %v614 = vunpack.c.l.b16 %v158
  %v615 = vunpack.c.h.b16 %v158
  %v616 = vunpack.c.l.b16 %v159
  %v617 = vunpack.c.h.b16 %v159
  %v618 = vunpack.c.l.b16 %v160
  %v619 = vunpack.c.l.b16 %v161
  %v620 = vunpack.c.h.b16 %v161
  %v621 = vunpack.c.l.b16 %v162
  %v622 = vunpack.c.h.b16 %v162
  %v623 = vunpack.c.l.b16 %v163
  %v624 = vunpack.c.l.b16 %v164
  %v625 = vunpack.c.h.b16 %v164
  %v626 = vunpack.c.l.b16 %v165
  %v627 = vunpack.c.h.b16 %v165
  %v628 = vunpack.c.l.b16 %v166
  %v629 = vunpack.c.l.b16 %v167
  %v630 = vunpack.c.h.b16 %v167
  %v631 = vunpack.c.l.b16 %v168
  %v632 = vunpack.c.h.b16 %v168
  %v633 = vunpack.c.l.b16 %v169
  %v634 = vpack.c.b16 %v394, %v389
  %v635 = vpack.c.b16 %v395, %v390
  %v636 = vpack.c.b16 %v396, %v391
  %v637 = vpack.c.b16 %v397, %v392
  %v638 = vpack.c.b16 %v398, %v393
  %v639 = vpack.c.b16 %v404, %v399
  %v640 = vpack.c.b16 %v405, %v400
  %v641 = vpack.c.b16 %v406, %v401
  %v642 = vpack.c.b16 %v407, %v402
  %v643 = vpack.c.b16 %v408, %v403
  %v644 = vpack.c.b16 %v414, %v409
  %v645 = vpack.c.b16 %v415, %v410
  %v646 = vpack.c.b16 %v416, %v411
  %v647 = vpack.c.b16 %v417, %v412
  %v648 = vpack.c.b16 %v418, %v413
  %v649 = vpack.c.b16 %v424, %v419
  %v650 = vpack.c.b16 %v425, %v420
  %v651 = vpack.c.b16 %v426, %v421
  %v652 = vpack.c.b16 %v427, %v422
  %v653 = vpack.c.b16 %v428, %v423
  %v654 = vpack.c.b16 %v434, %v429
  %v655 = vpack.c.b16 %v435, %v430
  %v656 = vpack.c.b16 %v436, %v431
  %v657 = vpack.c.b16 %v437, %v432
  %v658 = vpack.c.b16 %v438, %v433
  %v659 = vpack.c.b16 %v444, %v439
  %v660 = vpack.c.b16 %v445, %v440
  %v661 = vpack.c.b16 %v446, %v441
  %v662 = vpack.c.b16 %v447, %v442
  %v663 = vpack.c.b16 %v448, %v443
  %v664 = vpack.c.b16 %v454, %v449
  %v665 = vpack.c.b16 %v455, %v450
  %v666 = vpack.c.b16 %v456, %v451
  %v667 = vpack.c.b16 %v457, %v452
  %v668 = vpack.c.b16 %v458, %v453
  %v669 = vpack.c.b16 %v464, %v459
  %v670 = vpack.c.b16 %v465, %v460
  %v671 = vpack.c.b16 %v466, %v461
  %v672 = vpack.c.b16 %v467, %v462
  %v673 = vpack.c.b16 %v468, %v463
  %v674 = vpack.c.b16 %v474, %v469
  %v675 = vpack.c.b16 %v475, %v470
  %v676 = vpack.c.b16 %v476, %v471
  %v677 = vpack.c.b16 %v477, %v472
  %v678 = vpack.c.b16 %v478, %v473
  %v679 = vpack.c.b16 %v484, %v479
  %v680 = vpack.c.b16 %v485, %v480
  %v681 = vpack.c.b16 %v486, %v481
  %v682 = vpack.c.b16 %v487, %v482
  %v683 = vpack.c.b16 %v488, %v483
  %v684 = vpack.c.b16 %v494, %v489
  %v685 = vpack.c.b16 %v495, %v490
  %v686 = vpack.c.b16 %v496, %v491
  %v687 = vpack.c.b16 %v497, %v492
  %v688 = vpack.c.b16 %v498, %v493
  %v689 = vpack.c.b16 %v504, %v499
  %v690 = vpack.c.b16 %v505, %v500
  %v691 = vpack.c.b16 %v506, %v501
  %v692 = vpack.c.b16 %v507, %v502
  %v693 = vpack.c.b16 %v508, %v503
  %v694 = vpack.c.b16 %v514, %v509
  %v695 = vpack.c.b16 %v515, %v510
  %v696 = vpack.c.b16 %v516, %v511
  %v697 = vpack.c.b16 %v517, %v512
  %v698 = vpack.c.b16 %v518, %v513
  %v699 = vpack.c.b16 %v524, %v519
  %v700 = vpack.c.b16 %v525, %v520
  %v701 = vpack.c.b16 %v526, %v521
  %v702 = vpack.c.b16 %v527, %v522
  %v703 = vpack.c.b16 %v528, %v523
  %v704 = vpack.c.b16 %v534, %v529
  %v705 = vpack.c.b16 %v535, %v530
  %v706 = vpack.c.b16 %v536, %v531
  %v707 = vpack.c.b16 %v537, %v532
  %v708 = vpack.c.b16 %v538, %v533
  %v709 = vpack.c.b16 %v544, %v539
  %v710 = vpack.c.b16 %v545, %v540
  %v711 = vpack.c.b16 %v546, %v541
  %v712 = vpack.c.b16 %v547, %v542
  %v713 = vpack.c.b16 %v548, %v543
  %v714 = vpack.c.b16 %v554, %v549
  %v715 = vpack.c.b16 %v555, %v550
  %v716 = vpack.c.b16 %v556, %v551
  %v717 = vpack.c.b16 %v557, %v552
  %v718 = vpack.c.b16 %v558, %v553
  %v719 = vpack.c.b16 %v564, %v559
  %v720 = vpack.c.b16 %v565, %v560
  %v721 = vpack.c.b16 %v566, %v561
  %v722 = vpack.c.b16 %v567, %v562
  %v723 = vpack.c.b16 %v568, %v563
  %v724 = vpack.c.b16 %v574, %v569
  %v725 = vpack.c.b16 %v575, %v570
  %v726 = vpack.c.b16 %v576, %v571
  %v727 = vpack.c.b16 %v577, %v572
  %v728 = vpack.c.b16 %v578, %v573
  %v729 = vpack.c.b16 %v584, %v579
  %v730 = vpack.c.b16 %v585, %v580
  %v731 = vpack.c.b16 %v586, %v581
  %v732 = vpack.c.b16 %v587, %v582
  %v733 = vpack.c.b16 %v588, %v583
  %v734 = vpack.c.b16 %v594, %v589
  %v735 = vpack.c.b16 %v595, %v590
  %v736 = vpack.c.b16 %v596, %v591
  %v737 = vpack.c.b16 %v597, %v592
  %v738 = vpack.c.b16 %v598, %v593
  %v739 = vpack.c.b16 %v604, %v599
  %v740 = vpack.c.b16 %v605, %v600
  %v741 = vpack.c.b16 %v606, %v601
  %v742 = vpack.c.b16 %v607, %v602
  %v743 = vpack.c.b16 %v608, %v603
  %v744 = vpack.c.b16 %v614, %v609
  %v745 = vpack.c.b16 %v615, %v610
  %v746 = vpack.c.b16 %v616, %v611
  %v747 = vpack.c.b16 %v617, %v612
  %v748 = vpack.c.b16 %v618, %v613
  %v749 = vpack.c.b16 %v624, %v619
  %v750 = vpack.c.b16 %v625, %v620
  %v751 = vpack.c.b16 %v626, %v621
  %v752 = vpack.c.b16 %v627, %v622
  %v753 = vpack.c.b16 %v628, %v623
  %v754 = vpack.c.b16 %v629, %v629
  %v755 = vpack.c.b16 %v630, %v630
  %v756 = vpack.c.b16 %v631, %v631
  %v757 = vpack.c.b16 %v632, %v632
  %v758 = vpack.c.b16 %v633, %v633
  %v931 = vunpack.c.l.b16 %v170
  %v932 = vunpack.c.l.b16 %v171
  %v933 = vunpack.c.l.b16 %v172
  %v934 = vunpack.c.l.b16 %v173
  %v935 = vunpack.c.l.b16 %v174
  %v936 = vunpack.c.l.b16 %v175
  %v937 = vunpack.c.l.b16 %v176
  %v938 = vunpack.c.l.b16 %v177
  %v939 = vunpack.c.l.b16 %v178
  %v940 = vunpack.c.l.b16 %v179
  %v941 = vunpack.c.l.b16 %v180
  %v942 = vunpack.c.l.b16 %v181
  %v943 = vunpack.c.l.b16 %v182
  %v944 = vunpack.c.l.b16 %v183
  %v945 = vunpack.c.l.b16 %v184
  %v946 = vunpack.c.l.b16 %v185
  %v947 = vunpack.c.l.b16 %v186
  %v948 = vunpack.c.l.b16 %v187
  %v949 = vunpack.c.l.b16 %v188
  %v950 = vunpack.c.l.b16 %v189
  %v951 = vunpack.c.l.b16 %v190
  %v952 = vunpack.c.l.b16 %v191
  %v953 = vunpack.c.l.b16 %v192
  %v954 = vunpack.c.l.b16 %v193
  %v955 = vunpack.c.l.b16 %v194
  %v956 = vunpack.c.l.b16 %v195
  %v957 = vunpack.c.l.b16 %v196
  %v958 = vunpack.c.l.b16 %v197
  %v959 = vunpack.c.l.b16 %v198
  %v960 = vunpack.c.l.b16 %v199
  %v961 = vunpack.c.l.b16 %v200
  %v962 = vunpack.c.l.b16 %v201
  %v963 = vunpack.c.l.b16 %v202
  %v964 = vunpack.c.l.b16 %v203
  %v965 = vunpack.c.l.b16 %v204
  %v966 = vunpack.c.l.b16 %v205
  %v967 = vunpack.c.l.b16 %v206
  %v968 = vunpack.c.l.b16 %v207
  %v969 = vunpack.c.l.b16 %v208
  %v970 = vunpack.c.l.b16 %v209
  %v971 = vunpack.c.l.b16 %v210
  %v972 = vunpack.c.l.b16 %v211
  %v973 = vunpack.c.l.b16 %v212
  %v974 = vunpack.c.l.b16 %v213
  %v975 = vunpack.c.l.b16 %v214
  %v976 = vunpack.c.l.b16 %v215
  %v977 = vunpack.c.l.b16 %v216
  %v978 = vunpack.c.l.b16 %v217
  %v979 = vunpack.c.l.b16 %v218
  %v980 = vunpack.c.l.b16 %v219
  %v981 = vunpack.c.l.b16 %v220
  %v982 = vunpack.c.l.b16 %v221
  %v983 = vunpack.c.l.b16 %v222
  %v984 = vunpack.c.l.b16 %v223
  %v985 = vunpack.c.l.b16 %v224
  %v986 = vunpack.c.l.b16 %v225
  %v987 = vunpack.c.l.b16 %v226
  %v988 = vunpack.c.l.b16 %v227
  %v989 = vunpack.c.l.b16 %v228
  %v990 = vunpack.c.l.b16 %v229
  %v991 = vunpack.c.l.b16 %v230
  %v992 = vunpack.c.l.b16 %v231
  %v993 = vunpack.c.l.b16 %v232
  %v994 = vunpack.c.l.b16 %v233
  %v995 = vunpack.c.l.b16 %v234
  %v996 = vunpack.c.l.b16 %v235
  %v997 = vunpack.c.l.b16 %v236
  %v998 = vunpack.c.l.b16 %v237
  %v999 = vunpack.c.l.b16 %v238
  %v1000 = vunpack.c.l.b16 %v239
  %v1001 = vunpack.c.l.b16 %v240
  %v1002 = vunpack.c.l.b16 %v241
  %v1003 = vpack.c.b16 %v932, %v931
  %v1004 = vpack.c.b16 %v934, %v933
  %v1005 = vpack.c.b16 %v936, %v935
  %v1006 = vpack.c.b16 %v938, %v937
  %v1007 = vpack.c.b16 %v940, %v939
  %v1008 = vpack.c.b16 %v942, %v941
  %v1009 = vpack.c.b16 %v944, %v943
  %v1010 = vpack.c.b16 %v946, %v945
  %v1011 = vpack.c.b16 %v948, %v947
  %v1012 = vpack.c.b16 %v950, %v949
  %v1013 = vpack.c.b16 %v952, %v951
  %v1014 = vpack.c.b16 %v954, %v953
  %v1015 = vpack.c.b16 %v956, %v955
  %v1016 = vpack.c.b16 %v958, %v957
  %v1017 = vpack.c.b16 %v960, %v959
  %v1018 = vpack.c.b16 %v962, %v961
  %v1019 = vpack.c.b16 %v964, %v963
  %v1020 = vpack.c.b16 %v966, %v965
  %v1021 = vpack.c.b16 %v968, %v967
  %v1022 = vpack.c.b16 %v970, %v969
  %v1023 = vpack.c.b16 %v972, %v971
  %v1024 = vpack.c.b16 %v974, %v973
  %v1025 = vpack.c.b16 %v976, %v975
  %v1026 = vpack.c.b16 %v978, %v977
  %v1027 = vpack.c.b16 %v980, %v979
  %v1028 = vpack.c.b16 %v982, %v981
  %v1029 = vpack.c.b16 %v984, %v983
  %v1030 = vpack.c.b16 %v986, %v985
  %v1031 = vpack.c.b16 %v988, %v987
  %v1032 = vpack.c.b16 %v990, %v989
  %v1033 = vpack.c.b16 %v992, %v991
  %v1034 = vpack.c.b16 %v994, %v993
  %v1035 = vpack.c.b16 %v996, %v995
  %v1036 = vpack.c.b16 %v998, %v997
  %v1037 = vpack.c.b16 %v1000, %v999
  %v1038 = vpack.c.b16 %v1002, %v1001
  %vm1075 = vcmask 523264
  %v1077 = vsel %vm1075, %v638, 0
  %v1080 = vsel %vm1075, %v643, 0
  %v1083 = vsel %vm1075, %v648, 0
  %v1086 = vsel %vm1075, %v653, 0
  %v1089 = vsel %vm1075, %v658, 0
  %v1092 = vsel %vm1075, %v663, 0
  %v1095 = vsel %vm1075, %v668, 0
  %v1098 = vsel %vm1075, %v673, 0
  %v1101 = vsel %vm1075, %v678, 0
  %v1104 = vsel %vm1075, %v683, 0
  %v1107 = vsel %vm1075, %v688, 0
  %v1110 = vsel %vm1075, %v693, 0
  %v1113 = vsel %vm1075, %v698, 0
  %v1116 = vsel %vm1075, %v703, 0
  %v1119 = vsel %vm1075, %v708, 0
  %v1122 = vsel %vm1075, %v713, 0
  %v1125 = vsel %vm1075, %v718, 0
  %v1128 = vsel %vm1075, %v723, 0
  %v1131 = vsel %vm1075, %v728, 0
  %v1134 = vsel %vm1075, %v733, 0
  %v1137 = vsel %vm1075, %v738, 0
  %v1140 = vsel %vm1075, %v743, 0
  %v1143 = vsel %vm1075, %v748, 0
  %v1146 = vsel %vm1075, %v753, 0
  %v1149 = vsel %vm1075, %v758, 0
  %1151 = vmatprep.subr.bf16.mxu0 0
  %1152 = vmatpush1.bf16.msra.mxu0 %v1003
  %1153 = vmatprep.subr.bf16.mxu0 0
  %1154 = vmatpush1.bf16.msra.mxu0 %v1004
  %1155 = vmatprep.subr.bf16.mxu0 0
  %1156 = vmatpush1.bf16.msra.mxu0 %v1005
  %1157 = vmatprep.subr.bf16.mxu0 0
  %1158 = vmatpush1.bf16.msra.mxu0 %v1006
  %1159 = vmatprep.subr.bf16.mxu0 0
  %1160 = vmatpush1.bf16.msra.mxu0 %v1007
  %1161 = vmatprep.subr.bf16.mxu0 0
  %1162 = vmatpush1.bf16.msra.mxu0 %v1008
  %1163 = vmatprep.subr.bf16.mxu0 0
  %1164 = vmatpush1.bf16.msra.mxu0 %v1009
  %1165 = vmatprep.subr.bf16.mxu0 0
  %1166 = vmatpush1.bf16.msra.mxu0 %v1010
  %1167 = vmatprep.subr.bf16.mxu0 0
  %1168 = vmatpush1.bf16.msra.mxu0 %v1011
  %1169 = vmatprep.subr.bf16.mxu0 0
  %1170 = vmatpush1.bf16.msra.mxu0 %v1012
  %1171 = vmatprep.subr.bf16.mxu0 0
  %1172 = vmatpush1.bf16.msra.mxu0 %v1013
  %1173 = vmatprep.subr.bf16.mxu0 0
  %1174 = vmatpush1.bf16.msra.mxu0 %v1014
  %1175 = vmatprep.subr.bf16.mxu0 0
  %1176 = vmatpush1.bf16.msra.mxu0 %v1015
  %1177 = vmatprep.subr.bf16.mxu0 0
  %1178 = vmatpush1.bf16.msra.mxu0 %v1016
  %1179 = vmatprep.subr.bf16.mxu0 0
  %1180 = vmatpush1.bf16.msra.mxu0 %v1017
  %1181 = vmatprep.subr.bf16.mxu0 0
  %1182 = vmatpush1.bf16.msra.mxu0 %v1018
  %1183 = vmatprep.mubr.bf16.mxu0 %v635
  %1184 = vmatmul.mubr.bf16.gmra.mrb[0].mxu0 %v634
  %v1185 = vpop.f32.mrb[0].mxu0
  %v1186 = vadd.f32 0.0, %v1185
  %v1187 = vpop.f32.mrb[0].mxu0
  %v1188 = vpop.f32.mrb[0].mxu0
  %v1189 = vadd.f32 0.0, %v1188
  %v1190 = vpop.f32.mrb[0].mxu0
  %1191 = vmatprep.mubr.bf16.mxu0 %v640
  %1192 = vmatmul.mubr.bf16.gmra.mrb[0].mxu0 %v639
  %v1193 = vpop.f32.mrb[0].mxu0
  %v1194 = vadd.f32 0.0, %v1193
  %v1195 = vpop.f32.mrb[0].mxu0
  %v1196 = vpop.f32.mrb[0].mxu0
  %v1197 = vadd.f32 0.0, %v1196
  %v1198 = vpop.f32.mrb[0].mxu0
  %1199 = vmatprep.mubr.bf16.mxu0 %v645
  %1200 = vmatmul.mubr.bf16.gmra.mrb[0].mxu0 %v644
  %v1201 = vpop.f32.mrb[0].mxu0
  %v1202 = vadd.f32 0.0, %v1201
  %v1203 = vpop.f32.mrb[0].mxu0
  %v1204 = vpop.f32.mrb[0].mxu0
  %v1205 = vadd.f32 0.0, %v1204
  %v1206 = vpop.f32.mrb[0].mxu0
  %1207 = vmatprep.mubr.bf16.mxu0 %v650
  %1208 = vmatmul.mubr.bf16.gmra.mrb[0].mxu0 %v649
  %v1209 = vpop.f32.mrb[0].mxu0
  %v1210 = vadd.f32 0.0, %v1209
  %v1211 = vpop.f32.mrb[0].mxu0
  %v1212 = vpop.f32.mrb[0].mxu0
  %v1213 = vadd.f32 0.0, %v1212
  %v1214 = vpop.f32.mrb[0].mxu0
  %1215 = vmatprep.mubr.bf16.mxu0 %v655
  %1216 = vmatmul.mubr.bf16.gmra.mrb[0].mxu0 %v654
  %v1217 = vpop.f32.mrb[0].mxu0
  %v1218 = vadd.f32 0.0, %v1217
  %v1219 = vpop.f32.mrb[0].mxu0
  %v1220 = vpop.f32.mrb[0].mxu0
  %v1221 = vadd.f32 0.0, %v1220
  %v1222 = vpop.f32.mrb[0].mxu0
  %1223 = vmatprep.mubr.bf16.mxu0 %v660
  %1224 = vmatmul.mubr.bf16.gmra.mrb[0].mxu0 %v659
  %v1225 = vpop.f32.mrb[0].mxu0
  %v1226 = vadd.f32 0.0, %v1225
  %v1227 = vpop.f32.mrb[0].mxu0
  %v1228 = vpop.f32.mrb[0].mxu0
  %v1229 = vadd.f32 0.0, %v1228
  %v1230 = vpop.f32.mrb[0].mxu0
  %1231 = vmatprep.mubr.bf16.mxu0 %v665
  %1232 = vmatmul.mubr.bf16.gmra.mrb[0].mxu0 %v664
  %v1233 = vpop.f32.mrb[0].mxu0
  %v1234 = vadd.f32 0.0, %v1233
  %v1235 = vpop.f32.mrb[0].mxu0
  %v1236 = vpop.f32.mrb[0].mxu0
  %v1237 = vadd.f32 0.0, %v1236
  %v1238 = vpop.f32.mrb[0].mxu0
  %1239 = vmatprep.mubr.bf16.mxu0 %v670
  %1240 = vmatmul.mubr.bf16.gmra.mrb[0].mxu0 %v669
  %v1241 = vpop.f32.mrb[0].mxu0
  %v1242 = vadd.f32 0.0, %v1241
  %v1243 = vpop.f32.mrb[0].mxu0
  %v1244 = vpop.f32.mrb[0].mxu0
  %v1245 = vadd.f32 0.0, %v1244
  %v1246 = vpop.f32.mrb[0].mxu0
  %1247 = vmatprep.mubr.bf16.mxu0 %v675
  %1248 = vmatmul.mubr.bf16.gmra.mrb[0].mxu0 %v674
  %v1249 = vpop.f32.mrb[0].mxu0
  %v1250 = vadd.f32 0.0, %v1249
  %v1251 = vpop.f32.mrb[0].mxu0
  %v1252 = vpop.f32.mrb[0].mxu0
  %v1253 = vadd.f32 0.0, %v1252
  %v1254 = vpop.f32.mrb[0].mxu0
  %1255 = vmatprep.mubr.bf16.mxu0 %v680
  %1256 = vmatmul.mubr.bf16.gmra.mrb[0].mxu0 %v679
  %v1257 = vpop.f32.mrb[0].mxu0
  %v1258 = vadd.f32 0.0, %v1257
  %v1259 = vpop.f32.mrb[0].mxu0
  %v1260 = vpop.f32.mrb[0].mxu0
  %v1261 = vadd.f32 0.0, %v1260
  %v1262 = vpop.f32.mrb[0].mxu0
  %1263 = vmatprep.mubr.bf16.mxu0 %v685
  %1264 = vmatmul.mubr.bf16.gmra.mrb[0].mxu0 %v684
  %v1265 = vpop.f32.mrb[0].mxu0
  %v1266 = vadd.f32 0.0, %v1265
  %v1267 = vpop.f32.mrb[0].mxu0
  %v1268 = vpop.f32.mrb[0].mxu0
  %v1269 = vadd.f32 0.0, %v1268
  %v1270 = vpop.f32.mrb[0].mxu0
  %1271 = vmatprep.mubr.bf16.mxu0 %v690
  %1272 = vmatmul.mubr.bf16.gmra.mrb[0].mxu0 %v689
  %v1273 = vpop.f32.mrb[0].mxu0
  %v1274 = vadd.f32 0.0, %v1273
  %v1275 = vpop.f32.mrb[0].mxu0
  %v1276 = vpop.f32.mrb[0].mxu0
  %v1277 = vadd.f32 0.0, %v1276
  %v1278 = vpop.f32.mrb[0].mxu0
  %1279 = vmatprep.mubr.bf16.mxu0 %v695
  %1280 = vmatmul.mubr.bf16.gmra.mrb[0].mxu0 %v694
  %v1281 = vpop.f32.mrb[0].mxu0
  %v1282 = vadd.f32 0.0, %v1281
  %v1283 = vpop.f32.mrb[0].mxu0
  %v1284 = vpop.f32.mrb[0].mxu0
  %v1285 = vadd.f32 0.0, %v1284
  %v1286 = vpop.f32.mrb[0].mxu0
  %1287 = vmatprep.mubr.bf16.mxu0 %v700
  %1288 = vmatmul.mubr.bf16.gmra.mrb[0].mxu0 %v699
  %v1289 = vpop.f32.mrb[0].mxu0
  %v1290 = vadd.f32 0.0, %v1289
  %v1291 = vpop.f32.mrb[0].mxu0
  %v1292 = vpop.f32.mrb[0].mxu0
  %v1293 = vadd.f32 0.0, %v1292
  %v1294 = vpop.f32.mrb[0].mxu0
  %1295 = vmatprep.mubr.bf16.mxu0 %v705
  %1296 = vmatmul.mubr.bf16.gmra.mrb[0].mxu0 %v704
  %v1297 = vpop.f32.mrb[0].mxu0
  %v1298 = vadd.f32 0.0, %v1297
  %v1299 = vpop.f32.mrb[0].mxu0
  %v1300 = vpop.f32.mrb[0].mxu0
  %v1301 = vadd.f32 0.0, %v1300
  %v1302 = vpop.f32.mrb[0].mxu0
  %1303 = vmatprep.mubr.bf16.mxu0 %v710
  %1304 = vmatmul.mubr.bf16.gmra.mrb[0].mxu0 %v709
  %v1305 = vpop.f32.mrb[0].mxu0
  %v1306 = vadd.f32 0.0, %v1305
  %v1307 = vpop.f32.mrb[0].mxu0
  %v1308 = vpop.f32.mrb[0].mxu0
  %v1309 = vadd.f32 0.0, %v1308
  %v1310 = vpop.f32.mrb[0].mxu0
  %1311 = vmatprep.mubr.bf16.mxu0 %v715
  %1312 = vmatmul.mubr.bf16.gmra.mrb[0].mxu0 %v714
  %v1313 = vpop.f32.mrb[0].mxu0
  %v1314 = vadd.f32 0.0, %v1313
  %v1315 = vpop.f32.mrb[0].mxu0
  %v1316 = vpop.f32.mrb[0].mxu0
  %v1317 = vadd.f32 0.0, %v1316
  %v1318 = vpop.f32.mrb[0].mxu0
  %1319 = vmatprep.mubr.bf16.mxu0 %v720
  %1320 = vmatmul.mubr.bf16.gmra.mrb[0].mxu0 %v719
  %v1321 = vpop.f32.mrb[0].mxu0
  %v1322 = vadd.f32 0.0, %v1321
  %v1323 = vpop.f32.mrb[0].mxu0
  %v1324 = vpop.f32.mrb[0].mxu0
  %v1325 = vadd.f32 0.0, %v1324
  %v1326 = vpop.f32.mrb[0].mxu0
  %1327 = vmatprep.mubr.bf16.mxu0 %v725
  %1328 = vmatmul.mubr.bf16.gmra.mrb[0].mxu0 %v724
  %v1329 = vpop.f32.mrb[0].mxu0
  %v1330 = vadd.f32 0.0, %v1329
  %v1331 = vpop.f32.mrb[0].mxu0
  %v1332 = vpop.f32.mrb[0].mxu0
  %v1333 = vadd.f32 0.0, %v1332
  %v1334 = vpop.f32.mrb[0].mxu0
  %1335 = vmatprep.mubr.bf16.mxu0 %v730
  %1336 = vmatmul.mubr.bf16.gmra.mrb[0].mxu0 %v729
  %v1337 = vpop.f32.mrb[0].mxu0
  %v1338 = vadd.f32 0.0, %v1337
  %v1339 = vpop.f32.mrb[0].mxu0
  %v1340 = vpop.f32.mrb[0].mxu0
  %v1341 = vadd.f32 0.0, %v1340
  %v1342 = vpop.f32.mrb[0].mxu0
  %1343 = vmatprep.mubr.bf16.mxu0 %v735
  %1344 = vmatmul.mubr.bf16.gmra.mrb[0].mxu0 %v734
  %v1345 = vpop.f32.mrb[0].mxu0
  %v1346 = vadd.f32 0.0, %v1345
  %v1347 = vpop.f32.mrb[0].mxu0
  %v1348 = vpop.f32.mrb[0].mxu0
  %v1349 = vadd.f32 0.0, %v1348
  %v1350 = vpop.f32.mrb[0].mxu0
  %1351 = vmatprep.mubr.bf16.mxu0 %v740
  %1352 = vmatmul.mubr.bf16.gmra.mrb[0].mxu0 %v739
  %v1353 = vpop.f32.mrb[0].mxu0
  %v1354 = vadd.f32 0.0, %v1353
  %v1355 = vpop.f32.mrb[0].mxu0
  %v1356 = vpop.f32.mrb[0].mxu0
  %v1357 = vadd.f32 0.0, %v1356
  %v1358 = vpop.f32.mrb[0].mxu0
  %1359 = vmatprep.mubr.bf16.mxu0 %v745
  %1360 = vmatmul.mubr.bf16.gmra.mrb[0].mxu0 %v744
  %v1361 = vpop.f32.mrb[0].mxu0
  %v1362 = vadd.f32 0.0, %v1361
  %v1363 = vpop.f32.mrb[0].mxu0
  %v1364 = vpop.f32.mrb[0].mxu0
  %v1365 = vadd.f32 0.0, %v1364
  %v1366 = vpop.f32.mrb[0].mxu0
  %1367 = vmatprep.mubr.bf16.mxu0 %v750
  %1368 = vmatmul.mubr.bf16.gmra.mrb[0].mxu0 %v749
  %v1369 = vpop.f32.mrb[0].mxu0
  %v1370 = vadd.f32 0.0, %v1369
  %v1371 = vpop.f32.mrb[0].mxu0
  %v1372 = vpop.f32.mrb[0].mxu0
  %v1373 = vadd.f32 0.0, %v1372
  %v1374 = vpop.f32.mrb[0].mxu0
  %1375 = vmatprep.mubr.bf16.mxu0 %v755
  %1376 = vmatmul.mubr.bf16.gmra.mrb[0].mxu0 %v754
  %v1377 = vpop.f32.mrb[0].mxu0
  %v1378 = vadd.f32 0.0, %v1377
  %v1379 = vpop.f32.mrb[0].mxu0
  %v1380 = vpop.f32.mrb[0].mxu0
  %v1381 = vpop.f32.mrb[0].mxu0
  %1382 = vdwg.mxu0
  %1383 = vmatprep.subr.bf16.mxu0 0
  %1384 = vmatpush1.bf16.msra.mxu0 %v1019
  %1385 = vmatprep.subr.bf16.mxu0 0
  %1386 = vmatpush1.bf16.msra.mxu0 %v1020
  %1387 = vmatprep.subr.bf16.mxu0 0
  %1388 = vmatpush1.bf16.msra.mxu0 %v1021
  %1389 = vmatprep.subr.bf16.mxu0 0
  %1390 = vmatpush1.bf16.msra.mxu0 %v1022
  %1391 = vmatprep.subr.bf16.mxu0 0
  %1392 = vmatpush1.bf16.msra.mxu0 %v1023
  %1393 = vmatprep.subr.bf16.mxu0 0
  %1394 = vmatpush1.bf16.msra.mxu0 %v1024
  %1395 = vmatprep.subr.bf16.mxu0 0
  %1396 = vmatpush1.bf16.msra.mxu0 %v1025
  %1397 = vmatprep.subr.bf16.mxu0 0
  %1398 = vmatpush1.bf16.msra.mxu0 %v1026
  %1399 = vmatprep.subr.bf16.mxu0 0
  %1400 = vmatpush1.bf16.msra.mxu0 %v1027
  %1401 = vmatprep.subr.bf16.mxu0 0
  %1402 = vmatpush1.bf16.msra.mxu0 %v1028
  %1403 = vmatprep.subr.bf16.mxu0 0
  %1404 = vmatpush1.bf16.msra.mxu0 %v1029
  %1405 = vmatprep.subr.bf16.mxu0 0
  %1406 = vmatpush1.bf16.msra.mxu0 %v1030
  %1407 = vmatprep.subr.bf16.mxu0 0
  %1408 = vmatpush1.bf16.msra.mxu0 %v1031
  %1409 = vmatprep.subr.bf16.mxu0 0
  %1410 = vmatpush1.bf16.msra.mxu0 %v1032
  %1411 = vmatprep.subr.bf16.mxu0 0
  %1412 = vmatpush1.bf16.msra.mxu0 %v1033
  %1413 = vmatprep.subr.bf16.mxu0 0
  %1414 = vmatpush1.bf16.msra.mxu0 %v1034
  %1415 = vmatprep.mubr.bf16.mxu0 %v637
  %1416 = vmatmul.mubr.bf16.gmra.mrb[0].mxu0 %v636
  %v1417 = vpop.f32.mrb[0].mxu0
  %v1418 = vadd.f32 %v1186, %v1417
  %v1419 = vpop.f32.mrb[0].mxu0
  %v1420 = vpop.f32.mrb[0].mxu0
  %v1421 = vadd.f32 %v1189, %v1420
  %v1422 = vpop.f32.mrb[0].mxu0
  %1423 = vmatprep.mubr.bf16.mxu0 %v642
  %1424 = vmatmul.mubr.bf16.gmra.mrb[0].mxu0 %v641
  %v1425 = vpop.f32.mrb[0].mxu0
  %v1426 = vadd.f32 %v1194, %v1425
  %v1427 = vpop.f32.mrb[0].mxu0
  %v1428 = vpop.f32.mrb[0].mxu0
  %v1429 = vadd.f32 %v1197, %v1428
  %v1430 = vpop.f32.mrb[0].mxu0
  %1431 = vmatprep.mubr.bf16.mxu0 %v647
  %1432 = vmatmul.mubr.bf16.gmra.mrb[0].mxu0 %v646
  %v1433 = vpop.f32.mrb[0].mxu0
  %v1434 = vadd.f32 %v1202, %v1433
  %v1435 = vpop.f32.mrb[0].mxu0
  %v1436 = vpop.f32.mrb[0].mxu0
  %v1437 = vadd.f32 %v1205, %v1436
  %v1438 = vpop.f32.mrb[0].mxu0
  %1439 = vmatprep.mubr.bf16.mxu0 %v652
  %1440 = vmatmul.mubr.bf16.gmra.mrb[0].mxu0 %v651
  %v1441 = vpop.f32.mrb[0].mxu0
  %v1442 = vadd.f32 %v1210, %v1441
  %v1443 = vpop.f32.mrb[0].mxu0
  %v1444 = vpop.f32.mrb[0].mxu0
  %v1445 = vadd.f32 %v1213, %v1444
  %v1446 = vpop.f32.mrb[0].mxu0
  %1447 = vmatprep.mubr.bf16.mxu0 %v657
  %1448 = vmatmul.mubr.bf16.gmra.mrb[0].mxu0 %v656
  %v1449 = vpop.f32.mrb[0].mxu0
  %v1450 = vadd.f32 %v1218, %v1449
  %v1451 = vpop.f32.mrb[0].mxu0
  %v1452 = vpop.f32.mrb[0].mxu0
  %v1453 = vadd.f32 %v1221, %v1452
  %v1454 = vpop.f32.mrb[0].mxu0
  %1455 = vmatprep.mubr.bf16.mxu0 %v662
  %1456 = vmatmul.mubr.bf16.gmra.mrb[0].mxu0 %v661
  %v1457 = vpop.f32.mrb[0].mxu0
  %v1458 = vadd.f32 %v1226, %v1457
  %v1459 = vpop.f32.mrb[0].mxu0
  %v1460 = vpop.f32.mrb[0].mxu0
  %v1461 = vadd.f32 %v1229, %v1460
  %v1462 = vpop.f32.mrb[0].mxu0
  %1463 = vmatprep.mubr.bf16.mxu0 %v667
  %1464 = vmatmul.mubr.bf16.gmra.mrb[0].mxu0 %v666
  %v1465 = vpop.f32.mrb[0].mxu0
  %v1466 = vadd.f32 %v1234, %v1465
  %v1467 = vpop.f32.mrb[0].mxu0
  %v1468 = vpop.f32.mrb[0].mxu0
  %v1469 = vadd.f32 %v1237, %v1468
  %v1470 = vpop.f32.mrb[0].mxu0
  %1471 = vmatprep.mubr.bf16.mxu0 %v672
  %1472 = vmatmul.mubr.bf16.gmra.mrb[0].mxu0 %v671
  %v1473 = vpop.f32.mrb[0].mxu0
  %v1474 = vadd.f32 %v1242, %v1473
  %v1475 = vpop.f32.mrb[0].mxu0
  %v1476 = vpop.f32.mrb[0].mxu0
  %v1477 = vadd.f32 %v1245, %v1476
  %v1478 = vpop.f32.mrb[0].mxu0
  %1479 = vmatprep.mubr.bf16.mxu0 %v677
  %1480 = vmatmul.mubr.bf16.gmra.mrb[0].mxu0 %v676
  %v1481 = vpop.f32.mrb[0].mxu0
  %v1482 = vadd.f32 %v1250, %v1481
  %v1483 = vpop.f32.mrb[0].mxu0
  %v1484 = vpop.f32.mrb[0].mxu0
  %v1485 = vadd.f32 %v1253, %v1484
  %v1486 = vpop.f32.mrb[0].mxu0
  %1487 = vmatprep.mubr.bf16.mxu0 %v682
  %1488 = vmatmul.mubr.bf16.gmra.mrb[0].mxu0 %v681
  %v1489 = vpop.f32.mrb[0].mxu0
  %v1490 = vadd.f32 %v1258, %v1489
  %v1491 = vpop.f32.mrb[0].mxu0
  %v1492 = vpop.f32.mrb[0].mxu0
  %v1493 = vadd.f32 %v1261, %v1492
  %v1494 = vpop.f32.mrb[0].mxu0
  %1495 = vmatprep.mubr.bf16.mxu0 %v687
  %1496 = vmatmul.mubr.bf16.gmra.mrb[0].mxu0 %v686
  %v1497 = vpop.f32.mrb[0].mxu0
  %v1498 = vadd.f32 %v1266, %v1497
  %v1499 = vpop.f32.mrb[0].mxu0
  %v1500 = vpop.f32.mrb[0].mxu0
  %v1501 = vadd.f32 %v1269, %v1500
  %v1502 = vpop.f32.mrb[0].mxu0
  %1503 = vmatprep.mubr.bf16.mxu0 %v692
  %1504 = vmatmul.mubr.bf16.gmra.mrb[0].mxu0 %v691
  %v1505 = vpop.f32.mrb[0].mxu0
  %v1506 = vadd.f32 %v1274, %v1505
  %v1507 = vpop.f32.mrb[0].mxu0
  %v1508 = vpop.f32.mrb[0].mxu0
  %v1509 = vadd.f32 %v1277, %v1508
  %v1510 = vpop.f32.mrb[0].mxu0
  %1511 = vmatprep.mubr.bf16.mxu0 %v697
  %1512 = vmatmul.mubr.bf16.gmra.mrb[0].mxu0 %v696
  %v1513 = vpop.f32.mrb[0].mxu0
  %v1514 = vadd.f32 %v1282, %v1513
  %v1515 = vpop.f32.mrb[0].mxu0
  %v1516 = vpop.f32.mrb[0].mxu0
  %v1517 = vadd.f32 %v1285, %v1516
  %v1518 = vpop.f32.mrb[0].mxu0
  %1519 = vmatprep.mubr.bf16.mxu0 %v702
  %1520 = vmatmul.mubr.bf16.gmra.mrb[0].mxu0 %v701
  %v1521 = vpop.f32.mrb[0].mxu0
  %v1522 = vadd.f32 %v1290, %v1521
  %v1523 = vpop.f32.mrb[0].mxu0
  %v1524 = vpop.f32.mrb[0].mxu0
  %v1525 = vadd.f32 %v1293, %v1524
  %v1526 = vpop.f32.mrb[0].mxu0
  %1527 = vmatprep.mubr.bf16.mxu0 %v707
  %1528 = vmatmul.mubr.bf16.gmra.mrb[0].mxu0 %v706
  %v1529 = vpop.f32.mrb[0].mxu0
  %v1530 = vadd.f32 %v1298, %v1529
  %v1531 = vpop.f32.mrb[0].mxu0
  %v1532 = vpop.f32.mrb[0].mxu0
  %v1533 = vadd.f32 %v1301, %v1532
  %v1534 = vpop.f32.mrb[0].mxu0
  %1535 = vmatprep.mubr.bf16.mxu0 %v712
  %1536 = vmatmul.mubr.bf16.gmra.mrb[0].mxu0 %v711
  %v1537 = vpop.f32.mrb[0].mxu0
  %v1538 = vadd.f32 %v1306, %v1537
  %v1539 = vpop.f32.mrb[0].mxu0
  %v1540 = vpop.f32.mrb[0].mxu0
  %v1541 = vadd.f32 %v1309, %v1540
  %v1542 = vpop.f32.mrb[0].mxu0
  %1543 = vmatprep.mubr.bf16.mxu0 %v717
  %1544 = vmatmul.mubr.bf16.gmra.mrb[0].mxu0 %v716
  %v1545 = vpop.f32.mrb[0].mxu0
  %v1546 = vadd.f32 %v1314, %v1545
  %v1547 = vpop.f32.mrb[0].mxu0
  %v1548 = vpop.f32.mrb[0].mxu0
  %v1549 = vadd.f32 %v1317, %v1548
  %v1550 = vpop.f32.mrb[0].mxu0
  %1551 = vmatprep.mubr.bf16.mxu0 %v722
  %1552 = vmatmul.mubr.bf16.gmra.mrb[0].mxu0 %v721
  %v1553 = vpop.f32.mrb[0].mxu0
  %v1554 = vadd.f32 %v1322, %v1553
  %v1555 = vpop.f32.mrb[0].mxu0
  %v1556 = vpop.f32.mrb[0].mxu0
  %v1557 = vadd.f32 %v1325, %v1556
  %v1558 = vpop.f32.mrb[0].mxu0
  %1559 = vmatprep.mubr.bf16.mxu0 %v727
  %1560 = vmatmul.mubr.bf16.gmra.mrb[0].mxu0 %v726
  %v1561 = vpop.f32.mrb[0].mxu0
  %v1562 = vadd.f32 %v1330, %v1561
  %v1563 = vpop.f32.mrb[0].mxu0
  %v1564 = vpop.f32.mrb[0].mxu0
  %v1565 = vadd.f32 %v1333, %v1564
  %v1566 = vpop.f32.mrb[0].mxu0
  %1567 = vmatprep.mubr.bf16.mxu0 %v732
  %1568 = vmatmul.mubr.bf16.gmra.mrb[0].mxu0 %v731
  %v1569 = vpop.f32.mrb[0].mxu0
  %v1570 = vadd.f32 %v1338, %v1569
  %v1571 = vpop.f32.mrb[0].mxu0
  %v1572 = vpop.f32.mrb[0].mxu0
  %v1573 = vadd.f32 %v1341, %v1572
  %v1574 = vpop.f32.mrb[0].mxu0
  %1575 = vmatprep.mubr.bf16.mxu0 %v737
  %1576 = vmatmul.mubr.bf16.gmra.mrb[0].mxu0 %v736
  %v1577 = vpop.f32.mrb[0].mxu0
  %v1578 = vadd.f32 %v1346, %v1577
  %v1579 = vpop.f32.mrb[0].mxu0
  %v1580 = vpop.f32.mrb[0].mxu0
  %v1581 = vadd.f32 %v1349, %v1580
  %v1582 = vpop.f32.mrb[0].mxu0
  %1583 = vmatprep.mubr.bf16.mxu0 %v742
  %1584 = vmatmul.mubr.bf16.gmra.mrb[0].mxu0 %v741
  %v1585 = vpop.f32.mrb[0].mxu0
  %v1586 = vadd.f32 %v1354, %v1585
  %v1587 = vpop.f32.mrb[0].mxu0
  %v1588 = vpop.f32.mrb[0].mxu0
  %v1589 = vadd.f32 %v1357, %v1588
  %v1590 = vpop.f32.mrb[0].mxu0
  %1591 = vmatprep.mubr.bf16.mxu0 %v747
  %1592 = vmatmul.mubr.bf16.gmra.mrb[0].mxu0 %v746
  %v1593 = vpop.f32.mrb[0].mxu0
  %v1594 = vadd.f32 %v1362, %v1593
  %v1595 = vpop.f32.mrb[0].mxu0
  %v1596 = vpop.f32.mrb[0].mxu0
  %v1597 = vadd.f32 %v1365, %v1596
  %v1598 = vpop.f32.mrb[0].mxu0
  %1599 = vmatprep.mubr.bf16.mxu0 %v752
  %1600 = vmatmul.mubr.bf16.gmra.mrb[0].mxu0 %v751
  %v1601 = vpop.f32.mrb[0].mxu0
  %v1602 = vadd.f32 %v1370, %v1601
  %v1603 = vpop.f32.mrb[0].mxu0
  %v1604 = vpop.f32.mrb[0].mxu0
  %v1605 = vadd.f32 %v1373, %v1604
  %v1606 = vpop.f32.mrb[0].mxu0
  %1607 = vmatprep.mubr.bf16.mxu0 %v757
  %1608 = vmatmul.mubr.bf16.gmra.mrb[0].mxu0 %v756
  %v1609 = vpop.f32.mrb[0].mxu0
  %v1610 = vadd.f32 %v1378, %v1609
  %v1611 = vpop.f32.mrb[0].mxu0
  %v1612 = vpop.f32.mrb[0].mxu0
  %v1613 = vpop.f32.mrb[0].mxu0
  %1614 = vdwg.mxu0
  %1615 = vmatprep.subr.bf16.mxu0 0
  %1616 = vmatpush1.bf16.msra.mxu0 %v1035
  %1617 = vmatprep.subr.bf16.mxu0 0
  %1618 = vmatpush1.bf16.msra.mxu0 %v1036
  %1619 = vmatprep.subr.bf16.mxu0 0
  %1620 = vmatpush1.bf16.msra.mxu0 %v1037
  %1621 = vmatprep.subr.bf16.mxu0 0
  %1622 = vmatpush1.bf16.msra.mxu0 %v1038
  %1623 = vmatprep.subr.bf16.mxu0 0
  %1624 = vmatpush1.bf16.msra.mxu0 0
  %1625 = vmatprep.subr.bf16.mxu0 0
  %1626 = vmatpush1.bf16.msra.mxu0 0
  %1627 = vmatprep.subr.bf16.mxu0 0
  %1628 = vmatpush1.bf16.msra.mxu0 0
  %1629 = vmatprep.subr.bf16.mxu0 0
  %1630 = vmatpush1.bf16.msra.mxu0 0
  %1631 = vmatprep.subr.bf16.mxu0 0
  %1632 = vmatpush1.bf16.msra.mxu0 0
  %1633 = vmatprep.subr.bf16.mxu0 0
  %1634 = vmatpush1.bf16.msra.mxu0 0
  %1635 = vmatprep.subr.bf16.mxu0 0
  %1636 = vmatpush1.bf16.msra.mxu0 0
  %1637 = vmatprep.subr.bf16.mxu0 0
  %1638 = vmatpush1.bf16.msra.mxu0 0
  %1639 = vmatprep.subr.bf16.mxu0 0
  %1640 = vmatpush1.bf16.msra.mxu0 0
  %1641 = vmatprep.subr.bf16.mxu0 0
  %1642 = vmatpush1.bf16.msra.mxu0 0
  %1643 = vmatprep.subr.bf16.mxu0 0
  %1644 = vmatpush1.bf16.msra.mxu0 0
  %1645 = vmatprep.subr.bf16.mxu0 0
  %1646 = vmatpush1.bf16.msra.mxu0 0
  %1647 = vmatprep.mubr.bf16.mxu0 0
  %1648 = vmatmul.mubr.bf16.gmra.mrb[0].mxu0 %v1077
  %v1649 = vpop.f32.mrb[0].mxu0
  %v1650 = vadd.f32 %v1418, %v1649
  %v1651 = vpop.f32.mrb[0].mxu0
  %v1652 = vpop.f32.mrb[0].mxu0
  %v1653 = vadd.f32 %v1421, %v1652
  %v1654 = vpop.f32.mrb[0].mxu0
  %1655 = vmatprep.mubr.bf16.mxu0 0
  %1656 = vmatmul.mubr.bf16.gmra.mrb[0].mxu0 %v1080
  %v1657 = vpop.f32.mrb[0].mxu0
  %v1658 = vadd.f32 %v1426, %v1657
  %v1659 = vpop.f32.mrb[0].mxu0
  %v1660 = vpop.f32.mrb[0].mxu0
  %v1661 = vadd.f32 %v1429, %v1660
  %v1662 = vpop.f32.mrb[0].mxu0
  %1663 = vmatprep.mubr.bf16.mxu0 0
  %1664 = vmatmul.mubr.bf16.gmra.mrb[0].mxu0 %v1083
  %v1665 = vpop.f32.mrb[0].mxu0
  %v1666 = vadd.f32 %v1434, %v1665
  %v1667 = vpop.f32.mrb[0].mxu0
  %v1668 = vpop.f32.mrb[0].mxu0
  %v1669 = vadd.f32 %v1437, %v1668
  %v1670 = vpop.f32.mrb[0].mxu0
  %1671 = vmatprep.mubr.bf16.mxu0 0
  %1672 = vmatmul.mubr.bf16.gmra.mrb[0].mxu0 %v1086
  %v1673 = vpop.f32.mrb[0].mxu0
  %v1674 = vadd.f32 %v1442, %v1673
  %v1675 = vpop.f32.mrb[0].mxu0
  %v1676 = vpop.f32.mrb[0].mxu0
  %v1677 = vadd.f32 %v1445, %v1676
  %v1678 = vpop.f32.mrb[0].mxu0
  %1679 = vmatprep.mubr.bf16.mxu0 0
  %1680 = vmatmul.mubr.bf16.gmra.mrb[0].mxu0 %v1089
  %v1681 = vpop.f32.mrb[0].mxu0
  %v1682 = vadd.f32 %v1450, %v1681
  %v1683 = vpop.f32.mrb[0].mxu0
  %v1684 = vpop.f32.mrb[0].mxu0
  %v1685 = vadd.f32 %v1453, %v1684
  %v1686 = vpop.f32.mrb[0].mxu0
  %1687 = vmatprep.mubr.bf16.mxu0 0
  %1688 = vmatmul.mubr.bf16.gmra.mrb[0].mxu0 %v1092
  %v1689 = vpop.f32.mrb[0].mxu0
  %v1690 = vadd.f32 %v1458, %v1689
  %v1691 = vpop.f32.mrb[0].mxu0
  %v1692 = vpop.f32.mrb[0].mxu0
  %v1693 = vadd.f32 %v1461, %v1692
  %v1694 = vpop.f32.mrb[0].mxu0
  %1695 = vmatprep.mubr.bf16.mxu0 0
  %1696 = vmatmul.mubr.bf16.gmra.mrb[0].mxu0 %v1095
  %v1697 = vpop.f32.mrb[0].mxu0
  %v1698 = vadd.f32 %v1466, %v1697
  %v1699 = vpop.f32.mrb[0].mxu0
  %v1700 = vpop.f32.mrb[0].mxu0
  %v1701 = vadd.f32 %v1469, %v1700
  %v1702 = vpop.f32.mrb[0].mxu0
  %1703 = vmatprep.mubr.bf16.mxu0 0
  %1704 = vmatmul.mubr.bf16.gmra.mrb[0].mxu0 %v1098
  %v1705 = vpop.f32.mrb[0].mxu0
  %v1706 = vadd.f32 %v1474, %v1705
  %v1707 = vpop.f32.mrb[0].mxu0
  %v1708 = vpop.f32.mrb[0].mxu0
  %v1709 = vadd.f32 %v1477, %v1708
  %v1710 = vpop.f32.mrb[0].mxu0
  %1711 = vmatprep.mubr.bf16.mxu0 0
  %1712 = vmatmul.mubr.bf16.gmra.mrb[0].mxu0 %v1101
  %v1713 = vpop.f32.mrb[0].mxu0
  %v1714 = vadd.f32 %v1482, %v1713
  %v1715 = vpop.f32.mrb[0].mxu0
  %v1716 = vpop.f32.mrb[0].mxu0
  %v1717 = vadd.f32 %v1485, %v1716
  %v1718 = vpop.f32.mrb[0].mxu0
  %1719 = vmatprep.mubr.bf16.mxu0 0
  %1720 = vmatmul.mubr.bf16.gmra.mrb[0].mxu0 %v1104
  %v1721 = vpop.f32.mrb[0].mxu0
  %v1722 = vadd.f32 %v1490, %v1721
  %v1723 = vpop.f32.mrb[0].mxu0
  %v1724 = vpop.f32.mrb[0].mxu0
  %v1725 = vadd.f32 %v1493, %v1724
  %v1726 = vpop.f32.mrb[0].mxu0
  %1727 = vmatprep.mubr.bf16.mxu0 0
  %1728 = vmatmul.mubr.bf16.gmra.mrb[0].mxu0 %v1107
  %v1729 = vpop.f32.mrb[0].mxu0
  %v1730 = vadd.f32 %v1498, %v1729
  %v1731 = vpop.f32.mrb[0].mxu0
  %v1732 = vpop.f32.mrb[0].mxu0
  %v1733 = vadd.f32 %v1501, %v1732
  %v1734 = vpop.f32.mrb[0].mxu0
  %1735 = vmatprep.mubr.bf16.mxu0 0
  %1736 = vmatmul.mubr.bf16.gmra.mrb[0].mxu0 %v1110
  %v1737 = vpop.f32.mrb[0].mxu0
  %v1738 = vadd.f32 %v1506, %v1737
  %v1739 = vpop.f32.mrb[0].mxu0
  %v1740 = vpop.f32.mrb[0].mxu0
  %v1741 = vadd.f32 %v1509, %v1740
  %v1742 = vpop.f32.mrb[0].mxu0
  %1743 = vmatprep.mubr.bf16.mxu0 0
  %1744 = vmatmul.mubr.bf16.gmra.mrb[0].mxu0 %v1113
  %v1745 = vpop.f32.mrb[0].mxu0
  %v1746 = vadd.f32 %v1514, %v1745
  %v1747 = vpop.f32.mrb[0].mxu0
  %v1748 = vpop.f32.mrb[0].mxu0
  %v1749 = vadd.f32 %v1517, %v1748
  %v1750 = vpop.f32.mrb[0].mxu0
  %1751 = vmatprep.mubr.bf16.mxu0 0
  %1752 = vmatmul.mubr.bf16.gmra.mrb[0].mxu0 %v1116
  %v1753 = vpop.f32.mrb[0].mxu0
  %v1754 = vadd.f32 %v1522, %v1753
  %v1755 = vpop.f32.mrb[0].mxu0
  %v1756 = vpop.f32.mrb[0].mxu0
  %v1757 = vadd.f32 %v1525, %v1756
  %v1758 = vpop.f32.mrb[0].mxu0
  %1759 = vmatprep.mubr.bf16.mxu0 0
  %1760 = vmatmul.mubr.bf16.gmra.mrb[0].mxu0 %v1119
  %v1761 = vpop.f32.mrb[0].mxu0
  %v1762 = vadd.f32 %v1530, %v1761
  %v1763 = vpop.f32.mrb[0].mxu0
  %v1764 = vpop.f32.mrb[0].mxu0
  %v1765 = vadd.f32 %v1533, %v1764
  %v1766 = vpop.f32.mrb[0].mxu0
  %1767 = vmatprep.mubr.bf16.mxu0 0
  %1768 = vmatmul.mubr.bf16.gmra.mrb[0].mxu0 %v1122
  %v1769 = vpop.f32.mrb[0].mxu0
  %v1770 = vadd.f32 %v1538, %v1769
  %v1771 = vpop.f32.mrb[0].mxu0
  %v1772 = vpop.f32.mrb[0].mxu0
  %v1773 = vadd.f32 %v1541, %v1772
  %v1774 = vpop.f32.mrb[0].mxu0
  %1775 = vmatprep.mubr.bf16.mxu0 0
  %1776 = vmatmul.mubr.bf16.gmra.mrb[0].mxu0 %v1125
  %v1777 = vpop.f32.mrb[0].mxu0
  %v1778 = vadd.f32 %v1546, %v1777
  %v1779 = vpop.f32.mrb[0].mxu0
  %v1780 = vpop.f32.mrb[0].mxu0
  %v1781 = vadd.f32 %v1549, %v1780
  %v1782 = vpop.f32.mrb[0].mxu0
  %1783 = vmatprep.mubr.bf16.mxu0 0
  %1784 = vmatmul.mubr.bf16.gmra.mrb[0].mxu0 %v1128
  %v1785 = vpop.f32.mrb[0].mxu0
  %v1786 = vadd.f32 %v1554, %v1785
  %v1787 = vpop.f32.mrb[0].mxu0
  %v1788 = vpop.f32.mrb[0].mxu0
  %v1789 = vadd.f32 %v1557, %v1788
  %v1790 = vpop.f32.mrb[0].mxu0
  %1791 = vmatprep.mubr.bf16.mxu0 0
  %1792 = vmatmul.mubr.bf16.gmra.mrb[0].mxu0 %v1131
  %v1793 = vpop.f32.mrb[0].mxu0
  %v1794 = vadd.f32 %v1562, %v1793
  %v1795 = vpop.f32.mrb[0].mxu0
  %v1796 = vpop.f32.mrb[0].mxu0
  %v1797 = vadd.f32 %v1565, %v1796
  %v1798 = vpop.f32.mrb[0].mxu0
  %1799 = vmatprep.mubr.bf16.mxu0 0
  %1800 = vmatmul.mubr.bf16.gmra.mrb[0].mxu0 %v1134
  %v1801 = vpop.f32.mrb[0].mxu0
  %v1802 = vadd.f32 %v1570, %v1801
  %v1803 = vpop.f32.mrb[0].mxu0
  %v1804 = vpop.f32.mrb[0].mxu0
  %v1805 = vadd.f32 %v1573, %v1804
  %v1806 = vpop.f32.mrb[0].mxu0
  %1807 = vmatprep.mubr.bf16.mxu0 0
  %1808 = vmatmul.mubr.bf16.gmra.mrb[0].mxu0 %v1137
  %v1809 = vpop.f32.mrb[0].mxu0
  %v1810 = vadd.f32 %v1578, %v1809
  %v1811 = vpop.f32.mrb[0].mxu0
  %v1812 = vpop.f32.mrb[0].mxu0
  %v1813 = vadd.f32 %v1581, %v1812
  %v1814 = vpop.f32.mrb[0].mxu0
  %1815 = vmatprep.mubr.bf16.mxu0 0
  %1816 = vmatmul.mubr.bf16.gmra.mrb[0].mxu0 %v1140
  %v1817 = vpop.f32.mrb[0].mxu0
  %v1818 = vadd.f32 %v1586, %v1817
  %v1819 = vpop.f32.mrb[0].mxu0
  %v1820 = vpop.f32.mrb[0].mxu0
  %v1821 = vadd.f32 %v1589, %v1820
  %v1822 = vpop.f32.mrb[0].mxu0
  %1823 = vmatprep.mubr.bf16.mxu0 0
  %1824 = vmatmul.mubr.bf16.gmra.mrb[0].mxu0 %v1143
  %v1825 = vpop.f32.mrb[0].mxu0
  %v1826 = vadd.f32 %v1594, %v1825
  %v1827 = vpop.f32.mrb[0].mxu0
  %v1828 = vpop.f32.mrb[0].mxu0
  %v1829 = vadd.f32 %v1597, %v1828
  %v1830 = vpop.f32.mrb[0].mxu0
  %1831 = vmatprep.mubr.bf16.mxu0 0
  %1832 = vmatmul.mubr.bf16.gmra.mrb[0].mxu0 %v1146
  %v1833 = vpop.f32.mrb[0].mxu0
  %v1834 = vadd.f32 %v1602, %v1833
  %v1835 = vpop.f32.mrb[0].mxu0
  %v1836 = vpop.f32.mrb[0].mxu0
  %v1837 = vadd.f32 %v1605, %v1836
  %v1838 = vpop.f32.mrb[0].mxu0
  %1839 = vmatprep.mubr.bf16.mxu0 0
  %1840 = vmatmul.mubr.bf16.gmra.mrb[0].mxu0 %v1149
  %v1841 = vpop.f32.mrb[0].mxu0
  %v1842 = vadd.f32 %v1610, %v1841
  %v1843 = vpop.f32.mrb[0].mxu0
  %v1844 = vpop.f32.mrb[0].mxu0
  %v1845 = vpop.f32.mrb[0].mxu0
  %1846 = vdwg.mxu0
  %v1847 = vld [vmem:[%s3] sm:$0xff]
  %v1848 = vld [vmem:[%s3 + $0x8] sm:$0xff]
  %v1849 = vld [vmem:[%s3 + $0x10] sm:$0xff]
  %v1850 = vld [vmem:[%s3 + $0x18] sm:$0xff]
  %v1851 = vld [vmem:[%s3 + $0x20] sm:$0xff]
  %v1852 = vld [vmem:[%s3 + $0x28] sm:$0xff]
  %v1853 = vld [vmem:[%s3 + $0x30] sm:$0xff]
  %v1854 = vld [vmem:[%s3 + $0x38] sm:$0xff]
  %v1855 = vld [vmem:[%s3 + $0x40] sm:$0xff]
  %v1856 = vld [vmem:[%s3 + $0x48] sm:$0xff]
  %v1857 = vld [vmem:[%s3 + $0x50] sm:$0xff]
  %v1858 = vld [vmem:[%s3 + $0x58] sm:$0xff]
  %v1859 = vld [vmem:[%s3 + $0x60] sm:$0xff]
  %v1860 = vld [vmem:[%s3 + $0x68] sm:$0xff]
  %v1861 = vld [vmem:[%s3 + $0x70] sm:$0xff]
  %v1862 = vld [vmem:[%s3 + $0x78] sm:$0xff]
  %v1863 = vld [vmem:[%s3 + $0x80] sm:$0xff]
  %v1864 = vld [vmem:[%s3 + $0x88] sm:$0xff]
  %v1865 = vld [vmem:[%s3 + $0x90] sm:$0xff]
  %v1866 = vld [vmem:[%s3 + $0x98] sm:$0xff]
  %v1867 = vld [vmem:[%s3 + $0xa0] sm:$0xff]
  %v1868 = vld [vmem:[%s3 + $0xa8] sm:$0xff]
  %v1869 = vld [vmem:[%s3 + $0xb0] sm:$0xff]
  %v1870 = vld [vmem:[%s3 + $0xb8] sm:$0xff]
  %v1871 = vld [vmem:[%s3 + $0xc0] sm:$0xff]
  %v1872 = vld [vmem:[%s3 + $0xc8] sm:$0xff]
  %v1873 = vld [vmem:[%s3 + $0xd0] sm:$0xff]
  %v1874 = vld [vmem:[%s3 + $0xd8] sm:$0xff]
  %v1875 = vld [vmem:[%s3 + $0xe0] sm:$0xff]
  %v1876 = vld [vmem:[%s3 + $0xe8] sm:$0xff]
  %v1877 = vld [vmem:[%s3 + $0xf0] sm:$0xff]
  %v1878 = vld [vmem:[%s3 + $0xf8] sm:$0xff]
  %v1879 = vld [vmem:[%s3 + $0x100] sm:$0xff]
  %v1880 = vld [vmem:[%s3 + $0x108] sm:$0xff]
  %v1881 = vld [vmem:[%s3 + $0x110] sm:$0xff]
  %v1882 = vld [vmem:[%s3 + $0x118] sm:$0xff]
  %v1883 = vld [vmem:[%s3 + $0x120] sm:$0xff]
  %v1884 = vld [vmem:[%s3 + $0x128] sm:$0xff]
  %v1885 = vld [vmem:[%s3 + $0x130] sm:$0xff]
  %v1886 = vld [vmem:[%s3 + $0x138] sm:$0xff]
  %v1887 = vld [vmem:[%s3 + $0x140] sm:$0xff]
  %v1888 = vld [vmem:[%s3 + $0x148] sm:$0xff]
  %v1889 = vld [vmem:[%s3 + $0x150] sm:$0xff]
  %v1890 = vld [vmem:[%s3 + $0x158] sm:$0xff]
  %v1891 = vld [vmem:[%s3 + $0x160] sm:$0xff]
  %v1892 = vld [vmem:[%s3 + $0x168] sm:$0xff]
  %v1893 = vld [vmem:[%s3 + $0x170] sm:$0xff]
  %v1894 = vld [vmem:[%s3 + $0x178] sm:$0xff]
  %v1895 = vld [vmem:[%s3 + $0x180] sm:$0xff]
  %v1896 = vld [vmem:[%s4] sm:$0xff]
  %v1897 = vld [vmem:[%s4 + $0x8] sm:$0xff]
  %v1898 = vld [vmem:[%s4 + $0x10] sm:$0xff]
  %v1899 = vld [vmem:[%s4 + $0x18] sm:$0xff]
  %v1900 = vld [vmem:[%s4 + $0x20] sm:$0xff]
  %v1901 = vld [vmem:[%s4 + $0x28] sm:$0xff]
  %v1902 = vld [vmem:[%s4 + $0x30] sm:$0xff]
  %v1903 = vld [vmem:[%s4 + $0x38] sm:$0xff]
  %v1904 = vld [vmem:[%s4 + $0x40] sm:$0xff]
  %v1905 = vld [vmem:[%s4 + $0x48] sm:$0xff]
  %v1906 = vld [vmem:[%s4 + $0x50] sm:$0xff]
  %v1907 = vld [vmem:[%s4 + $0x58] sm:$0xff]
  %v1908 = vld [vmem:[%s4 + $0x60] sm:$0xff]
  %v1909 = vld [vmem:[%s4 + $0x68] sm:$0xff]
  %v1910 = vld [vmem:[%s4 + $0x70] sm:$0xff]
  %v1911 = vld [vmem:[%s4 + $0x78] sm:$0xff]
  %v1912 = vld [vmem:[%s4 + $0x80] sm:$0xff]
  %v1913 = vld [vmem:[%s4 + $0x88] sm:$0xff]
  %v1914 = vld [vmem:[%s4 + $0x90] sm:$0xff]
  %v1915 = vld [vmem:[%s4 + $0x98] sm:$0xff]
  %v1916 = vld [vmem:[%s4 + $0xa0] sm:$0xff]
  %v1917 = vld [vmem:[%s4 + $0xa8] sm:$0xff]
  %v1918 = vld [vmem:[%s4 + $0xb0] sm:$0xff]
  %v1919 = vld [vmem:[%s4 + $0xb8] sm:$0xff]
  %v1920 = vld [vmem:[%s4 + $0xc0] sm:$0xff]
  %v1921 = vld [vmem:[%s4 + $0xc8] sm:$0xff]
  %v1922 = vld [vmem:[%s4 + $0xd0] sm:$0xff]
  %v1923 = vld [vmem:[%s4 + $0xd8] sm:$0xff]
  %v1924 = vld [vmem:[%s4 + $0xe0] sm:$0xff]
  %v1925 = vld [vmem:[%s4 + $0xe8] sm:$0xff]
  %v1926 = vld [vmem:[%s4 + $0xf0] sm:$0xff]
  %v1927 = vld [vmem:[%s4 + $0xf8] sm:$0xff]
  %v1928 = vld [vmem:[%s4 + $0x100] sm:$0xff]
  %v1929 = vld [vmem:[%s4 + $0x108] sm:$0xff]
  %v1930 = vld [vmem:[%s4 + $0x110] sm:$0xff]
  %v1931 = vld [vmem:[%s4 + $0x118] sm:$0xff]
  %v1932 = vld [vmem:[%s4 + $0x120] sm:$0xff]
  %v1933 = vld [vmem:[%s4 + $0x128] sm:$0xff]
  %v1934 = vld [vmem:[%s4 + $0x130] sm:$0xff]
  %v1935 = vld [vmem:[%s4 + $0x138] sm:$0xff]
  %v1936 = vld [vmem:[%s4 + $0x140] sm:$0xff]
  %v1937 = vld [vmem:[%s4 + $0x148] sm:$0xff]
  %v1938 = vld [vmem:[%s4 + $0x150] sm:$0xff]
  %v1939 = vld [vmem:[%s4 + $0x158] sm:$0xff]
  %v1940 = vld [vmem:[%s4 + $0x160] sm:$0xff]
  %v1941 = vld [vmem:[%s4 + $0x168] sm:$0xff]
  %v1942 = vld [vmem:[%s4 + $0x170] sm:$0xff]
  %v1943 = vld [vmem:[%s4 + $0x178] sm:$0xff]
  %v1944 = vld [vmem:[%s4 + $0x180] sm:$0xff]
  %v1945 = vsub.f32 1.0, %v1896
  %v1946 = vsub.f32 1.0, %v1897
  %v1947 = vsub.f32 1.0, %v1898
  %v1948 = vsub.f32 1.0, %v1899
  %v1949 = vsub.f32 1.0, %v1900
  %v1950 = vsub.f32 1.0, %v1901
  %v1951 = vsub.f32 1.0, %v1902
  %v1952 = vsub.f32 1.0, %v1903
  %v1953 = vsub.f32 1.0, %v1904
  %v1954 = vsub.f32 1.0, %v1905
  %v1955 = vsub.f32 1.0, %v1906
  %v1956 = vsub.f32 1.0, %v1907
  %v1957 = vsub.f32 1.0, %v1908
  %v1958 = vsub.f32 1.0, %v1909
  %v1959 = vsub.f32 1.0, %v1910
  %v1960 = vsub.f32 1.0, %v1911
  %v1961 = vsub.f32 1.0, %v1912
  %v1962 = vsub.f32 1.0, %v1913
  %v1963 = vsub.f32 1.0, %v1914
  %v1964 = vsub.f32 1.0, %v1915
  %v1965 = vsub.f32 1.0, %v1916
  %v1966 = vsub.f32 1.0, %v1917
  %v1967 = vsub.f32 1.0, %v1918
  %v1968 = vsub.f32 1.0, %v1919
  %v1969 = vsub.f32 1.0, %v1920
  %v1970 = vsub.f32 1.0, %v1921
  %v1971 = vsub.f32 1.0, %v1922
  %v1972 = vsub.f32 1.0, %v1923
  %v1973 = vsub.f32 1.0, %v1924
  %v1974 = vsub.f32 1.0, %v1925
  %v1975 = vsub.f32 1.0, %v1926
  %v1976 = vsub.f32 1.0, %v1927
  %v1977 = vsub.f32 1.0, %v1928
  %v1978 = vsub.f32 1.0, %v1929
  %v1979 = vsub.f32 1.0, %v1930
  %v1980 = vsub.f32 1.0, %v1931
  %v1981 = vsub.f32 1.0, %v1932
  %v1982 = vsub.f32 1.0, %v1933
  %v1983 = vsub.f32 1.0, %v1934
  %v1984 = vsub.f32 1.0, %v1935
  %v1985 = vsub.f32 1.0, %v1936
  %v1986 = vsub.f32 1.0, %v1937
  %v1987 = vsub.f32 1.0, %v1938
  %v1988 = vsub.f32 1.0, %v1939
  %v1989 = vsub.f32 1.0, %v1940
  %v1990 = vsub.f32 1.0, %v1941
  %v1991 = vsub.f32 1.0, %v1942
  %v1992 = vsub.f32 1.0, %v1943
  %v1993 = vsub.f32 1.0, %v1944
  %v1994 = vmul.f32 %v1847, %v1945
  %v1995 = vmul.f32 %v1848, %v1946
  %v1996 = vmul.f32 %v1849, %v1947
  %v1997 = vmul.f32 %v1850, %v1948
  %v1998 = vmul.f32 %v1851, %v1949
  %v1999 = vmul.f32 %v1852, %v1950
  %v2000 = vmul.f32 %v1853, %v1951
  %v2001 = vmul.f32 %v1854, %v1952
  %v2002 = vmul.f32 %v1855, %v1953
  %v2003 = vmul.f32 %v1856, %v1954
  %v2004 = vmul.f32 %v1857, %v1955
  %v2005 = vmul.f32 %v1858, %v1956
  %v2006 = vmul.f32 %v1859, %v1957
  %v2007 = vmul.f32 %v1860, %v1958
  %v2008 = vmul.f32 %v1861, %v1959
  %v2009 = vmul.f32 %v1862, %v1960
  %v2010 = vmul.f32 %v1863, %v1961
  %v2011 = vmul.f32 %v1864, %v1962
  %v2012 = vmul.f32 %v1865, %v1963
  %v2013 = vmul.f32 %v1866, %v1964
  %v2014 = vmul.f32 %v1867, %v1965
  %v2015 = vmul.f32 %v1868, %v1966
  %v2016 = vmul.f32 %v1869, %v1967
  %v2017 = vmul.f32 %v1870, %v1968
  %v2018 = vmul.f32 %v1871, %v1969
  %v2019 = vmul.f32 %v1872, %v1970
  %v2020 = vmul.f32 %v1873, %v1971
  %v2021 = vmul.f32 %v1874, %v1972
  %v2022 = vmul.f32 %v1875, %v1973
  %v2023 = vmul.f32 %v1876, %v1974
  %v2024 = vmul.f32 %v1877, %v1975
  %v2025 = vmul.f32 %v1878, %v1976
  %v2026 = vmul.f32 %v1879, %v1977
  %v2027 = vmul.f32 %v1880, %v1978
  %v2028 = vmul.f32 %v1881, %v1979
  %v2029 = vmul.f32 %v1882, %v1980
  %v2030 = vmul.f32 %v1883, %v1981
  %v2031 = vmul.f32 %v1884, %v1982
  %v2032 = vmul.f32 %v1885, %v1983
  %v2033 = vmul.f32 %v1886, %v1984
  %v2034 = vmul.f32 %v1887, %v1985
  %v2035 = vmul.f32 %v1888, %v1986
  %v2036 = vmul.f32 %v1889, %v1987
  %v2037 = vmul.f32 %v1890, %v1988
  %v2038 = vmul.f32 %v1891, %v1989
  %v2039 = vmul.f32 %v1892, %v1990
  %v2040 = vmul.f32 %v1893, %v1991
  %v2041 = vmul.f32 %v1894, %v1992
  %v2042 = vmul.f32 %v1895, %v1993
  %v2043 = vadd.f32 %v1994, %v1650
  %v2044 = vadd.f32 %v1995, %v1653
  %v2045 = vadd.f32 %v1996, %v1658
  %v2046 = vadd.f32 %v1997, %v1661
  %v2047 = vadd.f32 %v1998, %v1666
  %v2048 = vadd.f32 %v1999, %v1669
  %v2049 = vadd.f32 %v2000, %v1674
  %v2050 = vadd.f32 %v2001, %v1677
  %v2051 = vadd.f32 %v2002, %v1682
  %v2052 = vadd.f32 %v2003, %v1685
  %v2053 = vadd.f32 %v2004, %v1690
  %v2054 = vadd.f32 %v2005, %v1693
  %v2055 = vadd.f32 %v2006, %v1698
  %v2056 = vadd.f32 %v2007, %v1701
  %v2057 = vadd.f32 %v2008, %v1706
  %v2058 = vadd.f32 %v2009, %v1709
  %v2059 = vadd.f32 %v2010, %v1714
  %v2060 = vadd.f32 %v2011, %v1717
  %v2061 = vadd.f32 %v2012, %v1722
  %v2062 = vadd.f32 %v2013, %v1725
  %v2063 = vadd.f32 %v2014, %v1730
  %v2064 = vadd.f32 %v2015, %v1733
  %v2065 = vadd.f32 %v2016, %v1738
  %v2066 = vadd.f32 %v2017, %v1741
  %v2067 = vadd.f32 %v2018, %v1746
  %v2068 = vadd.f32 %v2019, %v1749
  %v2069 = vadd.f32 %v2020, %v1754
  %v2070 = vadd.f32 %v2021, %v1757
  %v2071 = vadd.f32 %v2022, %v1762
  %v2072 = vadd.f32 %v2023, %v1765
  %v2073 = vadd.f32 %v2024, %v1770
  %v2074 = vadd.f32 %v2025, %v1773
  %v2075 = vadd.f32 %v2026, %v1778
  %v2076 = vadd.f32 %v2027, %v1781
  %v2077 = vadd.f32 %v2028, %v1786
  %v2078 = vadd.f32 %v2029, %v1789
  %v2079 = vadd.f32 %v2030, %v1794
  %v2080 = vadd.f32 %v2031, %v1797
  %v2081 = vadd.f32 %v2032, %v1802
  %v2082 = vadd.f32 %v2033, %v1805
  %v2083 = vadd.f32 %v2034, %v1810
  %v2084 = vadd.f32 %v2035, %v1813
  %v2085 = vadd.f32 %v2036, %v1818
  %v2086 = vadd.f32 %v2037, %v1821
  %v2087 = vadd.f32 %v2038, %v1826
  %v2088 = vadd.f32 %v2039, %v1829
  %v2089 = vadd.f32 %v2040, %v1834
  %v2090 = vadd.f32 %v2041, %v1837
  %v2091 = vadd.f32 %v2042, %v1842
  %v2092 = vld [vmem:[%s2] sm:$0x1]
  %v2094 = vlaneseq
  %v2095 = vshrl.u32 %v2094, 7
  %v2096 = vsub.s32 0, %v2095
  %v2097 = vrot.slane %v2092, %v2096
  %v2099 = vadd.f32 %v2043, %v2097
  %v2100 = vadd.f32 %v2044, %v2097
  %v2101 = vadd.f32 %v2045, %v2097
  %v2102 = vadd.f32 %v2046, %v2097
  %v2103 = vadd.f32 %v2047, %v2097
  %v2104 = vadd.f32 %v2048, %v2097
  %v2105 = vadd.f32 %v2049, %v2097
  %v2106 = vadd.f32 %v2050, %v2097
  %v2107 = vadd.f32 %v2051, %v2097
  %v2108 = vadd.f32 %v2052, %v2097
  %v2109 = vadd.f32 %v2053, %v2097
  %v2110 = vadd.f32 %v2054, %v2097
  %v2111 = vadd.f32 %v2055, %v2097
  %v2112 = vadd.f32 %v2056, %v2097
  %v2113 = vadd.f32 %v2057, %v2097
  %v2114 = vadd.f32 %v2058, %v2097
  %v2115 = vadd.f32 %v2059, %v2097
  %v2116 = vadd.f32 %v2060, %v2097
  %v2117 = vadd.f32 %v2061, %v2097
  %v2118 = vadd.f32 %v2062, %v2097
  %v2119 = vadd.f32 %v2063, %v2097
  %v2120 = vadd.f32 %v2064, %v2097
  %v2121 = vadd.f32 %v2065, %v2097
  %v2122 = vadd.f32 %v2066, %v2097
  %v2123 = vadd.f32 %v2067, %v2097
  %v2124 = vadd.f32 %v2068, %v2097
  %v2125 = vadd.f32 %v2069, %v2097
  %v2126 = vadd.f32 %v2070, %v2097
  %v2127 = vadd.f32 %v2071, %v2097
  %v2128 = vadd.f32 %v2072, %v2097
  %v2129 = vadd.f32 %v2073, %v2097
  %v2130 = vadd.f32 %v2074, %v2097
  %v2131 = vadd.f32 %v2075, %v2097
  %v2132 = vadd.f32 %v2076, %v2097
  %v2133 = vadd.f32 %v2077, %v2097
  %v2134 = vadd.f32 %v2078, %v2097
  %v2135 = vadd.f32 %v2079, %v2097
  %v2136 = vadd.f32 %v2080, %v2097
  %v2137 = vadd.f32 %v2081, %v2097
  %v2138 = vadd.f32 %v2082, %v2097
  %v2139 = vadd.f32 %v2083, %v2097
  %v2140 = vadd.f32 %v2084, %v2097
  %v2141 = vadd.f32 %v2085, %v2097
  %v2142 = vadd.f32 %v2086, %v2097
  %v2143 = vadd.f32 %v2087, %v2097
  %v2144 = vadd.f32 %v2088, %v2097
  %v2145 = vadd.f32 %v2089, %v2097
  %v2146 = vadd.f32 %v2090, %v2097
  %v2147 = vadd.f32 %v2091, %v2097
  %vm2148 = vcmask 261120
  %2149 = vst.msk [vmem:[%s5] sm:$0xff] %vm2148, %v2099
  %2150 = vst.msk [vmem:[%s5 + $0x8] sm:$0xff] %vm2148, %v2100
  %2151 = vst.msk [vmem:[%s5 + $0x10] sm:$0xff] %vm2148, %v2101
  %2152 = vst.msk [vmem:[%s5 + $0x18] sm:$0xff] %vm2148, %v2102
  %2153 = vst.msk [vmem:[%s5 + $0x20] sm:$0xff] %vm2148, %v2103
  %2154 = vst.msk [vmem:[%s5 + $0x28] sm:$0xff] %vm2148, %v2104
  %2155 = vst.msk [vmem:[%s5 + $0x30] sm:$0xff] %vm2148, %v2105
  %2156 = vst.msk [vmem:[%s5 + $0x38] sm:$0xff] %vm2148, %v2106
  %2157 = vst.msk [vmem:[%s5 + $0x40] sm:$0xff] %vm2148, %v2107
  %2158 = vst.msk [vmem:[%s5 + $0x48] sm:$0xff] %vm2148, %v2108
  %2159 = vst.msk [vmem:[%s5 + $0x50] sm:$0xff] %vm2148, %v2109
  %2160 = vst.msk [vmem:[%s5 + $0x58] sm:$0xff] %vm2148, %v2110
  %2161 = vst.msk [vmem:[%s5 + $0x60] sm:$0xff] %vm2148, %v2111
  %2162 = vst.msk [vmem:[%s5 + $0x68] sm:$0xff] %vm2148, %v2112
  %2163 = vst.msk [vmem:[%s5 + $0x70] sm:$0xff] %vm2148, %v2113
  %2164 = vst.msk [vmem:[%s5 + $0x78] sm:$0xff] %vm2148, %v2114
  %2165 = vst.msk [vmem:[%s5 + $0x80] sm:$0xff] %vm2148, %v2115
  %2166 = vst.msk [vmem:[%s5 + $0x88] sm:$0xff] %vm2148, %v2116
  %2167 = vst.msk [vmem:[%s5 + $0x90] sm:$0xff] %vm2148, %v2117
  %2168 = vst.msk [vmem:[%s5 + $0x98] sm:$0xff] %vm2148, %v2118
  %2169 = vst.msk [vmem:[%s5 + $0xa0] sm:$0xff] %vm2148, %v2119
  %2170 = vst.msk [vmem:[%s5 + $0xa8] sm:$0xff] %vm2148, %v2120
  %2171 = vst.msk [vmem:[%s5 + $0xb0] sm:$0xff] %vm2148, %v2121
  %2172 = vst.msk [vmem:[%s5 + $0xb8] sm:$0xff] %vm2148, %v2122
  %2173 = vst.msk [vmem:[%s5 + $0xc0] sm:$0xff] %vm2148, %v2123
  %2174 = vst.msk [vmem:[%s5 + $0xc8] sm:$0xff] %vm2148, %v2124
  %2175 = vst.msk [vmem:[%s5 + $0xd0] sm:$0xff] %vm2148, %v2125
  %2176 = vst.msk [vmem:[%s5 + $0xd8] sm:$0xff] %vm2148, %v2126
  %2177 = vst.msk [vmem:[%s5 + $0xe0] sm:$0xff] %vm2148, %v2127
  %2178 = vst.msk [vmem:[%s5 + $0xe8] sm:$0xff] %vm2148, %v2128
  %2179 = vst.msk [vmem:[%s5 + $0xf0] sm:$0xff] %vm2148, %v2129
  %2180 = vst.msk [vmem:[%s5 + $0xf8] sm:$0xff] %vm2148, %v2130
  %2181 = vst.msk [vmem:[%s5 + $0x100] sm:$0xff] %vm2148, %v2131
  %2182 = vst.msk [vmem:[%s5 + $0x108] sm:$0xff] %vm2148, %v2132
  %2183 = vst.msk [vmem:[%s5 + $0x110] sm:$0xff] %vm2148, %v2133
  %2184 = vst.msk [vmem:[%s5 + $0x118] sm:$0xff] %vm2148, %v2134
  %2185 = vst.msk [vmem:[%s5 + $0x120] sm:$0xff] %vm2148, %v2135
  %2186 = vst.msk [vmem:[%s5 + $0x128] sm:$0xff] %vm2148, %v2136
  %2187 = vst.msk [vmem:[%s5 + $0x130] sm:$0xff] %vm2148, %v2137
  %2188 = vst.msk [vmem:[%s5 + $0x138] sm:$0xff] %vm2148, %v2138
  %2189 = vst.msk [vmem:[%s5 + $0x140] sm:$0xff] %vm2148, %v2139
  %2190 = vst.msk [vmem:[%s5 + $0x148] sm:$0xff] %vm2148, %v2140
  %2191 = vst.msk [vmem:[%s5 + $0x150] sm:$0xff] %vm2148, %v2141
  %2192 = vst.msk [vmem:[%s5 + $0x158] sm:$0xff] %vm2148, %v2142
  %2193 = vst.msk [vmem:[%s5 + $0x160] sm:$0xff] %vm2148, %v2143
  %2194 = vst.msk [vmem:[%s5 + $0x168] sm:$0xff] %vm2148, %v2144
  %2195 = vst.msk [vmem:[%s5 + $0x170] sm:$0xff] %vm2148, %v2145
  %2196 = vst.msk [vmem:[%s5 + $0x178] sm:$0xff] %vm2148, %v2146
  %2197 = vst.msk [vmem:[%s5 + $0x180] sm:$0xff] %vm2148, %v2147
  %vm2198 = vcmp.ge.f32.partialorder %v2099, 1.0
  %vm2199 = vcmp.ge.f32.partialorder %v2100, 1.0
  %vm2200 = vcmp.ge.f32.partialorder %v2101, 1.0
  %vm2201 = vcmp.ge.f32.partialorder %v2102, 1.0
  %vm2202 = vcmp.ge.f32.partialorder %v2103, 1.0
  %vm2203 = vcmp.ge.f32.partialorder %v2104, 1.0
  %vm2204 = vcmp.ge.f32.partialorder %v2105, 1.0
  %vm2205 = vcmp.ge.f32.partialorder %v2106, 1.0
  %vm2206 = vcmp.ge.f32.partialorder %v2107, 1.0
  %vm2207 = vcmp.ge.f32.partialorder %v2108, 1.0
  %vm2208 = vcmp.ge.f32.partialorder %v2109, 1.0
  %vm2209 = vcmp.ge.f32.partialorder %v2110, 1.0
  %vm2210 = vcmp.ge.f32.partialorder %v2111, 1.0
  %vm2211 = vcmp.ge.f32.partialorder %v2112, 1.0
  %vm2212 = vcmp.ge.f32.partialorder %v2113, 1.0
  %vm2213 = vcmp.ge.f32.partialorder %v2114, 1.0
  %vm2214 = vcmp.ge.f32.partialorder %v2115, 1.0
  %vm2215 = vcmp.ge.f32.partialorder %v2116, 1.0
  %vm2216 = vcmp.ge.f32.partialorder %v2117, 1.0
  %vm2217 = vcmp.ge.f32.partialorder %v2118, 1.0
  %vm2218 = vcmp.ge.f32.partialorder %v2119, 1.0
  %vm2219 = vcmp.ge.f32.partialorder %v2120, 1.0
  %vm2220 = vcmp.ge.f32.partialorder %v2121, 1.0
  %vm2221 = vcmp.ge.f32.partialorder %v2122, 1.0
  %vm2222 = vcmp.ge.f32.partialorder %v2123, 1.0
  %vm2223 = vcmp.ge.f32.partialorder %v2124, 1.0
  %vm2224 = vcmp.ge.f32.partialorder %v2125, 1.0
  %vm2225 = vcmp.ge.f32.partialorder %v2126, 1.0
  %vm2226 = vcmp.ge.f32.partialorder %v2127, 1.0
  %vm2227 = vcmp.ge.f32.partialorder %v2128, 1.0
  %vm2228 = vcmp.ge.f32.partialorder %v2129, 1.0
  %vm2229 = vcmp.ge.f32.partialorder %v2130, 1.0
  %vm2230 = vcmp.ge.f32.partialorder %v2131, 1.0
  %vm2231 = vcmp.ge.f32.partialorder %v2132, 1.0
  %vm2232 = vcmp.ge.f32.partialorder %v2133, 1.0
  %vm2233 = vcmp.ge.f32.partialorder %v2134, 1.0
  %vm2234 = vcmp.ge.f32.partialorder %v2135, 1.0
  %vm2235 = vcmp.ge.f32.partialorder %v2136, 1.0
  %vm2236 = vcmp.ge.f32.partialorder %v2137, 1.0
  %vm2237 = vcmp.ge.f32.partialorder %v2138, 1.0
  %vm2238 = vcmp.ge.f32.partialorder %v2139, 1.0
  %vm2239 = vcmp.ge.f32.partialorder %v2140, 1.0
  %vm2240 = vcmp.ge.f32.partialorder %v2141, 1.0
  %vm2241 = vcmp.ge.f32.partialorder %v2142, 1.0
  %vm2242 = vcmp.ge.f32.partialorder %v2143, 1.0
  %vm2243 = vcmp.ge.f32.partialorder %v2144, 1.0
  %vm2244 = vcmp.ge.f32.partialorder %v2145, 1.0
  %vm2245 = vcmp.ge.f32.partialorder %v2146, 1.0
  %vm2246 = vcmp.ge.f32.partialorder %v2147, 1.0
  %v2247 = vsel %vm2198, 1, 0
  %v2248 = vsel %vm2199, 1, 0
  %v2249 = vsel %vm2200, 1, 0
  %v2250 = vsel %vm2201, 1, 0
  %v2251 = vsel %vm2202, 1, 0
  %v2252 = vsel %vm2203, 1, 0
  %v2253 = vsel %vm2204, 1, 0
  %v2254 = vsel %vm2205, 1, 0
  %v2255 = vsel %vm2206, 1, 0
  %v2256 = vsel %vm2207, 1, 0
  %v2257 = vsel %vm2208, 1, 0
  %v2258 = vsel %vm2209, 1, 0
  %v2259 = vsel %vm2210, 1, 0
  %v2260 = vsel %vm2211, 1, 0
  %v2261 = vsel %vm2212, 1, 0
  %v2262 = vsel %vm2213, 1, 0
  %v2263 = vsel %vm2214, 1, 0
  %v2264 = vsel %vm2215, 1, 0
  %v2265 = vsel %vm2216, 1, 0
  %v2266 = vsel %vm2217, 1, 0
  %v2267 = vsel %vm2218, 1, 0
  %v2268 = vsel %vm2219, 1, 0
  %v2269 = vsel %vm2220, 1, 0
  %v2270 = vsel %vm2221, 1, 0
  %v2271 = vsel %vm2222, 1, 0
  %v2272 = vsel %vm2223, 1, 0
  %v2273 = vsel %vm2224, 1, 0
  %v2274 = vsel %vm2225, 1, 0
  %v2275 = vsel %vm2226, 1, 0
  %v2276 = vsel %vm2227, 1, 0
  %v2277 = vsel %vm2228, 1, 0
  %v2278 = vsel %vm2229, 1, 0
  %v2279 = vsel %vm2230, 1, 0
  %v2280 = vsel %vm2231, 1, 0
  %v2281 = vsel %vm2232, 1, 0
  %v2282 = vsel %vm2233, 1, 0
  %v2283 = vsel %vm2234, 1, 0
  %v2284 = vsel %vm2235, 1, 0
  %v2285 = vsel %vm2236, 1, 0
  %v2286 = vsel %vm2237, 1, 0
  %v2287 = vsel %vm2238, 1, 0
  %v2288 = vsel %vm2239, 1, 0
  %v2289 = vsel %vm2240, 1, 0
  %v2290 = vsel %vm2241, 1, 0
  %v2291 = vsel %vm2242, 1, 0
  %v2292 = vsel %vm2243, 1, 0
  %v2293 = vsel %vm2244, 1, 0
  %v2294 = vsel %vm2245, 1, 0
  %v2295 = vsel %vm2246, 1, 0
  %v2296 = vcvt.s32.f32 %v2247
  %v2297 = vcvt.s32.f32 %v2248
  %v2298 = vcvt.s32.f32 %v2249
  %v2299 = vcvt.s32.f32 %v2250
  %v2300 = vcvt.s32.f32 %v2251
  %v2301 = vcvt.s32.f32 %v2252
  %v2302 = vcvt.s32.f32 %v2253
  %v2303 = vcvt.s32.f32 %v2254
  %v2304 = vcvt.s32.f32 %v2255
  %v2305 = vcvt.s32.f32 %v2256
  %v2306 = vcvt.s32.f32 %v2257
  %v2307 = vcvt.s32.f32 %v2258
  %v2308 = vcvt.s32.f32 %v2259
  %v2309 = vcvt.s32.f32 %v2260
  %v2310 = vcvt.s32.f32 %v2261
  %v2311 = vcvt.s32.f32 %v2262
  %v2312 = vcvt.s32.f32 %v2263
  %v2313 = vcvt.s32.f32 %v2264
  %v2314 = vcvt.s32.f32 %v2265
  %v2315 = vcvt.s32.f32 %v2266
  %v2316 = vcvt.s32.f32 %v2267
  %v2317 = vcvt.s32.f32 %v2268
  %v2318 = vcvt.s32.f32 %v2269
  %v2319 = vcvt.s32.f32 %v2270
  %v2320 = vcvt.s32.f32 %v2271
  %v2321 = vcvt.s32.f32 %v2272
  %v2322 = vcvt.s32.f32 %v2273
  %v2323 = vcvt.s32.f32 %v2274
  %v2324 = vcvt.s32.f32 %v2275
  %v2325 = vcvt.s32.f32 %v2276
  %v2326 = vcvt.s32.f32 %v2277
  %v2327 = vcvt.s32.f32 %v2278
  %v2328 = vcvt.s32.f32 %v2279
  %v2329 = vcvt.s32.f32 %v2280
  %v2330 = vcvt.s32.f32 %v2281
  %v2331 = vcvt.s32.f32 %v2282
  %v2332 = vcvt.s32.f32 %v2283
  %v2333 = vcvt.s32.f32 %v2284
  %v2334 = vcvt.s32.f32 %v2285
  %v2335 = vcvt.s32.f32 %v2286
  %v2336 = vcvt.s32.f32 %v2287
  %v2337 = vcvt.s32.f32 %v2288
  %v2338 = vcvt.s32.f32 %v2289
  %v2339 = vcvt.s32.f32 %v2290
  %v2340 = vcvt.s32.f32 %v2291
  %v2341 = vcvt.s32.f32 %v2292
  %v2342 = vcvt.s32.f32 %v2293
  %v2343 = vcvt.s32.f32 %v2294
  %v2344 = vcvt.s32.f32 %v2295
  %2345 = vst.msk [vmem:[%s6] sm:$0xff] %vm2148, %v2296
  %2346 = vst.msk [vmem:[%s6 + $0x8] sm:$0xff] %vm2148, %v2297
  %2347 = vst.msk [vmem:[%s6 + $0x10] sm:$0xff] %vm2148, %v2298
  %2348 = vst.msk [vmem:[%s6 + $0x18] sm:$0xff] %vm2148, %v2299
  %2349 = vst.msk [vmem:[%s6 + $0x20] sm:$0xff] %vm2148, %v2300
  %2350 = vst.msk [vmem:[%s6 + $0x28] sm:$0xff] %vm2148, %v2301
  %2351 = vst.msk [vmem:[%s6 + $0x30] sm:$0xff] %vm2148, %v2302
  %2352 = vst.msk [vmem:[%s6 + $0x38] sm:$0xff] %vm2148, %v2303
  %2353 = vst.msk [vmem:[%s6 + $0x40] sm:$0xff] %vm2148, %v2304
  %2354 = vst.msk [vmem:[%s6 + $0x48] sm:$0xff] %vm2148, %v2305
  %2355 = vst.msk [vmem:[%s6 + $0x50] sm:$0xff] %vm2148, %v2306
  %2356 = vst.msk [vmem:[%s6 + $0x58] sm:$0xff] %vm2148, %v2307
  %2357 = vst.msk [vmem:[%s6 + $0x60] sm:$0xff] %vm2148, %v2308
  %2358 = vst.msk [vmem:[%s6 + $0x68] sm:$0xff] %vm2148, %v2309
  %2359 = vst.msk [vmem:[%s6 + $0x70] sm:$0xff] %vm2148, %v2310
  %2360 = vst.msk [vmem:[%s6 + $0x78] sm:$0xff] %vm2148, %v2311
  %2361 = vst.msk [vmem:[%s6 + $0x80] sm:$0xff] %vm2148, %v2312
  %2362 = vst.msk [vmem:[%s6 + $0x88] sm:$0xff] %vm2148, %v2313
  %2363 = vst.msk [vmem:[%s6 + $0x90] sm:$0xff] %vm2148, %v2314
  %2364 = vst.msk [vmem:[%s6 + $0x98] sm:$0xff] %vm2148, %v2315
  %2365 = vst.msk [vmem:[%s6 + $0xa0] sm:$0xff] %vm2148, %v2316
  %2366 = vst.msk [vmem:[%s6 + $0xa8] sm:$0xff] %vm2148, %v2317
  %2367 = vst.msk [vmem:[%s6 + $0xb0] sm:$0xff] %vm2148, %v2318
  %2368 = vst.msk [vmem:[%s6 + $0xb8] sm:$0xff] %vm2148, %v2319
  %2369 = vst.msk [vmem:[%s6 + $0xc0] sm:$0xff] %vm2148, %v2320
  %2370 = vst.msk [vmem:[%s6 + $0xc8] sm:$0xff] %vm2148, %v2321
  %2371 = vst.msk [vmem:[%s6 + $0xd0] sm:$0xff] %vm2148, %v2322
  %2372 = vst.msk [vmem:[%s6 + $0xd8] sm:$0xff] %vm2148, %v2323
  %2373 = vst.msk [vmem:[%s6 + $0xe0] sm:$0xff] %vm2148, %v2324
  %2374 = vst.msk [vmem:[%s6 + $0xe8] sm:$0xff] %vm2148, %v2325
  %2375 = vst.msk [vmem:[%s6 + $0xf0] sm:$0xff] %vm2148, %v2326
  %2376 = vst.msk [vmem:[%s6 + $0xf8] sm:$0xff] %vm2148, %v2327
  %2377 = vst.msk [vmem:[%s6 + $0x100] sm:$0xff] %vm2148, %v2328
  %2378 = vst.msk [vmem:[%s6 + $0x108] sm:$0xff] %vm2148, %v2329
  %2379 = vst.msk [vmem:[%s6 + $0x110] sm:$0xff] %vm2148, %v2330
  %2380 = vst.msk [vmem:[%s6 + $0x118] sm:$0xff] %vm2148, %v2331
  %2381 = vst.msk [vmem:[%s6 + $0x120] sm:$0xff] %vm2148, %v2332
  %2382 = vst.msk [vmem:[%s6 + $0x128] sm:$0xff] %vm2148, %v2333
  %2383 = vst.msk [vmem:[%s6 + $0x130] sm:$0xff] %vm2148, %v2334
  %2384 = vst.msk [vmem:[%s6 + $0x138] sm:$0xff] %vm2148, %v2335
  %2385 = vst.msk [vmem:[%s6 + $0x140] sm:$0xff] %vm2148, %v2336
  %2386 = vst.msk [vmem:[%s6 + $0x148] sm:$0xff] %vm2148, %v2337
  %2387 = vst.msk [vmem:[%s6 + $0x150] sm:$0xff] %vm2148, %v2338
  %2388 = vst.msk [vmem:[%s6 + $0x158] sm:$0xff] %vm2148, %v2339
  %2389 = vst.msk [vmem:[%s6 + $0x160] sm:$0xff] %vm2148, %v2340
  %2390 = vst.msk [vmem:[%s6 + $0x168] sm:$0xff] %vm2148, %v2341
  %2391 = vst.msk [vmem:[%s6 + $0x170] sm:$0xff] %vm2148, %v2342
  %2392 = vst.msk [vmem:[%s6 + $0x178] sm:$0xff] %vm2148, %v2343
  %2393 = vst.msk [vmem:[%s6 + $0x180] sm:$0xff] %vm2148, %v2344
  // Predicated region
  $region22: #{scnn_forward.15} parent=0 // pred_check
    _
  $region23: #{scnn_forward.15} parent=0 // pred_check_branch
    %2395 = sbr.rel (0) target = $region25
  $region24: #{scnn_forward.15} parent=0 // pred_region
    _
  $region25: #{scnn_forward.15} parent=0 // pred_fallthru
    _
  // Predicated region
  $region26: #{scnn_forward.15} parent=0 // pred_check
    _
  $region27: #{scnn_forward.15} parent=0 // pred_check_branch
    %2397 = sbr.rel (0) target = $region29
  $region28: #{scnn_forward.15} parent=0 // pred_region
    _
  $region29: #{scnn_forward.15} parent=0 // pred_fallthru
    _
  // Predicated region
  $region30: #{scnn_forward.15} parent=0 // pred_check
    _
  $region31: #{scnn_forward.15} parent=0 // pred_check_branch
    %2399 = sbr.rel (0) target = $region33
  $region32: #{scnn_forward.15} parent=0 // pred_region
    _
  $region33: #{scnn_forward.15} parent=0 // pred_fallthru
    _
  // Predicated region
  $region34: #{scnn_forward.15} parent=0 // pred_check
    _
  $region35: #{scnn_forward.15} parent=0 // pred_check_branch
    %2401 = sbr.rel (0) target = $region37
  $region36: #{scnn_forward.15} parent=0 // pred_region
    _
  $region37: #{scnn_forward.15} parent=0 // pred_fallthru
    _

// kernel: scnn_forward.16
$region0: #{scnn_forward.16}
  #allocation0 [shape = 'u32[]', space=smem, size = 0x4, offset = 0x4, fixed_abs, tag = 'smem constant byte address 0x4 - core index']
  #allocation1 [shape = 'u32[144,128]{1,0:T(1,128)}', space=vmem, size = 0x12000, scoped, tag = 'internal scratch']
  %s0 = inlined_call_operand.vmem [shape: bf16[2,1568], index: 0, kind: input, shape index: {}]
  %s1 = inlined_call_operand.vmem [shape: f32[2,128], index: 1, kind: input, shape index: {}, may-alias: {1,11}]
  %s2 = inlined_call_operand.vmem [shape: f32[2,128], index: 2, kind: input, shape index: {}, may-alias: {2,12}]
  %s3 = inlined_call_operand.vmem [shape: f32[2,128], index: 3, kind: input, shape index: {}, may-alias: {3,13}]
  %s4 = inlined_call_operand.vmem [shape: f32[2,128], index: 4, kind: input, shape index: {}, may-alias: {4,14}]
  %s5 = inlined_call_operand.vmem [shape: bf16[1568,128], index: 5, kind: input, shape index: {}]
  %s6 = inlined_call_operand.vmem [shape: bf16[128,128], index: 6, kind: input, shape index: {}]
  %s7 = inlined_call_operand.vmem [shape: f32[1,128], index: 7, kind: input, shape index: {}]
  %s8 = inlined_call_operand.vmem [shape: bf16[128,128], index: 8, kind: input, shape index: {}]
  %s9 = inlined_call_operand.vmem [shape: bf16[128,128], index: 9, kind: input, shape index: {}]
  %s10 = inlined_call_operand.vmem [shape: f32[1,128], index: 10, kind: input, shape index: {}]
  %s11 = inlined_call_operand.vmem [shape: f32[2,128], index: 11, kind: output, shape index: {0}, may-alias: {1,11}]
  %s12 = inlined_call_operand.vmem [shape: f32[2,128], index: 12, kind: output, shape index: {1}, may-alias: {2,12}]
  %s13 = inlined_call_operand.vmem [shape: f32[2,128], index: 13, kind: output, shape index: {2}, may-alias: {3,13}]
  %s14 = inlined_call_operand.vmem [shape: f32[2,128], index: 14, kind: output, shape index: {3}, may-alias: {4,14}]
  %15 = xla_tuple %s11, %s12, %s13, %s14
  %s16 = sld [smem:[#allocation0]]
  $region78: #{scnn_forward.16} parent=0
    _
  %s18 = ssub.s32 1, %s16
  %s19 = scalar_select 0, %s18, %s16
  // Predicated region
  $region2: #{scnn_forward.16} parent=0 // pred_check
    _
  $region3: #{scnn_forward.16} parent=0 // pred_check_branch
    %21 = sbr.rel (0) target = $region5
  $region4: #{scnn_forward.16} parent=0 // pred_region
    _
  $region5: #{scnn_forward.16} parent=0 // pred_fallthru
    _
  // Predicated region
  $region6: #{scnn_forward.16} parent=0 // pred_check
    _
  $region7: #{scnn_forward.16} parent=0 // pred_check_branch
    %23 = sbr.rel (0) target = $region9
  $region8: #{scnn_forward.16} parent=0 // pred_region
    _
  $region9: #{scnn_forward.16} parent=0 // pred_fallthru
    _
  // Predicated region
  $region10: #{scnn_forward.16} parent=0 // pred_check
    _
  $region11: #{scnn_forward.16} parent=0 // pred_check_branch
    %25 = sbr.rel (0) target = $region13
  $region12: #{scnn_forward.16} parent=0 // pred_region
    _
  $region13: #{scnn_forward.16} parent=0 // pred_fallthru
    _
  // Predicated region
  $region14: #{scnn_forward.16} parent=0 // pred_check
    _
  $region15: #{scnn_forward.16} parent=0 // pred_check_branch
    %27 = sbr.rel (0) target = $region17
  $region16: #{scnn_forward.16} parent=0 // pred_region
    _
  $region17: #{scnn_forward.16} parent=0 // pred_fallthru
    _
  // Predicated region
  $region18: #{scnn_forward.16} parent=0 // pred_check
    _
  $region19: #{scnn_forward.16} parent=0 // pred_check_branch
    %29 = sbr.rel (0) target = $region21
  $region20: #{scnn_forward.16} parent=0 // pred_region
    _
  $region21: #{scnn_forward.16} parent=0 // pred_fallthru
    _
  // Predicated region
  $region22: #{scnn_forward.16} parent=0 // pred_check
    _
  $region23: #{scnn_forward.16} parent=0 // pred_check_branch
    %31 = sbr.rel (0) target = $region25
  $region24: #{scnn_forward.16} parent=0 // pred_region
    _
  $region25: #{scnn_forward.16} parent=0 // pred_fallthru
    _
  // Predicated region
  $region26: #{scnn_forward.16} parent=0 // pred_check
    _
  $region27: #{scnn_forward.16} parent=0 // pred_check_branch
    %33 = sbr.rel (0) target = $region29
  $region28: #{scnn_forward.16} parent=0 // pred_region
    _
  $region29: #{scnn_forward.16} parent=0 // pred_fallthru
    _
  // Predicated region
  $region30: #{scnn_forward.16} parent=0 // pred_check
    _
  $region31: #{scnn_forward.16} parent=0 // pred_check_branch
    %35 = sbr.rel (0) target = $region33
  $region32: #{scnn_forward.16} parent=0 // pred_region
    _
  $region33: #{scnn_forward.16} parent=0 // pred_fallthru
    _
  // Predicated region
  $region34: #{scnn_forward.16} parent=0 // pred_check
    _
  $region35: #{scnn_forward.16} parent=0 // pred_check_branch
    %37 = sbr.rel (0) target = $region37
  $region36: #{scnn_forward.16} parent=0 // pred_region
    _
  $region37: #{scnn_forward.16} parent=0 // pred_fallthru
    _
  // Predicated region
  $region38: #{scnn_forward.16} parent=0 // pred_check
    _
  $region39: #{scnn_forward.16} parent=0 // pred_check_branch
    %39 = sbr.rel (0) target = $region41
  $region40: #{scnn_forward.16} parent=0 // pred_region
    _
  $region41: #{scnn_forward.16} parent=0 // pred_fallthru
    _
  // Predicated region
  $region42: #{scnn_forward.16} parent=0 // pred_check
    _
  $region43: #{scnn_forward.16} parent=0 // pred_check_branch
    %41 = sbr.rel (0) target = $region45
  $region44: #{scnn_forward.16} parent=0 // pred_region
    _
  $region45: #{scnn_forward.16} parent=0 // pred_fallthru
    _
  %v43 = vld [vmem:[%s2] sm:$0x3]
  %v44 = vld [vmem:[%s0] sm:$0xff]
  %v45 = vld [vmem:[%s0 + $0x8] sm:$0x1f]
  %v46 = vld [vmem:[%s5] sm:$0xf]
  %v47 = vld [vmem:[%s5 + $0x4] sm:$0xf]
  %v48 = vld [vmem:[%s5 + $0x8] sm:$0xf]
  %v49 = vld [vmem:[%s5 + $0xc] sm:$0xf]
  %v50 = vld [vmem:[%s5 + $0x10] sm:$0xf]
  %v51 = vld [vmem:[%s5 + $0x14] sm:$0xf]
  %v52 = vld [vmem:[%s5 + $0x18] sm:$0xf]
  %v53 = vld [vmem:[%s5 + $0x1c] sm:$0xf]
  %v54 = vld [vmem:[%s5 + $0x20] sm:$0xf]
  %v55 = vld [vmem:[%s5 + $0x24] sm:$0xf]
  %v56 = vld [vmem:[%s5 + $0x28] sm:$0xf]
  %v57 = vld [vmem:[%s5 + $0x2c] sm:$0xf]
  %v58 = vld [vmem:[%s5 + $0x30] sm:$0xf]
  %v59 = vld [vmem:[%s5 + $0x34] sm:$0xf]
  %v60 = vld [vmem:[%s5 + $0x38] sm:$0xf]
  %v61 = vld [vmem:[%s5 + $0x3c] sm:$0xf]
  %v62 = vld [vmem:[%s5 + $0x40] sm:$0xf]
  %v63 = vld [vmem:[%s5 + $0x44] sm:$0xf]
  %v64 = vld [vmem:[%s5 + $0x48] sm:$0xf]
  %v65 = vld [vmem:[%s5 + $0x4c] sm:$0xf]
  %v66 = vld [vmem:[%s5 + $0x50] sm:$0xf]
  %v67 = vld [vmem:[%s5 + $0x54] sm:$0xf]
  %v68 = vld [vmem:[%s5 + $0x58] sm:$0xf]
  %v69 = vld [vmem:[%s5 + $0x5c] sm:$0xf]
  %v70 = vld [vmem:[%s5 + $0x60] sm:$0xf]
  %v71 = vld [vmem:[%s5 + $0x64] sm:$0xf]
  %v72 = vld [vmem:[%s5 + $0x68] sm:$0xf]
  %v73 = vld [vmem:[%s5 + $0x6c] sm:$0xf]
  %v74 = vld [vmem:[%s5 + $0x70] sm:$0xf]
  %v75 = vld [vmem:[%s5 + $0x74] sm:$0xf]
  %v76 = vld [vmem:[%s5 + $0x78] sm:$0xf]
  %v77 = vld [vmem:[%s5 + $0x7c] sm:$0xf]
  %v78 = vld [vmem:[%s5 + $0x80] sm:$0xf]
  %v79 = vld [vmem:[%s5 + $0x84] sm:$0xf]
  %v80 = vld [vmem:[%s5 + $0x88] sm:$0xf]
  %v81 = vld [vmem:[%s5 + $0x8c] sm:$0xf]
  %v82 = vld [vmem:[%s5 + $0x90] sm:$0xf]
  %v83 = vld [vmem:[%s5 + $0x94] sm:$0xf]
  %v84 = vld [vmem:[%s5 + $0x98] sm:$0xf]
  %v85 = vld [vmem:[%s5 + $0x9c] sm:$0xf]
  %v86 = vld [vmem:[%s5 + $0xa0] sm:$0xf]
  %v87 = vld [vmem:[%s5 + $0xa4] sm:$0xf]
  %v88 = vld [vmem:[%s5 + $0xa8] sm:$0xf]
  %v89 = vld [vmem:[%s5 + $0xac] sm:$0xf]
  %v90 = vld [vmem:[%s5 + $0xb0] sm:$0xf]
  %v91 = vld [vmem:[%s5 + $0xb4] sm:$0xf]
  %v92 = vld [vmem:[%s5 + $0xb8] sm:$0xf]
  %v93 = vld [vmem:[%s5 + $0xbc] sm:$0xf]
  %v94 = vld [vmem:[%s5 + $0xc0] sm:$0xf]
  %v95 = vld [vmem:[%s5 + $0xc4] sm:$0xf]
  %v96 = vld [vmem:[%s5 + $0xc8] sm:$0xf]
  %v97 = vld [vmem:[%s5 + $0xcc] sm:$0xf]
  %v98 = vld [vmem:[%s5 + $0xd0] sm:$0xf]
  %v99 = vld [vmem:[%s5 + $0xd4] sm:$0xf]
  %v100 = vld [vmem:[%s5 + $0xd8] sm:$0xf]
  %v101 = vld [vmem:[%s5 + $0xdc] sm:$0xf]
  %v102 = vld [vmem:[%s5 + $0xe0] sm:$0xf]
  %v103 = vld [vmem:[%s5 + $0xe4] sm:$0xf]
  %v104 = vld [vmem:[%s5 + $0xe8] sm:$0xf]
  %v105 = vld [vmem:[%s5 + $0xec] sm:$0xf]
  %v106 = vld [vmem:[%s5 + $0xf0] sm:$0xf]
  %v107 = vld [vmem:[%s5 + $0xf4] sm:$0xf]
  %v108 = vld [vmem:[%s5 + $0xf8] sm:$0xf]
  %v109 = vld [vmem:[%s5 + $0xfc] sm:$0xf]
  %v110 = vld [vmem:[%s5 + $0x100] sm:$0xf]
  %v111 = vld [vmem:[%s5 + $0x104] sm:$0xf]
  %v112 = vld [vmem:[%s5 + $0x108] sm:$0xf]
  %v113 = vld [vmem:[%s5 + $0x10c] sm:$0xf]
  %v114 = vld [vmem:[%s5 + $0x110] sm:$0xf]
  %v115 = vld [vmem:[%s5 + $0x114] sm:$0xf]
  %v116 = vld [vmem:[%s5 + $0x118] sm:$0xf]
  %v117 = vld [vmem:[%s5 + $0x11c] sm:$0xf]
  %v118 = vld [vmem:[%s5 + $0x120] sm:$0xf]
  %v119 = vld [vmem:[%s5 + $0x124] sm:$0xf]
  %v120 = vld [vmem:[%s5 + $0x128] sm:$0xf]
  %v121 = vld [vmem:[%s5 + $0x12c] sm:$0xf]
  %v122 = vld [vmem:[%s5 + $0x130] sm:$0xf]
  %v123 = vld [vmem:[%s5 + $0x134] sm:$0xf]
  %v124 = vld [vmem:[%s5 + $0x138] sm:$0xf]
  %v125 = vld [vmem:[%s5 + $0x13c] sm:$0xf]
  %v126 = vld [vmem:[%s5 + $0x140] sm:$0xf]
  %v127 = vld [vmem:[%s5 + $0x144] sm:$0xf]
  %v128 = vld [vmem:[%s5 + $0x148] sm:$0xf]
  %v129 = vld [vmem:[%s5 + $0x14c] sm:$0xf]
  %v130 = vld [vmem:[%s5 + $0x150] sm:$0xf]
  %v131 = vld [vmem:[%s5 + $0x154] sm:$0xf]
  %v132 = vld [vmem:[%s5 + $0x158] sm:$0xf]
  %v133 = vld [vmem:[%s5 + $0x15c] sm:$0xf]
  %v134 = vld [vmem:[%s5 + $0x160] sm:$0xf]
  %v135 = vld [vmem:[%s5 + $0x164] sm:$0xf]
  %v136 = vld [vmem:[%s5 + $0x168] sm:$0xf]
  %v137 = vld [vmem:[%s5 + $0x16c] sm:$0xf]
  %v138 = vld [vmem:[%s5 + $0x170] sm:$0xf]
  %v139 = vld [vmem:[%s5 + $0x174] sm:$0xf]
  %v140 = vld [vmem:[%s5 + $0x178] sm:$0xf]
  %v141 = vld [vmem:[%s5 + $0x17c] sm:$0xf]
  %v142 = vld [vmem:[%s5 + $0x180] sm:$0xf]
  %v143 = vld [vmem:[%s5 + $0x184] sm:$0xf]
  %v144 = vld [vmem:[%s5 + $0x188] sm:$0xf]
  %v145 = vld [vmem:[%s5 + $0x18c] sm:$0xf]
  %v146 = vld [vmem:[%s5 + $0x190] sm:$0xf]
  %v147 = vld [vmem:[%s5 + $0x194] sm:$0xf]
  %v148 = vld [vmem:[%s5 + $0x198] sm:$0xf]
  %v149 = vld [vmem:[%s5 + $0x19c] sm:$0xf]
  %v150 = vld [vmem:[%s5 + $0x1a0] sm:$0xf]
  %v151 = vld [vmem:[%s5 + $0x1a4] sm:$0xf]
  %v152 = vld [vmem:[%s5 + $0x1a8] sm:$0xf]
  %v153 = vld [vmem:[%s5 + $0x1ac] sm:$0xf]
  %v154 = vld [vmem:[%s5 + $0x1b0] sm:$0xf]
  %v155 = vld [vmem:[%s5 + $0x1b4] sm:$0xf]
  %v156 = vld [vmem:[%s5 + $0x1b8] sm:$0xf]
  %v157 = vld [vmem:[%s5 + $0x1bc] sm:$0xf]
  %v158 = vld [vmem:[%s5 + $0x1c0] sm:$0xf]
  %v159 = vld [vmem:[%s5 + $0x1c4] sm:$0xf]
  %v160 = vld [vmem:[%s5 + $0x1c8] sm:$0xf]
  %v161 = vld [vmem:[%s5 + $0x1cc] sm:$0xf]
  %v162 = vld [vmem:[%s5 + $0x1d0] sm:$0xf]
  %v163 = vld [vmem:[%s5 + $0x1d4] sm:$0xf]
  %v164 = vld [vmem:[%s5 + $0x1d8] sm:$0xf]
  %v165 = vld [vmem:[%s5 + $0x1dc] sm:$0xf]
  %v166 = vld [vmem:[%s5 + $0x1e0] sm:$0xf]
  %v167 = vld [vmem:[%s5 + $0x1e4] sm:$0xf]
  %v168 = vld [vmem:[%s5 + $0x1e8] sm:$0xf]
  %v169 = vld [vmem:[%s5 + $0x1ec] sm:$0xf]
  %v170 = vld [vmem:[%s5 + $0x1f0] sm:$0xf]
  %v171 = vld [vmem:[%s5 + $0x1f4] sm:$0xf]
  %v172 = vld [vmem:[%s5 + $0x1f8] sm:$0xf]
  %v173 = vld [vmem:[%s5 + $0x1fc] sm:$0xf]
  %v174 = vld [vmem:[%s5 + $0x200] sm:$0xf]
  %v175 = vld [vmem:[%s5 + $0x204] sm:$0xf]
  %v176 = vld [vmem:[%s5 + $0x208] sm:$0xf]
  %v177 = vld [vmem:[%s5 + $0x20c] sm:$0xf]
  %v178 = vld [vmem:[%s5 + $0x210] sm:$0xf]
  %v179 = vld [vmem:[%s5 + $0x214] sm:$0xf]
  %v180 = vld [vmem:[%s5 + $0x218] sm:$0xf]
  %v181 = vld [vmem:[%s5 + $0x21c] sm:$0xf]
  %v182 = vld [vmem:[%s5 + $0x220] sm:$0xf]
  %v183 = vld [vmem:[%s5 + $0x224] sm:$0xf]
  %v184 = vld [vmem:[%s5 + $0x228] sm:$0xf]
  %v185 = vld [vmem:[%s5 + $0x22c] sm:$0xf]
  %v186 = vld [vmem:[%s5 + $0x230] sm:$0xf]
  %v187 = vld [vmem:[%s5 + $0x234] sm:$0xf]
  %v188 = vld [vmem:[%s5 + $0x238] sm:$0xf]
  %v189 = vld [vmem:[%s5 + $0x23c] sm:$0xf]
  %v190 = vld [vmem:[%s5 + $0x240] sm:$0xf]
  %v191 = vld [vmem:[%s5 + $0x244] sm:$0xf]
  %v192 = vld [vmem:[%s5 + $0x248] sm:$0xf]
  %v193 = vld [vmem:[%s5 + $0x24c] sm:$0xf]
  %v194 = vld [vmem:[%s5 + $0x250] sm:$0xf]
  %v195 = vld [vmem:[%s5 + $0x254] sm:$0xf]
  %v196 = vld [vmem:[%s5 + $0x258] sm:$0xf]
  %v197 = vld [vmem:[%s5 + $0x25c] sm:$0xf]
  %v198 = vld [vmem:[%s5 + $0x260] sm:$0xf]
  %v199 = vld [vmem:[%s5 + $0x264] sm:$0xf]
  %v200 = vld [vmem:[%s5 + $0x268] sm:$0xf]
  %v201 = vld [vmem:[%s5 + $0x26c] sm:$0xf]
  %v202 = vld [vmem:[%s5 + $0x270] sm:$0xf]
  %v203 = vld [vmem:[%s5 + $0x274] sm:$0xf]
  %v204 = vld [vmem:[%s5 + $0x278] sm:$0xf]
  %v205 = vld [vmem:[%s5 + $0x27c] sm:$0xf]
  %v206 = vld [vmem:[%s5 + $0x280] sm:$0xf]
  %v207 = vld [vmem:[%s5 + $0x284] sm:$0xf]
  %v208 = vld [vmem:[%s5 + $0x288] sm:$0xf]
  %v209 = vld [vmem:[%s5 + $0x28c] sm:$0xf]
  %v210 = vld [vmem:[%s5 + $0x290] sm:$0xf]
  %v211 = vld [vmem:[%s5 + $0x294] sm:$0xf]
  %v212 = vld [vmem:[%s5 + $0x298] sm:$0xf]
  %v213 = vld [vmem:[%s5 + $0x29c] sm:$0xf]
  %v214 = vld [vmem:[%s5 + $0x2a0] sm:$0xf]
  %v215 = vld [vmem:[%s5 + $0x2a4] sm:$0xf]
  %v216 = vld [vmem:[%s5 + $0x2a8] sm:$0xf]
  %v217 = vld [vmem:[%s5 + $0x2ac] sm:$0xf]
  %v218 = vld [vmem:[%s5 + $0x2b0] sm:$0xf]
  %v219 = vld [vmem:[%s5 + $0x2b4] sm:$0xf]
  %v220 = vld [vmem:[%s5 + $0x2b8] sm:$0xf]
  %v221 = vld [vmem:[%s5 + $0x2bc] sm:$0xf]
  %v222 = vld [vmem:[%s5 + $0x2c0] sm:$0xf]
  %v223 = vld [vmem:[%s5 + $0x2c4] sm:$0xf]
  %v224 = vld [vmem:[%s5 + $0x2c8] sm:$0xf]
  %v225 = vld [vmem:[%s5 + $0x2cc] sm:$0xf]
  %v226 = vld [vmem:[%s5 + $0x2d0] sm:$0xf]
  %v227 = vld [vmem:[%s5 + $0x2d4] sm:$0xf]
  %v228 = vld [vmem:[%s5 + $0x2d8] sm:$0xf]
  %v229 = vld [vmem:[%s5 + $0x2dc] sm:$0xf]
  %v230 = vld [vmem:[%s5 + $0x2e0] sm:$0xf]
  %v231 = vld [vmem:[%s5 + $0x2e4] sm:$0xf]
  %v232 = vld [vmem:[%s5 + $0x2e8] sm:$0xf]
  %v233 = vld [vmem:[%s5 + $0x2ec] sm:$0xf]
  %v234 = vld [vmem:[%s5 + $0x2f0] sm:$0xf]
  %v235 = vld [vmem:[%s5 + $0x2f4] sm:$0xf]
  %v236 = vld [vmem:[%s5 + $0x2f8] sm:$0xf]
  %v237 = vld [vmem:[%s5 + $0x2fc] sm:$0xf]
  %v238 = vld [vmem:[%s5 + $0x300] sm:$0xf]
  %v239 = vld [vmem:[%s5 + $0x304] sm:$0xf]
  %v240 = vld [vmem:[%s5 + $0x308] sm:$0xf]
  %v241 = vld [vmem:[%s5 + $0x30c] sm:$0xf]
  %v244 = vcombine.high %v44, %v44
  %v246 = vunpack.c.l.s4 1966171168
  %v247 = vunpack.c.0.s8 %v246
  %v248 = vlaneseq
  %v249 = vshrl.u32 %v248, 7
  %v250 = vsub.s32 %v247, %v249
  %v251 = vrot.slane %v44, %v250
  %v253 = vunpack.c.l.s4 1966171168
  %v254 = vunpack.c.0.s8 %v253
  %v255 = vlaneseq
  %v256 = vshrl.u32 %v255, 7
  %v257 = vsub.s32 %v254, %v256
  %v258 = vrot.slane %v244, %v257
  %v259 = vcombine.high %v251, %v251
  %v260 = vcombine.high %v258, %v258
  %v262 = vunpack.c.l.s4 1966171168
  %v263 = vunpack.c.0.s8 %v262
  %v264 = vlaneseq
  %v265 = vshrl.u32 %v264, 7
  %v266 = vsub.s32 %v263, %v265
  %v267 = vrot.slane %v251, %v266
  %v269 = vunpack.c.l.s4 1966171168
  %v270 = vunpack.c.0.s8 %v269
  %v271 = vlaneseq
  %v272 = vshrl.u32 %v271, 7
  %v273 = vsub.s32 %v270, %v272
  %v274 = vrot.slane %v258, %v273
  %v276 = vunpack.c.l.s4 1966171168
  %v277 = vunpack.c.0.s8 %v276
  %v278 = vlaneseq
  %v279 = vshrl.u32 %v278, 7
  %v280 = vsub.s32 %v277, %v279
  %v281 = vrot.slane %v259, %v280
  %v283 = vunpack.c.l.s4 1966171168
  %v284 = vunpack.c.0.s8 %v283
  %v285 = vlaneseq
  %v286 = vshrl.u32 %v285, 7
  %v287 = vsub.s32 %v284, %v286
  %v288 = vrot.slane %v260, %v287
  %v289 = vcombine.high %v267, %v267
  %v290 = vcombine.high %v274, %v274
  %v291 = vcombine.high %v281, %v281
  %v292 = vcombine.high %v288, %v288
  %v293 = vcombine.high %v45, %v45
  %v295 = vunpack.c.l.s4 1966171168
  %v296 = vunpack.c.0.s8 %v295
  %v297 = vlaneseq
  %v298 = vshrl.u32 %v297, 7
  %v299 = vsub.s32 %v296, %v298
  %v300 = vrot.slane %v45, %v299
  %v302 = vunpack.c.l.s4 1966171168
  %v303 = vunpack.c.0.s8 %v302
  %v304 = vlaneseq
  %v305 = vshrl.u32 %v304, 7
  %v306 = vsub.s32 %v303, %v305
  %v307 = vrot.slane %v293, %v306
  %v308 = vcombine.high %v300, %v300
  %v310 = vunpack.c.l.s4 1966171168
  %v311 = vunpack.c.0.s8 %v310
  %v312 = vlaneseq
  %v313 = vshrl.u32 %v312, 7
  %v314 = vsub.s32 %v311, %v313
  %v315 = vrot.slane %v300, %v314
  %v317 = vunpack.c.l.s4 1966171168
  %v318 = vunpack.c.0.s8 %v317
  %v319 = vlaneseq
  %v320 = vshrl.u32 %v319, 7
  %v321 = vsub.s32 %v318, %v320
  %v322 = vrot.slane %v307, %v321
  %v324 = vunpack.c.l.s4 1966171168
  %v325 = vunpack.c.0.s8 %v324
  %v326 = vlaneseq
  %v327 = vshrl.u32 %v326, 7
  %v328 = vsub.s32 %v325, %v327
  %v329 = vrot.slane %v308, %v328
  %v330 = vcombine.high %v315, %v315
  %v331 = vcombine.high %v329, %v329
  %v540 = vunpack.c.l.b16 %v46
  %v541 = vunpack.c.l.b16 %v47
  %v542 = vunpack.c.l.b16 %v48
  %v543 = vunpack.c.l.b16 %v49
  %v544 = vunpack.c.l.b16 %v50
  %v545 = vunpack.c.l.b16 %v51
  %v546 = vunpack.c.l.b16 %v52
  %v547 = vunpack.c.l.b16 %v53
  %v548 = vunpack.c.l.b16 %v54
  %v549 = vunpack.c.l.b16 %v55
  %v550 = vunpack.c.l.b16 %v56
  %v551 = vunpack.c.l.b16 %v57
  %v552 = vunpack.c.l.b16 %v58
  %v553 = vunpack.c.l.b16 %v59
  %v554 = vunpack.c.l.b16 %v60
  %v555 = vunpack.c.l.b16 %v61
  %v556 = vunpack.c.l.b16 %v62
  %v557 = vunpack.c.l.b16 %v63
  %v558 = vunpack.c.l.b16 %v64
  %v559 = vunpack.c.l.b16 %v65
  %v560 = vunpack.c.l.b16 %v66
  %v561 = vunpack.c.l.b16 %v67
  %v562 = vunpack.c.l.b16 %v68
  %v563 = vunpack.c.l.b16 %v69
  %v564 = vunpack.c.l.b16 %v70
  %v565 = vunpack.c.l.b16 %v71
  %v566 = vunpack.c.l.b16 %v72
  %v567 = vunpack.c.l.b16 %v73
  %v568 = vunpack.c.l.b16 %v74
  %v569 = vunpack.c.l.b16 %v75
  %v570 = vunpack.c.l.b16 %v76
  %v571 = vunpack.c.l.b16 %v77
  %v572 = vunpack.c.l.b16 %v78
  %v573 = vunpack.c.l.b16 %v79
  %v574 = vunpack.c.l.b16 %v80
  %v575 = vunpack.c.l.b16 %v81
  %v576 = vunpack.c.l.b16 %v82
  %v577 = vunpack.c.l.b16 %v83
  %v578 = vunpack.c.l.b16 %v84
  %v579 = vunpack.c.l.b16 %v85
  %v580 = vunpack.c.l.b16 %v86
  %v581 = vunpack.c.l.b16 %v87
  %v582 = vunpack.c.l.b16 %v88
  %v583 = vunpack.c.l.b16 %v89
  %v584 = vunpack.c.l.b16 %v90
  %v585 = vunpack.c.l.b16 %v91
  %v586 = vunpack.c.l.b16 %v92
  %v587 = vunpack.c.l.b16 %v93
  %v588 = vunpack.c.l.b16 %v94
  %v589 = vunpack.c.l.b16 %v95
  %v590 = vunpack.c.l.b16 %v96
  %v591 = vunpack.c.l.b16 %v97
  %v592 = vunpack.c.l.b16 %v98
  %v593 = vunpack.c.l.b16 %v99
  %v594 = vunpack.c.l.b16 %v100
  %v595 = vunpack.c.l.b16 %v101
  %v596 = vunpack.c.l.b16 %v102
  %v597 = vunpack.c.l.b16 %v103
  %v598 = vunpack.c.l.b16 %v104
  %v599 = vunpack.c.l.b16 %v105
  %v600 = vunpack.c.l.b16 %v106
  %v601 = vunpack.c.l.b16 %v107
  %v602 = vunpack.c.l.b16 %v108
  %v603 = vunpack.c.l.b16 %v109
  %v604 = vunpack.c.l.b16 %v110
  %v605 = vunpack.c.l.b16 %v111
  %v606 = vunpack.c.l.b16 %v112
  %v607 = vunpack.c.l.b16 %v113
  %v608 = vunpack.c.l.b16 %v114
  %v609 = vunpack.c.l.b16 %v115
  %v610 = vunpack.c.l.b16 %v116
  %v611 = vunpack.c.l.b16 %v117
  %v612 = vunpack.c.l.b16 %v118
  %v613 = vunpack.c.l.b16 %v119
  %v614 = vunpack.c.l.b16 %v120
  %v615 = vunpack.c.l.b16 %v121
  %v616 = vunpack.c.l.b16 %v122
  %v617 = vunpack.c.l.b16 %v123
  %v618 = vunpack.c.l.b16 %v124
  %v619 = vunpack.c.l.b16 %v125
  %v620 = vunpack.c.l.b16 %v126
  %v621 = vunpack.c.l.b16 %v127
  %v622 = vunpack.c.l.b16 %v128
  %v623 = vunpack.c.l.b16 %v129
  %v624 = vunpack.c.l.b16 %v130
  %v625 = vunpack.c.l.b16 %v131
  %v626 = vunpack.c.l.b16 %v132
  %v627 = vunpack.c.l.b16 %v133
  %v628 = vunpack.c.l.b16 %v134
  %v629 = vunpack.c.l.b16 %v135
  %v630 = vunpack.c.l.b16 %v136
  %v631 = vunpack.c.l.b16 %v137
  %v632 = vunpack.c.l.b16 %v138
  %v633 = vunpack.c.l.b16 %v139
  %v634 = vunpack.c.l.b16 %v140
  %v635 = vunpack.c.l.b16 %v141
  %v636 = vunpack.c.l.b16 %v142
  %v637 = vunpack.c.l.b16 %v143
  %v638 = vunpack.c.l.b16 %v144
  %v639 = vunpack.c.l.b16 %v145
  %v640 = vunpack.c.l.b16 %v146
  %v641 = vunpack.c.l.b16 %v147
  %v642 = vunpack.c.l.b16 %v148
  %v643 = vunpack.c.l.b16 %v149
  %v644 = vunpack.c.l.b16 %v150
  %v645 = vunpack.c.l.b16 %v151
  %v646 = vunpack.c.l.b16 %v152
  %v647 = vunpack.c.l.b16 %v153
  %v648 = vunpack.c.l.b16 %v154
  %v649 = vunpack.c.l.b16 %v155
  %v650 = vunpack.c.l.b16 %v156
  %v651 = vunpack.c.l.b16 %v157
  %v652 = vunpack.c.l.b16 %v158
  %v653 = vunpack.c.l.b16 %v159
  %v654 = vunpack.c.l.b16 %v160
  %v655 = vunpack.c.l.b16 %v161
  %v656 = vunpack.c.l.b16 %v162
  %v657 = vunpack.c.l.b16 %v163
  %v658 = vunpack.c.l.b16 %v164
  %v659 = vunpack.c.l.b16 %v165
  %v660 = vunpack.c.l.b16 %v166
  %v661 = vunpack.c.l.b16 %v167
  %v662 = vunpack.c.l.b16 %v168
  %v663 = vunpack.c.l.b16 %v169
  %v664 = vunpack.c.l.b16 %v170
  %v665 = vunpack.c.l.b16 %v171
  %v666 = vunpack.c.l.b16 %v172
  %v667 = vunpack.c.l.b16 %v173
  %v668 = vunpack.c.l.b16 %v174
  %v669 = vunpack.c.l.b16 %v175
  %v670 = vunpack.c.l.b16 %v176
  %v671 = vunpack.c.l.b16 %v177
  %v672 = vunpack.c.l.b16 %v178
  %v673 = vunpack.c.l.b16 %v179
  %v674 = vunpack.c.l.b16 %v180
  %v675 = vunpack.c.l.b16 %v181
  %v676 = vunpack.c.l.b16 %v182
  %v677 = vunpack.c.l.b16 %v183
  %v678 = vunpack.c.l.b16 %v184
  %v679 = vunpack.c.l.b16 %v185
  %v680 = vunpack.c.l.b16 %v186
  %v681 = vunpack.c.l.b16 %v187
  %v682 = vunpack.c.l.b16 %v188
  %v683 = vunpack.c.l.b16 %v189
  %v684 = vunpack.c.l.b16 %v190
  %v685 = vunpack.c.l.b16 %v191
  %v686 = vunpack.c.l.b16 %v192
  %v687 = vunpack.c.l.b16 %v193
  %v688 = vunpack.c.l.b16 %v194
  %v689 = vunpack.c.l.b16 %v195
  %v690 = vunpack.c.l.b16 %v196
  %v691 = vunpack.c.l.b16 %v197
  %v692 = vunpack.c.l.b16 %v198
  %v693 = vunpack.c.l.b16 %v199
  %v694 = vunpack.c.l.b16 %v200
  %v695 = vunpack.c.l.b16 %v201
  %v696 = vunpack.c.l.b16 %v202
  %v697 = vunpack.c.l.b16 %v203
  %v698 = vunpack.c.l.b16 %v204
  %v699 = vunpack.c.l.b16 %v205
  %v700 = vunpack.c.l.b16 %v206
  %v701 = vunpack.c.l.b16 %v207
  %v702 = vunpack.c.l.b16 %v208
  %v703 = vunpack.c.l.b16 %v209
  %v704 = vunpack.c.l.b16 %v210
  %v705 = vunpack.c.l.b16 %v211
  %v706 = vunpack.c.l.b16 %v212
  %v707 = vunpack.c.l.b16 %v213
  %v708 = vunpack.c.l.b16 %v214
  %v709 = vunpack.c.l.b16 %v215
  %v710 = vunpack.c.l.b16 %v216
  %v711 = vunpack.c.l.b16 %v217
  %v712 = vunpack.c.l.b16 %v218
  %v713 = vunpack.c.l.b16 %v219
  %v714 = vunpack.c.l.b16 %v220
  %v715 = vunpack.c.l.b16 %v221
  %v716 = vunpack.c.l.b16 %v222
  %v717 = vunpack.c.l.b16 %v223
  %v718 = vunpack.c.l.b16 %v224
  %v719 = vunpack.c.l.b16 %v225
  %v720 = vunpack.c.l.b16 %v226
  %v721 = vunpack.c.l.b16 %v227
  %v722 = vunpack.c.l.b16 %v228
  %v723 = vunpack.c.l.b16 %v229
  %v724 = vunpack.c.l.b16 %v230
  %v725 = vunpack.c.l.b16 %v231
  %v726 = vunpack.c.l.b16 %v232
  %v727 = vunpack.c.l.b16 %v233
  %v728 = vunpack.c.l.b16 %v234
  %v729 = vunpack.c.l.b16 %v235
  %v730 = vunpack.c.l.b16 %v236
  %v731 = vunpack.c.l.b16 %v237
  %v732 = vunpack.c.l.b16 %v238
  %v733 = vunpack.c.l.b16 %v239
  %v734 = vunpack.c.l.b16 %v240
  %v735 = vunpack.c.l.b16 %v241
  %v736 = vpack.c.b16 %v541, %v540
  %v737 = vpack.c.b16 %v543, %v542
  %v738 = vpack.c.b16 %v545, %v544
  %v739 = vpack.c.b16 %v547, %v546
  %v740 = vpack.c.b16 %v549, %v548
  %v741 = vpack.c.b16 %v551, %v550
  %v742 = vpack.c.b16 %v553, %v552
  %v743 = vpack.c.b16 %v555, %v554
  %v744 = vpack.c.b16 %v557, %v556
  %v745 = vpack.c.b16 %v559, %v558
  %v746 = vpack.c.b16 %v561, %v560
  %v747 = vpack.c.b16 %v563, %v562
  %v748 = vpack.c.b16 %v565, %v564
  %v749 = vpack.c.b16 %v567, %v566
  %v750 = vpack.c.b16 %v569, %v568
  %v751 = vpack.c.b16 %v571, %v570
  %v752 = vpack.c.b16 %v573, %v572
  %v753 = vpack.c.b16 %v575, %v574
  %v754 = vpack.c.b16 %v577, %v576
  %v755 = vpack.c.b16 %v579, %v578
  %v756 = vpack.c.b16 %v581, %v580
  %v757 = vpack.c.b16 %v583, %v582
  %v758 = vpack.c.b16 %v585, %v584
  %v759 = vpack.c.b16 %v587, %v586
  %v760 = vpack.c.b16 %v589, %v588
  %v761 = vpack.c.b16 %v591, %v590
  %v762 = vpack.c.b16 %v593, %v592
  %v763 = vpack.c.b16 %v595, %v594
  %v764 = vpack.c.b16 %v597, %v596
  %v765 = vpack.c.b16 %v599, %v598
  %v766 = vpack.c.b16 %v601, %v600
  %v767 = vpack.c.b16 %v603, %v602
  %v768 = vpack.c.b16 %v605, %v604
  %v769 = vpack.c.b16 %v607, %v606
  %v770 = vpack.c.b16 %v609, %v608
  %v771 = vpack.c.b16 %v611, %v610
  %v772 = vpack.c.b16 %v613, %v612
  %v773 = vpack.c.b16 %v615, %v614
  %v774 = vpack.c.b16 %v617, %v616
  %v775 = vpack.c.b16 %v619, %v618
  %v776 = vpack.c.b16 %v621, %v620
  %v777 = vpack.c.b16 %v623, %v622
  %v778 = vpack.c.b16 %v625, %v624
  %v779 = vpack.c.b16 %v627, %v626
  %v780 = vpack.c.b16 %v629, %v628
  %v781 = vpack.c.b16 %v631, %v630
  %v782 = vpack.c.b16 %v633, %v632
  %v783 = vpack.c.b16 %v635, %v634
  %v784 = vpack.c.b16 %v637, %v636
  %v785 = vpack.c.b16 %v639, %v638
  %v786 = vpack.c.b16 %v641, %v640
  %v787 = vpack.c.b16 %v643, %v642
  %v788 = vpack.c.b16 %v645, %v644
  %v789 = vpack.c.b16 %v647, %v646
  %v790 = vpack.c.b16 %v649, %v648
  %v791 = vpack.c.b16 %v651, %v650
  %v792 = vpack.c.b16 %v653, %v652
  %v793 = vpack.c.b16 %v655, %v654
  %v794 = vpack.c.b16 %v657, %v656
  %v795 = vpack.c.b16 %v659, %v658
  %v796 = vpack.c.b16 %v661, %v660
  %v797 = vpack.c.b16 %v663, %v662
  %v798 = vpack.c.b16 %v665, %v664
  %v799 = vpack.c.b16 %v667, %v666
  %v800 = vpack.c.b16 %v669, %v668
  %v801 = vpack.c.b16 %v671, %v670
  %v802 = vpack.c.b16 %v673, %v672
  %v803 = vpack.c.b16 %v675, %v674
  %v804 = vpack.c.b16 %v677, %v676
  %v805 = vpack.c.b16 %v679, %v678
  %v806 = vpack.c.b16 %v681, %v680
  %v807 = vpack.c.b16 %v683, %v682
  %v808 = vpack.c.b16 %v685, %v684
  %v809 = vpack.c.b16 %v687, %v686
  %v810 = vpack.c.b16 %v689, %v688
  %v811 = vpack.c.b16 %v691, %v690
  %v812 = vpack.c.b16 %v693, %v692
  %v813 = vpack.c.b16 %v695, %v694
  %v814 = vpack.c.b16 %v697, %v696
  %v815 = vpack.c.b16 %v699, %v698
  %v816 = vpack.c.b16 %v701, %v700
  %v817 = vpack.c.b16 %v703, %v702
  %v818 = vpack.c.b16 %v705, %v704
  %v819 = vpack.c.b16 %v707, %v706
  %v820 = vpack.c.b16 %v709, %v708
  %v821 = vpack.c.b16 %v711, %v710
  %v822 = vpack.c.b16 %v713, %v712
  %v823 = vpack.c.b16 %v715, %v714
  %v824 = vpack.c.b16 %v717, %v716
  %v825 = vpack.c.b16 %v719, %v718
  %v826 = vpack.c.b16 %v721, %v720
  %v827 = vpack.c.b16 %v723, %v722
  %v828 = vpack.c.b16 %v725, %v724
  %v829 = vpack.c.b16 %v727, %v726
  %v830 = vpack.c.b16 %v729, %v728
  %v831 = vpack.c.b16 %v731, %v730
  %v832 = vpack.c.b16 %v733, %v732
  %v833 = vpack.c.b16 %v735, %v734
  %vm932 = vcmask 261120
  %v934 = vsel %vm932, %v322, 0
  %936 = vmatprep.subr.bf16.mxu0 0
  %937 = vmatpush1.bf16.msra.mxu0 %v736
  %938 = vmatprep.subr.bf16.mxu0 0
  %939 = vmatpush1.bf16.msra.mxu0 %v737
  %940 = vmatprep.subr.bf16.mxu0 0
  %941 = vmatpush1.bf16.msra.mxu0 %v738
  %942 = vmatprep.subr.bf16.mxu0 0
  %943 = vmatpush1.bf16.msra.mxu0 %v739
  %944 = vmatprep.subr.bf16.mxu0 0
  %945 = vmatpush1.bf16.msra.mxu0 %v740
  %946 = vmatprep.subr.bf16.mxu0 0
  %947 = vmatpush1.bf16.msra.mxu0 %v741
  %948 = vmatprep.subr.bf16.mxu0 0
  %949 = vmatpush1.bf16.msra.mxu0 %v742
  %950 = vmatprep.subr.bf16.mxu0 0
  %951 = vmatpush1.bf16.msra.mxu0 %v743
  %952 = vmatprep.subr.bf16.mxu0 0
  %953 = vmatpush1.bf16.msra.mxu0 %v744
  %954 = vmatprep.subr.bf16.mxu0 0
  %955 = vmatpush1.bf16.msra.mxu0 %v745
  %956 = vmatprep.subr.bf16.mxu0 0
  %957 = vmatpush1.bf16.msra.mxu0 %v746
  %958 = vmatprep.subr.bf16.mxu0 0
  %959 = vmatpush1.bf16.msra.mxu0 %v747
  %960 = vmatprep.subr.bf16.mxu0 0
  %961 = vmatpush1.bf16.msra.mxu0 %v748
  %962 = vmatprep.subr.bf16.mxu0 0
  %963 = vmatpush1.bf16.msra.mxu0 %v749
  %964 = vmatprep.subr.bf16.mxu0 0
  %965 = vmatpush1.bf16.msra.mxu0 %v750
  %966 = vmatprep.subr.bf16.mxu0 0
  %967 = vmatpush1.bf16.msra.mxu0 %v751
  %968 = vmatprep.mubr.bf16.mxu0 %v281
  %969 = vmatmul.mubr.bf16.gmra.mrb[0].mxu0 %v267
  %v970 = vpop.f32.mrb[0].mxu0
  %v971 = vadd.f32 0.0, %v970
  %v972 = vpop.f32.mrb[0].mxu0
  %v973 = vpop.f32.mrb[0].mxu0
  %v974 = vpop.f32.mrb[0].mxu0
  %975 = vdwg.mxu0
  %976 = vmatprep.subr.bf16.mxu0 0
  %977 = vmatpush1.bf16.msra.mxu0 %v752
  %978 = vmatprep.subr.bf16.mxu0 0
  %979 = vmatpush1.bf16.msra.mxu0 %v753
  %980 = vmatprep.subr.bf16.mxu0 0
  %981 = vmatpush1.bf16.msra.mxu0 %v754
  %982 = vmatprep.subr.bf16.mxu0 0
  %983 = vmatpush1.bf16.msra.mxu0 %v755
  %984 = vmatprep.subr.bf16.mxu0 0
  %985 = vmatpush1.bf16.msra.mxu0 %v756
  %986 = vmatprep.subr.bf16.mxu0 0
  %987 = vmatpush1.bf16.msra.mxu0 %v757
  %988 = vmatprep.subr.bf16.mxu0 0
  %989 = vmatpush1.bf16.msra.mxu0 %v758
  %990 = vmatprep.subr.bf16.mxu0 0
  %991 = vmatpush1.bf16.msra.mxu0 %v759
  %992 = vmatprep.subr.bf16.mxu0 0
  %993 = vmatpush1.bf16.msra.mxu0 %v760
  %994 = vmatprep.subr.bf16.mxu0 0
  %995 = vmatpush1.bf16.msra.mxu0 %v761
  %996 = vmatprep.subr.bf16.mxu0 0
  %997 = vmatpush1.bf16.msra.mxu0 %v762
  %998 = vmatprep.subr.bf16.mxu0 0
  %999 = vmatpush1.bf16.msra.mxu0 %v763
  %1000 = vmatprep.subr.bf16.mxu0 0
  %1001 = vmatpush1.bf16.msra.mxu0 %v764
  %1002 = vmatprep.subr.bf16.mxu0 0
  %1003 = vmatpush1.bf16.msra.mxu0 %v765
  %1004 = vmatprep.subr.bf16.mxu0 0
  %1005 = vmatpush1.bf16.msra.mxu0 %v766
  %1006 = vmatprep.subr.bf16.mxu0 0
  %1007 = vmatpush1.bf16.msra.mxu0 %v767
  %1008 = vmatprep.mubr.bf16.mxu0 %v291
  %1009 = vmatmul.mubr.bf16.gmra.mrb[0].mxu0 %v289
  %v1010 = vpop.f32.mrb[0].mxu0
  %v1011 = vadd.f32 %v971, %v1010
  %v1012 = vpop.f32.mrb[0].mxu0
  %v1013 = vpop.f32.mrb[0].mxu0
  %v1014 = vpop.f32.mrb[0].mxu0
  %1015 = vdwg.mxu0
  %1016 = vmatprep.subr.bf16.mxu0 0
  %1017 = vmatpush1.bf16.msra.mxu0 %v768
  %1018 = vmatprep.subr.bf16.mxu0 0
  %1019 = vmatpush1.bf16.msra.mxu0 %v769
  %1020 = vmatprep.subr.bf16.mxu0 0
  %1021 = vmatpush1.bf16.msra.mxu0 %v770
  %1022 = vmatprep.subr.bf16.mxu0 0
  %1023 = vmatpush1.bf16.msra.mxu0 %v771
  %1024 = vmatprep.subr.bf16.mxu0 0
  %1025 = vmatpush1.bf16.msra.mxu0 %v772
  %1026 = vmatprep.subr.bf16.mxu0 0
  %1027 = vmatpush1.bf16.msra.mxu0 %v773
  %1028 = vmatprep.subr.bf16.mxu0 0
  %1029 = vmatpush1.bf16.msra.mxu0 %v774
  %1030 = vmatprep.subr.bf16.mxu0 0
  %1031 = vmatpush1.bf16.msra.mxu0 %v775
  %1032 = vmatprep.subr.bf16.mxu0 0
  %1033 = vmatpush1.bf16.msra.mxu0 %v776
  %1034 = vmatprep.subr.bf16.mxu0 0
  %1035 = vmatpush1.bf16.msra.mxu0 %v777
  %1036 = vmatprep.subr.bf16.mxu0 0
  %1037 = vmatpush1.bf16.msra.mxu0 %v778
  %1038 = vmatprep.subr.bf16.mxu0 0
  %1039 = vmatpush1.bf16.msra.mxu0 %v779
  %1040 = vmatprep.subr.bf16.mxu0 0
  %1041 = vmatpush1.bf16.msra.mxu0 %v780
  %1042 = vmatprep.subr.bf16.mxu0 0
  %1043 = vmatpush1.bf16.msra.mxu0 %v781
  %1044 = vmatprep.subr.bf16.mxu0 0
  %1045 = vmatpush1.bf16.msra.mxu0 %v782
  %1046 = vmatprep.subr.bf16.mxu0 0
  %1047 = vmatpush1.bf16.msra.mxu0 %v783
  %1048 = vmatprep.mubr.bf16.mxu0 %v288
  %1049 = vmatmul.mubr.bf16.gmra.mrb[0].mxu0 %v274
  %v1050 = vpop.f32.mrb[0].mxu0
  %v1051 = vadd.f32 %v1011, %v1050
  %v1052 = vpop.f32.mrb[0].mxu0
  %v1053 = vpop.f32.mrb[0].mxu0
  %v1054 = vpop.f32.mrb[0].mxu0
  %1055 = vdwg.mxu0
  %1056 = vmatprep.subr.bf16.mxu0 0
  %1057 = vmatpush1.bf16.msra.mxu0 %v784
  %1058 = vmatprep.subr.bf16.mxu0 0
  %1059 = vmatpush1.bf16.msra.mxu0 %v785
  %1060 = vmatprep.subr.bf16.mxu0 0
  %1061 = vmatpush1.bf16.msra.mxu0 %v786
  %1062 = vmatprep.subr.bf16.mxu0 0
  %1063 = vmatpush1.bf16.msra.mxu0 %v787
  %1064 = vmatprep.subr.bf16.mxu0 0
  %1065 = vmatpush1.bf16.msra.mxu0 %v788
  %1066 = vmatprep.subr.bf16.mxu0 0
  %1067 = vmatpush1.bf16.msra.mxu0 %v789
  %1068 = vmatprep.subr.bf16.mxu0 0
  %1069 = vmatpush1.bf16.msra.mxu0 %v790
  %1070 = vmatprep.subr.bf16.mxu0 0
  %1071 = vmatpush1.bf16.msra.mxu0 %v791
  %1072 = vmatprep.subr.bf16.mxu0 0
  %1073 = vmatpush1.bf16.msra.mxu0 %v792
  %1074 = vmatprep.subr.bf16.mxu0 0
  %1075 = vmatpush1.bf16.msra.mxu0 %v793
  %1076 = vmatprep.subr.bf16.mxu0 0
  %1077 = vmatpush1.bf16.msra.mxu0 %v794
  %1078 = vmatprep.subr.bf16.mxu0 0
  %1079 = vmatpush1.bf16.msra.mxu0 %v795
  %1080 = vmatprep.subr.bf16.mxu0 0
  %1081 = vmatpush1.bf16.msra.mxu0 %v796
  %1082 = vmatprep.subr.bf16.mxu0 0
  %1083 = vmatpush1.bf16.msra.mxu0 %v797
  %1084 = vmatprep.subr.bf16.mxu0 0
  %1085 = vmatpush1.bf16.msra.mxu0 %v798
  %1086 = vmatprep.subr.bf16.mxu0 0
  %1087 = vmatpush1.bf16.msra.mxu0 %v799
  %1088 = vmatprep.mubr.bf16.mxu0 %v292
  %1089 = vmatmul.mubr.bf16.gmra.mrb[0].mxu0 %v290
  %v1090 = vpop.f32.mrb[0].mxu0
  %v1091 = vadd.f32 %v1051, %v1090
  %v1092 = vpop.f32.mrb[0].mxu0
  %v1093 = vpop.f32.mrb[0].mxu0
  %v1094 = vpop.f32.mrb[0].mxu0
  %1095 = vdwg.mxu0
  %1096 = vmatprep.subr.bf16.mxu0 0
  %1097 = vmatpush1.bf16.msra.mxu0 %v800
  %1098 = vmatprep.subr.bf16.mxu0 0
  %1099 = vmatpush1.bf16.msra.mxu0 %v801
  %1100 = vmatprep.subr.bf16.mxu0 0
  %1101 = vmatpush1.bf16.msra.mxu0 %v802
  %1102 = vmatprep.subr.bf16.mxu0 0
  %1103 = vmatpush1.bf16.msra.mxu0 %v803
  %1104 = vmatprep.subr.bf16.mxu0 0
  %1105 = vmatpush1.bf16.msra.mxu0 %v804
  %1106 = vmatprep.subr.bf16.mxu0 0
  %1107 = vmatpush1.bf16.msra.mxu0 %v805
  %1108 = vmatprep.subr.bf16.mxu0 0
  %1109 = vmatpush1.bf16.msra.mxu0 %v806
  %1110 = vmatprep.subr.bf16.mxu0 0
  %1111 = vmatpush1.bf16.msra.mxu0 %v807
  %1112 = vmatprep.subr.bf16.mxu0 0
  %1113 = vmatpush1.bf16.msra.mxu0 %v808
  %1114 = vmatprep.subr.bf16.mxu0 0
  %1115 = vmatpush1.bf16.msra.mxu0 %v809
  %1116 = vmatprep.subr.bf16.mxu0 0
  %1117 = vmatpush1.bf16.msra.mxu0 %v810
  %1118 = vmatprep.subr.bf16.mxu0 0
  %1119 = vmatpush1.bf16.msra.mxu0 %v811
  %1120 = vmatprep.subr.bf16.mxu0 0
  %1121 = vmatpush1.bf16.msra.mxu0 %v812
  %1122 = vmatprep.subr.bf16.mxu0 0
  %1123 = vmatpush1.bf16.msra.mxu0 %v813
  %1124 = vmatprep.subr.bf16.mxu0 0
  %1125 = vmatpush1.bf16.msra.mxu0 %v814
  %1126 = vmatprep.subr.bf16.mxu0 0
  %1127 = vmatpush1.bf16.msra.mxu0 %v815
  %1128 = vmatprep.mubr.bf16.mxu0 %v329
  %1129 = vmatmul.mubr.bf16.gmra.mrb[0].mxu0 %v315
  %v1130 = vpop.f32.mrb[0].mxu0
  %v1131 = vadd.f32 %v1091, %v1130
  %v1132 = vpop.f32.mrb[0].mxu0
  %v1133 = vpop.f32.mrb[0].mxu0
  %v1134 = vpop.f32.mrb[0].mxu0
  %1135 = vdwg.mxu0
  %1136 = vmatprep.subr.bf16.mxu0 0
  %1137 = vmatpush1.bf16.msra.mxu0 %v816
  %1138 = vmatprep.subr.bf16.mxu0 0
  %1139 = vmatpush1.bf16.msra.mxu0 %v817
  %1140 = vmatprep.subr.bf16.mxu0 0
  %1141 = vmatpush1.bf16.msra.mxu0 %v818
  %1142 = vmatprep.subr.bf16.mxu0 0
  %1143 = vmatpush1.bf16.msra.mxu0 %v819
  %1144 = vmatprep.subr.bf16.mxu0 0
  %1145 = vmatpush1.bf16.msra.mxu0 %v820
  %1146 = vmatprep.subr.bf16.mxu0 0
  %1147 = vmatpush1.bf16.msra.mxu0 %v821
  %1148 = vmatprep.subr.bf16.mxu0 0
  %1149 = vmatpush1.bf16.msra.mxu0 %v822
  %1150 = vmatprep.subr.bf16.mxu0 0
  %1151 = vmatpush1.bf16.msra.mxu0 %v823
  %1152 = vmatprep.subr.bf16.mxu0 0
  %1153 = vmatpush1.bf16.msra.mxu0 %v824
  %1154 = vmatprep.subr.bf16.mxu0 0
  %1155 = vmatpush1.bf16.msra.mxu0 %v825
  %1156 = vmatprep.subr.bf16.mxu0 0
  %1157 = vmatpush1.bf16.msra.mxu0 %v826
  %1158 = vmatprep.subr.bf16.mxu0 0
  %1159 = vmatpush1.bf16.msra.mxu0 %v827
  %1160 = vmatprep.subr.bf16.mxu0 0
  %1161 = vmatpush1.bf16.msra.mxu0 %v828
  %1162 = vmatprep.subr.bf16.mxu0 0
  %1163 = vmatpush1.bf16.msra.mxu0 %v829
  %1164 = vmatprep.subr.bf16.mxu0 0
  %1165 = vmatpush1.bf16.msra.mxu0 %v830
  %1166 = vmatprep.subr.bf16.mxu0 0
  %1167 = vmatpush1.bf16.msra.mxu0 %v831
  %1168 = vmatprep.mubr.bf16.mxu0 %v331
  %1169 = vmatmul.mubr.bf16.gmra.mrb[0].mxu0 %v330
  %v1170 = vpop.f32.mrb[0].mxu0
  %v1171 = vadd.f32 %v1131, %v1170
  %v1172 = vpop.f32.mrb[0].mxu0
  %v1173 = vpop.f32.mrb[0].mxu0
  %v1174 = vpop.f32.mrb[0].mxu0
  %1175 = vdwg.mxu0
  %1176 = vmatprep.subr.bf16.mxu0 0
  %1177 = vmatpush1.bf16.msra.mxu0 %v832
  %1178 = vmatprep.subr.bf16.mxu0 0
  %1179 = vmatpush1.bf16.msra.mxu0 %v833
  %1180 = vmatprep.subr.bf16.mxu0 0
  %1181 = vmatpush1.bf16.msra.mxu0 0
  %1182 = vmatprep.subr.bf16.mxu0 0
  %1183 = vmatpush1.bf16.msra.mxu0 0
  %1184 = vmatprep.subr.bf16.mxu0 0
  %1185 = vmatpush1.bf16.msra.mxu0 0
  %1186 = vmatprep.subr.bf16.mxu0 0
  %1187 = vmatpush1.bf16.msra.mxu0 0
  %1188 = vmatprep.subr.bf16.mxu0 0
  %1189 = vmatpush1.bf16.msra.mxu0 0
  %1190 = vmatprep.subr.bf16.mxu0 0
  %1191 = vmatpush1.bf16.msra.mxu0 0
  %1192 = vmatprep.subr.bf16.mxu0 0
  %1193 = vmatpush1.bf16.msra.mxu0 0
  %1194 = vmatprep.subr.bf16.mxu0 0
  %1195 = vmatpush1.bf16.msra.mxu0 0
  %1196 = vmatprep.subr.bf16.mxu0 0
  %1197 = vmatpush1.bf16.msra.mxu0 0
  %1198 = vmatprep.subr.bf16.mxu0 0
  %1199 = vmatpush1.bf16.msra.mxu0 0
  %1200 = vmatprep.subr.bf16.mxu0 0
  %1201 = vmatpush1.bf16.msra.mxu0 0
  %1202 = vmatprep.subr.bf16.mxu0 0
  %1203 = vmatpush1.bf16.msra.mxu0 0
  %1204 = vmatprep.subr.bf16.mxu0 0
  %1205 = vmatpush1.bf16.msra.mxu0 0
  %1206 = vmatprep.subr.bf16.mxu0 0
  %1207 = vmatpush1.bf16.msra.mxu0 0
  %1208 = vmatprep.mubr.bf16.mxu0 0
  %1209 = vmatmul.mubr.bf16.gmra.mrb[0].mxu0 %v934
  %v1210 = vpop.f32.mrb[0].mxu0
  %v1211 = vadd.f32 %v1171, %v1210
  %v1212 = vpop.f32.mrb[0].mxu0
  %v1213 = vpop.f32.mrb[0].mxu0
  %v1214 = vpop.f32.mrb[0].mxu0
  %1215 = vdwg.mxu0
  %v1216 = vpack.c.bf16 %v43, %v43
  %v1217 = vld [vmem:[%s6] sm:$0xf]
  %v1218 = vld [vmem:[%s6 + $0x4] sm:$0xf]
  %v1219 = vld [vmem:[%s6 + $0x8] sm:$0xf]
  %v1220 = vld [vmem:[%s6 + $0xc] sm:$0xf]
  %v1221 = vld [vmem:[%s6 + $0x10] sm:$0xf]
  %v1222 = vld [vmem:[%s6 + $0x14] sm:$0xf]
  %v1223 = vld [vmem:[%s6 + $0x18] sm:$0xf]
  %v1224 = vld [vmem:[%s6 + $0x1c] sm:$0xf]
  %v1225 = vld [vmem:[%s6 + $0x20] sm:$0xf]
  %v1226 = vld [vmem:[%s6 + $0x24] sm:$0xf]
  %v1227 = vld [vmem:[%s6 + $0x28] sm:$0xf]
  %v1228 = vld [vmem:[%s6 + $0x2c] sm:$0xf]
  %v1229 = vld [vmem:[%s6 + $0x30] sm:$0xf]
  %v1230 = vld [vmem:[%s6 + $0x34] sm:$0xf]
  %v1231 = vld [vmem:[%s6 + $0x38] sm:$0xf]
  %v1232 = vld [vmem:[%s6 + $0x3c] sm:$0xf]
  %v1249 = vunpack.c.l.b16 %v1217
  %v1250 = vunpack.c.l.b16 %v1218
  %v1251 = vunpack.c.l.b16 %v1219
  %v1252 = vunpack.c.l.b16 %v1220
  %v1253 = vunpack.c.l.b16 %v1221
  %v1254 = vunpack.c.l.b16 %v1222
  %v1255 = vunpack.c.l.b16 %v1223
  %v1256 = vunpack.c.l.b16 %v1224
  %v1257 = vunpack.c.l.b16 %v1225
  %v1258 = vunpack.c.l.b16 %v1226
  %v1259 = vunpack.c.l.b16 %v1227
  %v1260 = vunpack.c.l.b16 %v1228
  %v1261 = vunpack.c.l.b16 %v1229
  %v1262 = vunpack.c.l.b16 %v1230
  %v1263 = vunpack.c.l.b16 %v1231
  %v1264 = vunpack.c.l.b16 %v1232
  %v1265 = vpack.c.b16 %v1250, %v1249
  %v1266 = vpack.c.b16 %v1252, %v1251
  %v1267 = vpack.c.b16 %v1254, %v1253
  %v1268 = vpack.c.b16 %v1256, %v1255
  %v1269 = vpack.c.b16 %v1258, %v1257
  %v1270 = vpack.c.b16 %v1260, %v1259
  %v1271 = vpack.c.b16 %v1262, %v1261
  %v1272 = vpack.c.b16 %v1264, %v1263
  %1281 = vmatprep.subr.bf16.mxu0 0
  %1282 = vmatpush1.bf16.msra.mxu0 %v1265
  %1283 = vmatprep.subr.bf16.mxu0 0
  %1284 = vmatpush1.bf16.msra.mxu0 %v1266
  %1285 = vmatprep.subr.bf16.mxu0 0
  %1286 = vmatpush1.bf16.msra.mxu0 %v1267
  %1287 = vmatprep.subr.bf16.mxu0 0
  %1288 = vmatpush1.bf16.msra.mxu0 %v1268
  %1289 = vmatprep.subr.bf16.mxu0 0
  %1290 = vmatpush1.bf16.msra.mxu0 %v1269
  %1291 = vmatprep.subr.bf16.mxu0 0
  %1292 = vmatpush1.bf16.msra.mxu0 %v1270
  %1293 = vmatprep.subr.bf16.mxu0 0
  %1294 = vmatpush1.bf16.msra.mxu0 %v1271
  %1295 = vmatprep.subr.bf16.mxu0 0
  %1296 = vmatpush1.bf16.msra.mxu0 %v1272
  %1297 = vmatprep.subr.bf16.mxu0 0
  %1298 = vmatpush1.bf16.msra.mxu0 0
  %1299 = vmatprep.subr.bf16.mxu0 0
  %1300 = vmatpush1.bf16.msra.mxu0 0
  %1301 = vmatprep.subr.bf16.mxu0 0
  %1302 = vmatpush1.bf16.msra.mxu0 0
  %1303 = vmatprep.subr.bf16.mxu0 0
  %1304 = vmatpush1.bf16.msra.mxu0 0
  %1305 = vmatprep.subr.bf16.mxu0 0
  %1306 = vmatpush1.bf16.msra.mxu0 0
  %1307 = vmatprep.subr.bf16.mxu0 0
  %1308 = vmatpush1.bf16.msra.mxu0 0
  %1309 = vmatprep.subr.bf16.mxu0 0
  %1310 = vmatpush1.bf16.msra.mxu0 0
  %1311 = vmatprep.subr.bf16.mxu0 0
  %1312 = vmatpush1.bf16.msra.mxu0 0
  %1313 = vmatprep.mubr.bf16.mxu0 0
  %1314 = vmatmul.mubr.bf16.gmra.mrb[0].mxu0 %v1216
  %v1315 = vpop.f32.mrb[0].mxu0
  %v1316 = vadd.f32 0.0, %v1315
  %v1317 = vpop.f32.mrb[0].mxu0
  %v1318 = vpop.f32.mrb[0].mxu0
  %v1319 = vpop.f32.mrb[0].mxu0
  %1320 = vdwg.mxu0
  %v1321 = vld [vmem:[%s1] sm:$0x3]
  %v1322 = vsub.f32 1.0, %v43
  %v1323 = vmul.f32 %v1321, %v1322
  %v1324 = vadd.f32 %v1323, %v1211
  %v1325 = vadd.f32 %v1324, %v1316
  %v1326 = vld [vmem:[%s7] sm:$0x1]
  %v1328 = vlaneseq
  %v1329 = vshrl.u32 %v1328, 7
  %v1330 = vsub.s32 0, %v1329
  %v1331 = vrot.slane %v1326, %v1330
  %v1333 = vadd.f32 %v1325, %v1331
  %vm1334 = vcmp.ge.f32.partialorder %v1333, 1.0
  %v1335 = vsel %vm1334, 1, 0
  %v1336 = vcvt.s32.f32 %v1335
  %1337 = vst [vmem:[%s11] sm:$0x3] %v1333
  %1338 = vst [vmem:[%s12] sm:$0x3] %v1336
  %v1339 = vld [vmem:[%s4] sm:$0x3]
  %v1340 = vpack.c.bf16 %v1336, %v1336
  %v1341 = vld [vmem:[%s8] sm:$0xf]
  %v1342 = vld [vmem:[%s8 + $0x4] sm:$0xf]
  %v1343 = vld [vmem:[%s8 + $0x8] sm:$0xf]
  %v1344 = vld [vmem:[%s8 + $0xc] sm:$0xf]
  %v1345 = vld [vmem:[%s8 + $0x10] sm:$0xf]
  %v1346 = vld [vmem:[%s8 + $0x14] sm:$0xf]
  %v1347 = vld [vmem:[%s8 + $0x18] sm:$0xf]
  %v1348 = vld [vmem:[%s8 + $0x1c] sm:$0xf]
  %v1349 = vld [vmem:[%s8 + $0x20] sm:$0xf]
  %v1350 = vld [vmem:[%s8 + $0x24] sm:$0xf]
  %v1351 = vld [vmem:[%s8 + $0x28] sm:$0xf]
  %v1352 = vld [vmem:[%s8 + $0x2c] sm:$0xf]
  %v1353 = vld [vmem:[%s8 + $0x30] sm:$0xf]
  %v1354 = vld [vmem:[%s8 + $0x34] sm:$0xf]
  %v1355 = vld [vmem:[%s8 + $0x38] sm:$0xf]
  %v1356 = vld [vmem:[%s8 + $0x3c] sm:$0xf]
  %v1373 = vunpack.c.l.b16 %v1341
  %v1374 = vunpack.c.l.b16 %v1342
  %v1375 = vunpack.c.l.b16 %v1343
  %v1376 = vunpack.c.l.b16 %v1344
  %v1377 = vunpack.c.l.b16 %v1345
  %v1378 = vunpack.c.l.b16 %v1346
  %v1379 = vunpack.c.l.b16 %v1347
  %v1380 = vunpack.c.l.b16 %v1348
  %v1381 = vunpack.c.l.b16 %v1349
  %v1382 = vunpack.c.l.b16 %v1350
  %v1383 = vunpack.c.l.b16 %v1351
  %v1384 = vunpack.c.l.b16 %v1352
  %v1385 = vunpack.c.l.b16 %v1353
  %v1386 = vunpack.c.l.b16 %v1354
  %v1387 = vunpack.c.l.b16 %v1355
  %v1388 = vunpack.c.l.b16 %v1356
  %v1389 = vpack.c.b16 %v1374, %v1373
  %v1390 = vpack.c.b16 %v1376, %v1375
  %v1391 = vpack.c.b16 %v1378, %v1377
  %v1392 = vpack.c.b16 %v1380, %v1379
  %v1393 = vpack.c.b16 %v1382, %v1381
  %v1394 = vpack.c.b16 %v1384, %v1383
  %v1395 = vpack.c.b16 %v1386, %v1385
  %v1396 = vpack.c.b16 %v1388, %v1387
  %1405 = vmatprep.subr.bf16.mxu0 0
  %1406 = vmatpush1.bf16.msra.mxu0 %v1389
  %1407 = vmatprep.subr.bf16.mxu0 0
  %1408 = vmatpush1.bf16.msra.mxu0 %v1390
  %1409 = vmatprep.subr.bf16.mxu0 0
  %1410 = vmatpush1.bf16.msra.mxu0 %v1391
  %1411 = vmatprep.subr.bf16.mxu0 0
  %1412 = vmatpush1.bf16.msra.mxu0 %v1392
  %1413 = vmatprep.subr.bf16.mxu0 0
  %1414 = vmatpush1.bf16.msra.mxu0 %v1393
  %1415 = vmatprep.subr.bf16.mxu0 0
  %1416 = vmatpush1.bf16.msra.mxu0 %v1394
  %1417 = vmatprep.subr.bf16.mxu0 0
  %1418 = vmatpush1.bf16.msra.mxu0 %v1395
  %1419 = vmatprep.subr.bf16.mxu0 0
  %1420 = vmatpush1.bf16.msra.mxu0 %v1396
  %1421 = vmatprep.subr.bf16.mxu0 0
  %1422 = vmatpush1.bf16.msra.mxu0 0
  %1423 = vmatprep.subr.bf16.mxu0 0
  %1424 = vmatpush1.bf16.msra.mxu0 0
  %1425 = vmatprep.subr.bf16.mxu0 0
  %1426 = vmatpush1.bf16.msra.mxu0 0
  %1427 = vmatprep.subr.bf16.mxu0 0
  %1428 = vmatpush1.bf16.msra.mxu0 0
  %1429 = vmatprep.subr.bf16.mxu0 0
  %1430 = vmatpush1.bf16.msra.mxu0 0
  %1431 = vmatprep.subr.bf16.mxu0 0
  %1432 = vmatpush1.bf16.msra.mxu0 0
  %1433 = vmatprep.subr.bf16.mxu0 0
  %1434 = vmatpush1.bf16.msra.mxu0 0
  %1435 = vmatprep.subr.bf16.mxu0 0
  %1436 = vmatpush1.bf16.msra.mxu0 0
  %1437 = vmatprep.mubr.bf16.mxu0 0
  %1438 = vmatmul.mubr.bf16.gmra.mrb[0].mxu0 %v1340
  %v1439 = vpop.f32.mrb[0].mxu0
  %v1440 = vadd.f32 0.0, %v1439
  %v1441 = vpop.f32.mrb[0].mxu0
  %v1442 = vpop.f32.mrb[0].mxu0
  %v1443 = vpop.f32.mrb[0].mxu0
  %1444 = vdwg.mxu0
  %v1445 = vpack.c.bf16 %v1339, %v1339
  %v1446 = vld [vmem:[%s9] sm:$0xf]
  %v1447 = vld [vmem:[%s9 + $0x4] sm:$0xf]
  %v1448 = vld [vmem:[%s9 + $0x8] sm:$0xf]
  %v1449 = vld [vmem:[%s9 + $0xc] sm:$0xf]
  %v1450 = vld [vmem:[%s9 + $0x10] sm:$0xf]
  %v1451 = vld [vmem:[%s9 + $0x14] sm:$0xf]
  %v1452 = vld [vmem:[%s9 + $0x18] sm:$0xf]
  %v1453 = vld [vmem:[%s9 + $0x1c] sm:$0xf]
  %v1454 = vld [vmem:[%s9 + $0x20] sm:$0xf]
  %v1455 = vld [vmem:[%s9 + $0x24] sm:$0xf]
  %v1456 = vld [vmem:[%s9 + $0x28] sm:$0xf]
  %v1457 = vld [vmem:[%s9 + $0x2c] sm:$0xf]
  %v1458 = vld [vmem:[%s9 + $0x30] sm:$0xf]
  %v1459 = vld [vmem:[%s9 + $0x34] sm:$0xf]
  %v1460 = vld [vmem:[%s9 + $0x38] sm:$0xf]
  %v1461 = vld [vmem:[%s9 + $0x3c] sm:$0xf]
  %v1478 = vunpack.c.l.b16 %v1446
  %v1479 = vunpack.c.l.b16 %v1447
  %v1480 = vunpack.c.l.b16 %v1448
  %v1481 = vunpack.c.l.b16 %v1449
  %v1482 = vunpack.c.l.b16 %v1450
  %v1483 = vunpack.c.l.b16 %v1451
  %v1484 = vunpack.c.l.b16 %v1452
  %v1485 = vunpack.c.l.b16 %v1453
  %v1486 = vunpack.c.l.b16 %v1454
  %v1487 = vunpack.c.l.b16 %v1455
  %v1488 = vunpack.c.l.b16 %v1456
  %v1489 = vunpack.c.l.b16 %v1457
  %v1490 = vunpack.c.l.b16 %v1458
  %v1491 = vunpack.c.l.b16 %v1459
  %v1492 = vunpack.c.l.b16 %v1460
  %v1493 = vunpack.c.l.b16 %v1461
  %v1494 = vpack.c.b16 %v1479, %v1478
  %v1495 = vpack.c.b16 %v1481, %v1480
  %v1496 = vpack.c.b16 %v1483, %v1482
  %v1497 = vpack.c.b16 %v1485, %v1484
  %v1498 = vpack.c.b16 %v1487, %v1486
  %v1499 = vpack.c.b16 %v1489, %v1488
  %v1500 = vpack.c.b16 %v1491, %v1490
  %v1501 = vpack.c.b16 %v1493, %v1492
  %1510 = vmatprep.subr.bf16.mxu0 0
  %1511 = vmatpush1.bf16.msra.mxu0 %v1494
  %1512 = vmatprep.subr.bf16.mxu0 0
  %1513 = vmatpush1.bf16.msra.mxu0 %v1495
  %1514 = vmatprep.subr.bf16.mxu0 0
  %1515 = vmatpush1.bf16.msra.mxu0 %v1496
  %1516 = vmatprep.subr.bf16.mxu0 0
  %1517 = vmatpush1.bf16.msra.mxu0 %v1497
  %1518 = vmatprep.subr.bf16.mxu0 0
  %1519 = vmatpush1.bf16.msra.mxu0 %v1498
  %1520 = vmatprep.subr.bf16.mxu0 0
  %1521 = vmatpush1.bf16.msra.mxu0 %v1499
  %1522 = vmatprep.subr.bf16.mxu0 0
  %1523 = vmatpush1.bf16.msra.mxu0 %v1500
  %1524 = vmatprep.subr.bf16.mxu0 0
  %1525 = vmatpush1.bf16.msra.mxu0 %v1501
  %1526 = vmatprep.subr.bf16.mxu0 0
  %1527 = vmatpush1.bf16.msra.mxu0 0
  %1528 = vmatprep.subr.bf16.mxu0 0
  %1529 = vmatpush1.bf16.msra.mxu0 0
  %1530 = vmatprep.subr.bf16.mxu0 0
  %1531 = vmatpush1.bf16.msra.mxu0 0
  %1532 = vmatprep.subr.bf16.mxu0 0
  %1533 = vmatpush1.bf16.msra.mxu0 0
  %1534 = vmatprep.subr.bf16.mxu0 0
  %1535 = vmatpush1.bf16.msra.mxu0 0
  %1536 = vmatprep.subr.bf16.mxu0 0
  %1537 = vmatpush1.bf16.msra.mxu0 0
  %1538 = vmatprep.subr.bf16.mxu0 0
  %1539 = vmatpush1.bf16.msra.mxu0 0
  %1540 = vmatprep.subr.bf16.mxu0 0
  %1541 = vmatpush1.bf16.msra.mxu0 0
  %1542 = vmatprep.mubr.bf16.mxu0 0
  %1543 = vmatmul.mubr.bf16.gmra.mrb[0].mxu0 %v1445
  %v1544 = vpop.f32.mrb[0].mxu0
  %v1545 = vadd.f32 0.0, %v1544
  %v1546 = vpop.f32.mrb[0].mxu0
  %v1547 = vpop.f32.mrb[0].mxu0
  %v1548 = vpop.f32.mrb[0].mxu0
  %1549 = vdwg.mxu0
  %v1550 = vld [vmem:[%s3] sm:$0x3]
  %v1551 = vsub.f32 1.0, %v1339
  %v1552 = vmul.f32 %v1550, %v1551
  %v1553 = vadd.f32 %v1552, %v1440
  %v1554 = vadd.f32 %v1553, %v1545
  %v1555 = vld [vmem:[%s10] sm:$0x1]
  %v1557 = vlaneseq
  %v1558 = vshrl.u32 %v1557, 7
  %v1559 = vsub.s32 0, %v1558
  %v1560 = vrot.slane %v1555, %v1559
  %v1562 = vadd.f32 %v1554, %v1560
  %1563 = vst [vmem:[%s13] sm:$0x3] %v1562
  %vm1564 = vcmp.ge.f32.partialorder %v1562, 1.0
  %v1565 = vsel %vm1564, 1, 0
  %v1566 = vcvt.s32.f32 %v1565
  %1567 = vst [vmem:[%s14] sm:$0x3] %v1566
  // Predicated region
  $region46: #{scnn_forward.16} parent=0 // pred_check
    _
  $region47: #{scnn_forward.16} parent=0 // pred_check_branch
    %1569 = sbr.rel (0) target = $region49
  $region48: #{scnn_forward.16} parent=0 // pred_region
    _
  $region49: #{scnn_forward.16} parent=0 // pred_fallthru
    _
  // Predicated region
  $region50: #{scnn_forward.16} parent=0 // pred_check
    _
  $region51: #{scnn_forward.16} parent=0 // pred_check_branch
    %1571 = sbr.rel (0) target = $region53
  $region52: #{scnn_forward.16} parent=0 // pred_region
    _
  $region53: #{scnn_forward.16} parent=0 // pred_fallthru
    _
  // Predicated region
  $region54: #{scnn_forward.16} parent=0 // pred_check
    _
  $region55: #{scnn_forward.16} parent=0 // pred_check_branch
    %1573 = sbr.rel (0) target = $region57
  $region56: #{scnn_forward.16} parent=0 // pred_region
    _
  $region57: #{scnn_forward.16} parent=0 // pred_fallthru
    _
  // Predicated region
  $region58: #{scnn_forward.16} parent=0 // pred_check
    _
  $region59: #{scnn_forward.16} parent=0 // pred_check_branch
    %1575 = sbr.rel (0) target = $region61
  $region60: #{scnn_forward.16} parent=0 // pred_region
    _
  $region61: #{scnn_forward.16} parent=0 // pred_fallthru
    _
  // Predicated region
  $region62: #{scnn_forward.16} parent=0 // pred_check
    _
  $region63: #{scnn_forward.16} parent=0 // pred_check_branch
    %1577 = sbr.rel (0) target = $region65
  $region64: #{scnn_forward.16} parent=0 // pred_region
    _
  $region65: #{scnn_forward.16} parent=0 // pred_fallthru
    _
  // Predicated region
  $region66: #{scnn_forward.16} parent=0 // pred_check
    _
  $region67: #{scnn_forward.16} parent=0 // pred_check_branch
    %1579 = sbr.rel (0) target = $region69
  $region68: #{scnn_forward.16} parent=0 // pred_region
    _
  $region69: #{scnn_forward.16} parent=0 // pred_fallthru
    _
  // Predicated region
  $region70: #{scnn_forward.16} parent=0 // pred_check
    _
  $region71: #{scnn_forward.16} parent=0 // pred_check_branch
    %1581 = sbr.rel (0) target = $region73
  $region72: #{scnn_forward.16} parent=0 // pred_region
    _
  $region73: #{scnn_forward.16} parent=0 // pred_fallthru
    _
  // Predicated region
  $region74: #{scnn_forward.16} parent=0 // pred_check
    _
  $region75: #{scnn_forward.16} parent=0 // pred_check_branch
    %1583 = sbr.rel (0) target = $region77
  $region76: #{scnn_forward.16} parent=0 // pred_region
    _
  $region77: #{scnn_forward.16} parent=0 // pred_fallthru
    _

</llo_original>
